<compile_context>
chip_gen: v7x
topology: tpu7x:2x2x1
jax: 0.10.0
libtpu: 0.0.40
codegen_flags: <defaults>
</compile_context>

<pallas_src>
import jax
import jax.numpy as jnp
from jax.experimental import pallas as pl
from jax.experimental.pallas import tpu as pltpu


# ----------------------------------------------------------------------------
# Fused forward kernel.
#   x_ref  : (B, H, W, Cin)       NHWC activations
#   w1_ref : (9*Cin, C1)          conv1 weight, rows ordered (dy, dx, cin)
#   w2_ref : (9*C1, C2)           conv2 weight
#   fw1    : (H/4*W/4*C2, 256)    fc1 weight, rows pre-permuted to NHWC flatten order
#   fw2    : (256, 128), fw3: (128, ncls); biases are (1, n)
#   o_ref  : (B, ncls)            softmax probabilities
# Scratch (all VMEM): padded inputs, im2col matrices, pooled conv2 output, feature.
# ----------------------------------------------------------------------------
def _fused_forward_kernel(x_ref, w1_ref, b1_ref, w2_ref, b2_ref,
                          fw1_ref, fb1_ref, fw2_ref, fb2_ref, fw3_ref, fb3_ref,
                          o_ref,
                          xp1, col1, xp2, col2, p2s, feat):
    B, H, W, Cin = x_ref.shape
    C1 = w1_ref.shape[1]
    C2 = w2_ref.shape[1]
    H2, W2 = H // 2, W // 2
    H4, W4 = H2 // 2, W2 // 2
    taps = [(dy, dx) for dy in range(3) for dx in range(3)]

    # ---------------- conv block 1: 3x3 conv (pad=1) + bias + ReLU + 2x2 max-pool
    # in-kernel zero padding into VMEM scratch
    xp1[...] = jnp.zeros(xp1.shape, xp1.dtype)
    xp1[:, 1:H + 1, 1:W + 1, :] = x_ref[...]

    # im2col: 9 shifted taps written side by side -> (B*H*W, 9*Cin)
    for t, (dy, dx) in enumerate(taps):
        col1[:, t * Cin:(t + 1) * Cin] = (
            xp1[:, dy:dy + H, dx:dx + W, :].reshape(B * H * W, Cin))

    a1 = jnp.dot(col1[...], w1_ref[...], preferred_element_type=jnp.float32)
    a1 = jnp.maximum(a1 + b1_ref[...], 0.0)                # (B*H*W, C1)
    # fused 2x2 max-pool: rows are (b, h, w) ordered -> regroup and reduce
    a1 = a1.reshape(B * H2, 2, W2, 2, C1)
    p1 = jnp.max(jnp.max(a1, axis=3), axis=1)              # (B*H2, W2, C1)
    p1 = p1.reshape(B, H2, W2, C1)

    # ---------------- conv block 2
    xp2[...] = jnp.zeros(xp2.shape, xp2.dtype)
    xp2[:, 1:H2 + 1, 1:W2 + 1, :] = p1

    for t, (dy, dx) in enumerate(taps):
        col2[:, t * C1:(t + 1) * C1] = (
            xp2[:, dy:dy + H2, dx:dx + W2, :].reshape(B * H2 * W2, C1))

    a2 = jnp.dot(col2[...], w2_ref[...], preferred_element_type=jnp.float32)
    a2 = jnp.maximum(a2 + b2_ref[...], 0.0)                # (B*H2*W2, C2)
    a2 = a2.reshape(B * H4, 2, W4, 2, C2)
    p2 = jnp.max(jnp.max(a2, axis=3), axis=1)              # (B*H4, W4, C2)
    p2s[...] = p2.reshape(B, H4, W4, C2)

    # ---------------- flatten in NHWC order (fc1 rows were permuted to match)
    for h in range(H4):
        for w in range(W4):
            k = (h * W4 + w) * C2
            feat[:, k:k + C2] = p2s[:, h, w, :]

    # ---------------- MLP head: Linear->ReLU -> Linear->ReLU -> Linear -> Softmax
    h1 = jnp.maximum(
        jnp.dot(feat[...], fw1_ref[...], preferred_element_type=jnp.float32)
        + fb1_ref[...], 0.0)
    h2 = jnp.maximum(
        jnp.dot(h1, fw2_ref[...], preferred_element_type=jnp.float32)
        + fb2_ref[...], 0.0)
    logits = (jnp.dot(h2, fw3_ref[...], preferred_element_type=jnp.float32)
              + fb3_ref[...])
    z = logits - jnp.max(logits, axis=1, keepdims=True)    # softmax(dim=1)
    e = jnp.exp(z)
    o_ref[...] = (e / jnp.sum(e, axis=1, keepdims=True)).astype(o_ref.dtype)


# ----------------------------------------------------------------------------
# One-time parameter preparation (outside jit): PyTorch layouts -> kernel layouts.
# ----------------------------------------------------------------------------
def prepare_params(torch_params, x_size, y_size):
    (cw1, cb1, cw2, cb2, lw1, lb1, lw2, lb2, lw3, lb3) = torch_params
    cin = cw1.shape[1]
    c1 = cw1.shape[0]
    c2 = cw2.shape[0]
    h4, w4 = x_size // 4, y_size // 4
    nh1 = lw1.shape[0]

    # conv weights: OIHW -> HWIO -> (9*Cin, Cout), row order = (dy, dx, cin)
    w1m = jnp.transpose(cw1, (2, 3, 1, 0)).reshape(9 * cin, c1)
    w2m = jnp.transpose(cw2, (2, 3, 1, 0)).reshape(9 * c1, c2)

    # fc1: PyTorch flatten index is c*H4*W4 + h*W4 + w; our feature index is
    # (h*W4 + w)*C2 + c.  Permute rows once so the kernel consumes NHWC directly.
    fw1 = (lw1.T.reshape(c2, h4, w4, nh1)
               .transpose(1, 2, 0, 3)
               .reshape(h4 * w4 * c2, nh1))
    fw2 = lw2.T
    fw3 = lw3.T

    return (w1m, cb1.reshape(1, -1), w2m, cb2.reshape(1, -1),
            fw1, lb1.reshape(1, -1), fw2, lb2.reshape(1, -1),
            fw3, lb3.reshape(1, -1))


# ----------------------------------------------------------------------------
# Forward pass: a single NCHW->NHWC transpose plus ONE pallas_call.
# ----------------------------------------------------------------------------
def forward(x_nchw, prepared):
    (w1m, b1, w2m, b2, fw1, fb1, fw2, fb2, fw3, fb3) = prepared
    B, Cin, H, W = x_nchw.shape
    C1 = w1m.shape[1]
    C2 = w2m.shape[1]
    H2, W2, H4, W4 = H // 2, W // 2, H // 4, W // 4
    ncls = fw3.shape[1]

    x = jnp.transpose(x_nchw, (0, 2, 3, 1))   # NCHW -> NHWC (only per-call glue op)

    return pl.pallas_call(
        _fused_forward_kernel,
        out_shape=jax.ShapeDtypeStruct((B, ncls), jnp.float32),
        scratch_shapes=[
            pltpu.VMEM((B, H + 2, W + 2, Cin), jnp.float32),     # padded input 1
            pltpu.VMEM((B * H * W, 9 * Cin), jnp.float32),       # im2col 1
            pltpu.VMEM((B, H2 + 2, W2 + 2, C1), jnp.float32),    # padded input 2
            pltpu.VMEM((B * H2 * W2, 9 * C1), jnp.float32),      # im2col 2
            pltpu.VMEM((B, H4, W4, C2), jnp.float32),            # pooled conv2 out
            pltpu.VMEM((B, H4 * W4 * C2), jnp.float32),          # flattened feature
        ],
        compiler_params=pltpu.CompilerParams(
            vmem_limit_bytes=32 * 1024 * 1024),
    )(x, w1m, b1, w2m, b2, fw1, fb1, fw2, fb2, fw3, fb3)


# ----------------------------------------------------------------------------
# Pure-JAX reference (mirrors the PyTorch module in eval mode) for validation.
# ----------------------------------------------------------------------------
def reference_forward(x, torch_params):
    (cw1, cb1, cw2, cb2, lw1, lb1, lw2, lb2, lw3, lb3) = torch_params

    def conv_block(h, w, b):
        y = jax.lax.conv_general_dilated(
            h, w, window_strides=(1, 1), padding=((1, 1), (1, 1)),
            dimension_numbers=("NCHW", "OIHW", "NCHW"))
        y = jnp.maximum(y + b[None, :, None, None], 0.0)
        return jax.lax.reduce_window(
            y, -jnp.inf, jax.lax.max,
            window_dimensions=(1, 1, 2, 2), window_strides=(1, 1, 2, 2),
            padding="VALID")

    y = conv_block(x, cw1, cb1)
    y = conv_block(y, cw2, cb2)
    f = y.reshape(y.shape[0], -1)                    # PyTorch (C,H,W) flatten order
    h1 = jnp.maximum(f @ lw1.T + lb1, 0.0)
    h2 = jnp.maximum(h1 @ lw2.T + lb2, 0.0)
    return jax.nn.softmax(h2 @ lw3.T + lb3, axis=1)


if __name__ == "__main__":
    # Small shapes consistent with the module: batch=2, channels=4, 16x16, 10 classes
    B, Cin, Hx, Wx, NCLS = 2, 4, 16, 16, 10
    FLAT = 32 * (Hx // 4) * (Wx // 4)     # 32*4*4 = 512 after two conv+pool blocks

    key = jax.random.PRNGKey(0)
    ks = jax.random.split(key, 11)
    x = jax.random.normal(ks[0], (B, Cin, Hx, Wx), jnp.float32)   # NCHW like PyTorch

    torch_params = (
        jax.random.normal(ks[1], (16, Cin, 3, 3), jnp.float32) * 0.1,   # conv1 w (OIHW)
        jax.random.normal(ks[2], (16,), jnp.float32) * 0.1,             # conv1 b
        jax.random.normal(ks[3], (32, 16, 3, 3), jnp.float32) * 0.1,    # conv2 w
        jax.random.normal(ks[4], (32,), jnp.float32) * 0.1,             # conv2 b
        jax.random.normal(ks[5], (256, FLAT), jnp.float32) * 0.1,       # fc1 w (out,in)
        jax.random.normal(ks[6], (256,), jnp.float32) * 0.1,            # fc1 b
        jax.random.normal(ks[7], (128, 256), jnp.float32) * 0.1,        # fc2 w
        jax.random.normal(ks[8], (128,), jnp.float32) * 0.1,            # fc2 b
        jax.random.normal(ks[9], (NCLS, 128), jnp.float32) * 0.1,       # fc3 w
        jax.random.normal(ks[10], (NCLS,), jnp.float32) * 0.1,          # fc3 b
    )

    # one-time parameter layout prep (outside jit, per the perf review)
    prepared = prepare_params(torch_params, Hx, Wx)

    out = jax.jit(forward)(x, prepared)
    out = jax.block_until_ready(out)

    assert out.shape == (B, NCLS), out.shape
    assert bool(jnp.all(jnp.isfinite(out)))
    # softmax rows sum to 1
    assert bool(jnp.all(jnp.abs(jnp.sum(out, axis=1) - 1.0) < 1e-4))

    # validate against the pure-JAX reference of the PyTorch module (eval mode)
    ref = jax.block_until_ready(jax.jit(reference_forward)(x, torch_params))
    max_diff = float(jnp.max(jnp.abs(out - ref)))
    assert max_diff < 3e-2, f"mismatch vs reference: max |diff| = {max_diff}"

    print("KERNEL_OK")
</pallas_src>

<mosaic_0001>
module attributes {stable_mosaic.version = 11 : i64} {
  func.func @_fused_forward_kernel(%arg0: memref<2x16x16x4xf32, #tpu.memory_space<vmem>>, %arg1: memref<36x16xf32, #tpu.memory_space<vmem>>, %arg2: memref<1x16xf32, #tpu.memory_space<vmem>>, %arg3: memref<144x32xf32, #tpu.memory_space<vmem>>, %arg4: memref<1x32xf32, #tpu.memory_space<vmem>>, %arg5: memref<512x256xf32, #tpu.memory_space<vmem>>, %arg6: memref<1x256xf32, #tpu.memory_space<vmem>>, %arg7: memref<256x128xf32, #tpu.memory_space<vmem>>, %arg8: memref<1x128xf32, #tpu.memory_space<vmem>>, %arg9: memref<128x10xf32, #tpu.memory_space<vmem>>, %arg10: memref<1x10xf32, #tpu.memory_space<vmem>>, %arg11: memref<2x10xf32, #tpu.memory_space<vmem>>, %arg12: memref<2x18x18x4xf32, #tpu.memory_space<vmem>>, %arg13: memref<512x36xf32, #tpu.memory_space<vmem>>, %arg14: memref<2x10x10x16xf32, #tpu.memory_space<vmem>>, %arg15: memref<128x144xf32, #tpu.memory_space<vmem>>, %arg16: memref<2x4x4x32xf32, #tpu.memory_space<vmem>>, %arg17: memref<2x512xf32, #tpu.memory_space<vmem>>) attributes {dimension_semantics = [], scalar_prefetch = 0 : i64, scratch_operands = 6 : i64, tpu.core_type = #tpu.core_type<tc>} {
    %cst = arith.constant 0.000000e+00 : f32
    %0 = vector.broadcast %cst : f32 to vector<2x18x18x4xf32>
    %c0 = arith.constant 0 : index
    %c0_0 = arith.constant 0 : index
    %c0_1 = arith.constant 0 : index
    %c0_2 = arith.constant 0 : index
    %1 = vector.load %arg12[%c0, %c0_0, %c0_1, %c0_2] : memref<2x18x18x4xf32, #tpu.memory_space<vmem>>, vector<2x18x18x4xf32>
    tpu.vector_store %arg12[%c0, %c0_0, %c0_1, %c0_2], %0 {strides = array<i32>} : memref<2x18x18x4xf32, #tpu.memory_space<vmem>>, vector<2x18x18x4xf32>,
    %c0_3 = arith.constant 0 : index
    %c0_4 = arith.constant 0 : index
    %c0_5 = arith.constant 0 : index
    %c0_6 = arith.constant 0 : index
    %2 = vector.load %arg0[%c0_3, %c0_4, %c0_5, %c0_6] : memref<2x16x16x4xf32, #tpu.memory_space<vmem>>, vector<2x16x16x4xf32>
    %c0_7 = arith.constant 0 : index
    %c1 = arith.constant 1 : index
    %c1_8 = arith.constant 1 : index
    %c0_9 = arith.constant 0 : index
    %3 = vector.load %arg12[%c0_7, %c1, %c1_8, %c0_9] : memref<2x18x18x4xf32, #tpu.memory_space<vmem>>, vector<2x16x16x4xf32>
    tpu.vector_store %arg12[%c0_7, %c1, %c1_8, %c0_9], %2 {strides = array<i32>} : memref<2x18x18x4xf32, #tpu.memory_space<vmem>>, vector<2x16x16x4xf32>,
    %c0_10 = arith.constant 0 : index
    %c0_11 = arith.constant 0 : index
    %c0_12 = arith.constant 0 : index
    %c0_13 = arith.constant 0 : index
    %4 = vector.load %arg12[%c0_10, %c0_11, %c0_12, %c0_13] : memref<2x18x18x4xf32, #tpu.memory_space<vmem>>, vector<2x16x16x4xf32>
    %5 = vector.shape_cast %4 : vector<2x16x16x4xf32> to vector<512x4xf32>
    %c0_14 = arith.constant 0 : index
    %c0_15 = arith.constant 0 : index
    %6 = vector.load %arg13[%c0_14, %c0_15] : memref<512x36xf32, #tpu.memory_space<vmem>>, vector<512x4xf32>
    tpu.vector_store %arg13[%c0_14, %c0_15], %5 {strides = array<i32>} : memref<512x36xf32, #tpu.memory_space<vmem>>, vector<512x4xf32>,
    %c0_16 = arith.constant 0 : index
    %c0_17 = arith.constant 0 : index
    %c1_18 = arith.constant 1 : index
    %c0_19 = arith.constant 0 : index
    %7 = vector.load %arg12[%c0_16, %c0_17, %c1_18, %c0_19] : memref<2x18x18x4xf32, #tpu.memory_space<vmem>>, vector<2x16x16x4xf32>
    %8 = vector.shape_cast %7 : vector<2x16x16x4xf32> to vector<512x4xf32>
    %c0_20 = arith.constant 0 : index
    %c4 = arith.constant 4 : index
    %9 = vector.load %arg13[%c0_20, %c4] : memref<512x36xf32, #tpu.memory_space<vmem>>, vector<512x4xf32>
    tpu.vector_store %arg13[%c0_20, %c4], %8 {strides = array<i32>} : memref<512x36xf32, #tpu.memory_space<vmem>>, vector<512x4xf32>,
    %c0_21 = arith.constant 0 : index
    %c0_22 = arith.constant 0 : index
    %c2 = arith.constant 2 : index
    %c0_23 = arith.constant 0 : index
    %10 = vector.load %arg12[%c0_21, %c0_22, %c2, %c0_23] : memref<2x18x18x4xf32, #tpu.memory_space<vmem>>, vector<2x16x16x4xf32>
    %11 = vector.shape_cast %10 : vector<2x16x16x4xf32> to vector<512x4xf32>
    %c0_24 = arith.constant 0 : index
    %c8 = arith.constant 8 : index
    %12 = vector.load %arg13[%c0_24, %c8] : memref<512x36xf32, #tpu.memory_space<vmem>>, vector<512x4xf32>
    tpu.vector_store %arg13[%c0_24, %c8], %11 {strides = array<i32>} : memref<512x36xf32, #tpu.memory_space<vmem>>, vector<512x4xf32>,
    %c0_25 = arith.constant 0 : index
    %c1_26 = arith.constant 1 : index
    %c0_27 = arith.constant 0 : index
    %c0_28 = arith.constant 0 : index
    %13 = vector.load %arg12[%c0_25, %c1_26, %c0_27, %c0_28] : memref<2x18x18x4xf32, #tpu.memory_space<vmem>>, vector<2x16x16x4xf32>
    %14 = vector.shape_cast %13 : vector<2x16x16x4xf32> to vector<512x4xf32>
    %c0_29 = arith.constant 0 : index
    %c12 = arith.constant 12 : index
    %15 = vector.load %arg13[%c0_29, %c12] : memref<512x36xf32, #tpu.memory_space<vmem>>, vector<512x4xf32>
    tpu.vector_store %arg13[%c0_29, %c12], %14 {strides = array<i32>} : memref<512x36xf32, #tpu.memory_space<vmem>>, vector<512x4xf32>,
    %c0_30 = arith.constant 0 : index
    %c1_31 = arith.constant 1 : index
    %c1_32 = arith.constant 1 : index
    %c0_33 = arith.constant 0 : index
    %16 = vector.load %arg12[%c0_30, %c1_31, %c1_32, %c0_33] : memref<2x18x18x4xf32, #tpu.memory_space<vmem>>, vector<2x16x16x4xf32>
    %17 = vector.shape_cast %16 : vector<2x16x16x4xf32> to vector<512x4xf32>
    %c0_34 = arith.constant 0 : index
    %c16 = arith.constant 16 : index
    %18 = vector.load %arg13[%c0_34, %c16] : memref<512x36xf32, #tpu.memory_space<vmem>>, vector<512x4xf32>
    tpu.vector_store %arg13[%c0_34, %c16], %17 {strides = array<i32>} : memref<512x36xf32, #tpu.memory_space<vmem>>, vector<512x4xf32>,
    %c0_35 = arith.constant 0 : index
    %c1_36 = arith.constant 1 : index
    %c2_37 = arith.constant 2 : index
    %c0_38 = arith.constant 0 : index
    %19 = vector.load %arg12[%c0_35, %c1_36, %c2_37, %c0_38] : memref<2x18x18x4xf32, #tpu.memory_space<vmem>>, vector<2x16x16x4xf32>
    %20 = vector.shape_cast %19 : vector<2x16x16x4xf32> to vector<512x4xf32>
    %c0_39 = arith.constant 0 : index
    %c20 = arith.constant 20 : index
    %21 = vector.load %arg13[%c0_39, %c20] : memref<512x36xf32, #tpu.memory_space<vmem>>, vector<512x4xf32>
    tpu.vector_store %arg13[%c0_39, %c20], %20 {strides = array<i32>} : memref<512x36xf32, #tpu.memory_space<vmem>>, vector<512x4xf32>,
    %c0_40 = arith.constant 0 : index
    %c2_41 = arith.constant 2 : index
    %c0_42 = arith.constant 0 : index
    %c0_43 = arith.constant 0 : index
    %22 = vector.load %arg12[%c0_40, %c2_41, %c0_42, %c0_43] : memref<2x18x18x4xf32, #tpu.memory_space<vmem>>, vector<2x16x16x4xf32>
    %23 = vector.shape_cast %22 : vector<2x16x16x4xf32> to vector<512x4xf32>
    %c0_44 = arith.constant 0 : index
    %c24 = arith.constant 24 : index
    %24 = vector.load %arg13[%c0_44, %c24] : memref<512x36xf32, #tpu.memory_space<vmem>>, vector<512x4xf32>
    tpu.vector_store %arg13[%c0_44, %c24], %23 {strides = array<i32>} : memref<512x36xf32, #tpu.memory_space<vmem>>, vector<512x4xf32>,
    %c0_45 = arith.constant 0 : index
    %c2_46 = arith.constant 2 : index
    %c1_47 = arith.constant 1 : index
    %c0_48 = arith.constant 0 : index
    %25 = vector.load %arg12[%c0_45, %c2_46, %c1_47, %c0_48] : memref<2x18x18x4xf32, #tpu.memory_space<vmem>>, vector<2x16x16x4xf32>
    %26 = vector.shape_cast %25 : vector<2x16x16x4xf32> to vector<512x4xf32>
    %c0_49 = arith.constant 0 : index
    %c28 = arith.constant 28 : index
    %27 = vector.load %arg13[%c0_49, %c28] : memref<512x36xf32, #tpu.memory_space<vmem>>, vector<512x4xf32>
    tpu.vector_store %arg13[%c0_49, %c28], %26 {strides = array<i32>} : memref<512x36xf32, #tpu.memory_space<vmem>>, vector<512x4xf32>,
    %c0_50 = arith.constant 0 : index
    %c2_51 = arith.constant 2 : index
    %c2_52 = arith.constant 2 : index
    %c0_53 = arith.constant 0 : index
    %28 = vector.load %arg12[%c0_50, %c2_51, %c2_52, %c0_53] : memref<2x18x18x4xf32, #tpu.memory_space<vmem>>, vector<2x16x16x4xf32>
    %29 = vector.shape_cast %28 : vector<2x16x16x4xf32> to vector<512x4xf32>
    %c0_54 = arith.constant 0 : index
    %c32 = arith.constant 32 : index
    %30 = vector.load %arg13[%c0_54, %c32] : memref<512x36xf32, #tpu.memory_space<vmem>>, vector<512x4xf32>
    tpu.vector_store %arg13[%c0_54, %c32], %29 {strides = array<i32>} : memref<512x36xf32, #tpu.memory_space<vmem>>, vector<512x4xf32>,
    %c0_55 = arith.constant 0 : index
    %c0_56 = arith.constant 0 : index
    %31 = vector.load %arg13[%c0_55, %c0_56] : memref<512x36xf32, #tpu.memory_space<vmem>>, vector<512x36xf32>
    %c0_57 = arith.constant 0 : index
    %c0_58 = arith.constant 0 : index
    %32 = vector.load %arg1[%c0_57, %c0_58] : memref<36x16xf32, #tpu.memory_space<vmem>>, vector<36x16xf32>
    %cst_59 = arith.constant dense<0.000000e+00> : vector<512x16xf32>
    %33 = tpu.matmul %31, %32, %cst_59 {dimension_numbers = #tpu.dot_dimension_numbers<[1], [0], [0], [1], [0, 0, 1, 1], [], []>} : vector<512x36xf32>, vector<36x16xf32>, vector<512x16xf32> -> vector<512x16xf32>
    %c0_60 = arith.constant 0 : index
    %c0_61 = arith.constant 0 : index
    %34 = vector.load %arg2[%c0_60, %c0_61] : memref<1x16xf32, #tpu.memory_space<vmem>>, vector<1x16xf32>
    %35 = vector.broadcast %34 : vector<1x16xf32> to vector<512x16xf32>
    %36 = arith.addf %33, %35 : vector<512x16xf32>
    %cst_62 = arith.constant 0.000000e+00 : f32
    %37 = vector.broadcast %cst_62 : f32 to vector<512x16xf32>
    %38 = arith.maximumf %36, %37 : vector<512x16xf32>
    %39 = vector.shape_cast %38 : vector<512x16xf32> to vector<16x2x8x2x16xf32>
    %cst_63 = arith.constant dense<0xFF800000> : vector<16x2x8x16xf32>
    %40 = vector.multi_reduction <maximumf>, %39, %cst_63 [3] : vector<16x2x8x2x16xf32> to vector<16x2x8x16xf32>
    %cst_64 = arith.constant dense<0xFF800000> : vector<16x8x16xf32>
    %41 = vector.multi_reduction <maximumf>, %40, %cst_64 [1] : vector<16x2x8x16xf32> to vector<16x8x16xf32>
    %42 = vector.shape_cast %41 : vector<16x8x16xf32> to vector<2x8x8x16xf32>
    %cst_65 = arith.constant 0.000000e+00 : f32
    %43 = vector.broadcast %cst_65 : f32 to vector<2x10x10x16xf32>
    %c0_66 = arith.constant 0 : index
    %c0_67 = arith.constant 0 : index
    %c0_68 = arith.constant 0 : index
    %c0_69 = arith.constant 0 : index
    %44 = vector.load %arg14[%c0_66, %c0_67, %c0_68, %c0_69] : memref<2x10x10x16xf32, #tpu.memory_space<vmem>>, vector<2x10x10x16xf32>
    tpu.vector_store %arg14[%c0_66, %c0_67, %c0_68, %c0_69], %43 {strides = array<i32>} : memref<2x10x10x16xf32, #tpu.memory_space<vmem>>, vector<2x10x10x16xf32>,
    %c0_70 = arith.constant 0 : index
    %c1_71 = arith.constant 1 : index
    %c1_72 = arith.constant 1 : index
    %c0_73 = arith.constant 0 : index
    %45 = vector.load %arg14[%c0_70, %c1_71, %c1_72, %c0_73] : memref<2x10x10x16xf32, #tpu.memory_space<vmem>>, vector<2x8x8x16xf32>
    tpu.vector_store %arg14[%c0_70, %c1_71, %c1_72, %c0_73], %42 {strides = array<i32>} : memref<2x10x10x16xf32, #tpu.memory_space<vmem>>, vector<2x8x8x16xf32>,
    %c0_74 = arith.constant 0 : index
    %c0_75 = arith.constant 0 : index
    %c0_76 = arith.constant 0 : index
    %c0_77 = arith.constant 0 : index
    %46 = vector.load %arg14[%c0_74, %c0_75, %c0_76, %c0_77] : memref<2x10x10x16xf32, #tpu.memory_space<vmem>>, vector<2x8x8x16xf32>
    %47 = vector.shape_cast %46 : vector<2x8x8x16xf32> to vector<128x16xf32>
    %c0_78 = arith.constant 0 : index
    %c0_79 = arith.constant 0 : index
    %48 = vector.load %arg15[%c0_78, %c0_79] : memref<128x144xf32, #tpu.memory_space<vmem>>, vector<128x16xf32>
    tpu.vector_store %arg15[%c0_78, %c0_79], %47 {strides = array<i32>} : memref<128x144xf32, #tpu.memory_space<vmem>>, vector<128x16xf32>,
    %c0_80 = arith.constant 0 : index
    %c0_81 = arith.constant 0 : index
    %c1_82 = arith.constant 1 : index
    %c0_83 = arith.constant 0 : index
    %49 = vector.load %arg14[%c0_80, %c0_81, %c1_82, %c0_83] : memref<2x10x10x16xf32, #tpu.memory_space<vmem>>, vector<2x8x8x16xf32>
    %50 = vector.shape_cast %49 : vector<2x8x8x16xf32> to vector<128x16xf32>
    %c0_84 = arith.constant 0 : index
    %c16_85 = arith.constant 16 : index
    %51 = vector.load %arg15[%c0_84, %c16_85] : memref<128x144xf32, #tpu.memory_space<vmem>>, vector<128x16xf32>
    tpu.vector_store %arg15[%c0_84, %c16_85], %50 {strides = array<i32>} : memref<128x144xf32, #tpu.memory_space<vmem>>, vector<128x16xf32>,
    %c0_86 = arith.constant 0 : index
    %c0_87 = arith.constant 0 : index
    %c2_88 = arith.constant 2 : index
    %c0_89 = arith.constant 0 : index
    %52 = vector.load %arg14[%c0_86, %c0_87, %c2_88, %c0_89] : memref<2x10x10x16xf32, #tpu.memory_space<vmem>>, vector<2x8x8x16xf32>
    %53 = vector.shape_cast %52 : vector<2x8x8x16xf32> to vector<128x16xf32>
    %c0_90 = arith.constant 0 : index
    %c32_91 = arith.constant 32 : index
    %54 = vector.load %arg15[%c0_90, %c32_91] : memref<128x144xf32, #tpu.memory_space<vmem>>, vector<128x16xf32>
    tpu.vector_store %arg15[%c0_90, %c32_91], %53 {strides = array<i32>} : memref<128x144xf32, #tpu.memory_space<vmem>>, vector<128x16xf32>,
    %c0_92 = arith.constant 0 : index
    %c1_93 = arith.constant 1 : index
    %c0_94 = arith.constant 0 : index
    %c0_95 = arith.constant 0 : index
    %55 = vector.load %arg14[%c0_92, %c1_93, %c0_94, %c0_95] : memref<2x10x10x16xf32, #tpu.memory_space<vmem>>, vector<2x8x8x16xf32>
    %56 = vector.shape_cast %55 : vector<2x8x8x16xf32> to vector<128x16xf32>
    %c0_96 = arith.constant 0 : index
    %c48 = arith.constant 48 : index
    %57 = vector.load %arg15[%c0_96, %c48] : memref<128x144xf32, #tpu.memory_space<vmem>>, vector<128x16xf32>
    tpu.vector_store %arg15[%c0_96, %c48], %56 {strides = array<i32>} : memref<128x144xf32, #tpu.memory_space<vmem>>, vector<128x16xf32>,
    %c0_97 = arith.constant 0 : index
    %c1_98 = arith.constant 1 : index
    %c1_99 = arith.constant 1 : index
    %c0_100 = arith.constant 0 : index
    %58 = vector.load %arg14[%c0_97, %c1_98, %c1_99, %c0_100] : memref<2x10x10x16xf32, #tpu.memory_space<vmem>>, vector<2x8x8x16xf32>
    %59 = vector.shape_cast %58 : vector<2x8x8x16xf32> to vector<128x16xf32>
    %c0_101 = arith.constant 0 : index
    %c64 = arith.constant 64 : index
    %60 = vector.load %arg15[%c0_101, %c64] : memref<128x144xf32, #tpu.memory_space<vmem>>, vector<128x16xf32>
    tpu.vector_store %arg15[%c0_101, %c64], %59 {strides = array<i32>} : memref<128x144xf32, #tpu.memory_space<vmem>>, vector<128x16xf32>,
    %c0_102 = arith.constant 0 : index
    %c1_103 = arith.constant 1 : index
    %c2_104 = arith.constant 2 : index
    %c0_105 = arith.constant 0 : index
    %61 = vector.load %arg14[%c0_102, %c1_103, %c2_104, %c0_105] : memref<2x10x10x16xf32, #tpu.memory_space<vmem>>, vector<2x8x8x16xf32>
    %62 = vector.shape_cast %61 : vector<2x8x8x16xf32> to vector<128x16xf32>
    %c0_106 = arith.constant 0 : index
    %c80 = arith.constant 80 : index
    %63 = vector.load %arg15[%c0_106, %c80] : memref<128x144xf32, #tpu.memory_space<vmem>>, vector<128x16xf32>
    tpu.vector_store %arg15[%c0_106, %c80], %62 {strides = array<i32>} : memref<128x144xf32, #tpu.memory_space<vmem>>, vector<128x16xf32>,
    %c0_107 = arith.constant 0 : index
    %c2_108 = arith.constant 2 : index
    %c0_109 = arith.constant 0 : index
    %c0_110 = arith.constant 0 : index
    %64 = vector.load %arg14[%c0_107, %c2_108, %c0_109, %c0_110] : memref<2x10x10x16xf32, #tpu.memory_space<vmem>>, vector<2x8x8x16xf32>
    %65 = vector.shape_cast %64 : vector<2x8x8x16xf32> to vector<128x16xf32>
    %c0_111 = arith.constant 0 : index
    %c96 = arith.constant 96 : index
    %66 = vector.load %arg15[%c0_111, %c96] : memref<128x144xf32, #tpu.memory_space<vmem>>, vector<128x16xf32>
    tpu.vector_store %arg15[%c0_111, %c96], %65 {strides = array<i32>} : memref<128x144xf32, #tpu.memory_space<vmem>>, vector<128x16xf32>,
    %c0_112 = arith.constant 0 : index
    %c2_113 = arith.constant 2 : index
    %c1_114 = arith.constant 1 : index
    %c0_115 = arith.constant 0 : index
    %67 = vector.load %arg14[%c0_112, %c2_113, %c1_114, %c0_115] : memref<2x10x10x16xf32, #tpu.memory_space<vmem>>, vector<2x8x8x16xf32>
    %68 = vector.shape_cast %67 : vector<2x8x8x16xf32> to vector<128x16xf32>
    %c0_116 = arith.constant 0 : index
    %c112 = arith.constant 112 : index
    %69 = vector.load %arg15[%c0_116, %c112] : memref<128x144xf32, #tpu.memory_space<vmem>>, vector<128x16xf32>
    tpu.vector_store %arg15[%c0_116, %c112], %68 {strides = array<i32>} : memref<128x144xf32, #tpu.memory_space<vmem>>, vector<128x16xf32>,
    %c0_117 = arith.constant 0 : index
    %c2_118 = arith.constant 2 : index
    %c2_119 = arith.constant 2 : index
    %c0_120 = arith.constant 0 : index
    %70 = vector.load %arg14[%c0_117, %c2_118, %c2_119, %c0_120] : memref<2x10x10x16xf32, #tpu.memory_space<vmem>>, vector<2x8x8x16xf32>
    %71 = vector.shape_cast %70 : vector<2x8x8x16xf32> to vector<128x16xf32>
    %c0_121 = arith.constant 0 : index
    %c128 = arith.constant 128 : index
    %72 = vector.load %arg15[%c0_121, %c128] : memref<128x144xf32, #tpu.memory_space<vmem>>, vector<128x16xf32>
    tpu.vector_store %arg15[%c0_121, %c128], %71 {strides = array<i32>} : memref<128x144xf32, #tpu.memory_space<vmem>>, vector<128x16xf32>,
    %c0_122 = arith.constant 0 : index
    %c0_123 = arith.constant 0 : index
    %73 = vector.load %arg15[%c0_122, %c0_123] : memref<128x144xf32, #tpu.memory_space<vmem>>, vector<128x144xf32>
    %c0_124 = arith.constant 0 : index
    %c0_125 = arith.constant 0 : index
    %74 = vector.load %arg3[%c0_124, %c0_125] : memref<144x32xf32, #tpu.memory_space<vmem>>, vector<144x32xf32>
    %cst_126 = arith.constant dense<0.000000e+00> : vector<128x32xf32>
    %75 = tpu.matmul %73, %74, %cst_126 {dimension_numbers = #tpu.dot_dimension_numbers<[1], [0], [0], [1], [0, 0, 1, 1], [], []>} : vector<128x144xf32>, vector<144x32xf32>, vector<128x32xf32> -> vector<128x32xf32>
    %c0_127 = arith.constant 0 : index
    %c0_128 = arith.constant 0 : index
    %76 = vector.load %arg4[%c0_127, %c0_128] : memref<1x32xf32, #tpu.memory_space<vmem>>, vector<1x32xf32>
    %77 = vector.broadcast %76 : vector<1x32xf32> to vector<128x32xf32>
    %78 = arith.addf %75, %77 : vector<128x32xf32>
    %cst_129 = arith.constant 0.000000e+00 : f32
    %79 = vector.broadcast %cst_129 : f32 to vector<128x32xf32>
    %80 = arith.maximumf %78, %79 : vector<128x32xf32>
    %81 = vector.shape_cast %80 : vector<128x32xf32> to vector<8x2x4x2x32xf32>
    %cst_130 = arith.constant dense<0xFF800000> : vector<8x2x4x32xf32>
    %82 = vector.multi_reduction <maximumf>, %81, %cst_130 [3] : vector<8x2x4x2x32xf32> to vector<8x2x4x32xf32>
    %cst_131 = arith.constant dense<0xFF800000> : vector<8x4x32xf32>
    %83 = vector.multi_reduction <maximumf>, %82, %cst_131 [1] : vector<8x2x4x32xf32> to vector<8x4x32xf32>
    %84 = vector.shape_cast %83 : vector<8x4x32xf32> to vector<2x4x4x32xf32>
    %c0_132 = arith.constant 0 : index
    %c0_133 = arith.constant 0 : index
    %c0_134 = arith.constant 0 : index
    %c0_135 = arith.constant 0 : index
    %85 = vector.load %arg16[%c0_132, %c0_133, %c0_134, %c0_135] : memref<2x4x4x32xf32, #tpu.memory_space<vmem>>, vector<2x4x4x32xf32>
    tpu.vector_store %arg16[%c0_132, %c0_133, %c0_134, %c0_135], %84 {strides = array<i32>} : memref<2x4x4x32xf32, #tpu.memory_space<vmem>>, vector<2x4x4x32xf32>,
    %c0_136 = arith.constant 0 : index
    %c0_137 = arith.constant 0 : index
    %c0_138 = arith.constant 0 : index
    %c0_139 = arith.constant 0 : index
    %86 = vector.load %arg16[%c0_136, %c0_137, %c0_138, %c0_139] : memref<2x4x4x32xf32, #tpu.memory_space<vmem>>, vector<2x1x1x32xf32>
    %87 = vector.shape_cast %86 : vector<2x1x1x32xf32> to vector<2x32xf32>
    %c0_140 = arith.constant 0 : index
    %c0_141 = arith.constant 0 : index
    %88 = vector.load %arg17[%c0_140, %c0_141] : memref<2x512xf32, #tpu.memory_space<vmem>>, vector<2x32xf32>
    tpu.vector_store %arg17[%c0_140, %c0_141], %87 {strides = array<i32>} : memref<2x512xf32, #tpu.memory_space<vmem>>, vector<2x32xf32>,
    %c0_142 = arith.constant 0 : index
    %c0_143 = arith.constant 0 : index
    %c1_144 = arith.constant 1 : index
    %c0_145 = arith.constant 0 : index
    %89 = vector.load %arg16[%c0_142, %c0_143, %c1_144, %c0_145] : memref<2x4x4x32xf32, #tpu.memory_space<vmem>>, vector<2x1x1x32xf32>
    %90 = vector.shape_cast %89 : vector<2x1x1x32xf32> to vector<2x32xf32>
    %c0_146 = arith.constant 0 : index
    %c32_147 = arith.constant 32 : index
    %91 = vector.load %arg17[%c0_146, %c32_147] : memref<2x512xf32, #tpu.memory_space<vmem>>, vector<2x32xf32>
    tpu.vector_store %arg17[%c0_146, %c32_147], %90 {strides = array<i32>} : memref<2x512xf32, #tpu.memory_space<vmem>>, vector<2x32xf32>,
    %c0_148 = arith.constant 0 : index
    %c0_149 = arith.constant 0 : index
    %c2_150 = arith.constant 2 : index
    %c0_151 = arith.constant 0 : index
    %92 = vector.load %arg16[%c0_148, %c0_149, %c2_150, %c0_151] : memref<2x4x4x32xf32, #tpu.memory_space<vmem>>, vector<2x1x1x32xf32>
    %93 = vector.shape_cast %92 : vector<2x1x1x32xf32> to vector<2x32xf32>
    %c0_152 = arith.constant 0 : index
    %c64_153 = arith.constant 64 : index
    %94 = vector.load %arg17[%c0_152, %c64_153] : memref<2x512xf32, #tpu.memory_space<vmem>>, vector<2x32xf32>
    tpu.vector_store %arg17[%c0_152, %c64_153], %93 {strides = array<i32>} : memref<2x512xf32, #tpu.memory_space<vmem>>, vector<2x32xf32>,
    %c0_154 = arith.constant 0 : index
    %c0_155 = arith.constant 0 : index
    %c3 = arith.constant 3 : index
    %c0_156 = arith.constant 0 : index
    %95 = vector.load %arg16[%c0_154, %c0_155, %c3, %c0_156] : memref<2x4x4x32xf32, #tpu.memory_space<vmem>>, vector<2x1x1x32xf32>
    %96 = vector.shape_cast %95 : vector<2x1x1x32xf32> to vector<2x32xf32>
    %c0_157 = arith.constant 0 : index
    %c96_158 = arith.constant 96 : index
    %97 = vector.load %arg17[%c0_157, %c96_158] : memref<2x512xf32, #tpu.memory_space<vmem>>, vector<2x32xf32>
    tpu.vector_store %arg17[%c0_157, %c96_158], %96 {strides = array<i32>} : memref<2x512xf32, #tpu.memory_space<vmem>>, vector<2x32xf32>,
    %c0_159 = arith.constant 0 : index
    %c1_160 = arith.constant 1 : index
    %c0_161 = arith.constant 0 : index
    %c0_162 = arith.constant 0 : index
    %98 = vector.load %arg16[%c0_159, %c1_160, %c0_161, %c0_162] : memref<2x4x4x32xf32, #tpu.memory_space<vmem>>, vector<2x1x1x32xf32>
    %99 = vector.shape_cast %98 : vector<2x1x1x32xf32> to vector<2x32xf32>
    %c0_163 = arith.constant 0 : index
    %c128_164 = arith.constant 128 : index
    %100 = vector.load %arg17[%c0_163, %c128_164] : memref<2x512xf32, #tpu.memory_space<vmem>>, vector<2x32xf32>
    tpu.vector_store %arg17[%c0_163, %c128_164], %99 {strides = array<i32>} : memref<2x512xf32, #tpu.memory_space<vmem>>, vector<2x32xf32>,
    %c0_165 = arith.constant 0 : index
    %c1_166 = arith.constant 1 : index
    %c1_167 = arith.constant 1 : index
    %c0_168 = arith.constant 0 : index
    %101 = vector.load %arg16[%c0_165, %c1_166, %c1_167, %c0_168] : memref<2x4x4x32xf32, #tpu.memory_space<vmem>>, vector<2x1x1x32xf32>
    %102 = vector.shape_cast %101 : vector<2x1x1x32xf32> to vector<2x32xf32>
    %c0_169 = arith.constant 0 : index
    %c160 = arith.constant 160 : index
    %103 = vector.load %arg17[%c0_169, %c160] : memref<2x512xf32, #tpu.memory_space<vmem>>, vector<2x32xf32>
    tpu.vector_store %arg17[%c0_169, %c160], %102 {strides = array<i32>} : memref<2x512xf32, #tpu.memory_space<vmem>>, vector<2x32xf32>,
    %c0_170 = arith.constant 0 : index
    %c1_171 = arith.constant 1 : index
    %c2_172 = arith.constant 2 : index
    %c0_173 = arith.constant 0 : index
    %104 = vector.load %arg16[%c0_170, %c1_171, %c2_172, %c0_173] : memref<2x4x4x32xf32, #tpu.memory_space<vmem>>, vector<2x1x1x32xf32>
    %105 = vector.shape_cast %104 : vector<2x1x1x32xf32> to vector<2x32xf32>
    %c0_174 = arith.constant 0 : index
    %c192 = arith.constant 192 : index
    %106 = vector.load %arg17[%c0_174, %c192] : memref<2x512xf32, #tpu.memory_space<vmem>>, vector<2x32xf32>
    tpu.vector_store %arg17[%c0_174, %c192], %105 {strides = array<i32>} : memref<2x512xf32, #tpu.memory_space<vmem>>, vector<2x32xf32>,
    %c0_175 = arith.constant 0 : index
    %c1_176 = arith.constant 1 : index
    %c3_177 = arith.constant 3 : index
    %c0_178 = arith.constant 0 : index
    %107 = vector.load %arg16[%c0_175, %c1_176, %c3_177, %c0_178] : memref<2x4x4x32xf32, #tpu.memory_space<vmem>>, vector<2x1x1x32xf32>
    %108 = vector.shape_cast %107 : vector<2x1x1x32xf32> to vector<2x32xf32>
    %c0_179 = arith.constant 0 : index
    %c224 = arith.constant 224 : index
    %109 = vector.load %arg17[%c0_179, %c224] : memref<2x512xf32, #tpu.memory_space<vmem>>, vector<2x32xf32>
    tpu.vector_store %arg17[%c0_179, %c224], %108 {strides = array<i32>} : memref<2x512xf32, #tpu.memory_space<vmem>>, vector<2x32xf32>,
    %c0_180 = arith.constant 0 : index
    %c2_181 = arith.constant 2 : index
    %c0_182 = arith.constant 0 : index
    %c0_183 = arith.constant 0 : index
    %110 = vector.load %arg16[%c0_180, %c2_181, %c0_182, %c0_183] : memref<2x4x4x32xf32, #tpu.memory_space<vmem>>, vector<2x1x1x32xf32>
    %111 = vector.shape_cast %110 : vector<2x1x1x32xf32> to vector<2x32xf32>
    %c0_184 = arith.constant 0 : index
    %c256 = arith.constant 256 : index
    %112 = vector.load %arg17[%c0_184, %c256] : memref<2x512xf32, #tpu.memory_space<vmem>>, vector<2x32xf32>
    tpu.vector_store %arg17[%c0_184, %c256], %111 {strides = array<i32>} : memref<2x512xf32, #tpu.memory_space<vmem>>, vector<2x32xf32>,
    %c0_185 = arith.constant 0 : index
    %c2_186 = arith.constant 2 : index
    %c1_187 = arith.constant 1 : index
    %c0_188 = arith.constant 0 : index
    %113 = vector.load %arg16[%c0_185, %c2_186, %c1_187, %c0_188] : memref<2x4x4x32xf32, #tpu.memory_space<vmem>>, vector<2x1x1x32xf32>
    %114 = vector.shape_cast %113 : vector<2x1x1x32xf32> to vector<2x32xf32>
    %c0_189 = arith.constant 0 : index
    %c288 = arith.constant 288 : index
    %115 = vector.load %arg17[%c0_189, %c288] : memref<2x512xf32, #tpu.memory_space<vmem>>, vector<2x32xf32>
    tpu.vector_store %arg17[%c0_189, %c288], %114 {strides = array<i32>} : memref<2x512xf32, #tpu.memory_space<vmem>>, vector<2x32xf32>,
    %c0_190 = arith.constant 0 : index
    %c2_191 = arith.constant 2 : index
    %c2_192 = arith.constant 2 : index
    %c0_193 = arith.constant 0 : index
    %116 = vector.load %arg16[%c0_190, %c2_191, %c2_192, %c0_193] : memref<2x4x4x32xf32, #tpu.memory_space<vmem>>, vector<2x1x1x32xf32>
    %117 = vector.shape_cast %116 : vector<2x1x1x32xf32> to vector<2x32xf32>
    %c0_194 = arith.constant 0 : index
    %c320 = arith.constant 320 : index
    %118 = vector.load %arg17[%c0_194, %c320] : memref<2x512xf32, #tpu.memory_space<vmem>>, vector<2x32xf32>
    tpu.vector_store %arg17[%c0_194, %c320], %117 {strides = array<i32>} : memref<2x512xf32, #tpu.memory_space<vmem>>, vector<2x32xf32>,
    %c0_195 = arith.constant 0 : index
    %c2_196 = arith.constant 2 : index
    %c3_197 = arith.constant 3 : index
    %c0_198 = arith.constant 0 : index
    %119 = vector.load %arg16[%c0_195, %c2_196, %c3_197, %c0_198] : memref<2x4x4x32xf32, #tpu.memory_space<vmem>>, vector<2x1x1x32xf32>
    %120 = vector.shape_cast %119 : vector<2x1x1x32xf32> to vector<2x32xf32>
    %c0_199 = arith.constant 0 : index
    %c352 = arith.constant 352 : index
    %121 = vector.load %arg17[%c0_199, %c352] : memref<2x512xf32, #tpu.memory_space<vmem>>, vector<2x32xf32>
    tpu.vector_store %arg17[%c0_199, %c352], %120 {strides = array<i32>} : memref<2x512xf32, #tpu.memory_space<vmem>>, vector<2x32xf32>,
    %c0_200 = arith.constant 0 : index
    %c3_201 = arith.constant 3 : index
    %c0_202 = arith.constant 0 : index
    %c0_203 = arith.constant 0 : index
    %122 = vector.load %arg16[%c0_200, %c3_201, %c0_202, %c0_203] : memref<2x4x4x32xf32, #tpu.memory_space<vmem>>, vector<2x1x1x32xf32>
    %123 = vector.shape_cast %122 : vector<2x1x1x32xf32> to vector<2x32xf32>
    %c0_204 = arith.constant 0 : index
    %c384 = arith.constant 384 : index
    %124 = vector.load %arg17[%c0_204, %c384] : memref<2x512xf32, #tpu.memory_space<vmem>>, vector<2x32xf32>
    tpu.vector_store %arg17[%c0_204, %c384], %123 {strides = array<i32>} : memref<2x512xf32, #tpu.memory_space<vmem>>, vector<2x32xf32>,
    %c0_205 = arith.constant 0 : index
    %c3_206 = arith.constant 3 : index
    %c1_207 = arith.constant 1 : index
    %c0_208 = arith.constant 0 : index
    %125 = vector.load %arg16[%c0_205, %c3_206, %c1_207, %c0_208] : memref<2x4x4x32xf32, #tpu.memory_space<vmem>>, vector<2x1x1x32xf32>
    %126 = vector.shape_cast %125 : vector<2x1x1x32xf32> to vector<2x32xf32>
    %c0_209 = arith.constant 0 : index
    %c416 = arith.constant 416 : index
    %127 = vector.load %arg17[%c0_209, %c416] : memref<2x512xf32, #tpu.memory_space<vmem>>, vector<2x32xf32>
    tpu.vector_store %arg17[%c0_209, %c416], %126 {strides = array<i32>} : memref<2x512xf32, #tpu.memory_space<vmem>>, vector<2x32xf32>,
    %c0_210 = arith.constant 0 : index
    %c3_211 = arith.constant 3 : index
    %c2_212 = arith.constant 2 : index
    %c0_213 = arith.constant 0 : index
    %128 = vector.load %arg16[%c0_210, %c3_211, %c2_212, %c0_213] : memref<2x4x4x32xf32, #tpu.memory_space<vmem>>, vector<2x1x1x32xf32>
    %129 = vector.shape_cast %128 : vector<2x1x1x32xf32> to vector<2x32xf32>
    %c0_214 = arith.constant 0 : index
    %c448 = arith.constant 448 : index
    %130 = vector.load %arg17[%c0_214, %c448] : memref<2x512xf32, #tpu.memory_space<vmem>>, vector<2x32xf32>
    tpu.vector_store %arg17[%c0_214, %c448], %129 {strides = array<i32>} : memref<2x512xf32, #tpu.memory_space<vmem>>, vector<2x32xf32>,
    %c0_215 = arith.constant 0 : index
    %c3_216 = arith.constant 3 : index
    %c3_217 = arith.constant 3 : index
    %c0_218 = arith.constant 0 : index
    %131 = vector.load %arg16[%c0_215, %c3_216, %c3_217, %c0_218] : memref<2x4x4x32xf32, #tpu.memory_space<vmem>>, vector<2x1x1x32xf32>
    %132 = vector.shape_cast %131 : vector<2x1x1x32xf32> to vector<2x32xf32>
    %c0_219 = arith.constant 0 : index
    %c480 = arith.constant 480 : index
    %133 = vector.load %arg17[%c0_219, %c480] : memref<2x512xf32, #tpu.memory_space<vmem>>, vector<2x32xf32>
    tpu.vector_store %arg17[%c0_219, %c480], %132 {strides = array<i32>} : memref<2x512xf32, #tpu.memory_space<vmem>>, vector<2x32xf32>,
    %c0_220 = arith.constant 0 : index
    %c0_221 = arith.constant 0 : index
    %134 = vector.load %arg17[%c0_220, %c0_221] : memref<2x512xf32, #tpu.memory_space<vmem>>, vector<2x512xf32>
    %c0_222 = arith.constant 0 : index
    %c0_223 = arith.constant 0 : index
    %135 = vector.load %arg5[%c0_222, %c0_223] : memref<512x256xf32, #tpu.memory_space<vmem>>, vector<512x256xf32>
    %cst_224 = arith.constant dense<0.000000e+00> : vector<2x256xf32>
    %136 = tpu.matmul %134, %135, %cst_224 {dimension_numbers = #tpu.dot_dimension_numbers<[1], [0], [0], [1], [0, 0, 1, 1], [], []>} : vector<2x512xf32>, vector<512x256xf32>, vector<2x256xf32> -> vector<2x256xf32>
    %c0_225 = arith.constant 0 : index
    %c0_226 = arith.constant 0 : index
    %137 = vector.load %arg6[%c0_225, %c0_226] : memref<1x256xf32, #tpu.memory_space<vmem>>, vector<1x256xf32>
    %138 = vector.broadcast %137 : vector<1x256xf32> to vector<2x256xf32>
    %139 = arith.addf %136, %138 : vector<2x256xf32>
    %cst_227 = arith.constant 0.000000e+00 : f32
    %140 = vector.broadcast %cst_227 : f32 to vector<2x256xf32>
    %141 = arith.maximumf %139, %140 : vector<2x256xf32>
    %c0_228 = arith.constant 0 : index
    %c0_229 = arith.constant 0 : index
    %142 = vector.load %arg7[%c0_228, %c0_229] : memref<256x128xf32, #tpu.memory_space<vmem>>, vector<256x128xf32>
    %cst_230 = arith.constant dense<0.000000e+00> : vector<2x128xf32>
    %143 = tpu.matmul %141, %142, %cst_230 {dimension_numbers = #tpu.dot_dimension_numbers<[1], [0], [0], [1], [0, 0, 1, 1], [], []>} : vector<2x256xf32>, vector<256x128xf32>, vector<2x128xf32> -> vector<2x128xf32>
    %c0_231 = arith.constant 0 : index
    %c0_232 = arith.constant 0 : index
    %144 = vector.load %arg8[%c0_231, %c0_232] : memref<1x128xf32, #tpu.memory_space<vmem>>, vector<1x128xf32>
    %145 = vector.broadcast %144 : vector<1x128xf32> to vector<2x128xf32>
    %146 = arith.addf %143, %145 : vector<2x128xf32>
    %cst_233 = arith.constant 0.000000e+00 : f32
    %147 = vector.broadcast %cst_233 : f32 to vector<2x128xf32>
    %148 = arith.maximumf %146, %147 : vector<2x128xf32>
    %c0_234 = arith.constant 0 : index
    %c0_235 = arith.constant 0 : index
    %149 = vector.load %arg9[%c0_234, %c0_235] : memref<128x10xf32, #tpu.memory_space<vmem>>, vector<128x10xf32>
    %cst_236 = arith.constant dense<0.000000e+00> : vector<2x10xf32>
    %150 = tpu.matmul %148, %149, %cst_236 {dimension_numbers = #tpu.dot_dimension_numbers<[1], [0], [0], [1], [0, 0, 1, 1], [], []>} : vector<2x128xf32>, vector<128x10xf32>, vector<2x10xf32> -> vector<2x10xf32>
    %c0_237 = arith.constant 0 : index
    %c0_238 = arith.constant 0 : index
    %151 = vector.load %arg10[%c0_237, %c0_238] : memref<1x10xf32, #tpu.memory_space<vmem>>, vector<1x10xf32>
    %152 = vector.broadcast %151 : vector<1x10xf32> to vector<2x10xf32>
    %153 = arith.addf %150, %152 : vector<2x10xf32>
    %cst_239 = arith.constant dense<0xFF800000> : vector<2xf32>
    %154 = vector.multi_reduction <maximumf>, %153, %cst_239 [1] : vector<2x10xf32> to vector<2xf32>
    %155 = vector.shape_cast %154 : vector<2xf32> to vector<2x1xf32>
    %156 = vector.broadcast %155 : vector<2x1xf32> to vector<2x10xf32>
    %157 = arith.subf %153, %156 : vector<2x10xf32>
    %158 = math.exp %157 : vector<2x10xf32>
    %cst_240 = arith.constant dense<0.000000e+00> : vector<2xf32>
    %159 = vector.multi_reduction <add>, %158, %cst_240 [1] : vector<2x10xf32> to vector<2xf32>
    %160 = vector.shape_cast %159 : vector<2xf32> to vector<2x1xf32>
    %161 = vector.broadcast %160 : vector<2x1xf32> to vector<2x10xf32>
    %162 = arith.divf %158, %161 : vector<2x10xf32>
    %c0_241 = arith.constant 0 : index
    %c0_242 = arith.constant 0 : index
    %163 = vector.load %arg11[%c0_241, %c0_242] : memref<2x10xf32, #tpu.memory_space<vmem>>, vector<2x10xf32>
    tpu.vector_store %arg11[%c0_241, %c0_242], %162 {strides = array<i32>} : memref<2x10xf32, #tpu.memory_space<vmem>>, vector<2x10xf32>,
    return
  }
}

</mosaic_0001>

<llo_original>
// kernel: forward.1
$region0: #{forward.1}
  #allocation0 [shape = 'u32[]', space=smem, size = 0x4, offset = 0x4, fixed_abs, tag = 'smem constant byte address 0x4 - core index']
  #allocation1 [shape = 'u32[144,128]{1,0:T(1,128)}', space=vmem, size = 0x12000, scoped, tag = 'internal scratch']
  #allocation2 [shape = 'f32[2,18,18,4]{3,2,1,0:T(8,128)}', space=vmem, size = 0x6c000, scoped, tag = 'scratch operand']
  #allocation3 [shape = 'f32[512,36]{1,0:T(8,128)}', space=vmem, size = 0x40000, scoped, tag = 'scratch operand']
  #allocation4 [shape = 'f32[2,10,10,16]{3,2,1,0:T(8,128)}', space=vmem, size = 0x28000, scoped, tag = 'scratch operand']
  #allocation5 [shape = 'f32[128,144]{1,0:T(8,128)}', space=vmem, size = 0x20000, scoped, tag = 'scratch operand']
  #allocation6 [shape = 'f32[2,4,4,32]{3,2,1,0:T(4,128)}', space=vmem, size = 0x4000, scoped, tag = 'scratch operand']
  #allocation7 [shape = 'f32[2,512]{1,0:T(2,128)}', space=vmem, size = 0x1000, scoped, tag = 'scratch operand']
  %s0 = inlined_call_operand.vmem [shape: f32[2,16,16,4], index: 0, kind: input, shape index: {}]
  %s1 = inlined_call_operand.vmem [shape: f32[36,16], index: 1, kind: input, shape index: {}]
  %s2 = inlined_call_operand.vmem [shape: f32[1,16], index: 2, kind: input, shape index: {}]
  %s3 = inlined_call_operand.vmem [shape: f32[144,32], index: 3, kind: input, shape index: {}]
  %s4 = inlined_call_operand.vmem [shape: f32[1,32], index: 4, kind: input, shape index: {}]
  %s5 = inlined_call_operand.vmem [shape: f32[512,256], index: 5, kind: input, shape index: {}]
  %s6 = inlined_call_operand.vmem [shape: f32[1,256], index: 6, kind: input, shape index: {}]
  %s7 = inlined_call_operand.hbm [shape: f32[256,128], index: 7, kind: input, shape index: {}]
  %s8 = inlined_call_operand.vmem [shape: f32[1,128], index: 8, kind: input, shape index: {}]
  %s9 = inlined_call_operand.vmem [shape: f32[128,10], index: 9, kind: input, shape index: {}]
  %s10 = inlined_call_operand.vmem [shape: f32[1,10], index: 10, kind: input, shape index: {}]
  %s11 = inlined_call_operand.hbm [shape: f32[2,10], index: 11, kind: output, shape index: {}]
  %s12 = sld [smem:[#allocation0]]
  $region58: #{forward.1} parent=0
    _
  %s14 = ssub.s32 1, %s12
  %s15 = scalar_select 0, %s14, %s12
  $region1: #{forward.1} parent=0
    #allocation8 [shape = 'u8[131072]{0}', space=vmem, size = 0x20000, scoped, tag = 'input window, operand 7, single buffered']
    #allocation9 [shape = 's32[1]{0}', space=sflag, size = 0x4, scoped, tag = 'scoped memory for forward.1']
    #allocation10 [shape = 's32[1]{0}', space=sflag, size = 0x4, scoped, tag = 'scoped memory for forward.1']
    #allocation11 [shape = 'u8[1024]{0}', space=vmem, size = 0x400, scoped, tag = 'output window, operand 0, single buffered']
    %16 = vsyncpa [#allocation9], 0
    %17 = vsyncpa [#allocation10], 0
    // Predicated region
    $region2: #{forward.1} parent=1 // pred_check
      _
    $region3: #{forward.1} parent=1 // pred_check_branch
      %19 = sbr.rel (0) target = $region5
    $region4: #{forward.1} parent=1 // pred_region
      _
    $region5: #{forward.1} parent=1 // pred_fallthru
      _
    // Predicated region
    $region6: #{forward.1} parent=1 // pred_check
      _
    $region7: #{forward.1} parent=1 // pred_check_branch
      %21 = sbr.rel (0) target = $region9
    $region8: #{forward.1} parent=1 // pred_region
      _
    $region9: #{forward.1} parent=1 // pred_fallthru
      _
    // Predicated region
    $region10: #{forward.1} parent=1 // pred_check
      _
    $region11: #{forward.1} parent=1 // pred_check_branch
      %23 = sbr.rel (0) target = $region13
    $region12: #{forward.1} parent=1 // pred_region
      _
    $region13: #{forward.1} parent=1 // pred_fallthru
      _
    // Predicated region
    $region14: #{forward.1} parent=1 // pred_check
      _
    $region15: #{forward.1} parent=1 // pred_check_branch
      %25 = sbr.rel (0) target = $region17
    $region16: #{forward.1} parent=1 // pred_region
      _
    $region17: #{forward.1} parent=1 // pred_fallthru
      _
    // Predicated region
    $region18: #{forward.1} parent=1 // pred_check
      _
    $region19: #{forward.1} parent=1 // pred_check_branch
      %27 = sbr.rel (0) target = $region21
    $region20: #{forward.1} parent=1 // pred_region
      _
    $region21: #{forward.1} parent=1 // pred_fallthru
      _
    // Predicated region
    $region22: #{forward.1} parent=1 // pred_check
      _
    $region23: #{forward.1} parent=1 // pred_check_branch
      %29 = sbr.rel (0) target = $region25
    $region24: #{forward.1} parent=1 // pred_region
      _
    $region25: #{forward.1} parent=1 // pred_fallthru
      _
    // Predicated region
    $region26: #{forward.1} parent=1 // pred_check
      _
    $region27: #{forward.1} parent=1 // pred_check_branch
      %31 = sbr.rel (0) target = $region29
    $region28: #{forward.1} parent=1 // pred_region
      _
    $region29: #{forward.1} parent=1 // pred_fallthru
      _
    // Predicated region
    $region30: #{forward.1} parent=1 // pred_check
      _
    $region31: #{forward.1} parent=1 // pred_check_branch
      %33 = sbr.rel (0) target = $region33
    $region32: #{forward.1} parent=1 // pred_region
      %s35 = ssub.s32 4096, 4096
      %36 = vsyncadd [#allocation9], %s35
      %s37 = sshll.u32 [#allocation8], 4
      %s38 = int_to_ptr.vmem [resolvable:$true] %s37
      %43 = dma.hbm_to_vmem [thread:$0]  %s7, 4096, %s38, [#allocation9], 128, 128, 8
    $region33: #{forward.1} parent=1 // pred_fallthru
      _
    // Predicated region
    $region34: #{forward.1} parent=1 // pred_check
      _
    $region35: #{forward.1} parent=1 // pred_check_branch
      %45 = sbr.rel (0) target = $region37
    $region36: #{forward.1} parent=1 // pred_region
      _
    $region37: #{forward.1} parent=1 // pred_fallthru
      _
    // Predicated region
    $region38: #{forward.1} parent=1 // pred_check
      _
    $region39: #{forward.1} parent=1 // pred_check_branch
      %47 = sbr.rel (0) target = $region41
    $region40: #{forward.1} parent=1 // pred_region
      _
    $region41: #{forward.1} parent=1 // pred_fallthru
      _
    // Predicated region
    $region42: #{forward.1} parent=1 // pred_check
      _
    $region43: #{forward.1} parent=1 // pred_check_branch
      %49 = sbr.rel (0) target = $region45
    $region44: #{forward.1} parent=1 // pred_region
      _
    $region45: #{forward.1} parent=1 // pred_fallthru
      _
    // Predicated region
    $region46: #{forward.1} parent=1 // pred_check
      _
    $region47: #{forward.1} parent=1 // pred_check_branch
      %51 = sbr.rel (0) target = $region49
    $region48: #{forward.1} parent=1 // pred_region
      %52 = dma.done [#allocation9], 4096
    $region49: #{forward.1} parent=1 // pred_fallthru
      _
    %vm53 = vcmask 31744
    %54 = vst.msk [vmem:[#allocation2] sm:$0xff] %vm53, 0.0
    %55 = vst.msk [vmem:[#allocation2 + $0x8] sm:$0xff] %vm53, 0.0
    %vm56 = vcmask 25600
    %57 = vst.msk [vmem:[#allocation2 + $0x10] sm:$0x3] %vm56, 0.0
    %58 = vst.msk [vmem:[#allocation2 + $0x18] sm:$0xff] %vm53, 0.0
    %59 = vst.msk [vmem:[#allocation2 + $0x20] sm:$0xff] %vm53, 0.0
    %60 = vst.msk [vmem:[#allocation2 + $0x28] sm:$0x3] %vm56, 0.0
    %61 = vst.msk [vmem:[#allocation2 + $0x30] sm:$0xff] %vm53, 0.0
    %62 = vst.msk [vmem:[#allocation2 + $0x38] sm:$0xff] %vm53, 0.0
    %63 = vst.msk [vmem:[#allocation2 + $0x40] sm:$0x3] %vm56, 0.0
    %64 = vst.msk [vmem:[#allocation2 + $0x48] sm:$0xff] %vm53, 0.0
    %65 = vst.msk [vmem:[#allocation2 + $0x50] sm:$0xff] %vm53, 0.0
    %66 = vst.msk [vmem:[#allocation2 + $0x58] sm:$0x3] %vm56, 0.0
    %67 = vst.msk [vmem:[#allocation2 + $0x60] sm:$0xff] %vm53, 0.0
    %68 = vst.msk [vmem:[#allocation2 + $0x68] sm:$0xff] %vm53, 0.0
    %69 = vst.msk [vmem:[#allocation2 + $0x70] sm:$0x3] %vm56, 0.0
    %70 = vst.msk [vmem:[#allocation2 + $0x78] sm:$0xff] %vm53, 0.0
    %71 = vst.msk [vmem:[#allocation2 + $0x80] sm:$0xff] %vm53, 0.0
    %72 = vst.msk [vmem:[#allocation2 + $0x88] sm:$0x3] %vm56, 0.0
    %73 = vst.msk [vmem:[#allocation2 + $0x90] sm:$0xff] %vm53, 0.0
    %74 = vst.msk [vmem:[#allocation2 + $0x98] sm:$0xff] %vm53, 0.0
    %75 = vst.msk [vmem:[#allocation2 + $0xa0] sm:$0x3] %vm56, 0.0
    %76 = vst.msk [vmem:[#allocation2 + $0xa8] sm:$0xff] %vm53, 0.0
    %77 = vst.msk [vmem:[#allocation2 + $0xb0] sm:$0xff] %vm53, 0.0
    %78 = vst.msk [vmem:[#allocation2 + $0xb8] sm:$0x3] %vm56, 0.0
    %79 = vst.msk [vmem:[#allocation2 + $0xc0] sm:$0xff] %vm53, 0.0
    %80 = vst.msk [vmem:[#allocation2 + $0xc8] sm:$0xff] %vm53, 0.0
    %81 = vst.msk [vmem:[#allocation2 + $0xd0] sm:$0x3] %vm56, 0.0
    %82 = vst.msk [vmem:[#allocation2 + $0xd8] sm:$0xff] %vm53, 0.0
    %83 = vst.msk [vmem:[#allocation2 + $0xe0] sm:$0xff] %vm53, 0.0
    %84 = vst.msk [vmem:[#allocation2 + $0xe8] sm:$0x3] %vm56, 0.0
    %85 = vst.msk [vmem:[#allocation2 + $0xf0] sm:$0xff] %vm53, 0.0
    %86 = vst.msk [vmem:[#allocation2 + $0xf8] sm:$0xff] %vm53, 0.0
    %87 = vst.msk [vmem:[#allocation2 + $0x100] sm:$0x3] %vm56, 0.0
    %88 = vst.msk [vmem:[#allocation2 + $0x108] sm:$0xff] %vm53, 0.0
    %89 = vst.msk [vmem:[#allocation2 + $0x110] sm:$0xff] %vm53, 0.0
    %90 = vst.msk [vmem:[#allocation2 + $0x118] sm:$0x3] %vm56, 0.0
    %91 = vst.msk [vmem:[#allocation2 + $0x120] sm:$0xff] %vm53, 0.0
    %92 = vst.msk [vmem:[#allocation2 + $0x128] sm:$0xff] %vm53, 0.0
    %93 = vst.msk [vmem:[#allocation2 + $0x130] sm:$0x3] %vm56, 0.0
    %94 = vst.msk [vmem:[#allocation2 + $0x138] sm:$0xff] %vm53, 0.0
    %95 = vst.msk [vmem:[#allocation2 + $0x140] sm:$0xff] %vm53, 0.0
    %96 = vst.msk [vmem:[#allocation2 + $0x148] sm:$0x3] %vm56, 0.0
    %97 = vst.msk [vmem:[#allocation2 + $0x150] sm:$0xff] %vm53, 0.0
    %98 = vst.msk [vmem:[#allocation2 + $0x158] sm:$0xff] %vm53, 0.0
    %99 = vst.msk [vmem:[#allocation2 + $0x160] sm:$0x3] %vm56, 0.0
    %100 = vst.msk [vmem:[#allocation2 + $0x168] sm:$0xff] %vm53, 0.0
    %101 = vst.msk [vmem:[#allocation2 + $0x170] sm:$0xff] %vm53, 0.0
    %102 = vst.msk [vmem:[#allocation2 + $0x178] sm:$0x3] %vm56, 0.0
    %103 = vst.msk [vmem:[#allocation2 + $0x180] sm:$0xff] %vm53, 0.0
    %104 = vst.msk [vmem:[#allocation2 + $0x188] sm:$0xff] %vm53, 0.0
    %105 = vst.msk [vmem:[#allocation2 + $0x190] sm:$0x3] %vm56, 0.0
    %106 = vst.msk [vmem:[#allocation2 + $0x198] sm:$0xff] %vm53, 0.0
    %107 = vst.msk [vmem:[#allocation2 + $0x1a0] sm:$0xff] %vm53, 0.0
    %108 = vst.msk [vmem:[#allocation2 + $0x1a8] sm:$0x3] %vm56, 0.0
    %109 = vst.msk [vmem:[#allocation2 + $0x1b0] sm:$0xff] %vm53, 0.0
    %110 = vst.msk [vmem:[#allocation2 + $0x1b8] sm:$0xff] %vm53, 0.0
    %111 = vst.msk [vmem:[#allocation2 + $0x1c0] sm:$0x3] %vm56, 0.0
    %112 = vst.msk [vmem:[#allocation2 + $0x1c8] sm:$0xff] %vm53, 0.0
    %113 = vst.msk [vmem:[#allocation2 + $0x1d0] sm:$0xff] %vm53, 0.0
    %114 = vst.msk [vmem:[#allocation2 + $0x1d8] sm:$0x3] %vm56, 0.0
    %115 = vst.msk [vmem:[#allocation2 + $0x1e0] sm:$0xff] %vm53, 0.0
    %116 = vst.msk [vmem:[#allocation2 + $0x1e8] sm:$0xff] %vm53, 0.0
    %117 = vst.msk [vmem:[#allocation2 + $0x1f0] sm:$0x3] %vm56, 0.0
    %118 = vst.msk [vmem:[#allocation2 + $0x1f8] sm:$0xff] %vm53, 0.0
    %119 = vst.msk [vmem:[#allocation2 + $0x200] sm:$0xff] %vm53, 0.0
    %120 = vst.msk [vmem:[#allocation2 + $0x208] sm:$0x3] %vm56, 0.0
    %121 = vst.msk [vmem:[#allocation2 + $0x210] sm:$0xff] %vm53, 0.0
    %122 = vst.msk [vmem:[#allocation2 + $0x218] sm:$0xff] %vm53, 0.0
    %123 = vst.msk [vmem:[#allocation2 + $0x220] sm:$0x3] %vm56, 0.0
    %124 = vst.msk [vmem:[#allocation2 + $0x228] sm:$0xff] %vm53, 0.0
    %125 = vst.msk [vmem:[#allocation2 + $0x230] sm:$0xff] %vm53, 0.0
    %126 = vst.msk [vmem:[#allocation2 + $0x238] sm:$0x3] %vm56, 0.0
    %127 = vst.msk [vmem:[#allocation2 + $0x240] sm:$0xff] %vm53, 0.0
    %128 = vst.msk [vmem:[#allocation2 + $0x248] sm:$0xff] %vm53, 0.0
    %129 = vst.msk [vmem:[#allocation2 + $0x250] sm:$0x3] %vm56, 0.0
    %130 = vst.msk [vmem:[#allocation2 + $0x258] sm:$0xff] %vm53, 0.0
    %131 = vst.msk [vmem:[#allocation2 + $0x260] sm:$0xff] %vm53, 0.0
    %132 = vst.msk [vmem:[#allocation2 + $0x268] sm:$0x3] %vm56, 0.0
    %133 = vst.msk [vmem:[#allocation2 + $0x270] sm:$0xff] %vm53, 0.0
    %134 = vst.msk [vmem:[#allocation2 + $0x278] sm:$0xff] %vm53, 0.0
    %135 = vst.msk [vmem:[#allocation2 + $0x280] sm:$0x3] %vm56, 0.0
    %136 = vst.msk [vmem:[#allocation2 + $0x288] sm:$0xff] %vm53, 0.0
    %137 = vst.msk [vmem:[#allocation2 + $0x290] sm:$0xff] %vm53, 0.0
    %138 = vst.msk [vmem:[#allocation2 + $0x298] sm:$0x3] %vm56, 0.0
    %139 = vst.msk [vmem:[#allocation2 + $0x2a0] sm:$0xff] %vm53, 0.0
    %140 = vst.msk [vmem:[#allocation2 + $0x2a8] sm:$0xff] %vm53, 0.0
    %141 = vst.msk [vmem:[#allocation2 + $0x2b0] sm:$0x3] %vm56, 0.0
    %142 = vst.msk [vmem:[#allocation2 + $0x2b8] sm:$0xff] %vm53, 0.0
    %143 = vst.msk [vmem:[#allocation2 + $0x2c0] sm:$0xff] %vm53, 0.0
    %144 = vst.msk [vmem:[#allocation2 + $0x2c8] sm:$0x3] %vm56, 0.0
    %145 = vst.msk [vmem:[#allocation2 + $0x2d0] sm:$0xff] %vm53, 0.0
    %146 = vst.msk [vmem:[#allocation2 + $0x2d8] sm:$0xff] %vm53, 0.0
    %147 = vst.msk [vmem:[#allocation2 + $0x2e0] sm:$0x3] %vm56, 0.0
    %148 = vst.msk [vmem:[#allocation2 + $0x2e8] sm:$0xff] %vm53, 0.0
    %149 = vst.msk [vmem:[#allocation2 + $0x2f0] sm:$0xff] %vm53, 0.0
    %150 = vst.msk [vmem:[#allocation2 + $0x2f8] sm:$0x3] %vm56, 0.0
    %151 = vst.msk [vmem:[#allocation2 + $0x300] sm:$0xff] %vm53, 0.0
    %152 = vst.msk [vmem:[#allocation2 + $0x308] sm:$0xff] %vm53, 0.0
    %153 = vst.msk [vmem:[#allocation2 + $0x310] sm:$0x3] %vm56, 0.0
    %154 = vst.msk [vmem:[#allocation2 + $0x318] sm:$0xff] %vm53, 0.0
    %155 = vst.msk [vmem:[#allocation2 + $0x320] sm:$0xff] %vm53, 0.0
    %156 = vst.msk [vmem:[#allocation2 + $0x328] sm:$0x3] %vm56, 0.0
    %157 = vst.msk [vmem:[#allocation2 + $0x330] sm:$0xff] %vm53, 0.0
    %158 = vst.msk [vmem:[#allocation2 + $0x338] sm:$0xff] %vm53, 0.0
    %159 = vst.msk [vmem:[#allocation2 + $0x340] sm:$0x3] %vm56, 0.0
    %160 = vst.msk [vmem:[#allocation2 + $0x348] sm:$0xff] %vm53, 0.0
    %161 = vst.msk [vmem:[#allocation2 + $0x350] sm:$0xff] %vm53, 0.0
    %162 = vst.msk [vmem:[#allocation2 + $0x358] sm:$0x3] %vm56, 0.0
    %v163 = vld [vmem:[%s0] sm:$0xff]
    %v164 = vld [vmem:[%s0 + $0x8] sm:$0xff]
    %v165 = vld [vmem:[%s0 + $0x10] sm:$0xff]
    %v166 = vld [vmem:[%s0 + $0x18] sm:$0xff]
    %v167 = vld [vmem:[%s0 + $0x20] sm:$0xff]
    %v168 = vld [vmem:[%s0 + $0x28] sm:$0xff]
    %v169 = vld [vmem:[%s0 + $0x30] sm:$0xff]
    %v170 = vld [vmem:[%s0 + $0x38] sm:$0xff]
    %v171 = vld [vmem:[%s0 + $0x40] sm:$0xff]
    %v172 = vld [vmem:[%s0 + $0x48] sm:$0xff]
    %v173 = vld [vmem:[%s0 + $0x50] sm:$0xff]
    %v174 = vld [vmem:[%s0 + $0x58] sm:$0xff]
    %v175 = vld [vmem:[%s0 + $0x60] sm:$0xff]
    %v176 = vld [vmem:[%s0 + $0x68] sm:$0xff]
    %v177 = vld [vmem:[%s0 + $0x70] sm:$0xff]
    %v178 = vld [vmem:[%s0 + $0x78] sm:$0xff]
    %v179 = vld [vmem:[%s0 + $0x80] sm:$0xff]
    %v180 = vld [vmem:[%s0 + $0x88] sm:$0xff]
    %v181 = vld [vmem:[%s0 + $0x90] sm:$0xff]
    %v182 = vld [vmem:[%s0 + $0x98] sm:$0xff]
    %v183 = vld [vmem:[%s0 + $0xa0] sm:$0xff]
    %v184 = vld [vmem:[%s0 + $0xa8] sm:$0xff]
    %v185 = vld [vmem:[%s0 + $0xb0] sm:$0xff]
    %v186 = vld [vmem:[%s0 + $0xb8] sm:$0xff]
    %v187 = vld [vmem:[%s0 + $0xc0] sm:$0xff]
    %v188 = vld [vmem:[%s0 + $0xc8] sm:$0xff]
    %v189 = vld [vmem:[%s0 + $0xd0] sm:$0xff]
    %v190 = vld [vmem:[%s0 + $0xd8] sm:$0xff]
    %v191 = vld [vmem:[%s0 + $0xe0] sm:$0xff]
    %v192 = vld [vmem:[%s0 + $0xe8] sm:$0xff]
    %v193 = vld [vmem:[%s0 + $0xf0] sm:$0xff]
    %v194 = vld [vmem:[%s0 + $0xf8] sm:$0xff]
    %v195 = vld [vmem:[%s0 + $0x100] sm:$0xff]
    %v196 = vld [vmem:[%s0 + $0x108] sm:$0xff]
    %v197 = vld [vmem:[%s0 + $0x110] sm:$0xff]
    %v198 = vld [vmem:[%s0 + $0x118] sm:$0xff]
    %v199 = vld [vmem:[%s0 + $0x120] sm:$0xff]
    %v200 = vld [vmem:[%s0 + $0x128] sm:$0xff]
    %v201 = vld [vmem:[%s0 + $0x130] sm:$0xff]
    %v202 = vld [vmem:[%s0 + $0x138] sm:$0xff]
    %v203 = vld [vmem:[%s0 + $0x140] sm:$0xff]
    %v204 = vld [vmem:[%s0 + $0x148] sm:$0xff]
    %v205 = vld [vmem:[%s0 + $0x150] sm:$0xff]
    %v206 = vld [vmem:[%s0 + $0x158] sm:$0xff]
    %v207 = vld [vmem:[%s0 + $0x160] sm:$0xff]
    %v208 = vld [vmem:[%s0 + $0x168] sm:$0xff]
    %v209 = vld [vmem:[%s0 + $0x170] sm:$0xff]
    %v210 = vld [vmem:[%s0 + $0x178] sm:$0xff]
    %v211 = vld [vmem:[%s0 + $0x180] sm:$0xff]
    %v212 = vld [vmem:[%s0 + $0x188] sm:$0xff]
    %v213 = vld [vmem:[%s0 + $0x190] sm:$0xff]
    %v214 = vld [vmem:[%s0 + $0x198] sm:$0xff]
    %v215 = vld [vmem:[%s0 + $0x1a0] sm:$0xff]
    %v216 = vld [vmem:[%s0 + $0x1a8] sm:$0xff]
    %v217 = vld [vmem:[%s0 + $0x1b0] sm:$0xff]
    %v218 = vld [vmem:[%s0 + $0x1b8] sm:$0xff]
    %v219 = vld [vmem:[%s0 + $0x1c0] sm:$0xff]
    %v220 = vld [vmem:[%s0 + $0x1c8] sm:$0xff]
    %v221 = vld [vmem:[%s0 + $0x1d0] sm:$0xff]
    %v222 = vld [vmem:[%s0 + $0x1d8] sm:$0xff]
    %v223 = vld [vmem:[%s0 + $0x1e0] sm:$0xff]
    %v224 = vld [vmem:[%s0 + $0x1e8] sm:$0xff]
    %v225 = vld [vmem:[%s0 + $0x1f0] sm:$0xff]
    %v226 = vld [vmem:[%s0 + $0x1f8] sm:$0xff]
    %s227 = scalar_lea.vmem [#allocation2], 24
    %228 = vst.msk [vmem:[%s227 + $0x1] sm:$0xff] %vm53, %v163
    %229 = vst.msk [vmem:[%s227 + $0x9] sm:$0xff] %vm53, %v164
    %230 = vst.msk [vmem:[%s227 + $0x19] sm:$0xff] %vm53, %v165
    %231 = vst.msk [vmem:[%s227 + $0x21] sm:$0xff] %vm53, %v166
    %232 = vst.msk [vmem:[%s227 + $0x31] sm:$0xff] %vm53, %v167
    %233 = vst.msk [vmem:[%s227 + $0x39] sm:$0xff] %vm53, %v168
    %234 = vst.msk [vmem:[%s227 + $0x49] sm:$0xff] %vm53, %v169
    %235 = vst.msk [vmem:[%s227 + $0x51] sm:$0xff] %vm53, %v170
    %236 = vst.msk [vmem:[%s227 + $0x61] sm:$0xff] %vm53, %v171
    %237 = vst.msk [vmem:[%s227 + $0x69] sm:$0xff] %vm53, %v172
    %238 = vst.msk [vmem:[%s227 + $0x79] sm:$0xff] %vm53, %v173
    %239 = vst.msk [vmem:[%s227 + $0x81] sm:$0xff] %vm53, %v174
    %240 = vst.msk [vmem:[%s227 + $0x91] sm:$0xff] %vm53, %v175
    %241 = vst.msk [vmem:[%s227 + $0x99] sm:$0xff] %vm53, %v176
    %242 = vst.msk [vmem:[%s227 + $0xa9] sm:$0xff] %vm53, %v177
    %243 = vst.msk [vmem:[%s227 + $0xb1] sm:$0xff] %vm53, %v178
    %244 = vst.msk [vmem:[%s227 + $0xc1] sm:$0xff] %vm53, %v179
    %245 = vst.msk [vmem:[%s227 + $0xc9] sm:$0xff] %vm53, %v180
    %246 = vst.msk [vmem:[%s227 + $0xd9] sm:$0xff] %vm53, %v181
    %247 = vst.msk [vmem:[%s227 + $0xe1] sm:$0xff] %vm53, %v182
    %248 = vst.msk [vmem:[%s227 + $0xf1] sm:$0xff] %vm53, %v183
    %249 = vst.msk [vmem:[%s227 + $0xf9] sm:$0xff] %vm53, %v184
    %250 = vst.msk [vmem:[%s227 + $0x109] sm:$0xff] %vm53, %v185
    %251 = vst.msk [vmem:[%s227 + $0x111] sm:$0xff] %vm53, %v186
    %252 = vst.msk [vmem:[%s227 + $0x121] sm:$0xff] %vm53, %v187
    %253 = vst.msk [vmem:[%s227 + $0x129] sm:$0xff] %vm53, %v188
    %254 = vst.msk [vmem:[%s227 + $0x139] sm:$0xff] %vm53, %v189
    %255 = vst.msk [vmem:[%s227 + $0x141] sm:$0xff] %vm53, %v190
    %256 = vst.msk [vmem:[%s227 + $0x151] sm:$0xff] %vm53, %v191
    %257 = vst.msk [vmem:[%s227 + $0x159] sm:$0xff] %vm53, %v192
    %258 = vst.msk [vmem:[%s227 + $0x169] sm:$0xff] %vm53, %v193
    %259 = vst.msk [vmem:[%s227 + $0x171] sm:$0xff] %vm53, %v194
    %260 = vst.msk [vmem:[%s227 + $0x1b1] sm:$0xff] %vm53, %v195
    %261 = vst.msk [vmem:[%s227 + $0x1b9] sm:$0xff] %vm53, %v196
    %262 = vst.msk [vmem:[%s227 + $0x1c9] sm:$0xff] %vm53, %v197
    %263 = vst.msk [vmem:[%s227 + $0x1d1] sm:$0xff] %vm53, %v198
    %264 = vst.msk [vmem:[%s227 + $0x1e1] sm:$0xff] %vm53, %v199
    %265 = vst.msk [vmem:[%s227 + $0x1e9] sm:$0xff] %vm53, %v200
    %266 = vst.msk [vmem:[%s227 + $0x1f9] sm:$0xff] %vm53, %v201
    %267 = vst.msk [vmem:[%s227 + $0x201] sm:$0xff] %vm53, %v202
    %268 = vst.msk [vmem:[%s227 + $0x211] sm:$0xff] %vm53, %v203
    %269 = vst.msk [vmem:[%s227 + $0x219] sm:$0xff] %vm53, %v204
    %270 = vst.msk [vmem:[%s227 + $0x229] sm:$0xff] %vm53, %v205
    %271 = vst.msk [vmem:[%s227 + $0x231] sm:$0xff] %vm53, %v206
    %272 = vst.msk [vmem:[%s227 + $0x241] sm:$0xff] %vm53, %v207
    %273 = vst.msk [vmem:[%s227 + $0x249] sm:$0xff] %vm53, %v208
    %274 = vst.msk [vmem:[%s227 + $0x259] sm:$0xff] %vm53, %v209
    %275 = vst.msk [vmem:[%s227 + $0x261] sm:$0xff] %vm53, %v210
    %276 = vst.msk [vmem:[%s227 + $0x271] sm:$0xff] %vm53, %v211
    %277 = vst.msk [vmem:[%s227 + $0x279] sm:$0xff] %vm53, %v212
    %278 = vst.msk [vmem:[%s227 + $0x289] sm:$0xff] %vm53, %v213
    %279 = vst.msk [vmem:[%s227 + $0x291] sm:$0xff] %vm53, %v214
    %280 = vst.msk [vmem:[%s227 + $0x2a1] sm:$0xff] %vm53, %v215
    %281 = vst.msk [vmem:[%s227 + $0x2a9] sm:$0xff] %vm53, %v216
    %282 = vst.msk [vmem:[%s227 + $0x2b9] sm:$0xff] %vm53, %v217
    %283 = vst.msk [vmem:[%s227 + $0x2c1] sm:$0xff] %vm53, %v218
    %284 = vst.msk [vmem:[%s227 + $0x2d1] sm:$0xff] %vm53, %v219
    %285 = vst.msk [vmem:[%s227 + $0x2d9] sm:$0xff] %vm53, %v220
    %286 = vst.msk [vmem:[%s227 + $0x2e9] sm:$0xff] %vm53, %v221
    %287 = vst.msk [vmem:[%s227 + $0x2f1] sm:$0xff] %vm53, %v222
    %288 = vst.msk [vmem:[%s227 + $0x301] sm:$0xff] %vm53, %v223
    %289 = vst.msk [vmem:[%s227 + $0x309] sm:$0xff] %vm53, %v224
    %290 = vst.msk [vmem:[%s227 + $0x319] sm:$0xff] %vm53, %v225
    %291 = vst.msk [vmem:[%s227 + $0x321] sm:$0xff] %vm53, %v226
    %v292 = vld [vmem:[#allocation2] sm:$0xff]
    %v293 = vld [vmem:[#allocation2 + $0x8] sm:$0xff]
    %v294 = vld [vmem:[#allocation2 + $0x18] sm:$0xff]
    %v295 = vld [vmem:[#allocation2 + $0x20] sm:$0xff]
    %v296 = vld [vmem:[#allocation2 + $0x30] sm:$0xff]
    %v297 = vld [vmem:[#allocation2 + $0x38] sm:$0xff]
    %v298 = vld [vmem:[#allocation2 + $0x48] sm:$0xff]
    %v299 = vld [vmem:[#allocation2 + $0x50] sm:$0xff]
    %v300 = vld [vmem:[#allocation2 + $0x60] sm:$0xff]
    %v301 = vld [vmem:[#allocation2 + $0x68] sm:$0xff]
    %v302 = vld [vmem:[#allocation2 + $0x78] sm:$0xff]
    %v303 = vld [vmem:[#allocation2 + $0x80] sm:$0xff]
    %v304 = vld [vmem:[#allocation2 + $0x90] sm:$0xff]
    %v305 = vld [vmem:[#allocation2 + $0x98] sm:$0xff]
    %v306 = vld [vmem:[#allocation2 + $0xa8] sm:$0xff]
    %v307 = vld [vmem:[#allocation2 + $0xb0] sm:$0xff]
    %v308 = vld [vmem:[#allocation2 + $0xc0] sm:$0xff]
    %v309 = vld [vmem:[#allocation2 + $0xc8] sm:$0xff]
    %v310 = vld [vmem:[#allocation2 + $0xd8] sm:$0xff]
    %v311 = vld [vmem:[#allocation2 + $0xe0] sm:$0xff]
    %v312 = vld [vmem:[#allocation2 + $0xf0] sm:$0xff]
    %v313 = vld [vmem:[#allocation2 + $0xf8] sm:$0xff]
    %v314 = vld [vmem:[#allocation2 + $0x108] sm:$0xff]
    %v315 = vld [vmem:[#allocation2 + $0x110] sm:$0xff]
    %v316 = vld [vmem:[#allocation2 + $0x120] sm:$0xff]
    %v317 = vld [vmem:[#allocation2 + $0x128] sm:$0xff]
    %v318 = vld [vmem:[#allocation2 + $0x138] sm:$0xff]
    %v319 = vld [vmem:[#allocation2 + $0x140] sm:$0xff]
    %v320 = vld [vmem:[#allocation2 + $0x150] sm:$0xff]
    %v321 = vld [vmem:[#allocation2 + $0x158] sm:$0xff]
    %v322 = vld [vmem:[#allocation2 + $0x168] sm:$0xff]
    %v323 = vld [vmem:[#allocation2 + $0x170] sm:$0xff]
    %v324 = vld [vmem:[#allocation2 + $0x1b0] sm:$0xff]
    %v325 = vld [vmem:[#allocation2 + $0x1b8] sm:$0xff]
    %v326 = vld [vmem:[#allocation2 + $0x1c8] sm:$0xff]
    %v327 = vld [vmem:[#allocation2 + $0x1d0] sm:$0xff]
    %v328 = vld [vmem:[#allocation2 + $0x1e0] sm:$0xff]
    %v329 = vld [vmem:[#allocation2 + $0x1e8] sm:$0xff]
    %v330 = vld [vmem:[#allocation2 + $0x1f8] sm:$0xff]
    %v331 = vld [vmem:[#allocation2 + $0x200] sm:$0xff]
    %v332 = vld [vmem:[#allocation2 + $0x210] sm:$0xff]
    %v333 = vld [vmem:[#allocation2 + $0x218] sm:$0xff]
    %v334 = vld [vmem:[#allocation2 + $0x228] sm:$0xff]
    %v335 = vld [vmem:[#allocation2 + $0x230] sm:$0xff]
    %v336 = vld [vmem:[#allocation2 + $0x240] sm:$0xff]
    %v337 = vld [vmem:[#allocation2 + $0x248] sm:$0xff]
    %v338 = vld [vmem:[#allocation2 + $0x258] sm:$0xff]
    %v339 = vld [vmem:[#allocation2 + $0x260] sm:$0xff]
    %v340 = vld [vmem:[#allocation2 + $0x270] sm:$0xff]
    %v341 = vld [vmem:[#allocation2 + $0x278] sm:$0xff]
    %v342 = vld [vmem:[#allocation2 + $0x288] sm:$0xff]
    %v343 = vld [vmem:[#allocation2 + $0x290] sm:$0xff]
    %v344 = vld [vmem:[#allocation2 + $0x2a0] sm:$0xff]
    %v345 = vld [vmem:[#allocation2 + $0x2a8] sm:$0xff]
    %v346 = vld [vmem:[#allocation2 + $0x2b8] sm:$0xff]
    %v347 = vld [vmem:[#allocation2 + $0x2c0] sm:$0xff]
    %v348 = vld [vmem:[#allocation2 + $0x2d0] sm:$0xff]
    %v349 = vld [vmem:[#allocation2 + $0x2d8] sm:$0xff]
    %v350 = vld [vmem:[#allocation2 + $0x2e8] sm:$0xff]
    %v351 = vld [vmem:[#allocation2 + $0x2f0] sm:$0xff]
    %v352 = vld [vmem:[#allocation2 + $0x300] sm:$0xff]
    %v353 = vld [vmem:[#allocation2 + $0x308] sm:$0xff]
    %v354 = vld [vmem:[#allocation2 + $0x318] sm:$0xff]
    %v355 = vld [vmem:[#allocation2 + $0x320] sm:$0xff]
    %356 = vst.msk [vmem:[#allocation3] sm:$0xff] %vm53, %v292
    %357 = vst.msk [vmem:[#allocation3 + $0x8] sm:$0xff] %vm53, %v293
    %358 = vst.msk [vmem:[#allocation3 + $0x10] sm:$0xff] %vm53, %v294
    %359 = vst.msk [vmem:[#allocation3 + $0x18] sm:$0xff] %vm53, %v295
    %360 = vst.msk [vmem:[#allocation3 + $0x20] sm:$0xff] %vm53, %v296
    %361 = vst.msk [vmem:[#allocation3 + $0x28] sm:$0xff] %vm53, %v297
    %362 = vst.msk [vmem:[#allocation3 + $0x30] sm:$0xff] %vm53, %v298
    %363 = vst.msk [vmem:[#allocation3 + $0x38] sm:$0xff] %vm53, %v299
    %364 = vst.msk [vmem:[#allocation3 + $0x40] sm:$0xff] %vm53, %v300
    %365 = vst.msk [vmem:[#allocation3 + $0x48] sm:$0xff] %vm53, %v301
    %366 = vst.msk [vmem:[#allocation3 + $0x50] sm:$0xff] %vm53, %v302
    %367 = vst.msk [vmem:[#allocation3 + $0x58] sm:$0xff] %vm53, %v303
    %368 = vst.msk [vmem:[#allocation3 + $0x60] sm:$0xff] %vm53, %v304
    %369 = vst.msk [vmem:[#allocation3 + $0x68] sm:$0xff] %vm53, %v305
    %370 = vst.msk [vmem:[#allocation3 + $0x70] sm:$0xff] %vm53, %v306
    %371 = vst.msk [vmem:[#allocation3 + $0x78] sm:$0xff] %vm53, %v307
    %372 = vst.msk [vmem:[#allocation3 + $0x80] sm:$0xff] %vm53, %v308
    %373 = vst.msk [vmem:[#allocation3 + $0x88] sm:$0xff] %vm53, %v309
    %374 = vst.msk [vmem:[#allocation3 + $0x90] sm:$0xff] %vm53, %v310
    %375 = vst.msk [vmem:[#allocation3 + $0x98] sm:$0xff] %vm53, %v311
    %376 = vst.msk [vmem:[#allocation3 + $0xa0] sm:$0xff] %vm53, %v312
    %377 = vst.msk [vmem:[#allocation3 + $0xa8] sm:$0xff] %vm53, %v313
    %378 = vst.msk [vmem:[#allocation3 + $0xb0] sm:$0xff] %vm53, %v314
    %379 = vst.msk [vmem:[#allocation3 + $0xb8] sm:$0xff] %vm53, %v315
    %380 = vst.msk [vmem:[#allocation3 + $0xc0] sm:$0xff] %vm53, %v316
    %381 = vst.msk [vmem:[#allocation3 + $0xc8] sm:$0xff] %vm53, %v317
    %382 = vst.msk [vmem:[#allocation3 + $0xd0] sm:$0xff] %vm53, %v318
    %383 = vst.msk [vmem:[#allocation3 + $0xd8] sm:$0xff] %vm53, %v319
    %384 = vst.msk [vmem:[#allocation3 + $0xe0] sm:$0xff] %vm53, %v320
    %385 = vst.msk [vmem:[#allocation3 + $0xe8] sm:$0xff] %vm53, %v321
    %386 = vst.msk [vmem:[#allocation3 + $0xf0] sm:$0xff] %vm53, %v322
    %387 = vst.msk [vmem:[#allocation3 + $0xf8] sm:$0xff] %vm53, %v323
    %388 = vst.msk [vmem:[#allocation3 + $0x100] sm:$0xff] %vm53, %v324
    %389 = vst.msk [vmem:[#allocation3 + $0x108] sm:$0xff] %vm53, %v325
    %390 = vst.msk [vmem:[#allocation3 + $0x110] sm:$0xff] %vm53, %v326
    %391 = vst.msk [vmem:[#allocation3 + $0x118] sm:$0xff] %vm53, %v327
    %392 = vst.msk [vmem:[#allocation3 + $0x120] sm:$0xff] %vm53, %v328
    %393 = vst.msk [vmem:[#allocation3 + $0x128] sm:$0xff] %vm53, %v329
    %394 = vst.msk [vmem:[#allocation3 + $0x130] sm:$0xff] %vm53, %v330
    %395 = vst.msk [vmem:[#allocation3 + $0x138] sm:$0xff] %vm53, %v331
    %396 = vst.msk [vmem:[#allocation3 + $0x140] sm:$0xff] %vm53, %v332
    %397 = vst.msk [vmem:[#allocation3 + $0x148] sm:$0xff] %vm53, %v333
    %398 = vst.msk [vmem:[#allocation3 + $0x150] sm:$0xff] %vm53, %v334
    %399 = vst.msk [vmem:[#allocation3 + $0x158] sm:$0xff] %vm53, %v335
    %400 = vst.msk [vmem:[#allocation3 + $0x160] sm:$0xff] %vm53, %v336
    %401 = vst.msk [vmem:[#allocation3 + $0x168] sm:$0xff] %vm53, %v337
    %402 = vst.msk [vmem:[#allocation3 + $0x170] sm:$0xff] %vm53, %v338
    %403 = vst.msk [vmem:[#allocation3 + $0x178] sm:$0xff] %vm53, %v339
    %404 = vst.msk [vmem:[#allocation3 + $0x180] sm:$0xff] %vm53, %v340
    %405 = vst.msk [vmem:[#allocation3 + $0x188] sm:$0xff] %vm53, %v341
    %406 = vst.msk [vmem:[#allocation3 + $0x190] sm:$0xff] %vm53, %v342
    %407 = vst.msk [vmem:[#allocation3 + $0x198] sm:$0xff] %vm53, %v343
    %408 = vst.msk [vmem:[#allocation3 + $0x1a0] sm:$0xff] %vm53, %v344
    %409 = vst.msk [vmem:[#allocation3 + $0x1a8] sm:$0xff] %vm53, %v345
    %410 = vst.msk [vmem:[#allocation3 + $0x1b0] sm:$0xff] %vm53, %v346
    %411 = vst.msk [vmem:[#allocation3 + $0x1b8] sm:$0xff] %vm53, %v347
    %412 = vst.msk [vmem:[#allocation3 + $0x1c0] sm:$0xff] %vm53, %v348
    %413 = vst.msk [vmem:[#allocation3 + $0x1c8] sm:$0xff] %vm53, %v349
    %414 = vst.msk [vmem:[#allocation3 + $0x1d0] sm:$0xff] %vm53, %v350
    %415 = vst.msk [vmem:[#allocation3 + $0x1d8] sm:$0xff] %vm53, %v351
    %416 = vst.msk [vmem:[#allocation3 + $0x1e0] sm:$0xff] %vm53, %v352
    %417 = vst.msk [vmem:[#allocation3 + $0x1e8] sm:$0xff] %vm53, %v353
    %418 = vst.msk [vmem:[#allocation3 + $0x1f0] sm:$0xff] %vm53, %v354
    %419 = vst.msk [vmem:[#allocation3 + $0x1f8] sm:$0xff] %vm53, %v355
    %v420 = vld [vmem:[#allocation2 + $0x1] sm:$0xff]
    %v421 = vld [vmem:[#allocation2 + $0x9] sm:$0xff]
    %v422 = vld [vmem:[#allocation2 + $0x19] sm:$0xff]
    %v423 = vld [vmem:[#allocation2 + $0x21] sm:$0xff]
    %v424 = vld [vmem:[#allocation2 + $0x31] sm:$0xff]
    %v425 = vld [vmem:[#allocation2 + $0x39] sm:$0xff]
    %v426 = vld [vmem:[#allocation2 + $0x49] sm:$0xff]
    %v427 = vld [vmem:[#allocation2 + $0x51] sm:$0xff]
    %v428 = vld [vmem:[#allocation2 + $0x61] sm:$0xff]
    %v429 = vld [vmem:[#allocation2 + $0x69] sm:$0xff]
    %v430 = vld [vmem:[#allocation2 + $0x79] sm:$0xff]
    %v431 = vld [vmem:[#allocation2 + $0x81] sm:$0xff]
    %v432 = vld [vmem:[#allocation2 + $0x91] sm:$0xff]
    %v433 = vld [vmem:[#allocation2 + $0x99] sm:$0xff]
    %v434 = vld [vmem:[#allocation2 + $0xa9] sm:$0xff]
    %v435 = vld [vmem:[#allocation2 + $0xb1] sm:$0xff]
    %v436 = vld [vmem:[#allocation2 + $0xc1] sm:$0xff]
    %v437 = vld [vmem:[#allocation2 + $0xc9] sm:$0xff]
    %v438 = vld [vmem:[#allocation2 + $0xd9] sm:$0xff]
    %v439 = vld [vmem:[#allocation2 + $0xe1] sm:$0xff]
    %v440 = vld [vmem:[#allocation2 + $0xf1] sm:$0xff]
    %v441 = vld [vmem:[#allocation2 + $0xf9] sm:$0xff]
    %v442 = vld [vmem:[#allocation2 + $0x109] sm:$0xff]
    %v443 = vld [vmem:[#allocation2 + $0x111] sm:$0xff]
    %v444 = vld [vmem:[#allocation2 + $0x121] sm:$0xff]
    %v445 = vld [vmem:[#allocation2 + $0x129] sm:$0xff]
    %v446 = vld [vmem:[#allocation2 + $0x139] sm:$0xff]
    %v447 = vld [vmem:[#allocation2 + $0x141] sm:$0xff]
    %v448 = vld [vmem:[#allocation2 + $0x151] sm:$0xff]
    %v449 = vld [vmem:[#allocation2 + $0x159] sm:$0xff]
    %v450 = vld [vmem:[#allocation2 + $0x169] sm:$0xff]
    %v451 = vld [vmem:[#allocation2 + $0x171] sm:$0xff]
    %v452 = vld [vmem:[#allocation2 + $0x1b1] sm:$0xff]
    %v453 = vld [vmem:[#allocation2 + $0x1b9] sm:$0xff]
    %v454 = vld [vmem:[#allocation2 + $0x1c9] sm:$0xff]
    %v455 = vld [vmem:[#allocation2 + $0x1d1] sm:$0xff]
    %v456 = vld [vmem:[#allocation2 + $0x1e1] sm:$0xff]
    %v457 = vld [vmem:[#allocation2 + $0x1e9] sm:$0xff]
    %v458 = vld [vmem:[#allocation2 + $0x1f9] sm:$0xff]
    %v459 = vld [vmem:[#allocation2 + $0x201] sm:$0xff]
    %v460 = vld [vmem:[#allocation2 + $0x211] sm:$0xff]
    %v461 = vld [vmem:[#allocation2 + $0x219] sm:$0xff]
    %v462 = vld [vmem:[#allocation2 + $0x229] sm:$0xff]
    %v463 = vld [vmem:[#allocation2 + $0x231] sm:$0xff]
    %v464 = vld [vmem:[#allocation2 + $0x241] sm:$0xff]
    %v465 = vld [vmem:[#allocation2 + $0x249] sm:$0xff]
    %v466 = vld [vmem:[#allocation2 + $0x259] sm:$0xff]
    %v467 = vld [vmem:[#allocation2 + $0x261] sm:$0xff]
    %v468 = vld [vmem:[#allocation2 + $0x271] sm:$0xff]
    %v469 = vld [vmem:[#allocation2 + $0x279] sm:$0xff]
    %v470 = vld [vmem:[#allocation2 + $0x289] sm:$0xff]
    %v471 = vld [vmem:[#allocation2 + $0x291] sm:$0xff]
    %v472 = vld [vmem:[#allocation2 + $0x2a1] sm:$0xff]
    %v473 = vld [vmem:[#allocation2 + $0x2a9] sm:$0xff]
    %v474 = vld [vmem:[#allocation2 + $0x2b9] sm:$0xff]
    %v475 = vld [vmem:[#allocation2 + $0x2c1] sm:$0xff]
    %v476 = vld [vmem:[#allocation2 + $0x2d1] sm:$0xff]
    %v477 = vld [vmem:[#allocation2 + $0x2d9] sm:$0xff]
    %v478 = vld [vmem:[#allocation2 + $0x2e9] sm:$0xff]
    %v479 = vld [vmem:[#allocation2 + $0x2f1] sm:$0xff]
    %v480 = vld [vmem:[#allocation2 + $0x301] sm:$0xff]
    %v481 = vld [vmem:[#allocation2 + $0x309] sm:$0xff]
    %v482 = vld [vmem:[#allocation2 + $0x319] sm:$0xff]
    %v483 = vld [vmem:[#allocation2 + $0x321] sm:$0xff]
    %548 = vrot.lane.b32.xlu0 %v420, 4
    %v549 = vpop.permute.xlu0 %548
    %550 = vrot.lane.b32.xlu0 %v421, 4
    %v551 = vpop.permute.xlu0 %550
    %552 = vrot.lane.b32.xlu0 %v422, 4
    %v553 = vpop.permute.xlu0 %552
    %554 = vrot.lane.b32.xlu0 %v423, 4
    %v555 = vpop.permute.xlu0 %554
    %556 = vrot.lane.b32.xlu0 %v424, 4
    %v557 = vpop.permute.xlu0 %556
    %558 = vrot.lane.b32.xlu0 %v425, 4
    %v559 = vpop.permute.xlu0 %558
    %560 = vrot.lane.b32.xlu0 %v426, 4
    %v561 = vpop.permute.xlu0 %560
    %562 = vrot.lane.b32.xlu0 %v427, 4
    %v563 = vpop.permute.xlu0 %562
    %564 = vrot.lane.b32.xlu0 %v428, 4
    %v565 = vpop.permute.xlu0 %564
    %566 = vrot.lane.b32.xlu0 %v429, 4
    %v567 = vpop.permute.xlu0 %566
    %568 = vrot.lane.b32.xlu0 %v430, 4
    %v569 = vpop.permute.xlu0 %568
    %570 = vrot.lane.b32.xlu0 %v431, 4
    %v571 = vpop.permute.xlu0 %570
    %572 = vrot.lane.b32.xlu0 %v432, 4
    %v573 = vpop.permute.xlu0 %572
    %574 = vrot.lane.b32.xlu0 %v433, 4
    %v575 = vpop.permute.xlu0 %574
    %576 = vrot.lane.b32.xlu0 %v434, 4
    %v577 = vpop.permute.xlu0 %576
    %578 = vrot.lane.b32.xlu0 %v435, 4
    %v579 = vpop.permute.xlu0 %578
    %580 = vrot.lane.b32.xlu0 %v436, 4
    %v581 = vpop.permute.xlu0 %580
    %582 = vrot.lane.b32.xlu0 %v437, 4
    %v583 = vpop.permute.xlu0 %582
    %584 = vrot.lane.b32.xlu0 %v438, 4
    %v585 = vpop.permute.xlu0 %584
    %586 = vrot.lane.b32.xlu0 %v439, 4
    %v587 = vpop.permute.xlu0 %586
    %588 = vrot.lane.b32.xlu0 %v440, 4
    %v589 = vpop.permute.xlu0 %588
    %590 = vrot.lane.b32.xlu0 %v441, 4
    %v591 = vpop.permute.xlu0 %590
    %592 = vrot.lane.b32.xlu0 %v442, 4
    %v593 = vpop.permute.xlu0 %592
    %594 = vrot.lane.b32.xlu0 %v443, 4
    %v595 = vpop.permute.xlu0 %594
    %596 = vrot.lane.b32.xlu0 %v444, 4
    %v597 = vpop.permute.xlu0 %596
    %598 = vrot.lane.b32.xlu0 %v445, 4
    %v599 = vpop.permute.xlu0 %598
    %600 = vrot.lane.b32.xlu0 %v446, 4
    %v601 = vpop.permute.xlu0 %600
    %602 = vrot.lane.b32.xlu0 %v447, 4
    %v603 = vpop.permute.xlu0 %602
    %604 = vrot.lane.b32.xlu0 %v448, 4
    %v605 = vpop.permute.xlu0 %604
    %606 = vrot.lane.b32.xlu0 %v449, 4
    %v607 = vpop.permute.xlu0 %606
    %608 = vrot.lane.b32.xlu0 %v450, 4
    %v609 = vpop.permute.xlu0 %608
    %610 = vrot.lane.b32.xlu0 %v451, 4
    %v611 = vpop.permute.xlu0 %610
    %612 = vrot.lane.b32.xlu0 %v452, 4
    %v613 = vpop.permute.xlu0 %612
    %614 = vrot.lane.b32.xlu0 %v453, 4
    %v615 = vpop.permute.xlu0 %614
    %616 = vrot.lane.b32.xlu0 %v454, 4
    %v617 = vpop.permute.xlu0 %616
    %618 = vrot.lane.b32.xlu0 %v455, 4
    %v619 = vpop.permute.xlu0 %618
    %620 = vrot.lane.b32.xlu0 %v456, 4
    %v621 = vpop.permute.xlu0 %620
    %622 = vrot.lane.b32.xlu0 %v457, 4
    %v623 = vpop.permute.xlu0 %622
    %624 = vrot.lane.b32.xlu0 %v458, 4
    %v625 = vpop.permute.xlu0 %624
    %626 = vrot.lane.b32.xlu0 %v459, 4
    %v627 = vpop.permute.xlu0 %626
    %628 = vrot.lane.b32.xlu0 %v460, 4
    %v629 = vpop.permute.xlu0 %628
    %630 = vrot.lane.b32.xlu0 %v461, 4
    %v631 = vpop.permute.xlu0 %630
    %632 = vrot.lane.b32.xlu0 %v462, 4
    %v633 = vpop.permute.xlu0 %632
    %634 = vrot.lane.b32.xlu0 %v463, 4
    %v635 = vpop.permute.xlu0 %634
    %636 = vrot.lane.b32.xlu0 %v464, 4
    %v637 = vpop.permute.xlu0 %636
    %638 = vrot.lane.b32.xlu0 %v465, 4
    %v639 = vpop.permute.xlu0 %638
    %640 = vrot.lane.b32.xlu0 %v466, 4
    %v641 = vpop.permute.xlu0 %640
    %642 = vrot.lane.b32.xlu0 %v467, 4
    %v643 = vpop.permute.xlu0 %642
    %644 = vrot.lane.b32.xlu0 %v468, 4
    %v645 = vpop.permute.xlu0 %644
    %646 = vrot.lane.b32.xlu0 %v469, 4
    %v647 = vpop.permute.xlu0 %646
    %648 = vrot.lane.b32.xlu0 %v470, 4
    %v649 = vpop.permute.xlu0 %648
    %650 = vrot.lane.b32.xlu0 %v471, 4
    %v651 = vpop.permute.xlu0 %650
    %652 = vrot.lane.b32.xlu0 %v472, 4
    %v653 = vpop.permute.xlu0 %652
    %654 = vrot.lane.b32.xlu0 %v473, 4
    %v655 = vpop.permute.xlu0 %654
    %656 = vrot.lane.b32.xlu0 %v474, 4
    %v657 = vpop.permute.xlu0 %656
    %658 = vrot.lane.b32.xlu0 %v475, 4
    %v659 = vpop.permute.xlu0 %658
    %660 = vrot.lane.b32.xlu0 %v476, 4
    %v661 = vpop.permute.xlu0 %660
    %662 = vrot.lane.b32.xlu0 %v477, 4
    %v663 = vpop.permute.xlu0 %662
    %664 = vrot.lane.b32.xlu0 %v478, 4
    %v665 = vpop.permute.xlu0 %664
    %666 = vrot.lane.b32.xlu0 %v479, 4
    %v667 = vpop.permute.xlu0 %666
    %668 = vrot.lane.b32.xlu0 %v480, 4
    %v669 = vpop.permute.xlu0 %668
    %670 = vrot.lane.b32.xlu0 %v481, 4
    %v671 = vpop.permute.xlu0 %670
    %672 = vrot.lane.b32.xlu0 %v482, 4
    %v673 = vpop.permute.xlu0 %672
    %674 = vrot.lane.b32.xlu0 %v483, 4
    %v675 = vpop.permute.xlu0 %674
    %vm740 = vcmask 64544
    %741 = vst.msk [vmem:[#allocation3] sm:$0xff] %vm740, %v549
    %742 = vst.msk [vmem:[#allocation3 + $0x8] sm:$0xff] %vm740, %v551
    %743 = vst.msk [vmem:[#allocation3 + $0x10] sm:$0xff] %vm740, %v553
    %744 = vst.msk [vmem:[#allocation3 + $0x18] sm:$0xff] %vm740, %v555
    %745 = vst.msk [vmem:[#allocation3 + $0x20] sm:$0xff] %vm740, %v557
    %746 = vst.msk [vmem:[#allocation3 + $0x28] sm:$0xff] %vm740, %v559
    %747 = vst.msk [vmem:[#allocation3 + $0x30] sm:$0xff] %vm740, %v561
    %748 = vst.msk [vmem:[#allocation3 + $0x38] sm:$0xff] %vm740, %v563
    %749 = vst.msk [vmem:[#allocation3 + $0x40] sm:$0xff] %vm740, %v565
    %750 = vst.msk [vmem:[#allocation3 + $0x48] sm:$0xff] %vm740, %v567
    %751 = vst.msk [vmem:[#allocation3 + $0x50] sm:$0xff] %vm740, %v569
    %752 = vst.msk [vmem:[#allocation3 + $0x58] sm:$0xff] %vm740, %v571
    %753 = vst.msk [vmem:[#allocation3 + $0x60] sm:$0xff] %vm740, %v573
    %754 = vst.msk [vmem:[#allocation3 + $0x68] sm:$0xff] %vm740, %v575
    %755 = vst.msk [vmem:[#allocation3 + $0x70] sm:$0xff] %vm740, %v577
    %756 = vst.msk [vmem:[#allocation3 + $0x78] sm:$0xff] %vm740, %v579
    %757 = vst.msk [vmem:[#allocation3 + $0x80] sm:$0xff] %vm740, %v581
    %758 = vst.msk [vmem:[#allocation3 + $0x88] sm:$0xff] %vm740, %v583
    %759 = vst.msk [vmem:[#allocation3 + $0x90] sm:$0xff] %vm740, %v585
    %760 = vst.msk [vmem:[#allocation3 + $0x98] sm:$0xff] %vm740, %v587
    %761 = vst.msk [vmem:[#allocation3 + $0xa0] sm:$0xff] %vm740, %v589
    %762 = vst.msk [vmem:[#allocation3 + $0xa8] sm:$0xff] %vm740, %v591
    %763 = vst.msk [vmem:[#allocation3 + $0xb0] sm:$0xff] %vm740, %v593
    %764 = vst.msk [vmem:[#allocation3 + $0xb8] sm:$0xff] %vm740, %v595
    %765 = vst.msk [vmem:[#allocation3 + $0xc0] sm:$0xff] %vm740, %v597
    %766 = vst.msk [vmem:[#allocation3 + $0xc8] sm:$0xff] %vm740, %v599
    %767 = vst.msk [vmem:[#allocation3 + $0xd0] sm:$0xff] %vm740, %v601
    %768 = vst.msk [vmem:[#allocation3 + $0xd8] sm:$0xff] %vm740, %v603
    %769 = vst.msk [vmem:[#allocation3 + $0xe0] sm:$0xff] %vm740, %v605
    %770 = vst.msk [vmem:[#allocation3 + $0xe8] sm:$0xff] %vm740, %v607
    %771 = vst.msk [vmem:[#allocation3 + $0xf0] sm:$0xff] %vm740, %v609
    %772 = vst.msk [vmem:[#allocation3 + $0xf8] sm:$0xff] %vm740, %v611
    %773 = vst.msk [vmem:[#allocation3 + $0x100] sm:$0xff] %vm740, %v613
    %774 = vst.msk [vmem:[#allocation3 + $0x108] sm:$0xff] %vm740, %v615
    %775 = vst.msk [vmem:[#allocation3 + $0x110] sm:$0xff] %vm740, %v617
    %776 = vst.msk [vmem:[#allocation3 + $0x118] sm:$0xff] %vm740, %v619
    %777 = vst.msk [vmem:[#allocation3 + $0x120] sm:$0xff] %vm740, %v621
    %778 = vst.msk [vmem:[#allocation3 + $0x128] sm:$0xff] %vm740, %v623
    %779 = vst.msk [vmem:[#allocation3 + $0x130] sm:$0xff] %vm740, %v625
    %780 = vst.msk [vmem:[#allocation3 + $0x138] sm:$0xff] %vm740, %v627
    %781 = vst.msk [vmem:[#allocation3 + $0x140] sm:$0xff] %vm740, %v629
    %782 = vst.msk [vmem:[#allocation3 + $0x148] sm:$0xff] %vm740, %v631
    %783 = vst.msk [vmem:[#allocation3 + $0x150] sm:$0xff] %vm740, %v633
    %784 = vst.msk [vmem:[#allocation3 + $0x158] sm:$0xff] %vm740, %v635
    %785 = vst.msk [vmem:[#allocation3 + $0x160] sm:$0xff] %vm740, %v637
    %786 = vst.msk [vmem:[#allocation3 + $0x168] sm:$0xff] %vm740, %v639
    %787 = vst.msk [vmem:[#allocation3 + $0x170] sm:$0xff] %vm740, %v641
    %788 = vst.msk [vmem:[#allocation3 + $0x178] sm:$0xff] %vm740, %v643
    %789 = vst.msk [vmem:[#allocation3 + $0x180] sm:$0xff] %vm740, %v645
    %790 = vst.msk [vmem:[#allocation3 + $0x188] sm:$0xff] %vm740, %v647
    %791 = vst.msk [vmem:[#allocation3 + $0x190] sm:$0xff] %vm740, %v649
    %792 = vst.msk [vmem:[#allocation3 + $0x198] sm:$0xff] %vm740, %v651
    %793 = vst.msk [vmem:[#allocation3 + $0x1a0] sm:$0xff] %vm740, %v653
    %794 = vst.msk [vmem:[#allocation3 + $0x1a8] sm:$0xff] %vm740, %v655
    %795 = vst.msk [vmem:[#allocation3 + $0x1b0] sm:$0xff] %vm740, %v657
    %796 = vst.msk [vmem:[#allocation3 + $0x1b8] sm:$0xff] %vm740, %v659
    %797 = vst.msk [vmem:[#allocation3 + $0x1c0] sm:$0xff] %vm740, %v661
    %798 = vst.msk [vmem:[#allocation3 + $0x1c8] sm:$0xff] %vm740, %v663
    %799 = vst.msk [vmem:[#allocation3 + $0x1d0] sm:$0xff] %vm740, %v665
    %800 = vst.msk [vmem:[#allocation3 + $0x1d8] sm:$0xff] %vm740, %v667
    %801 = vst.msk [vmem:[#allocation3 + $0x1e0] sm:$0xff] %vm740, %v669
    %802 = vst.msk [vmem:[#allocation3 + $0x1e8] sm:$0xff] %vm740, %v671
    %803 = vst.msk [vmem:[#allocation3 + $0x1f0] sm:$0xff] %vm740, %v673
    %804 = vst.msk [vmem:[#allocation3 + $0x1f8] sm:$0xff] %vm740, %v675
    %v805 = vld [vmem:[#allocation2 + $0x2] sm:$0xff]
    %v806 = vld [vmem:[#allocation2 + $0xa] sm:$0xff]
    %v807 = vld [vmem:[#allocation2 + $0x1a] sm:$0xff]
    %v808 = vld [vmem:[#allocation2 + $0x22] sm:$0xff]
    %v809 = vld [vmem:[#allocation2 + $0x32] sm:$0xff]
    %v810 = vld [vmem:[#allocation2 + $0x3a] sm:$0xff]
    %v811 = vld [vmem:[#allocation2 + $0x4a] sm:$0xff]
    %v812 = vld [vmem:[#allocation2 + $0x52] sm:$0xff]
    %v813 = vld [vmem:[#allocation2 + $0x62] sm:$0xff]
    %v814 = vld [vmem:[#allocation2 + $0x6a] sm:$0xff]
    %v815 = vld [vmem:[#allocation2 + $0x7a] sm:$0xff]
    %v816 = vld [vmem:[#allocation2 + $0x82] sm:$0xff]
    %v817 = vld [vmem:[#allocation2 + $0x92] sm:$0xff]
    %v818 = vld [vmem:[#allocation2 + $0x9a] sm:$0xff]
    %v819 = vld [vmem:[#allocation2 + $0xaa] sm:$0xff]
    %v820 = vld [vmem:[#allocation2 + $0xb2] sm:$0xff]
    %v821 = vld [vmem:[#allocation2 + $0xc2] sm:$0xff]
    %v822 = vld [vmem:[#allocation2 + $0xca] sm:$0xff]
    %v823 = vld [vmem:[#allocation2 + $0xda] sm:$0xff]
    %v824 = vld [vmem:[#allocation2 + $0xe2] sm:$0xff]
    %v825 = vld [vmem:[#allocation2 + $0xf2] sm:$0xff]
    %v826 = vld [vmem:[#allocation2 + $0xfa] sm:$0xff]
    %v827 = vld [vmem:[#allocation2 + $0x10a] sm:$0xff]
    %v828 = vld [vmem:[#allocation2 + $0x112] sm:$0xff]
    %v829 = vld [vmem:[#allocation2 + $0x122] sm:$0xff]
    %v830 = vld [vmem:[#allocation2 + $0x12a] sm:$0xff]
    %v831 = vld [vmem:[#allocation2 + $0x13a] sm:$0xff]
    %v832 = vld [vmem:[#allocation2 + $0x142] sm:$0xff]
    %v833 = vld [vmem:[#allocation2 + $0x152] sm:$0xff]
    %v834 = vld [vmem:[#allocation2 + $0x15a] sm:$0xff]
    %v835 = vld [vmem:[#allocation2 + $0x16a] sm:$0xff]
    %v836 = vld [vmem:[#allocation2 + $0x172] sm:$0xff]
    %v837 = vld [vmem:[#allocation2 + $0x1b2] sm:$0xff]
    %v838 = vld [vmem:[#allocation2 + $0x1ba] sm:$0xff]
    %v839 = vld [vmem:[#allocation2 + $0x1ca] sm:$0xff]
    %v840 = vld [vmem:[#allocation2 + $0x1d2] sm:$0xff]
    %v841 = vld [vmem:[#allocation2 + $0x1e2] sm:$0xff]
    %v842 = vld [vmem:[#allocation2 + $0x1ea] sm:$0xff]
    %v843 = vld [vmem:[#allocation2 + $0x1fa] sm:$0xff]
    %v844 = vld [vmem:[#allocation2 + $0x202] sm:$0xff]
    %v845 = vld [vmem:[#allocation2 + $0x212] sm:$0xff]
    %v846 = vld [vmem:[#allocation2 + $0x21a] sm:$0xff]
    %v847 = vld [vmem:[#allocation2 + $0x22a] sm:$0xff]
    %v848 = vld [vmem:[#allocation2 + $0x232] sm:$0xff]
    %v849 = vld [vmem:[#allocation2 + $0x242] sm:$0xff]
    %v850 = vld [vmem:[#allocation2 + $0x24a] sm:$0xff]
    %v851 = vld [vmem:[#allocation2 + $0x25a] sm:$0xff]
    %v852 = vld [vmem:[#allocation2 + $0x262] sm:$0xff]
    %v853 = vld [vmem:[#allocation2 + $0x272] sm:$0xff]
    %v854 = vld [vmem:[#allocation2 + $0x27a] sm:$0xff]
    %v855 = vld [vmem:[#allocation2 + $0x28a] sm:$0xff]
    %v856 = vld [vmem:[#allocation2 + $0x292] sm:$0xff]
    %v857 = vld [vmem:[#allocation2 + $0x2a2] sm:$0xff]
    %v858 = vld [vmem:[#allocation2 + $0x2aa] sm:$0xff]
    %v859 = vld [vmem:[#allocation2 + $0x2ba] sm:$0xff]
    %v860 = vld [vmem:[#allocation2 + $0x2c2] sm:$0xff]
    %v861 = vld [vmem:[#allocation2 + $0x2d2] sm:$0xff]
    %v862 = vld [vmem:[#allocation2 + $0x2da] sm:$0xff]
    %v863 = vld [vmem:[#allocation2 + $0x2ea] sm:$0xff]
    %v864 = vld [vmem:[#allocation2 + $0x2f2] sm:$0xff]
    %v865 = vld [vmem:[#allocation2 + $0x302] sm:$0xff]
    %v866 = vld [vmem:[#allocation2 + $0x30a] sm:$0xff]
    %v867 = vld [vmem:[#allocation2 + $0x31a] sm:$0xff]
    %v868 = vld [vmem:[#allocation2 + $0x322] sm:$0xff]
    %933 = vrot.lane.b32.xlu0 %v805, 8
    %v934 = vpop.permute.xlu0 %933
    %935 = vrot.lane.b32.xlu0 %v806, 8
    %v936 = vpop.permute.xlu0 %935
    %937 = vrot.lane.b32.xlu0 %v807, 8
    %v938 = vpop.permute.xlu0 %937
    %939 = vrot.lane.b32.xlu0 %v808, 8
    %v940 = vpop.permute.xlu0 %939
    %941 = vrot.lane.b32.xlu0 %v809, 8
    %v942 = vpop.permute.xlu0 %941
    %943 = vrot.lane.b32.xlu0 %v810, 8
    %v944 = vpop.permute.xlu0 %943
    %945 = vrot.lane.b32.xlu0 %v811, 8
    %v946 = vpop.permute.xlu0 %945
    %947 = vrot.lane.b32.xlu0 %v812, 8
    %v948 = vpop.permute.xlu0 %947
    %949 = vrot.lane.b32.xlu0 %v813, 8
    %v950 = vpop.permute.xlu0 %949
    %951 = vrot.lane.b32.xlu0 %v814, 8
    %v952 = vpop.permute.xlu0 %951
    %953 = vrot.lane.b32.xlu0 %v815, 8
    %v954 = vpop.permute.xlu0 %953
    %955 = vrot.lane.b32.xlu0 %v816, 8
    %v956 = vpop.permute.xlu0 %955
    %957 = vrot.lane.b32.xlu0 %v817, 8
    %v958 = vpop.permute.xlu0 %957
    %959 = vrot.lane.b32.xlu0 %v818, 8
    %v960 = vpop.permute.xlu0 %959
    %961 = vrot.lane.b32.xlu0 %v819, 8
    %v962 = vpop.permute.xlu0 %961
    %963 = vrot.lane.b32.xlu0 %v820, 8
    %v964 = vpop.permute.xlu0 %963
    %965 = vrot.lane.b32.xlu0 %v821, 8
    %v966 = vpop.permute.xlu0 %965
    %967 = vrot.lane.b32.xlu0 %v822, 8
    %v968 = vpop.permute.xlu0 %967
    %969 = vrot.lane.b32.xlu0 %v823, 8
    %v970 = vpop.permute.xlu0 %969
    %971 = vrot.lane.b32.xlu0 %v824, 8
    %v972 = vpop.permute.xlu0 %971
    %973 = vrot.lane.b32.xlu0 %v825, 8
    %v974 = vpop.permute.xlu0 %973
    %975 = vrot.lane.b32.xlu0 %v826, 8
    %v976 = vpop.permute.xlu0 %975
    %977 = vrot.lane.b32.xlu0 %v827, 8
    %v978 = vpop.permute.xlu0 %977
    %979 = vrot.lane.b32.xlu0 %v828, 8
    %v980 = vpop.permute.xlu0 %979
    %981 = vrot.lane.b32.xlu0 %v829, 8
    %v982 = vpop.permute.xlu0 %981
    %983 = vrot.lane.b32.xlu0 %v830, 8
    %v984 = vpop.permute.xlu0 %983
    %985 = vrot.lane.b32.xlu0 %v831, 8
    %v986 = vpop.permute.xlu0 %985
    %987 = vrot.lane.b32.xlu0 %v832, 8
    %v988 = vpop.permute.xlu0 %987
    %989 = vrot.lane.b32.xlu0 %v833, 8
    %v990 = vpop.permute.xlu0 %989
    %991 = vrot.lane.b32.xlu0 %v834, 8
    %v992 = vpop.permute.xlu0 %991
    %993 = vrot.lane.b32.xlu0 %v835, 8
    %v994 = vpop.permute.xlu0 %993
    %995 = vrot.lane.b32.xlu0 %v836, 8
    %v996 = vpop.permute.xlu0 %995
    %997 = vrot.lane.b32.xlu0 %v837, 8
    %v998 = vpop.permute.xlu0 %997
    %999 = vrot.lane.b32.xlu0 %v838, 8
    %v1000 = vpop.permute.xlu0 %999
    %1001 = vrot.lane.b32.xlu0 %v839, 8
    %v1002 = vpop.permute.xlu0 %1001
    %1003 = vrot.lane.b32.xlu0 %v840, 8
    %v1004 = vpop.permute.xlu0 %1003
    %1005 = vrot.lane.b32.xlu0 %v841, 8
    %v1006 = vpop.permute.xlu0 %1005
    %1007 = vrot.lane.b32.xlu0 %v842, 8
    %v1008 = vpop.permute.xlu0 %1007
    %1009 = vrot.lane.b32.xlu0 %v843, 8
    %v1010 = vpop.permute.xlu0 %1009
    %1011 = vrot.lane.b32.xlu0 %v844, 8
    %v1012 = vpop.permute.xlu0 %1011
    %1013 = vrot.lane.b32.xlu0 %v845, 8
    %v1014 = vpop.permute.xlu0 %1013
    %1015 = vrot.lane.b32.xlu0 %v846, 8
    %v1016 = vpop.permute.xlu0 %1015
    %1017 = vrot.lane.b32.xlu0 %v847, 8
    %v1018 = vpop.permute.xlu0 %1017
    %1019 = vrot.lane.b32.xlu0 %v848, 8
    %v1020 = vpop.permute.xlu0 %1019
    %1021 = vrot.lane.b32.xlu0 %v849, 8
    %v1022 = vpop.permute.xlu0 %1021
    %1023 = vrot.lane.b32.xlu0 %v850, 8
    %v1024 = vpop.permute.xlu0 %1023
    %1025 = vrot.lane.b32.xlu0 %v851, 8
    %v1026 = vpop.permute.xlu0 %1025
    %1027 = vrot.lane.b32.xlu0 %v852, 8
    %v1028 = vpop.permute.xlu0 %1027
    %1029 = vrot.lane.b32.xlu0 %v853, 8
    %v1030 = vpop.permute.xlu0 %1029
    %1031 = vrot.lane.b32.xlu0 %v854, 8
    %v1032 = vpop.permute.xlu0 %1031
    %1033 = vrot.lane.b32.xlu0 %v855, 8
    %v1034 = vpop.permute.xlu0 %1033
    %1035 = vrot.lane.b32.xlu0 %v856, 8
    %v1036 = vpop.permute.xlu0 %1035
    %1037 = vrot.lane.b32.xlu0 %v857, 8
    %v1038 = vpop.permute.xlu0 %1037
    %1039 = vrot.lane.b32.xlu0 %v858, 8
    %v1040 = vpop.permute.xlu0 %1039
    %1041 = vrot.lane.b32.xlu0 %v859, 8
    %v1042 = vpop.permute.xlu0 %1041
    %1043 = vrot.lane.b32.xlu0 %v860, 8
    %v1044 = vpop.permute.xlu0 %1043
    %1045 = vrot.lane.b32.xlu0 %v861, 8
    %v1046 = vpop.permute.xlu0 %1045
    %1047 = vrot.lane.b32.xlu0 %v862, 8
    %v1048 = vpop.permute.xlu0 %1047
    %1049 = vrot.lane.b32.xlu0 %v863, 8
    %v1050 = vpop.permute.xlu0 %1049
    %1051 = vrot.lane.b32.xlu0 %v864, 8
    %v1052 = vpop.permute.xlu0 %1051
    %1053 = vrot.lane.b32.xlu0 %v865, 8
    %v1054 = vpop.permute.xlu0 %1053
    %1055 = vrot.lane.b32.xlu0 %v866, 8
    %v1056 = vpop.permute.xlu0 %1055
    %1057 = vrot.lane.b32.xlu0 %v867, 8
    %v1058 = vpop.permute.xlu0 %1057
    %1059 = vrot.lane.b32.xlu0 %v868, 8
    %v1060 = vpop.permute.xlu0 %1059
    %vm1125 = vcmask 97344
    %1126 = vst.msk [vmem:[#allocation3] sm:$0xff] %vm1125, %v934
    %1127 = vst.msk [vmem:[#allocation3 + $0x8] sm:$0xff] %vm1125, %v936
    %1128 = vst.msk [vmem:[#allocation3 + $0x10] sm:$0xff] %vm1125, %v938
    %1129 = vst.msk [vmem:[#allocation3 + $0x18] sm:$0xff] %vm1125, %v940
    %1130 = vst.msk [vmem:[#allocation3 + $0x20] sm:$0xff] %vm1125, %v942
    %1131 = vst.msk [vmem:[#allocation3 + $0x28] sm:$0xff] %vm1125, %v944
    %1132 = vst.msk [vmem:[#allocation3 + $0x30] sm:$0xff] %vm1125, %v946
    %1133 = vst.msk [vmem:[#allocation3 + $0x38] sm:$0xff] %vm1125, %v948
    %1134 = vst.msk [vmem:[#allocation3 + $0x40] sm:$0xff] %vm1125, %v950
    %1135 = vst.msk [vmem:[#allocation3 + $0x48] sm:$0xff] %vm1125, %v952
    %1136 = vst.msk [vmem:[#allocation3 + $0x50] sm:$0xff] %vm1125, %v954
    %1137 = vst.msk [vmem:[#allocation3 + $0x58] sm:$0xff] %vm1125, %v956
    %1138 = vst.msk [vmem:[#allocation3 + $0x60] sm:$0xff] %vm1125, %v958
    %1139 = vst.msk [vmem:[#allocation3 + $0x68] sm:$0xff] %vm1125, %v960
    %1140 = vst.msk [vmem:[#allocation3 + $0x70] sm:$0xff] %vm1125, %v962
    %1141 = vst.msk [vmem:[#allocation3 + $0x78] sm:$0xff] %vm1125, %v964
    %1142 = vst.msk [vmem:[#allocation3 + $0x80] sm:$0xff] %vm1125, %v966
    %1143 = vst.msk [vmem:[#allocation3 + $0x88] sm:$0xff] %vm1125, %v968
    %1144 = vst.msk [vmem:[#allocation3 + $0x90] sm:$0xff] %vm1125, %v970
    %1145 = vst.msk [vmem:[#allocation3 + $0x98] sm:$0xff] %vm1125, %v972
    %1146 = vst.msk [vmem:[#allocation3 + $0xa0] sm:$0xff] %vm1125, %v974
    %1147 = vst.msk [vmem:[#allocation3 + $0xa8] sm:$0xff] %vm1125, %v976
    %1148 = vst.msk [vmem:[#allocation3 + $0xb0] sm:$0xff] %vm1125, %v978
    %1149 = vst.msk [vmem:[#allocation3 + $0xb8] sm:$0xff] %vm1125, %v980
    %1150 = vst.msk [vmem:[#allocation3 + $0xc0] sm:$0xff] %vm1125, %v982
    %1151 = vst.msk [vmem:[#allocation3 + $0xc8] sm:$0xff] %vm1125, %v984
    %1152 = vst.msk [vmem:[#allocation3 + $0xd0] sm:$0xff] %vm1125, %v986
    %1153 = vst.msk [vmem:[#allocation3 + $0xd8] sm:$0xff] %vm1125, %v988
    %1154 = vst.msk [vmem:[#allocation3 + $0xe0] sm:$0xff] %vm1125, %v990
    %1155 = vst.msk [vmem:[#allocation3 + $0xe8] sm:$0xff] %vm1125, %v992
    %1156 = vst.msk [vmem:[#allocation3 + $0xf0] sm:$0xff] %vm1125, %v994
    %1157 = vst.msk [vmem:[#allocation3 + $0xf8] sm:$0xff] %vm1125, %v996
    %1158 = vst.msk [vmem:[#allocation3 + $0x100] sm:$0xff] %vm1125, %v998
    %1159 = vst.msk [vmem:[#allocation3 + $0x108] sm:$0xff] %vm1125, %v1000
    %1160 = vst.msk [vmem:[#allocation3 + $0x110] sm:$0xff] %vm1125, %v1002
    %1161 = vst.msk [vmem:[#allocation3 + $0x118] sm:$0xff] %vm1125, %v1004
    %1162 = vst.msk [vmem:[#allocation3 + $0x120] sm:$0xff] %vm1125, %v1006
    %1163 = vst.msk [vmem:[#allocation3 + $0x128] sm:$0xff] %vm1125, %v1008
    %1164 = vst.msk [vmem:[#allocation3 + $0x130] sm:$0xff] %vm1125, %v1010
    %1165 = vst.msk [vmem:[#allocation3 + $0x138] sm:$0xff] %vm1125, %v1012
    %1166 = vst.msk [vmem:[#allocation3 + $0x140] sm:$0xff] %vm1125, %v1014
    %1167 = vst.msk [vmem:[#allocation3 + $0x148] sm:$0xff] %vm1125, %v1016
    %1168 = vst.msk [vmem:[#allocation3 + $0x150] sm:$0xff] %vm1125, %v1018
    %1169 = vst.msk [vmem:[#allocation3 + $0x158] sm:$0xff] %vm1125, %v1020
    %1170 = vst.msk [vmem:[#allocation3 + $0x160] sm:$0xff] %vm1125, %v1022
    %1171 = vst.msk [vmem:[#allocation3 + $0x168] sm:$0xff] %vm1125, %v1024
    %1172 = vst.msk [vmem:[#allocation3 + $0x170] sm:$0xff] %vm1125, %v1026
    %1173 = vst.msk [vmem:[#allocation3 + $0x178] sm:$0xff] %vm1125, %v1028
    %1174 = vst.msk [vmem:[#allocation3 + $0x180] sm:$0xff] %vm1125, %v1030
    %1175 = vst.msk [vmem:[#allocation3 + $0x188] sm:$0xff] %vm1125, %v1032
    %1176 = vst.msk [vmem:[#allocation3 + $0x190] sm:$0xff] %vm1125, %v1034
    %1177 = vst.msk [vmem:[#allocation3 + $0x198] sm:$0xff] %vm1125, %v1036
    %1178 = vst.msk [vmem:[#allocation3 + $0x1a0] sm:$0xff] %vm1125, %v1038
    %1179 = vst.msk [vmem:[#allocation3 + $0x1a8] sm:$0xff] %vm1125, %v1040
    %1180 = vst.msk [vmem:[#allocation3 + $0x1b0] sm:$0xff] %vm1125, %v1042
    %1181 = vst.msk [vmem:[#allocation3 + $0x1b8] sm:$0xff] %vm1125, %v1044
    %1182 = vst.msk [vmem:[#allocation3 + $0x1c0] sm:$0xff] %vm1125, %v1046
    %1183 = vst.msk [vmem:[#allocation3 + $0x1c8] sm:$0xff] %vm1125, %v1048
    %1184 = vst.msk [vmem:[#allocation3 + $0x1d0] sm:$0xff] %vm1125, %v1050
    %1185 = vst.msk [vmem:[#allocation3 + $0x1d8] sm:$0xff] %vm1125, %v1052
    %1186 = vst.msk [vmem:[#allocation3 + $0x1e0] sm:$0xff] %vm1125, %v1054
    %1187 = vst.msk [vmem:[#allocation3 + $0x1e8] sm:$0xff] %vm1125, %v1056
    %1188 = vst.msk [vmem:[#allocation3 + $0x1f0] sm:$0xff] %vm1125, %v1058
    %1189 = vst.msk [vmem:[#allocation3 + $0x1f8] sm:$0xff] %vm1125, %v1060
    %v1190 = vld [vmem:[%s227] sm:$0xff]
    %v1191 = vld [vmem:[%s227 + $0x8] sm:$0xff]
    %v1192 = vld [vmem:[%s227 + $0x18] sm:$0xff]
    %v1193 = vld [vmem:[%s227 + $0x20] sm:$0xff]
    %v1194 = vld [vmem:[%s227 + $0x30] sm:$0xff]
    %v1195 = vld [vmem:[%s227 + $0x38] sm:$0xff]
    %v1196 = vld [vmem:[%s227 + $0x48] sm:$0xff]
    %v1197 = vld [vmem:[%s227 + $0x50] sm:$0xff]
    %v1198 = vld [vmem:[%s227 + $0x60] sm:$0xff]
    %v1199 = vld [vmem:[%s227 + $0x68] sm:$0xff]
    %v1200 = vld [vmem:[%s227 + $0x78] sm:$0xff]
    %v1201 = vld [vmem:[%s227 + $0x80] sm:$0xff]
    %v1202 = vld [vmem:[%s227 + $0x90] sm:$0xff]
    %v1203 = vld [vmem:[%s227 + $0x98] sm:$0xff]
    %v1204 = vld [vmem:[%s227 + $0xa8] sm:$0xff]
    %v1205 = vld [vmem:[%s227 + $0xb0] sm:$0xff]
    %v1206 = vld [vmem:[%s227 + $0xc0] sm:$0xff]
    %v1207 = vld [vmem:[%s227 + $0xc8] sm:$0xff]
    %v1208 = vld [vmem:[%s227 + $0xd8] sm:$0xff]
    %v1209 = vld [vmem:[%s227 + $0xe0] sm:$0xff]
    %v1210 = vld [vmem:[%s227 + $0xf0] sm:$0xff]
    %v1211 = vld [vmem:[%s227 + $0xf8] sm:$0xff]
    %v1212 = vld [vmem:[%s227 + $0x108] sm:$0xff]
    %v1213 = vld [vmem:[%s227 + $0x110] sm:$0xff]
    %v1214 = vld [vmem:[%s227 + $0x120] sm:$0xff]
    %v1215 = vld [vmem:[%s227 + $0x128] sm:$0xff]
    %v1216 = vld [vmem:[%s227 + $0x138] sm:$0xff]
    %v1217 = vld [vmem:[%s227 + $0x140] sm:$0xff]
    %v1218 = vld [vmem:[%s227 + $0x150] sm:$0xff]
    %v1219 = vld [vmem:[%s227 + $0x158] sm:$0xff]
    %v1220 = vld [vmem:[%s227 + $0x168] sm:$0xff]
    %v1221 = vld [vmem:[%s227 + $0x170] sm:$0xff]
    %v1222 = vld [vmem:[%s227 + $0x1b0] sm:$0xff]
    %v1223 = vld [vmem:[%s227 + $0x1b8] sm:$0xff]
    %v1224 = vld [vmem:[%s227 + $0x1c8] sm:$0xff]
    %v1225 = vld [vmem:[%s227 + $0x1d0] sm:$0xff]
    %v1226 = vld [vmem:[%s227 + $0x1e0] sm:$0xff]
    %v1227 = vld [vmem:[%s227 + $0x1e8] sm:$0xff]
    %v1228 = vld [vmem:[%s227 + $0x1f8] sm:$0xff]
    %v1229 = vld [vmem:[%s227 + $0x200] sm:$0xff]
    %v1230 = vld [vmem:[%s227 + $0x210] sm:$0xff]
    %v1231 = vld [vmem:[%s227 + $0x218] sm:$0xff]
    %v1232 = vld [vmem:[%s227 + $0x228] sm:$0xff]
    %v1233 = vld [vmem:[%s227 + $0x230] sm:$0xff]
    %v1234 = vld [vmem:[%s227 + $0x240] sm:$0xff]
    %v1235 = vld [vmem:[%s227 + $0x248] sm:$0xff]
    %v1236 = vld [vmem:[%s227 + $0x258] sm:$0xff]
    %v1237 = vld [vmem:[%s227 + $0x260] sm:$0xff]
    %v1238 = vld [vmem:[%s227 + $0x270] sm:$0xff]
    %v1239 = vld [vmem:[%s227 + $0x278] sm:$0xff]
    %v1240 = vld [vmem:[%s227 + $0x288] sm:$0xff]
    %v1241 = vld [vmem:[%s227 + $0x290] sm:$0xff]
    %v1242 = vld [vmem:[%s227 + $0x2a0] sm:$0xff]
    %v1243 = vld [vmem:[%s227 + $0x2a8] sm:$0xff]
    %v1244 = vld [vmem:[%s227 + $0x2b8] sm:$0xff]
    %v1245 = vld [vmem:[%s227 + $0x2c0] sm:$0xff]
    %v1246 = vld [vmem:[%s227 + $0x2d0] sm:$0xff]
    %v1247 = vld [vmem:[%s227 + $0x2d8] sm:$0xff]
    %v1248 = vld [vmem:[%s227 + $0x2e8] sm:$0xff]
    %v1249 = vld [vmem:[%s227 + $0x2f0] sm:$0xff]
    %v1250 = vld [vmem:[%s227 + $0x300] sm:$0xff]
    %v1251 = vld [vmem:[%s227 + $0x308] sm:$0xff]
    %v1252 = vld [vmem:[%s227 + $0x318] sm:$0xff]
    %v1253 = vld [vmem:[%s227 + $0x320] sm:$0xff]
    %1318 = vrot.lane.b32.xlu0 %v1190, 12
    %v1319 = vpop.permute.xlu0 %1318
    %1320 = vrot.lane.b32.xlu0 %v1191, 12
    %v1321 = vpop.permute.xlu0 %1320
    %1322 = vrot.lane.b32.xlu0 %v1192, 12
    %v1323 = vpop.permute.xlu0 %1322
    %1324 = vrot.lane.b32.xlu0 %v1193, 12
    %v1325 = vpop.permute.xlu0 %1324
    %1326 = vrot.lane.b32.xlu0 %v1194, 12
    %v1327 = vpop.permute.xlu0 %1326
    %1328 = vrot.lane.b32.xlu0 %v1195, 12
    %v1329 = vpop.permute.xlu0 %1328
    %1330 = vrot.lane.b32.xlu0 %v1196, 12
    %v1331 = vpop.permute.xlu0 %1330
    %1332 = vrot.lane.b32.xlu0 %v1197, 12
    %v1333 = vpop.permute.xlu0 %1332
    %1334 = vrot.lane.b32.xlu0 %v1198, 12
    %v1335 = vpop.permute.xlu0 %1334
    %1336 = vrot.lane.b32.xlu0 %v1199, 12
    %v1337 = vpop.permute.xlu0 %1336
    %1338 = vrot.lane.b32.xlu0 %v1200, 12
    %v1339 = vpop.permute.xlu0 %1338
    %1340 = vrot.lane.b32.xlu0 %v1201, 12
    %v1341 = vpop.permute.xlu0 %1340
    %1342 = vrot.lane.b32.xlu0 %v1202, 12
    %v1343 = vpop.permute.xlu0 %1342
    %1344 = vrot.lane.b32.xlu0 %v1203, 12
    %v1345 = vpop.permute.xlu0 %1344
    %1346 = vrot.lane.b32.xlu0 %v1204, 12
    %v1347 = vpop.permute.xlu0 %1346
    %1348 = vrot.lane.b32.xlu0 %v1205, 12
    %v1349 = vpop.permute.xlu0 %1348
    %1350 = vrot.lane.b32.xlu0 %v1206, 12
    %v1351 = vpop.permute.xlu0 %1350
    %1352 = vrot.lane.b32.xlu0 %v1207, 12
    %v1353 = vpop.permute.xlu0 %1352
    %1354 = vrot.lane.b32.xlu0 %v1208, 12
    %v1355 = vpop.permute.xlu0 %1354
    %1356 = vrot.lane.b32.xlu0 %v1209, 12
    %v1357 = vpop.permute.xlu0 %1356
    %1358 = vrot.lane.b32.xlu0 %v1210, 12
    %v1359 = vpop.permute.xlu0 %1358
    %1360 = vrot.lane.b32.xlu0 %v1211, 12
    %v1361 = vpop.permute.xlu0 %1360
    %1362 = vrot.lane.b32.xlu0 %v1212, 12
    %v1363 = vpop.permute.xlu0 %1362
    %1364 = vrot.lane.b32.xlu0 %v1213, 12
    %v1365 = vpop.permute.xlu0 %1364
    %1366 = vrot.lane.b32.xlu0 %v1214, 12
    %v1367 = vpop.permute.xlu0 %1366
    %1368 = vrot.lane.b32.xlu0 %v1215, 12
    %v1369 = vpop.permute.xlu0 %1368
    %1370 = vrot.lane.b32.xlu0 %v1216, 12
    %v1371 = vpop.permute.xlu0 %1370
    %1372 = vrot.lane.b32.xlu0 %v1217, 12
    %v1373 = vpop.permute.xlu0 %1372
    %1374 = vrot.lane.b32.xlu0 %v1218, 12
    %v1375 = vpop.permute.xlu0 %1374
    %1376 = vrot.lane.b32.xlu0 %v1219, 12
    %v1377 = vpop.permute.xlu0 %1376
    %1378 = vrot.lane.b32.xlu0 %v1220, 12
    %v1379 = vpop.permute.xlu0 %1378
    %1380 = vrot.lane.b32.xlu0 %v1221, 12
    %v1381 = vpop.permute.xlu0 %1380
    %1382 = vrot.lane.b32.xlu0 %v1222, 12
    %v1383 = vpop.permute.xlu0 %1382
    %1384 = vrot.lane.b32.xlu0 %v1223, 12
    %v1385 = vpop.permute.xlu0 %1384
    %1386 = vrot.lane.b32.xlu0 %v1224, 12
    %v1387 = vpop.permute.xlu0 %1386
    %1388 = vrot.lane.b32.xlu0 %v1225, 12
    %v1389 = vpop.permute.xlu0 %1388
    %1390 = vrot.lane.b32.xlu0 %v1226, 12
    %v1391 = vpop.permute.xlu0 %1390
    %1392 = vrot.lane.b32.xlu0 %v1227, 12
    %v1393 = vpop.permute.xlu0 %1392
    %1394 = vrot.lane.b32.xlu0 %v1228, 12
    %v1395 = vpop.permute.xlu0 %1394
    %1396 = vrot.lane.b32.xlu0 %v1229, 12
    %v1397 = vpop.permute.xlu0 %1396
    %1398 = vrot.lane.b32.xlu0 %v1230, 12
    %v1399 = vpop.permute.xlu0 %1398
    %1400 = vrot.lane.b32.xlu0 %v1231, 12
    %v1401 = vpop.permute.xlu0 %1400
    %1402 = vrot.lane.b32.xlu0 %v1232, 12
    %v1403 = vpop.permute.xlu0 %1402
    %1404 = vrot.lane.b32.xlu0 %v1233, 12
    %v1405 = vpop.permute.xlu0 %1404
    %1406 = vrot.lane.b32.xlu0 %v1234, 12
    %v1407 = vpop.permute.xlu0 %1406
    %1408 = vrot.lane.b32.xlu0 %v1235, 12
    %v1409 = vpop.permute.xlu0 %1408
    %1410 = vrot.lane.b32.xlu0 %v1236, 12
    %v1411 = vpop.permute.xlu0 %1410
    %1412 = vrot.lane.b32.xlu0 %v1237, 12
    %v1413 = vpop.permute.xlu0 %1412
    %1414 = vrot.lane.b32.xlu0 %v1238, 12
    %v1415 = vpop.permute.xlu0 %1414
    %1416 = vrot.lane.b32.xlu0 %v1239, 12
    %v1417 = vpop.permute.xlu0 %1416
    %1418 = vrot.lane.b32.xlu0 %v1240, 12
    %v1419 = vpop.permute.xlu0 %1418
    %1420 = vrot.lane.b32.xlu0 %v1241, 12
    %v1421 = vpop.permute.xlu0 %1420
    %1422 = vrot.lane.b32.xlu0 %v1242, 12
    %v1423 = vpop.permute.xlu0 %1422
    %1424 = vrot.lane.b32.xlu0 %v1243, 12
    %v1425 = vpop.permute.xlu0 %1424
    %1426 = vrot.lane.b32.xlu0 %v1244, 12
    %v1427 = vpop.permute.xlu0 %1426
    %1428 = vrot.lane.b32.xlu0 %v1245, 12
    %v1429 = vpop.permute.xlu0 %1428
    %1430 = vrot.lane.b32.xlu0 %v1246, 12
    %v1431 = vpop.permute.xlu0 %1430
    %1432 = vrot.lane.b32.xlu0 %v1247, 12
    %v1433 = vpop.permute.xlu0 %1432
    %1434 = vrot.lane.b32.xlu0 %v1248, 12
    %v1435 = vpop.permute.xlu0 %1434
    %1436 = vrot.lane.b32.xlu0 %v1249, 12
    %v1437 = vpop.permute.xlu0 %1436
    %1438 = vrot.lane.b32.xlu0 %v1250, 12
    %v1439 = vpop.permute.xlu0 %1438
    %1440 = vrot.lane.b32.xlu0 %v1251, 12
    %v1441 = vpop.permute.xlu0 %1440
    %1442 = vrot.lane.b32.xlu0 %v1252, 12
    %v1443 = vpop.permute.xlu0 %1442
    %1444 = vrot.lane.b32.xlu0 %v1253, 12
    %v1445 = vpop.permute.xlu0 %1444
    %vm1510 = vcmask 130144
    %1511 = vst.msk [vmem:[#allocation3] sm:$0xff] %vm1510, %v1319
    %1512 = vst.msk [vmem:[#allocation3 + $0x8] sm:$0xff] %vm1510, %v1321
    %1513 = vst.msk [vmem:[#allocation3 + $0x10] sm:$0xff] %vm1510, %v1323
    %1514 = vst.msk [vmem:[#allocation3 + $0x18] sm:$0xff] %vm1510, %v1325
    %1515 = vst.msk [vmem:[#allocation3 + $0x20] sm:$0xff] %vm1510, %v1327
    %1516 = vst.msk [vmem:[#allocation3 + $0x28] sm:$0xff] %vm1510, %v1329
    %1517 = vst.msk [vmem:[#allocation3 + $0x30] sm:$0xff] %vm1510, %v1331
    %1518 = vst.msk [vmem:[#allocation3 + $0x38] sm:$0xff] %vm1510, %v1333
    %1519 = vst.msk [vmem:[#allocation3 + $0x40] sm:$0xff] %vm1510, %v1335
    %1520 = vst.msk [vmem:[#allocation3 + $0x48] sm:$0xff] %vm1510, %v1337
    %1521 = vst.msk [vmem:[#allocation3 + $0x50] sm:$0xff] %vm1510, %v1339
    %1522 = vst.msk [vmem:[#allocation3 + $0x58] sm:$0xff] %vm1510, %v1341
    %1523 = vst.msk [vmem:[#allocation3 + $0x60] sm:$0xff] %vm1510, %v1343
    %1524 = vst.msk [vmem:[#allocation3 + $0x68] sm:$0xff] %vm1510, %v1345
    %1525 = vst.msk [vmem:[#allocation3 + $0x70] sm:$0xff] %vm1510, %v1347
    %1526 = vst.msk [vmem:[#allocation3 + $0x78] sm:$0xff] %vm1510, %v1349
    %1527 = vst.msk [vmem:[#allocation3 + $0x80] sm:$0xff] %vm1510, %v1351
    %1528 = vst.msk [vmem:[#allocation3 + $0x88] sm:$0xff] %vm1510, %v1353
    %1529 = vst.msk [vmem:[#allocation3 + $0x90] sm:$0xff] %vm1510, %v1355
    %1530 = vst.msk [vmem:[#allocation3 + $0x98] sm:$0xff] %vm1510, %v1357
    %1531 = vst.msk [vmem:[#allocation3 + $0xa0] sm:$0xff] %vm1510, %v1359
    %1532 = vst.msk [vmem:[#allocation3 + $0xa8] sm:$0xff] %vm1510, %v1361
    %1533 = vst.msk [vmem:[#allocation3 + $0xb0] sm:$0xff] %vm1510, %v1363
    %1534 = vst.msk [vmem:[#allocation3 + $0xb8] sm:$0xff] %vm1510, %v1365
    %1535 = vst.msk [vmem:[#allocation3 + $0xc0] sm:$0xff] %vm1510, %v1367
    %1536 = vst.msk [vmem:[#allocation3 + $0xc8] sm:$0xff] %vm1510, %v1369
    %1537 = vst.msk [vmem:[#allocation3 + $0xd0] sm:$0xff] %vm1510, %v1371
    %1538 = vst.msk [vmem:[#allocation3 + $0xd8] sm:$0xff] %vm1510, %v1373
    %1539 = vst.msk [vmem:[#allocation3 + $0xe0] sm:$0xff] %vm1510, %v1375
    %1540 = vst.msk [vmem:[#allocation3 + $0xe8] sm:$0xff] %vm1510, %v1377
    %1541 = vst.msk [vmem:[#allocation3 + $0xf0] sm:$0xff] %vm1510, %v1379
    %1542 = vst.msk [vmem:[#allocation3 + $0xf8] sm:$0xff] %vm1510, %v1381
    %1543 = vst.msk [vmem:[#allocation3 + $0x100] sm:$0xff] %vm1510, %v1383
    %1544 = vst.msk [vmem:[#allocation3 + $0x108] sm:$0xff] %vm1510, %v1385
    %1545 = vst.msk [vmem:[#allocation3 + $0x110] sm:$0xff] %vm1510, %v1387
    %1546 = vst.msk [vmem:[#allocation3 + $0x118] sm:$0xff] %vm1510, %v1389
    %1547 = vst.msk [vmem:[#allocation3 + $0x120] sm:$0xff] %vm1510, %v1391
    %1548 = vst.msk [vmem:[#allocation3 + $0x128] sm:$0xff] %vm1510, %v1393
    %1549 = vst.msk [vmem:[#allocation3 + $0x130] sm:$0xff] %vm1510, %v1395
    %1550 = vst.msk [vmem:[#allocation3 + $0x138] sm:$0xff] %vm1510, %v1397
    %1551 = vst.msk [vmem:[#allocation3 + $0x140] sm:$0xff] %vm1510, %v1399
    %1552 = vst.msk [vmem:[#allocation3 + $0x148] sm:$0xff] %vm1510, %v1401
    %1553 = vst.msk [vmem:[#allocation3 + $0x150] sm:$0xff] %vm1510, %v1403
    %1554 = vst.msk [vmem:[#allocation3 + $0x158] sm:$0xff] %vm1510, %v1405
    %1555 = vst.msk [vmem:[#allocation3 + $0x160] sm:$0xff] %vm1510, %v1407
    %1556 = vst.msk [vmem:[#allocation3 + $0x168] sm:$0xff] %vm1510, %v1409
    %1557 = vst.msk [vmem:[#allocation3 + $0x170] sm:$0xff] %vm1510, %v1411
    %1558 = vst.msk [vmem:[#allocation3 + $0x178] sm:$0xff] %vm1510, %v1413
    %1559 = vst.msk [vmem:[#allocation3 + $0x180] sm:$0xff] %vm1510, %v1415
    %1560 = vst.msk [vmem:[#allocation3 + $0x188] sm:$0xff] %vm1510, %v1417
    %1561 = vst.msk [vmem:[#allocation3 + $0x190] sm:$0xff] %vm1510, %v1419
    %1562 = vst.msk [vmem:[#allocation3 + $0x198] sm:$0xff] %vm1510, %v1421
    %1563 = vst.msk [vmem:[#allocation3 + $0x1a0] sm:$0xff] %vm1510, %v1423
    %1564 = vst.msk [vmem:[#allocation3 + $0x1a8] sm:$0xff] %vm1510, %v1425
    %1565 = vst.msk [vmem:[#allocation3 + $0x1b0] sm:$0xff] %vm1510, %v1427
    %1566 = vst.msk [vmem:[#allocation3 + $0x1b8] sm:$0xff] %vm1510, %v1429
    %1567 = vst.msk [vmem:[#allocation3 + $0x1c0] sm:$0xff] %vm1510, %v1431
    %1568 = vst.msk [vmem:[#allocation3 + $0x1c8] sm:$0xff] %vm1510, %v1433
    %1569 = vst.msk [vmem:[#allocation3 + $0x1d0] sm:$0xff] %vm1510, %v1435
    %1570 = vst.msk [vmem:[#allocation3 + $0x1d8] sm:$0xff] %vm1510, %v1437
    %1571 = vst.msk [vmem:[#allocation3 + $0x1e0] sm:$0xff] %vm1510, %v1439
    %1572 = vst.msk [vmem:[#allocation3 + $0x1e8] sm:$0xff] %vm1510, %v1441
    %1573 = vst.msk [vmem:[#allocation3 + $0x1f0] sm:$0xff] %vm1510, %v1443
    %1574 = vst.msk [vmem:[#allocation3 + $0x1f8] sm:$0xff] %vm1510, %v1445
    %v1575 = vld [vmem:[%s227 + $0x1] sm:$0xff]
    %v1576 = vld [vmem:[%s227 + $0x9] sm:$0xff]
    %v1577 = vld [vmem:[%s227 + $0x19] sm:$0xff]
    %v1578 = vld [vmem:[%s227 + $0x21] sm:$0xff]
    %v1579 = vld [vmem:[%s227 + $0x31] sm:$0xff]
    %v1580 = vld [vmem:[%s227 + $0x39] sm:$0xff]
    %v1581 = vld [vmem:[%s227 + $0x49] sm:$0xff]
    %v1582 = vld [vmem:[%s227 + $0x51] sm:$0xff]
    %v1583 = vld [vmem:[%s227 + $0x61] sm:$0xff]
    %v1584 = vld [vmem:[%s227 + $0x69] sm:$0xff]
    %v1585 = vld [vmem:[%s227 + $0x79] sm:$0xff]
    %v1586 = vld [vmem:[%s227 + $0x81] sm:$0xff]
    %v1587 = vld [vmem:[%s227 + $0x91] sm:$0xff]
    %v1588 = vld [vmem:[%s227 + $0x99] sm:$0xff]
    %v1589 = vld [vmem:[%s227 + $0xa9] sm:$0xff]
    %v1590 = vld [vmem:[%s227 + $0xb1] sm:$0xff]
    %v1591 = vld [vmem:[%s227 + $0xc1] sm:$0xff]
    %v1592 = vld [vmem:[%s227 + $0xc9] sm:$0xff]
    %v1593 = vld [vmem:[%s227 + $0xd9] sm:$0xff]
    %v1594 = vld [vmem:[%s227 + $0xe1] sm:$0xff]
    %v1595 = vld [vmem:[%s227 + $0xf1] sm:$0xff]
    %v1596 = vld [vmem:[%s227 + $0xf9] sm:$0xff]
    %v1597 = vld [vmem:[%s227 + $0x109] sm:$0xff]
    %v1598 = vld [vmem:[%s227 + $0x111] sm:$0xff]
    %v1599 = vld [vmem:[%s227 + $0x121] sm:$0xff]
    %v1600 = vld [vmem:[%s227 + $0x129] sm:$0xff]
    %v1601 = vld [vmem:[%s227 + $0x139] sm:$0xff]
    %v1602 = vld [vmem:[%s227 + $0x141] sm:$0xff]
    %v1603 = vld [vmem:[%s227 + $0x151] sm:$0xff]
    %v1604 = vld [vmem:[%s227 + $0x159] sm:$0xff]
    %v1605 = vld [vmem:[%s227 + $0x169] sm:$0xff]
    %v1606 = vld [vmem:[%s227 + $0x171] sm:$0xff]
    %v1607 = vld [vmem:[%s227 + $0x1b1] sm:$0xff]
    %v1608 = vld [vmem:[%s227 + $0x1b9] sm:$0xff]
    %v1609 = vld [vmem:[%s227 + $0x1c9] sm:$0xff]
    %v1610 = vld [vmem:[%s227 + $0x1d1] sm:$0xff]
    %v1611 = vld [vmem:[%s227 + $0x1e1] sm:$0xff]
    %v1612 = vld [vmem:[%s227 + $0x1e9] sm:$0xff]
    %v1613 = vld [vmem:[%s227 + $0x1f9] sm:$0xff]
    %v1614 = vld [vmem:[%s227 + $0x201] sm:$0xff]
    %v1615 = vld [vmem:[%s227 + $0x211] sm:$0xff]
    %v1616 = vld [vmem:[%s227 + $0x219] sm:$0xff]
    %v1617 = vld [vmem:[%s227 + $0x229] sm:$0xff]
    %v1618 = vld [vmem:[%s227 + $0x231] sm:$0xff]
    %v1619 = vld [vmem:[%s227 + $0x241] sm:$0xff]
    %v1620 = vld [vmem:[%s227 + $0x249] sm:$0xff]
    %v1621 = vld [vmem:[%s227 + $0x259] sm:$0xff]
    %v1622 = vld [vmem:[%s227 + $0x261] sm:$0xff]
    %v1623 = vld [vmem:[%s227 + $0x271] sm:$0xff]
    %v1624 = vld [vmem:[%s227 + $0x279] sm:$0xff]
    %v1625 = vld [vmem:[%s227 + $0x289] sm:$0xff]
    %v1626 = vld [vmem:[%s227 + $0x291] sm:$0xff]
    %v1627 = vld [vmem:[%s227 + $0x2a1] sm:$0xff]
    %v1628 = vld [vmem:[%s227 + $0x2a9] sm:$0xff]
    %v1629 = vld [vmem:[%s227 + $0x2b9] sm:$0xff]
    %v1630 = vld [vmem:[%s227 + $0x2c1] sm:$0xff]
    %v1631 = vld [vmem:[%s227 + $0x2d1] sm:$0xff]
    %v1632 = vld [vmem:[%s227 + $0x2d9] sm:$0xff]
    %v1633 = vld [vmem:[%s227 + $0x2e9] sm:$0xff]
    %v1634 = vld [vmem:[%s227 + $0x2f1] sm:$0xff]
    %v1635 = vld [vmem:[%s227 + $0x301] sm:$0xff]
    %v1636 = vld [vmem:[%s227 + $0x309] sm:$0xff]
    %v1637 = vld [vmem:[%s227 + $0x319] sm:$0xff]
    %v1638 = vld [vmem:[%s227 + $0x321] sm:$0xff]
    %1703 = vrot.lane.b32.xlu0 %v1575, 16
    %v1704 = vpop.permute.xlu0 %1703
    %1705 = vrot.lane.b32.xlu0 %v1576, 16
    %v1706 = vpop.permute.xlu0 %1705
    %1707 = vrot.lane.b32.xlu0 %v1577, 16
    %v1708 = vpop.permute.xlu0 %1707
    %1709 = vrot.lane.b32.xlu0 %v1578, 16
    %v1710 = vpop.permute.xlu0 %1709
    %1711 = vrot.lane.b32.xlu0 %v1579, 16
    %v1712 = vpop.permute.xlu0 %1711
    %1713 = vrot.lane.b32.xlu0 %v1580, 16
    %v1714 = vpop.permute.xlu0 %1713
    %1715 = vrot.lane.b32.xlu0 %v1581, 16
    %v1716 = vpop.permute.xlu0 %1715
    %1717 = vrot.lane.b32.xlu0 %v1582, 16
    %v1718 = vpop.permute.xlu0 %1717
    %1719 = vrot.lane.b32.xlu0 %v1583, 16
    %v1720 = vpop.permute.xlu0 %1719
    %1721 = vrot.lane.b32.xlu0 %v1584, 16
    %v1722 = vpop.permute.xlu0 %1721
    %1723 = vrot.lane.b32.xlu0 %v1585, 16
    %v1724 = vpop.permute.xlu0 %1723
    %1725 = vrot.lane.b32.xlu0 %v1586, 16
    %v1726 = vpop.permute.xlu0 %1725
    %1727 = vrot.lane.b32.xlu0 %v1587, 16
    %v1728 = vpop.permute.xlu0 %1727
    %1729 = vrot.lane.b32.xlu0 %v1588, 16
    %v1730 = vpop.permute.xlu0 %1729
    %1731 = vrot.lane.b32.xlu0 %v1589, 16
    %v1732 = vpop.permute.xlu0 %1731
    %1733 = vrot.lane.b32.xlu0 %v1590, 16
    %v1734 = vpop.permute.xlu0 %1733
    %1735 = vrot.lane.b32.xlu0 %v1591, 16
    %v1736 = vpop.permute.xlu0 %1735
    %1737 = vrot.lane.b32.xlu0 %v1592, 16
    %v1738 = vpop.permute.xlu0 %1737
    %1739 = vrot.lane.b32.xlu0 %v1593, 16
    %v1740 = vpop.permute.xlu0 %1739
    %1741 = vrot.lane.b32.xlu0 %v1594, 16
    %v1742 = vpop.permute.xlu0 %1741
    %1743 = vrot.lane.b32.xlu0 %v1595, 16
    %v1744 = vpop.permute.xlu0 %1743
    %1745 = vrot.lane.b32.xlu0 %v1596, 16
    %v1746 = vpop.permute.xlu0 %1745
    %1747 = vrot.lane.b32.xlu0 %v1597, 16
    %v1748 = vpop.permute.xlu0 %1747
    %1749 = vrot.lane.b32.xlu0 %v1598, 16
    %v1750 = vpop.permute.xlu0 %1749
    %1751 = vrot.lane.b32.xlu0 %v1599, 16
    %v1752 = vpop.permute.xlu0 %1751
    %1753 = vrot.lane.b32.xlu0 %v1600, 16
    %v1754 = vpop.permute.xlu0 %1753
    %1755 = vrot.lane.b32.xlu0 %v1601, 16
    %v1756 = vpop.permute.xlu0 %1755
    %1757 = vrot.lane.b32.xlu0 %v1602, 16
    %v1758 = vpop.permute.xlu0 %1757
    %1759 = vrot.lane.b32.xlu0 %v1603, 16
    %v1760 = vpop.permute.xlu0 %1759
    %1761 = vrot.lane.b32.xlu0 %v1604, 16
    %v1762 = vpop.permute.xlu0 %1761
    %1763 = vrot.lane.b32.xlu0 %v1605, 16
    %v1764 = vpop.permute.xlu0 %1763
    %1765 = vrot.lane.b32.xlu0 %v1606, 16
    %v1766 = vpop.permute.xlu0 %1765
    %1767 = vrot.lane.b32.xlu0 %v1607, 16
    %v1768 = vpop.permute.xlu0 %1767
    %1769 = vrot.lane.b32.xlu0 %v1608, 16
    %v1770 = vpop.permute.xlu0 %1769
    %1771 = vrot.lane.b32.xlu0 %v1609, 16
    %v1772 = vpop.permute.xlu0 %1771
    %1773 = vrot.lane.b32.xlu0 %v1610, 16
    %v1774 = vpop.permute.xlu0 %1773
    %1775 = vrot.lane.b32.xlu0 %v1611, 16
    %v1776 = vpop.permute.xlu0 %1775
    %1777 = vrot.lane.b32.xlu0 %v1612, 16
    %v1778 = vpop.permute.xlu0 %1777
    %1779 = vrot.lane.b32.xlu0 %v1613, 16
    %v1780 = vpop.permute.xlu0 %1779
    %1781 = vrot.lane.b32.xlu0 %v1614, 16
    %v1782 = vpop.permute.xlu0 %1781
    %1783 = vrot.lane.b32.xlu0 %v1615, 16
    %v1784 = vpop.permute.xlu0 %1783
    %1785 = vrot.lane.b32.xlu0 %v1616, 16
    %v1786 = vpop.permute.xlu0 %1785
    %1787 = vrot.lane.b32.xlu0 %v1617, 16
    %v1788 = vpop.permute.xlu0 %1787
    %1789 = vrot.lane.b32.xlu0 %v1618, 16
    %v1790 = vpop.permute.xlu0 %1789
    %1791 = vrot.lane.b32.xlu0 %v1619, 16
    %v1792 = vpop.permute.xlu0 %1791
    %1793 = vrot.lane.b32.xlu0 %v1620, 16
    %v1794 = vpop.permute.xlu0 %1793
    %1795 = vrot.lane.b32.xlu0 %v1621, 16
    %v1796 = vpop.permute.xlu0 %1795
    %1797 = vrot.lane.b32.xlu0 %v1622, 16
    %v1798 = vpop.permute.xlu0 %1797
    %1799 = vrot.lane.b32.xlu0 %v1623, 16
    %v1800 = vpop.permute.xlu0 %1799
    %1801 = vrot.lane.b32.xlu0 %v1624, 16
    %v1802 = vpop.permute.xlu0 %1801
    %1803 = vrot.lane.b32.xlu0 %v1625, 16
    %v1804 = vpop.permute.xlu0 %1803
    %1805 = vrot.lane.b32.xlu0 %v1626, 16
    %v1806 = vpop.permute.xlu0 %1805
    %1807 = vrot.lane.b32.xlu0 %v1627, 16
    %v1808 = vpop.permute.xlu0 %1807
    %1809 = vrot.lane.b32.xlu0 %v1628, 16
    %v1810 = vpop.permute.xlu0 %1809
    %1811 = vrot.lane.b32.xlu0 %v1629, 16
    %v1812 = vpop.permute.xlu0 %1811
    %1813 = vrot.lane.b32.xlu0 %v1630, 16
    %v1814 = vpop.permute.xlu0 %1813
    %1815 = vrot.lane.b32.xlu0 %v1631, 16
    %v1816 = vpop.permute.xlu0 %1815
    %1817 = vrot.lane.b32.xlu0 %v1632, 16
    %v1818 = vpop.permute.xlu0 %1817
    %1819 = vrot.lane.b32.xlu0 %v1633, 16
    %v1820 = vpop.permute.xlu0 %1819
    %1821 = vrot.lane.b32.xlu0 %v1634, 16
    %v1822 = vpop.permute.xlu0 %1821
    %1823 = vrot.lane.b32.xlu0 %v1635, 16
    %v1824 = vpop.permute.xlu0 %1823
    %1825 = vrot.lane.b32.xlu0 %v1636, 16
    %v1826 = vpop.permute.xlu0 %1825
    %1827 = vrot.lane.b32.xlu0 %v1637, 16
    %v1828 = vpop.permute.xlu0 %1827
    %1829 = vrot.lane.b32.xlu0 %v1638, 16
    %v1830 = vpop.permute.xlu0 %1829
    %vm1895 = vcmask 162944
    %1896 = vst.msk [vmem:[#allocation3] sm:$0xff] %vm1895, %v1704
    %1897 = vst.msk [vmem:[#allocation3 + $0x8] sm:$0xff] %vm1895, %v1706
    %1898 = vst.msk [vmem:[#allocation3 + $0x10] sm:$0xff] %vm1895, %v1708
    %1899 = vst.msk [vmem:[#allocation3 + $0x18] sm:$0xff] %vm1895, %v1710
    %1900 = vst.msk [vmem:[#allocation3 + $0x20] sm:$0xff] %vm1895, %v1712
    %1901 = vst.msk [vmem:[#allocation3 + $0x28] sm:$0xff] %vm1895, %v1714
    %1902 = vst.msk [vmem:[#allocation3 + $0x30] sm:$0xff] %vm1895, %v1716
    %1903 = vst.msk [vmem:[#allocation3 + $0x38] sm:$0xff] %vm1895, %v1718
    %1904 = vst.msk [vmem:[#allocation3 + $0x40] sm:$0xff] %vm1895, %v1720
    %1905 = vst.msk [vmem:[#allocation3 + $0x48] sm:$0xff] %vm1895, %v1722
    %1906 = vst.msk [vmem:[#allocation3 + $0x50] sm:$0xff] %vm1895, %v1724
    %1907 = vst.msk [vmem:[#allocation3 + $0x58] sm:$0xff] %vm1895, %v1726
    %1908 = vst.msk [vmem:[#allocation3 + $0x60] sm:$0xff] %vm1895, %v1728
    %1909 = vst.msk [vmem:[#allocation3 + $0x68] sm:$0xff] %vm1895, %v1730
    %1910 = vst.msk [vmem:[#allocation3 + $0x70] sm:$0xff] %vm1895, %v1732
    %1911 = vst.msk [vmem:[#allocation3 + $0x78] sm:$0xff] %vm1895, %v1734
    %1912 = vst.msk [vmem:[#allocation3 + $0x80] sm:$0xff] %vm1895, %v1736
    %1913 = vst.msk [vmem:[#allocation3 + $0x88] sm:$0xff] %vm1895, %v1738
    %1914 = vst.msk [vmem:[#allocation3 + $0x90] sm:$0xff] %vm1895, %v1740
    %1915 = vst.msk [vmem:[#allocation3 + $0x98] sm:$0xff] %vm1895, %v1742
    %1916 = vst.msk [vmem:[#allocation3 + $0xa0] sm:$0xff] %vm1895, %v1744
    %1917 = vst.msk [vmem:[#allocation3 + $0xa8] sm:$0xff] %vm1895, %v1746
    %1918 = vst.msk [vmem:[#allocation3 + $0xb0] sm:$0xff] %vm1895, %v1748
    %1919 = vst.msk [vmem:[#allocation3 + $0xb8] sm:$0xff] %vm1895, %v1750
    %1920 = vst.msk [vmem:[#allocation3 + $0xc0] sm:$0xff] %vm1895, %v1752
    %1921 = vst.msk [vmem:[#allocation3 + $0xc8] sm:$0xff] %vm1895, %v1754
    %1922 = vst.msk [vmem:[#allocation3 + $0xd0] sm:$0xff] %vm1895, %v1756
    %1923 = vst.msk [vmem:[#allocation3 + $0xd8] sm:$0xff] %vm1895, %v1758
    %1924 = vst.msk [vmem:[#allocation3 + $0xe0] sm:$0xff] %vm1895, %v1760
    %1925 = vst.msk [vmem:[#allocation3 + $0xe8] sm:$0xff] %vm1895, %v1762
    %1926 = vst.msk [vmem:[#allocation3 + $0xf0] sm:$0xff] %vm1895, %v1764
    %1927 = vst.msk [vmem:[#allocation3 + $0xf8] sm:$0xff] %vm1895, %v1766
    %1928 = vst.msk [vmem:[#allocation3 + $0x100] sm:$0xff] %vm1895, %v1768
    %1929 = vst.msk [vmem:[#allocation3 + $0x108] sm:$0xff] %vm1895, %v1770
    %1930 = vst.msk [vmem:[#allocation3 + $0x110] sm:$0xff] %vm1895, %v1772
    %1931 = vst.msk [vmem:[#allocation3 + $0x118] sm:$0xff] %vm1895, %v1774
    %1932 = vst.msk [vmem:[#allocation3 + $0x120] sm:$0xff] %vm1895, %v1776
    %1933 = vst.msk [vmem:[#allocation3 + $0x128] sm:$0xff] %vm1895, %v1778
    %1934 = vst.msk [vmem:[#allocation3 + $0x130] sm:$0xff] %vm1895, %v1780
    %1935 = vst.msk [vmem:[#allocation3 + $0x138] sm:$0xff] %vm1895, %v1782
    %1936 = vst.msk [vmem:[#allocation3 + $0x140] sm:$0xff] %vm1895, %v1784
    %1937 = vst.msk [vmem:[#allocation3 + $0x148] sm:$0xff] %vm1895, %v1786
    %1938 = vst.msk [vmem:[#allocation3 + $0x150] sm:$0xff] %vm1895, %v1788
    %1939 = vst.msk [vmem:[#allocation3 + $0x158] sm:$0xff] %vm1895, %v1790
    %1940 = vst.msk [vmem:[#allocation3 + $0x160] sm:$0xff] %vm1895, %v1792
    %1941 = vst.msk [vmem:[#allocation3 + $0x168] sm:$0xff] %vm1895, %v1794
    %1942 = vst.msk [vmem:[#allocation3 + $0x170] sm:$0xff] %vm1895, %v1796
    %1943 = vst.msk [vmem:[#allocation3 + $0x178] sm:$0xff] %vm1895, %v1798
    %1944 = vst.msk [vmem:[#allocation3 + $0x180] sm:$0xff] %vm1895, %v1800
    %1945 = vst.msk [vmem:[#allocation3 + $0x188] sm:$0xff] %vm1895, %v1802
    %1946 = vst.msk [vmem:[#allocation3 + $0x190] sm:$0xff] %vm1895, %v1804
    %1947 = vst.msk [vmem:[#allocation3 + $0x198] sm:$0xff] %vm1895, %v1806
    %1948 = vst.msk [vmem:[#allocation3 + $0x1a0] sm:$0xff] %vm1895, %v1808
    %1949 = vst.msk [vmem:[#allocation3 + $0x1a8] sm:$0xff] %vm1895, %v1810
    %1950 = vst.msk [vmem:[#allocation3 + $0x1b0] sm:$0xff] %vm1895, %v1812
    %1951 = vst.msk [vmem:[#allocation3 + $0x1b8] sm:$0xff] %vm1895, %v1814
    %1952 = vst.msk [vmem:[#allocation3 + $0x1c0] sm:$0xff] %vm1895, %v1816
    %1953 = vst.msk [vmem:[#allocation3 + $0x1c8] sm:$0xff] %vm1895, %v1818
    %1954 = vst.msk [vmem:[#allocation3 + $0x1d0] sm:$0xff] %vm1895, %v1820
    %1955 = vst.msk [vmem:[#allocation3 + $0x1d8] sm:$0xff] %vm1895, %v1822
    %1956 = vst.msk [vmem:[#allocation3 + $0x1e0] sm:$0xff] %vm1895, %v1824
    %1957 = vst.msk [vmem:[#allocation3 + $0x1e8] sm:$0xff] %vm1895, %v1826
    %1958 = vst.msk [vmem:[#allocation3 + $0x1f0] sm:$0xff] %vm1895, %v1828
    %1959 = vst.msk [vmem:[#allocation3 + $0x1f8] sm:$0xff] %vm1895, %v1830
    %v1960 = vld [vmem:[%s227 + $0x2] sm:$0xff]
    %v1961 = vld [vmem:[%s227 + $0xa] sm:$0xff]
    %v1962 = vld [vmem:[%s227 + $0x1a] sm:$0xff]
    %v1963 = vld [vmem:[%s227 + $0x22] sm:$0xff]
    %v1964 = vld [vmem:[%s227 + $0x32] sm:$0xff]
    %v1965 = vld [vmem:[%s227 + $0x3a] sm:$0xff]
    %v1966 = vld [vmem:[%s227 + $0x4a] sm:$0xff]
    %v1967 = vld [vmem:[%s227 + $0x52] sm:$0xff]
    %v1968 = vld [vmem:[%s227 + $0x62] sm:$0xff]
    %v1969 = vld [vmem:[%s227 + $0x6a] sm:$0xff]
    %v1970 = vld [vmem:[%s227 + $0x7a] sm:$0xff]
    %v1971 = vld [vmem:[%s227 + $0x82] sm:$0xff]
    %v1972 = vld [vmem:[%s227 + $0x92] sm:$0xff]
    %v1973 = vld [vmem:[%s227 + $0x9a] sm:$0xff]
    %v1974 = vld [vmem:[%s227 + $0xaa] sm:$0xff]
    %v1975 = vld [vmem:[%s227 + $0xb2] sm:$0xff]
    %v1976 = vld [vmem:[%s227 + $0xc2] sm:$0xff]
    %v1977 = vld [vmem:[%s227 + $0xca] sm:$0xff]
    %v1978 = vld [vmem:[%s227 + $0xda] sm:$0xff]
    %v1979 = vld [vmem:[%s227 + $0xe2] sm:$0xff]
    %v1980 = vld [vmem:[%s227 + $0xf2] sm:$0xff]
    %v1981 = vld [vmem:[%s227 + $0xfa] sm:$0xff]
    %v1982 = vld [vmem:[%s227 + $0x10a] sm:$0xff]
    %v1983 = vld [vmem:[%s227 + $0x112] sm:$0xff]
    %v1984 = vld [vmem:[%s227 + $0x122] sm:$0xff]
    %v1985 = vld [vmem:[%s227 + $0x12a] sm:$0xff]
    %v1986 = vld [vmem:[%s227 + $0x13a] sm:$0xff]
    %v1987 = vld [vmem:[%s227 + $0x142] sm:$0xff]
    %v1988 = vld [vmem:[%s227 + $0x152] sm:$0xff]
    %v1989 = vld [vmem:[%s227 + $0x15a] sm:$0xff]
    %v1990 = vld [vmem:[%s227 + $0x16a] sm:$0xff]
    %v1991 = vld [vmem:[%s227 + $0x172] sm:$0xff]
    %v1992 = vld [vmem:[%s227 + $0x1b2] sm:$0xff]
    %v1993 = vld [vmem:[%s227 + $0x1ba] sm:$0xff]
    %v1994 = vld [vmem:[%s227 + $0x1ca] sm:$0xff]
    %v1995 = vld [vmem:[%s227 + $0x1d2] sm:$0xff]
    %v1996 = vld [vmem:[%s227 + $0x1e2] sm:$0xff]
    %v1997 = vld [vmem:[%s227 + $0x1ea] sm:$0xff]
    %v1998 = vld [vmem:[%s227 + $0x1fa] sm:$0xff]
    %v1999 = vld [vmem:[%s227 + $0x202] sm:$0xff]
    %v2000 = vld [vmem:[%s227 + $0x212] sm:$0xff]
    %v2001 = vld [vmem:[%s227 + $0x21a] sm:$0xff]
    %v2002 = vld [vmem:[%s227 + $0x22a] sm:$0xff]
    %v2003 = vld [vmem:[%s227 + $0x232] sm:$0xff]
    %v2004 = vld [vmem:[%s227 + $0x242] sm:$0xff]
    %v2005 = vld [vmem:[%s227 + $0x24a] sm:$0xff]
    %v2006 = vld [vmem:[%s227 + $0x25a] sm:$0xff]
    %v2007 = vld [vmem:[%s227 + $0x262] sm:$0xff]
    %v2008 = vld [vmem:[%s227 + $0x272] sm:$0xff]
    %v2009 = vld [vmem:[%s227 + $0x27a] sm:$0xff]
    %v2010 = vld [vmem:[%s227 + $0x28a] sm:$0xff]
    %v2011 = vld [vmem:[%s227 + $0x292] sm:$0xff]
    %v2012 = vld [vmem:[%s227 + $0x2a2] sm:$0xff]
    %v2013 = vld [vmem:[%s227 + $0x2aa] sm:$0xff]
    %v2014 = vld [vmem:[%s227 + $0x2ba] sm:$0xff]
    %v2015 = vld [vmem:[%s227 + $0x2c2] sm:$0xff]
    %v2016 = vld [vmem:[%s227 + $0x2d2] sm:$0xff]
    %v2017 = vld [vmem:[%s227 + $0x2da] sm:$0xff]
    %v2018 = vld [vmem:[%s227 + $0x2ea] sm:$0xff]
    %v2019 = vld [vmem:[%s227 + $0x2f2] sm:$0xff]
    %v2020 = vld [vmem:[%s227 + $0x302] sm:$0xff]
    %v2021 = vld [vmem:[%s227 + $0x30a] sm:$0xff]
    %v2022 = vld [vmem:[%s227 + $0x31a] sm:$0xff]
    %v2023 = vld [vmem:[%s227 + $0x322] sm:$0xff]
    %2088 = vrot.lane.b32.xlu0 %v1960, 20
    %v2089 = vpop.permute.xlu0 %2088
    %2090 = vrot.lane.b32.xlu0 %v1961, 20
    %v2091 = vpop.permute.xlu0 %2090
    %2092 = vrot.lane.b32.xlu0 %v1962, 20
    %v2093 = vpop.permute.xlu0 %2092
    %2094 = vrot.lane.b32.xlu0 %v1963, 20
    %v2095 = vpop.permute.xlu0 %2094
    %2096 = vrot.lane.b32.xlu0 %v1964, 20
    %v2097 = vpop.permute.xlu0 %2096
    %2098 = vrot.lane.b32.xlu0 %v1965, 20
    %v2099 = vpop.permute.xlu0 %2098
    %2100 = vrot.lane.b32.xlu0 %v1966, 20
    %v2101 = vpop.permute.xlu0 %2100
    %2102 = vrot.lane.b32.xlu0 %v1967, 20
    %v2103 = vpop.permute.xlu0 %2102
    %2104 = vrot.lane.b32.xlu0 %v1968, 20
    %v2105 = vpop.permute.xlu0 %2104
    %2106 = vrot.lane.b32.xlu0 %v1969, 20
    %v2107 = vpop.permute.xlu0 %2106
    %2108 = vrot.lane.b32.xlu0 %v1970, 20
    %v2109 = vpop.permute.xlu0 %2108
    %2110 = vrot.lane.b32.xlu0 %v1971, 20
    %v2111 = vpop.permute.xlu0 %2110
    %2112 = vrot.lane.b32.xlu0 %v1972, 20
    %v2113 = vpop.permute.xlu0 %2112
    %2114 = vrot.lane.b32.xlu0 %v1973, 20
    %v2115 = vpop.permute.xlu0 %2114
    %2116 = vrot.lane.b32.xlu0 %v1974, 20
    %v2117 = vpop.permute.xlu0 %2116
    %2118 = vrot.lane.b32.xlu0 %v1975, 20
    %v2119 = vpop.permute.xlu0 %2118
    %2120 = vrot.lane.b32.xlu0 %v1976, 20
    %v2121 = vpop.permute.xlu0 %2120
    %2122 = vrot.lane.b32.xlu0 %v1977, 20
    %v2123 = vpop.permute.xlu0 %2122
    %2124 = vrot.lane.b32.xlu0 %v1978, 20
    %v2125 = vpop.permute.xlu0 %2124
    %2126 = vrot.lane.b32.xlu0 %v1979, 20
    %v2127 = vpop.permute.xlu0 %2126
    %2128 = vrot.lane.b32.xlu0 %v1980, 20
    %v2129 = vpop.permute.xlu0 %2128
    %2130 = vrot.lane.b32.xlu0 %v1981, 20
    %v2131 = vpop.permute.xlu0 %2130
    %2132 = vrot.lane.b32.xlu0 %v1982, 20
    %v2133 = vpop.permute.xlu0 %2132
    %2134 = vrot.lane.b32.xlu0 %v1983, 20
    %v2135 = vpop.permute.xlu0 %2134
    %2136 = vrot.lane.b32.xlu0 %v1984, 20
    %v2137 = vpop.permute.xlu0 %2136
    %2138 = vrot.lane.b32.xlu0 %v1985, 20
    %v2139 = vpop.permute.xlu0 %2138
    %2140 = vrot.lane.b32.xlu0 %v1986, 20
    %v2141 = vpop.permute.xlu0 %2140
    %2142 = vrot.lane.b32.xlu0 %v1987, 20
    %v2143 = vpop.permute.xlu0 %2142
    %2144 = vrot.lane.b32.xlu0 %v1988, 20
    %v2145 = vpop.permute.xlu0 %2144
    %2146 = vrot.lane.b32.xlu0 %v1989, 20
    %v2147 = vpop.permute.xlu0 %2146
    %2148 = vrot.lane.b32.xlu0 %v1990, 20
    %v2149 = vpop.permute.xlu0 %2148
    %2150 = vrot.lane.b32.xlu0 %v1991, 20
    %v2151 = vpop.permute.xlu0 %2150
    %2152 = vrot.lane.b32.xlu0 %v1992, 20
    %v2153 = vpop.permute.xlu0 %2152
    %2154 = vrot.lane.b32.xlu0 %v1993, 20
    %v2155 = vpop.permute.xlu0 %2154
    %2156 = vrot.lane.b32.xlu0 %v1994, 20
    %v2157 = vpop.permute.xlu0 %2156
    %2158 = vrot.lane.b32.xlu0 %v1995, 20
    %v2159 = vpop.permute.xlu0 %2158
    %2160 = vrot.lane.b32.xlu0 %v1996, 20
    %v2161 = vpop.permute.xlu0 %2160
    %2162 = vrot.lane.b32.xlu0 %v1997, 20
    %v2163 = vpop.permute.xlu0 %2162
    %2164 = vrot.lane.b32.xlu0 %v1998, 20
    %v2165 = vpop.permute.xlu0 %2164
    %2166 = vrot.lane.b32.xlu0 %v1999, 20
    %v2167 = vpop.permute.xlu0 %2166
    %2168 = vrot.lane.b32.xlu0 %v2000, 20
    %v2169 = vpop.permute.xlu0 %2168
    %2170 = vrot.lane.b32.xlu0 %v2001, 20
    %v2171 = vpop.permute.xlu0 %2170
    %2172 = vrot.lane.b32.xlu0 %v2002, 20
    %v2173 = vpop.permute.xlu0 %2172
    %2174 = vrot.lane.b32.xlu0 %v2003, 20
    %v2175 = vpop.permute.xlu0 %2174
    %2176 = vrot.lane.b32.xlu0 %v2004, 20
    %v2177 = vpop.permute.xlu0 %2176
    %2178 = vrot.lane.b32.xlu0 %v2005, 20
    %v2179 = vpop.permute.xlu0 %2178
    %2180 = vrot.lane.b32.xlu0 %v2006, 20
    %v2181 = vpop.permute.xlu0 %2180
    %2182 = vrot.lane.b32.xlu0 %v2007, 20
    %v2183 = vpop.permute.xlu0 %2182
    %2184 = vrot.lane.b32.xlu0 %v2008, 20
    %v2185 = vpop.permute.xlu0 %2184
    %2186 = vrot.lane.b32.xlu0 %v2009, 20
    %v2187 = vpop.permute.xlu0 %2186
    %2188 = vrot.lane.b32.xlu0 %v2010, 20
    %v2189 = vpop.permute.xlu0 %2188
    %2190 = vrot.lane.b32.xlu0 %v2011, 20
    %v2191 = vpop.permute.xlu0 %2190
    %2192 = vrot.lane.b32.xlu0 %v2012, 20
    %v2193 = vpop.permute.xlu0 %2192
    %2194 = vrot.lane.b32.xlu0 %v2013, 20
    %v2195 = vpop.permute.xlu0 %2194
    %2196 = vrot.lane.b32.xlu0 %v2014, 20
    %v2197 = vpop.permute.xlu0 %2196
    %2198 = vrot.lane.b32.xlu0 %v2015, 20
    %v2199 = vpop.permute.xlu0 %2198
    %2200 = vrot.lane.b32.xlu0 %v2016, 20
    %v2201 = vpop.permute.xlu0 %2200
    %2202 = vrot.lane.b32.xlu0 %v2017, 20
    %v2203 = vpop.permute.xlu0 %2202
    %2204 = vrot.lane.b32.xlu0 %v2018, 20
    %v2205 = vpop.permute.xlu0 %2204
    %2206 = vrot.lane.b32.xlu0 %v2019, 20
    %v2207 = vpop.permute.xlu0 %2206
    %2208 = vrot.lane.b32.xlu0 %v2020, 20
    %v2209 = vpop.permute.xlu0 %2208
    %2210 = vrot.lane.b32.xlu0 %v2021, 20
    %v2211 = vpop.permute.xlu0 %2210
    %2212 = vrot.lane.b32.xlu0 %v2022, 20
    %v2213 = vpop.permute.xlu0 %2212
    %2214 = vrot.lane.b32.xlu0 %v2023, 20
    %v2215 = vpop.permute.xlu0 %2214
    %vm2280 = vcmask 195744
    %2281 = vst.msk [vmem:[#allocation3] sm:$0xff] %vm2280, %v2089
    %2282 = vst.msk [vmem:[#allocation3 + $0x8] sm:$0xff] %vm2280, %v2091
    %2283 = vst.msk [vmem:[#allocation3 + $0x10] sm:$0xff] %vm2280, %v2093
    %2284 = vst.msk [vmem:[#allocation3 + $0x18] sm:$0xff] %vm2280, %v2095
    %2285 = vst.msk [vmem:[#allocation3 + $0x20] sm:$0xff] %vm2280, %v2097
    %2286 = vst.msk [vmem:[#allocation3 + $0x28] sm:$0xff] %vm2280, %v2099
    %2287 = vst.msk [vmem:[#allocation3 + $0x30] sm:$0xff] %vm2280, %v2101
    %2288 = vst.msk [vmem:[#allocation3 + $0x38] sm:$0xff] %vm2280, %v2103
    %2289 = vst.msk [vmem:[#allocation3 + $0x40] sm:$0xff] %vm2280, %v2105
    %2290 = vst.msk [vmem:[#allocation3 + $0x48] sm:$0xff] %vm2280, %v2107
    %2291 = vst.msk [vmem:[#allocation3 + $0x50] sm:$0xff] %vm2280, %v2109
    %2292 = vst.msk [vmem:[#allocation3 + $0x58] sm:$0xff] %vm2280, %v2111
    %2293 = vst.msk [vmem:[#allocation3 + $0x60] sm:$0xff] %vm2280, %v2113
    %2294 = vst.msk [vmem:[#allocation3 + $0x68] sm:$0xff] %vm2280, %v2115
    %2295 = vst.msk [vmem:[#allocation3 + $0x70] sm:$0xff] %vm2280, %v2117
    %2296 = vst.msk [vmem:[#allocation3 + $0x78] sm:$0xff] %vm2280, %v2119
    %2297 = vst.msk [vmem:[#allocation3 + $0x80] sm:$0xff] %vm2280, %v2121
    %2298 = vst.msk [vmem:[#allocation3 + $0x88] sm:$0xff] %vm2280, %v2123
    %2299 = vst.msk [vmem:[#allocation3 + $0x90] sm:$0xff] %vm2280, %v2125
    %2300 = vst.msk [vmem:[#allocation3 + $0x98] sm:$0xff] %vm2280, %v2127
    %2301 = vst.msk [vmem:[#allocation3 + $0xa0] sm:$0xff] %vm2280, %v2129
    %2302 = vst.msk [vmem:[#allocation3 + $0xa8] sm:$0xff] %vm2280, %v2131
    %2303 = vst.msk [vmem:[#allocation3 + $0xb0] sm:$0xff] %vm2280, %v2133
    %2304 = vst.msk [vmem:[#allocation3 + $0xb8] sm:$0xff] %vm2280, %v2135
    %2305 = vst.msk [vmem:[#allocation3 + $0xc0] sm:$0xff] %vm2280, %v2137
    %2306 = vst.msk [vmem:[#allocation3 + $0xc8] sm:$0xff] %vm2280, %v2139
    %2307 = vst.msk [vmem:[#allocation3 + $0xd0] sm:$0xff] %vm2280, %v2141
    %2308 = vst.msk [vmem:[#allocation3 + $0xd8] sm:$0xff] %vm2280, %v2143
    %2309 = vst.msk [vmem:[#allocation3 + $0xe0] sm:$0xff] %vm2280, %v2145
    %2310 = vst.msk [vmem:[#allocation3 + $0xe8] sm:$0xff] %vm2280, %v2147
    %2311 = vst.msk [vmem:[#allocation3 + $0xf0] sm:$0xff] %vm2280, %v2149
    %2312 = vst.msk [vmem:[#allocation3 + $0xf8] sm:$0xff] %vm2280, %v2151
    %2313 = vst.msk [vmem:[#allocation3 + $0x100] sm:$0xff] %vm2280, %v2153
    %2314 = vst.msk [vmem:[#allocation3 + $0x108] sm:$0xff] %vm2280, %v2155
    %2315 = vst.msk [vmem:[#allocation3 + $0x110] sm:$0xff] %vm2280, %v2157
    %2316 = vst.msk [vmem:[#allocation3 + $0x118] sm:$0xff] %vm2280, %v2159
    %2317 = vst.msk [vmem:[#allocation3 + $0x120] sm:$0xff] %vm2280, %v2161
    %2318 = vst.msk [vmem:[#allocation3 + $0x128] sm:$0xff] %vm2280, %v2163
    %2319 = vst.msk [vmem:[#allocation3 + $0x130] sm:$0xff] %vm2280, %v2165
    %2320 = vst.msk [vmem:[#allocation3 + $0x138] sm:$0xff] %vm2280, %v2167
    %2321 = vst.msk [vmem:[#allocation3 + $0x140] sm:$0xff] %vm2280, %v2169
    %2322 = vst.msk [vmem:[#allocation3 + $0x148] sm:$0xff] %vm2280, %v2171
    %2323 = vst.msk [vmem:[#allocation3 + $0x150] sm:$0xff] %vm2280, %v2173
    %2324 = vst.msk [vmem:[#allocation3 + $0x158] sm:$0xff] %vm2280, %v2175
    %2325 = vst.msk [vmem:[#allocation3 + $0x160] sm:$0xff] %vm2280, %v2177
    %2326 = vst.msk [vmem:[#allocation3 + $0x168] sm:$0xff] %vm2280, %v2179
    %2327 = vst.msk [vmem:[#allocation3 + $0x170] sm:$0xff] %vm2280, %v2181
    %2328 = vst.msk [vmem:[#allocation3 + $0x178] sm:$0xff] %vm2280, %v2183
    %2329 = vst.msk [vmem:[#allocation3 + $0x180] sm:$0xff] %vm2280, %v2185
    %2330 = vst.msk [vmem:[#allocation3 + $0x188] sm:$0xff] %vm2280, %v2187
    %2331 = vst.msk [vmem:[#allocation3 + $0x190] sm:$0xff] %vm2280, %v2189
    %2332 = vst.msk [vmem:[#allocation3 + $0x198] sm:$0xff] %vm2280, %v2191
    %2333 = vst.msk [vmem:[#allocation3 + $0x1a0] sm:$0xff] %vm2280, %v2193
    %2334 = vst.msk [vmem:[#allocation3 + $0x1a8] sm:$0xff] %vm2280, %v2195
    %2335 = vst.msk [vmem:[#allocation3 + $0x1b0] sm:$0xff] %vm2280, %v2197
    %2336 = vst.msk [vmem:[#allocation3 + $0x1b8] sm:$0xff] %vm2280, %v2199
    %2337 = vst.msk [vmem:[#allocation3 + $0x1c0] sm:$0xff] %vm2280, %v2201
    %2338 = vst.msk [vmem:[#allocation3 + $0x1c8] sm:$0xff] %vm2280, %v2203
    %2339 = vst.msk [vmem:[#allocation3 + $0x1d0] sm:$0xff] %vm2280, %v2205
    %2340 = vst.msk [vmem:[#allocation3 + $0x1d8] sm:$0xff] %vm2280, %v2207
    %2341 = vst.msk [vmem:[#allocation3 + $0x1e0] sm:$0xff] %vm2280, %v2209
    %2342 = vst.msk [vmem:[#allocation3 + $0x1e8] sm:$0xff] %vm2280, %v2211
    %2343 = vst.msk [vmem:[#allocation3 + $0x1f0] sm:$0xff] %vm2280, %v2213
    %2344 = vst.msk [vmem:[#allocation3 + $0x1f8] sm:$0xff] %vm2280, %v2215
    %s2345 = scalar_lea.vmem [#allocation2], 48
    %v2346 = vld [vmem:[%s2345] sm:$0xff]
    %v2347 = vld [vmem:[%s2345 + $0x8] sm:$0xff]
    %v2348 = vld [vmem:[%s2345 + $0x18] sm:$0xff]
    %v2349 = vld [vmem:[%s2345 + $0x20] sm:$0xff]
    %v2350 = vld [vmem:[%s2345 + $0x30] sm:$0xff]
    %v2351 = vld [vmem:[%s2345 + $0x38] sm:$0xff]
    %v2352 = vld [vmem:[%s2345 + $0x48] sm:$0xff]
    %v2353 = vld [vmem:[%s2345 + $0x50] sm:$0xff]
    %v2354 = vld [vmem:[%s2345 + $0x60] sm:$0xff]
    %v2355 = vld [vmem:[%s2345 + $0x68] sm:$0xff]
    %v2356 = vld [vmem:[%s2345 + $0x78] sm:$0xff]
    %v2357 = vld [vmem:[%s2345 + $0x80] sm:$0xff]
    %v2358 = vld [vmem:[%s2345 + $0x90] sm:$0xff]
    %v2359 = vld [vmem:[%s2345 + $0x98] sm:$0xff]
    %v2360 = vld [vmem:[%s2345 + $0xa8] sm:$0xff]
    %v2361 = vld [vmem:[%s2345 + $0xb0] sm:$0xff]
    %v2362 = vld [vmem:[%s2345 + $0xc0] sm:$0xff]
    %v2363 = vld [vmem:[%s2345 + $0xc8] sm:$0xff]
    %v2364 = vld [vmem:[%s2345 + $0xd8] sm:$0xff]
    %v2365 = vld [vmem:[%s2345 + $0xe0] sm:$0xff]
    %v2366 = vld [vmem:[%s2345 + $0xf0] sm:$0xff]
    %v2367 = vld [vmem:[%s2345 + $0xf8] sm:$0xff]
    %v2368 = vld [vmem:[%s2345 + $0x108] sm:$0xff]
    %v2369 = vld [vmem:[%s2345 + $0x110] sm:$0xff]
    %v2370 = vld [vmem:[%s2345 + $0x120] sm:$0xff]
    %v2371 = vld [vmem:[%s2345 + $0x128] sm:$0xff]
    %v2372 = vld [vmem:[%s2345 + $0x138] sm:$0xff]
    %v2373 = vld [vmem:[%s2345 + $0x140] sm:$0xff]
    %v2374 = vld [vmem:[%s2345 + $0x150] sm:$0xff]
    %v2375 = vld [vmem:[%s2345 + $0x158] sm:$0xff]
    %v2376 = vld [vmem:[%s2345 + $0x168] sm:$0xff]
    %v2377 = vld [vmem:[%s2345 + $0x170] sm:$0xff]
    %v2378 = vld [vmem:[%s2345 + $0x1b0] sm:$0xff]
    %v2379 = vld [vmem:[%s2345 + $0x1b8] sm:$0xff]
    %v2380 = vld [vmem:[%s2345 + $0x1c8] sm:$0xff]
    %v2381 = vld [vmem:[%s2345 + $0x1d0] sm:$0xff]
    %v2382 = vld [vmem:[%s2345 + $0x1e0] sm:$0xff]
    %v2383 = vld [vmem:[%s2345 + $0x1e8] sm:$0xff]
    %v2384 = vld [vmem:[%s2345 + $0x1f8] sm:$0xff]
    %v2385 = vld [vmem:[%s2345 + $0x200] sm:$0xff]
    %v2386 = vld [vmem:[%s2345 + $0x210] sm:$0xff]
    %v2387 = vld [vmem:[%s2345 + $0x218] sm:$0xff]
    %v2388 = vld [vmem:[%s2345 + $0x228] sm:$0xff]
    %v2389 = vld [vmem:[%s2345 + $0x230] sm:$0xff]
    %v2390 = vld [vmem:[%s2345 + $0x240] sm:$0xff]
    %v2391 = vld [vmem:[%s2345 + $0x248] sm:$0xff]
    %v2392 = vld [vmem:[%s2345 + $0x258] sm:$0xff]
    %v2393 = vld [vmem:[%s2345 + $0x260] sm:$0xff]
    %v2394 = vld [vmem:[%s2345 + $0x270] sm:$0xff]
    %v2395 = vld [vmem:[%s2345 + $0x278] sm:$0xff]
    %v2396 = vld [vmem:[%s2345 + $0x288] sm:$0xff]
    %v2397 = vld [vmem:[%s2345 + $0x290] sm:$0xff]
    %v2398 = vld [vmem:[%s2345 + $0x2a0] sm:$0xff]
    %v2399 = vld [vmem:[%s2345 + $0x2a8] sm:$0xff]
    %v2400 = vld [vmem:[%s2345 + $0x2b8] sm:$0xff]
    %v2401 = vld [vmem:[%s2345 + $0x2c0] sm:$0xff]
    %v2402 = vld [vmem:[%s2345 + $0x2d0] sm:$0xff]
    %v2403 = vld [vmem:[%s2345 + $0x2d8] sm:$0xff]
    %v2404 = vld [vmem:[%s2345 + $0x2e8] sm:$0xff]
    %v2405 = vld [vmem:[%s2345 + $0x2f0] sm:$0xff]
    %v2406 = vld [vmem:[%s2345 + $0x300] sm:$0xff]
    %v2407 = vld [vmem:[%s2345 + $0x308] sm:$0xff]
    %v2408 = vld [vmem:[%s2345 + $0x318] sm:$0xff]
    %v2409 = vld [vmem:[%s2345 + $0x320] sm:$0xff]
    %2474 = vrot.lane.b32.xlu0 %v2346, 24
    %v2475 = vpop.permute.xlu0 %2474
    %2476 = vrot.lane.b32.xlu0 %v2347, 24
    %v2477 = vpop.permute.xlu0 %2476
    %2478 = vrot.lane.b32.xlu0 %v2348, 24
    %v2479 = vpop.permute.xlu0 %2478
    %2480 = vrot.lane.b32.xlu0 %v2349, 24
    %v2481 = vpop.permute.xlu0 %2480
    %2482 = vrot.lane.b32.xlu0 %v2350, 24
    %v2483 = vpop.permute.xlu0 %2482
    %2484 = vrot.lane.b32.xlu0 %v2351, 24
    %v2485 = vpop.permute.xlu0 %2484
    %2486 = vrot.lane.b32.xlu0 %v2352, 24
    %v2487 = vpop.permute.xlu0 %2486
    %2488 = vrot.lane.b32.xlu0 %v2353, 24
    %v2489 = vpop.permute.xlu0 %2488
    %2490 = vrot.lane.b32.xlu0 %v2354, 24
    %v2491 = vpop.permute.xlu0 %2490
    %2492 = vrot.lane.b32.xlu0 %v2355, 24
    %v2493 = vpop.permute.xlu0 %2492
    %2494 = vrot.lane.b32.xlu0 %v2356, 24
    %v2495 = vpop.permute.xlu0 %2494
    %2496 = vrot.lane.b32.xlu0 %v2357, 24
    %v2497 = vpop.permute.xlu0 %2496
    %2498 = vrot.lane.b32.xlu0 %v2358, 24
    %v2499 = vpop.permute.xlu0 %2498
    %2500 = vrot.lane.b32.xlu0 %v2359, 24
    %v2501 = vpop.permute.xlu0 %2500
    %2502 = vrot.lane.b32.xlu0 %v2360, 24
    %v2503 = vpop.permute.xlu0 %2502
    %2504 = vrot.lane.b32.xlu0 %v2361, 24
    %v2505 = vpop.permute.xlu0 %2504
    %2506 = vrot.lane.b32.xlu0 %v2362, 24
    %v2507 = vpop.permute.xlu0 %2506
    %2508 = vrot.lane.b32.xlu0 %v2363, 24
    %v2509 = vpop.permute.xlu0 %2508
    %2510 = vrot.lane.b32.xlu0 %v2364, 24
    %v2511 = vpop.permute.xlu0 %2510
    %2512 = vrot.lane.b32.xlu0 %v2365, 24
    %v2513 = vpop.permute.xlu0 %2512
    %2514 = vrot.lane.b32.xlu0 %v2366, 24
    %v2515 = vpop.permute.xlu0 %2514
    %2516 = vrot.lane.b32.xlu0 %v2367, 24
    %v2517 = vpop.permute.xlu0 %2516
    %2518 = vrot.lane.b32.xlu0 %v2368, 24
    %v2519 = vpop.permute.xlu0 %2518
    %2520 = vrot.lane.b32.xlu0 %v2369, 24
    %v2521 = vpop.permute.xlu0 %2520
    %2522 = vrot.lane.b32.xlu0 %v2370, 24
    %v2523 = vpop.permute.xlu0 %2522
    %2524 = vrot.lane.b32.xlu0 %v2371, 24
    %v2525 = vpop.permute.xlu0 %2524
    %2526 = vrot.lane.b32.xlu0 %v2372, 24
    %v2527 = vpop.permute.xlu0 %2526
    %2528 = vrot.lane.b32.xlu0 %v2373, 24
    %v2529 = vpop.permute.xlu0 %2528
    %2530 = vrot.lane.b32.xlu0 %v2374, 24
    %v2531 = vpop.permute.xlu0 %2530
    %2532 = vrot.lane.b32.xlu0 %v2375, 24
    %v2533 = vpop.permute.xlu0 %2532
    %2534 = vrot.lane.b32.xlu0 %v2376, 24
    %v2535 = vpop.permute.xlu0 %2534
    %2536 = vrot.lane.b32.xlu0 %v2377, 24
    %v2537 = vpop.permute.xlu0 %2536
    %2538 = vrot.lane.b32.xlu0 %v2378, 24
    %v2539 = vpop.permute.xlu0 %2538
    %2540 = vrot.lane.b32.xlu0 %v2379, 24
    %v2541 = vpop.permute.xlu0 %2540
    %2542 = vrot.lane.b32.xlu0 %v2380, 24
    %v2543 = vpop.permute.xlu0 %2542
    %2544 = vrot.lane.b32.xlu0 %v2381, 24
    %v2545 = vpop.permute.xlu0 %2544
    %2546 = vrot.lane.b32.xlu0 %v2382, 24
    %v2547 = vpop.permute.xlu0 %2546
    %2548 = vrot.lane.b32.xlu0 %v2383, 24
    %v2549 = vpop.permute.xlu0 %2548
    %2550 = vrot.lane.b32.xlu0 %v2384, 24
    %v2551 = vpop.permute.xlu0 %2550
    %2552 = vrot.lane.b32.xlu0 %v2385, 24
    %v2553 = vpop.permute.xlu0 %2552
    %2554 = vrot.lane.b32.xlu0 %v2386, 24
    %v2555 = vpop.permute.xlu0 %2554
    %2556 = vrot.lane.b32.xlu0 %v2387, 24
    %v2557 = vpop.permute.xlu0 %2556
    %2558 = vrot.lane.b32.xlu0 %v2388, 24
    %v2559 = vpop.permute.xlu0 %2558
    %2560 = vrot.lane.b32.xlu0 %v2389, 24
    %v2561 = vpop.permute.xlu0 %2560
    %2562 = vrot.lane.b32.xlu0 %v2390, 24
    %v2563 = vpop.permute.xlu0 %2562
    %2564 = vrot.lane.b32.xlu0 %v2391, 24
    %v2565 = vpop.permute.xlu0 %2564
    %2566 = vrot.lane.b32.xlu0 %v2392, 24
    %v2567 = vpop.permute.xlu0 %2566
    %2568 = vrot.lane.b32.xlu0 %v2393, 24
    %v2569 = vpop.permute.xlu0 %2568
    %2570 = vrot.lane.b32.xlu0 %v2394, 24
    %v2571 = vpop.permute.xlu0 %2570
    %2572 = vrot.lane.b32.xlu0 %v2395, 24
    %v2573 = vpop.permute.xlu0 %2572
    %2574 = vrot.lane.b32.xlu0 %v2396, 24
    %v2575 = vpop.permute.xlu0 %2574
    %2576 = vrot.lane.b32.xlu0 %v2397, 24
    %v2577 = vpop.permute.xlu0 %2576
    %2578 = vrot.lane.b32.xlu0 %v2398, 24
    %v2579 = vpop.permute.xlu0 %2578
    %2580 = vrot.lane.b32.xlu0 %v2399, 24
    %v2581 = vpop.permute.xlu0 %2580
    %2582 = vrot.lane.b32.xlu0 %v2400, 24
    %v2583 = vpop.permute.xlu0 %2582
    %2584 = vrot.lane.b32.xlu0 %v2401, 24
    %v2585 = vpop.permute.xlu0 %2584
    %2586 = vrot.lane.b32.xlu0 %v2402, 24
    %v2587 = vpop.permute.xlu0 %2586
    %2588 = vrot.lane.b32.xlu0 %v2403, 24
    %v2589 = vpop.permute.xlu0 %2588
    %2590 = vrot.lane.b32.xlu0 %v2404, 24
    %v2591 = vpop.permute.xlu0 %2590
    %2592 = vrot.lane.b32.xlu0 %v2405, 24
    %v2593 = vpop.permute.xlu0 %2592
    %2594 = vrot.lane.b32.xlu0 %v2406, 24
    %v2595 = vpop.permute.xlu0 %2594
    %2596 = vrot.lane.b32.xlu0 %v2407, 24
    %v2597 = vpop.permute.xlu0 %2596
    %2598 = vrot.lane.b32.xlu0 %v2408, 24
    %v2599 = vpop.permute.xlu0 %2598
    %2600 = vrot.lane.b32.xlu0 %v2409, 24
    %v2601 = vpop.permute.xlu0 %2600
    %vm2666 = vcmask 228544
    %2667 = vst.msk [vmem:[#allocation3] sm:$0xff] %vm2666, %v2475
    %2668 = vst.msk [vmem:[#allocation3 + $0x8] sm:$0xff] %vm2666, %v2477
    %2669 = vst.msk [vmem:[#allocation3 + $0x10] sm:$0xff] %vm2666, %v2479
    %2670 = vst.msk [vmem:[#allocation3 + $0x18] sm:$0xff] %vm2666, %v2481
    %2671 = vst.msk [vmem:[#allocation3 + $0x20] sm:$0xff] %vm2666, %v2483
    %2672 = vst.msk [vmem:[#allocation3 + $0x28] sm:$0xff] %vm2666, %v2485
    %2673 = vst.msk [vmem:[#allocation3 + $0x30] sm:$0xff] %vm2666, %v2487
    %2674 = vst.msk [vmem:[#allocation3 + $0x38] sm:$0xff] %vm2666, %v2489
    %2675 = vst.msk [vmem:[#allocation3 + $0x40] sm:$0xff] %vm2666, %v2491
    %2676 = vst.msk [vmem:[#allocation3 + $0x48] sm:$0xff] %vm2666, %v2493
    %2677 = vst.msk [vmem:[#allocation3 + $0x50] sm:$0xff] %vm2666, %v2495
    %2678 = vst.msk [vmem:[#allocation3 + $0x58] sm:$0xff] %vm2666, %v2497
    %2679 = vst.msk [vmem:[#allocation3 + $0x60] sm:$0xff] %vm2666, %v2499
    %2680 = vst.msk [vmem:[#allocation3 + $0x68] sm:$0xff] %vm2666, %v2501
    %2681 = vst.msk [vmem:[#allocation3 + $0x70] sm:$0xff] %vm2666, %v2503
    %2682 = vst.msk [vmem:[#allocation3 + $0x78] sm:$0xff] %vm2666, %v2505
    %2683 = vst.msk [vmem:[#allocation3 + $0x80] sm:$0xff] %vm2666, %v2507
    %2684 = vst.msk [vmem:[#allocation3 + $0x88] sm:$0xff] %vm2666, %v2509
    %2685 = vst.msk [vmem:[#allocation3 + $0x90] sm:$0xff] %vm2666, %v2511
    %2686 = vst.msk [vmem:[#allocation3 + $0x98] sm:$0xff] %vm2666, %v2513
    %2687 = vst.msk [vmem:[#allocation3 + $0xa0] sm:$0xff] %vm2666, %v2515
    %2688 = vst.msk [vmem:[#allocation3 + $0xa8] sm:$0xff] %vm2666, %v2517
    %2689 = vst.msk [vmem:[#allocation3 + $0xb0] sm:$0xff] %vm2666, %v2519
    %2690 = vst.msk [vmem:[#allocation3 + $0xb8] sm:$0xff] %vm2666, %v2521
    %2691 = vst.msk [vmem:[#allocation3 + $0xc0] sm:$0xff] %vm2666, %v2523
    %2692 = vst.msk [vmem:[#allocation3 + $0xc8] sm:$0xff] %vm2666, %v2525
    %2693 = vst.msk [vmem:[#allocation3 + $0xd0] sm:$0xff] %vm2666, %v2527
    %2694 = vst.msk [vmem:[#allocation3 + $0xd8] sm:$0xff] %vm2666, %v2529
    %2695 = vst.msk [vmem:[#allocation3 + $0xe0] sm:$0xff] %vm2666, %v2531
    %2696 = vst.msk [vmem:[#allocation3 + $0xe8] sm:$0xff] %vm2666, %v2533
    %2697 = vst.msk [vmem:[#allocation3 + $0xf0] sm:$0xff] %vm2666, %v2535
    %2698 = vst.msk [vmem:[#allocation3 + $0xf8] sm:$0xff] %vm2666, %v2537
    %2699 = vst.msk [vmem:[#allocation3 + $0x100] sm:$0xff] %vm2666, %v2539
    %2700 = vst.msk [vmem:[#allocation3 + $0x108] sm:$0xff] %vm2666, %v2541
    %2701 = vst.msk [vmem:[#allocation3 + $0x110] sm:$0xff] %vm2666, %v2543
    %2702 = vst.msk [vmem:[#allocation3 + $0x118] sm:$0xff] %vm2666, %v2545
    %2703 = vst.msk [vmem:[#allocation3 + $0x120] sm:$0xff] %vm2666, %v2547
    %2704 = vst.msk [vmem:[#allocation3 + $0x128] sm:$0xff] %vm2666, %v2549
    %2705 = vst.msk [vmem:[#allocation3 + $0x130] sm:$0xff] %vm2666, %v2551
    %2706 = vst.msk [vmem:[#allocation3 + $0x138] sm:$0xff] %vm2666, %v2553
    %2707 = vst.msk [vmem:[#allocation3 + $0x140] sm:$0xff] %vm2666, %v2555
    %2708 = vst.msk [vmem:[#allocation3 + $0x148] sm:$0xff] %vm2666, %v2557
    %2709 = vst.msk [vmem:[#allocation3 + $0x150] sm:$0xff] %vm2666, %v2559
    %2710 = vst.msk [vmem:[#allocation3 + $0x158] sm:$0xff] %vm2666, %v2561
    %2711 = vst.msk [vmem:[#allocation3 + $0x160] sm:$0xff] %vm2666, %v2563
    %2712 = vst.msk [vmem:[#allocation3 + $0x168] sm:$0xff] %vm2666, %v2565
    %2713 = vst.msk [vmem:[#allocation3 + $0x170] sm:$0xff] %vm2666, %v2567
    %2714 = vst.msk [vmem:[#allocation3 + $0x178] sm:$0xff] %vm2666, %v2569
    %2715 = vst.msk [vmem:[#allocation3 + $0x180] sm:$0xff] %vm2666, %v2571
    %2716 = vst.msk [vmem:[#allocation3 + $0x188] sm:$0xff] %vm2666, %v2573
    %2717 = vst.msk [vmem:[#allocation3 + $0x190] sm:$0xff] %vm2666, %v2575
    %2718 = vst.msk [vmem:[#allocation3 + $0x198] sm:$0xff] %vm2666, %v2577
    %2719 = vst.msk [vmem:[#allocation3 + $0x1a0] sm:$0xff] %vm2666, %v2579
    %2720 = vst.msk [vmem:[#allocation3 + $0x1a8] sm:$0xff] %vm2666, %v2581
    %2721 = vst.msk [vmem:[#allocation3 + $0x1b0] sm:$0xff] %vm2666, %v2583
    %2722 = vst.msk [vmem:[#allocation3 + $0x1b8] sm:$0xff] %vm2666, %v2585
    %2723 = vst.msk [vmem:[#allocation3 + $0x1c0] sm:$0xff] %vm2666, %v2587
    %2724 = vst.msk [vmem:[#allocation3 + $0x1c8] sm:$0xff] %vm2666, %v2589
    %2725 = vst.msk [vmem:[#allocation3 + $0x1d0] sm:$0xff] %vm2666, %v2591
    %2726 = vst.msk [vmem:[#allocation3 + $0x1d8] sm:$0xff] %vm2666, %v2593
    %2727 = vst.msk [vmem:[#allocation3 + $0x1e0] sm:$0xff] %vm2666, %v2595
    %2728 = vst.msk [vmem:[#allocation3 + $0x1e8] sm:$0xff] %vm2666, %v2597
    %2729 = vst.msk [vmem:[#allocation3 + $0x1f0] sm:$0xff] %vm2666, %v2599
    %2730 = vst.msk [vmem:[#allocation3 + $0x1f8] sm:$0xff] %vm2666, %v2601
    %v2731 = vld [vmem:[%s2345 + $0x1] sm:$0xff]
    %v2732 = vld [vmem:[%s2345 + $0x9] sm:$0xff]
    %v2733 = vld [vmem:[%s2345 + $0x19] sm:$0xff]
    %v2734 = vld [vmem:[%s2345 + $0x21] sm:$0xff]
    %v2735 = vld [vmem:[%s2345 + $0x31] sm:$0xff]
    %v2736 = vld [vmem:[%s2345 + $0x39] sm:$0xff]
    %v2737 = vld [vmem:[%s2345 + $0x49] sm:$0xff]
    %v2738 = vld [vmem:[%s2345 + $0x51] sm:$0xff]
    %v2739 = vld [vmem:[%s2345 + $0x61] sm:$0xff]
    %v2740 = vld [vmem:[%s2345 + $0x69] sm:$0xff]
    %v2741 = vld [vmem:[%s2345 + $0x79] sm:$0xff]
    %v2742 = vld [vmem:[%s2345 + $0x81] sm:$0xff]
    %v2743 = vld [vmem:[%s2345 + $0x91] sm:$0xff]
    %v2744 = vld [vmem:[%s2345 + $0x99] sm:$0xff]
    %v2745 = vld [vmem:[%s2345 + $0xa9] sm:$0xff]
    %v2746 = vld [vmem:[%s2345 + $0xb1] sm:$0xff]
    %v2747 = vld [vmem:[%s2345 + $0xc1] sm:$0xff]
    %v2748 = vld [vmem:[%s2345 + $0xc9] sm:$0xff]
    %v2749 = vld [vmem:[%s2345 + $0xd9] sm:$0xff]
    %v2750 = vld [vmem:[%s2345 + $0xe1] sm:$0xff]
    %v2751 = vld [vmem:[%s2345 + $0xf1] sm:$0xff]
    %v2752 = vld [vmem:[%s2345 + $0xf9] sm:$0xff]
    %v2753 = vld [vmem:[%s2345 + $0x109] sm:$0xff]
    %v2754 = vld [vmem:[%s2345 + $0x111] sm:$0xff]
    %v2755 = vld [vmem:[%s2345 + $0x121] sm:$0xff]
    %v2756 = vld [vmem:[%s2345 + $0x129] sm:$0xff]
    %v2757 = vld [vmem:[%s2345 + $0x139] sm:$0xff]
    %v2758 = vld [vmem:[%s2345 + $0x141] sm:$0xff]
    %v2759 = vld [vmem:[%s2345 + $0x151] sm:$0xff]
    %v2760 = vld [vmem:[%s2345 + $0x159] sm:$0xff]
    %v2761 = vld [vmem:[%s2345 + $0x169] sm:$0xff]
    %v2762 = vld [vmem:[%s2345 + $0x171] sm:$0xff]
    %v2763 = vld [vmem:[%s2345 + $0x1b1] sm:$0xff]
    %v2764 = vld [vmem:[%s2345 + $0x1b9] sm:$0xff]
    %v2765 = vld [vmem:[%s2345 + $0x1c9] sm:$0xff]
    %v2766 = vld [vmem:[%s2345 + $0x1d1] sm:$0xff]
    %v2767 = vld [vmem:[%s2345 + $0x1e1] sm:$0xff]
    %v2768 = vld [vmem:[%s2345 + $0x1e9] sm:$0xff]
    %v2769 = vld [vmem:[%s2345 + $0x1f9] sm:$0xff]
    %v2770 = vld [vmem:[%s2345 + $0x201] sm:$0xff]
    %v2771 = vld [vmem:[%s2345 + $0x211] sm:$0xff]
    %v2772 = vld [vmem:[%s2345 + $0x219] sm:$0xff]
    %v2773 = vld [vmem:[%s2345 + $0x229] sm:$0xff]
    %v2774 = vld [vmem:[%s2345 + $0x231] sm:$0xff]
    %v2775 = vld [vmem:[%s2345 + $0x241] sm:$0xff]
    %v2776 = vld [vmem:[%s2345 + $0x249] sm:$0xff]
    %v2777 = vld [vmem:[%s2345 + $0x259] sm:$0xff]
    %v2778 = vld [vmem:[%s2345 + $0x261] sm:$0xff]
    %v2779 = vld [vmem:[%s2345 + $0x271] sm:$0xff]
    %v2780 = vld [vmem:[%s2345 + $0x279] sm:$0xff]
    %v2781 = vld [vmem:[%s2345 + $0x289] sm:$0xff]
    %v2782 = vld [vmem:[%s2345 + $0x291] sm:$0xff]
    %v2783 = vld [vmem:[%s2345 + $0x2a1] sm:$0xff]
    %v2784 = vld [vmem:[%s2345 + $0x2a9] sm:$0xff]
    %v2785 = vld [vmem:[%s2345 + $0x2b9] sm:$0xff]
    %v2786 = vld [vmem:[%s2345 + $0x2c1] sm:$0xff]
    %v2787 = vld [vmem:[%s2345 + $0x2d1] sm:$0xff]
    %v2788 = vld [vmem:[%s2345 + $0x2d9] sm:$0xff]
    %v2789 = vld [vmem:[%s2345 + $0x2e9] sm:$0xff]
    %v2790 = vld [vmem:[%s2345 + $0x2f1] sm:$0xff]
    %v2791 = vld [vmem:[%s2345 + $0x301] sm:$0xff]
    %v2792 = vld [vmem:[%s2345 + $0x309] sm:$0xff]
    %v2793 = vld [vmem:[%s2345 + $0x319] sm:$0xff]
    %v2794 = vld [vmem:[%s2345 + $0x321] sm:$0xff]
    %2859 = vrot.lane.b32.xlu0 %v2731, 28
    %v2860 = vpop.permute.xlu0 %2859
    %2861 = vrot.lane.b32.xlu0 %v2732, 28
    %v2862 = vpop.permute.xlu0 %2861
    %2863 = vrot.lane.b32.xlu0 %v2733, 28
    %v2864 = vpop.permute.xlu0 %2863
    %2865 = vrot.lane.b32.xlu0 %v2734, 28
    %v2866 = vpop.permute.xlu0 %2865
    %2867 = vrot.lane.b32.xlu0 %v2735, 28
    %v2868 = vpop.permute.xlu0 %2867
    %2869 = vrot.lane.b32.xlu0 %v2736, 28
    %v2870 = vpop.permute.xlu0 %2869
    %2871 = vrot.lane.b32.xlu0 %v2737, 28
    %v2872 = vpop.permute.xlu0 %2871
    %2873 = vrot.lane.b32.xlu0 %v2738, 28
    %v2874 = vpop.permute.xlu0 %2873
    %2875 = vrot.lane.b32.xlu0 %v2739, 28
    %v2876 = vpop.permute.xlu0 %2875
    %2877 = vrot.lane.b32.xlu0 %v2740, 28
    %v2878 = vpop.permute.xlu0 %2877
    %2879 = vrot.lane.b32.xlu0 %v2741, 28
    %v2880 = vpop.permute.xlu0 %2879
    %2881 = vrot.lane.b32.xlu0 %v2742, 28
    %v2882 = vpop.permute.xlu0 %2881
    %2883 = vrot.lane.b32.xlu0 %v2743, 28
    %v2884 = vpop.permute.xlu0 %2883
    %2885 = vrot.lane.b32.xlu0 %v2744, 28
    %v2886 = vpop.permute.xlu0 %2885
    %2887 = vrot.lane.b32.xlu0 %v2745, 28
    %v2888 = vpop.permute.xlu0 %2887
    %2889 = vrot.lane.b32.xlu0 %v2746, 28
    %v2890 = vpop.permute.xlu0 %2889
    %2891 = vrot.lane.b32.xlu0 %v2747, 28
    %v2892 = vpop.permute.xlu0 %2891
    %2893 = vrot.lane.b32.xlu0 %v2748, 28
    %v2894 = vpop.permute.xlu0 %2893
    %2895 = vrot.lane.b32.xlu0 %v2749, 28
    %v2896 = vpop.permute.xlu0 %2895
    %2897 = vrot.lane.b32.xlu0 %v2750, 28
    %v2898 = vpop.permute.xlu0 %2897
    %2899 = vrot.lane.b32.xlu0 %v2751, 28
    %v2900 = vpop.permute.xlu0 %2899
    %2901 = vrot.lane.b32.xlu0 %v2752, 28
    %v2902 = vpop.permute.xlu0 %2901
    %2903 = vrot.lane.b32.xlu0 %v2753, 28
    %v2904 = vpop.permute.xlu0 %2903
    %2905 = vrot.lane.b32.xlu0 %v2754, 28
    %v2906 = vpop.permute.xlu0 %2905
    %2907 = vrot.lane.b32.xlu0 %v2755, 28
    %v2908 = vpop.permute.xlu0 %2907
    %2909 = vrot.lane.b32.xlu0 %v2756, 28
    %v2910 = vpop.permute.xlu0 %2909
    %2911 = vrot.lane.b32.xlu0 %v2757, 28
    %v2912 = vpop.permute.xlu0 %2911
    %2913 = vrot.lane.b32.xlu0 %v2758, 28
    %v2914 = vpop.permute.xlu0 %2913
    %2915 = vrot.lane.b32.xlu0 %v2759, 28
    %v2916 = vpop.permute.xlu0 %2915
    %2917 = vrot.lane.b32.xlu0 %v2760, 28
    %v2918 = vpop.permute.xlu0 %2917
    %2919 = vrot.lane.b32.xlu0 %v2761, 28
    %v2920 = vpop.permute.xlu0 %2919
    %2921 = vrot.lane.b32.xlu0 %v2762, 28
    %v2922 = vpop.permute.xlu0 %2921
    %2923 = vrot.lane.b32.xlu0 %v2763, 28
    %v2924 = vpop.permute.xlu0 %2923
    %2925 = vrot.lane.b32.xlu0 %v2764, 28
    %v2926 = vpop.permute.xlu0 %2925
    %2927 = vrot.lane.b32.xlu0 %v2765, 28
    %v2928 = vpop.permute.xlu0 %2927
    %2929 = vrot.lane.b32.xlu0 %v2766, 28
    %v2930 = vpop.permute.xlu0 %2929
    %2931 = vrot.lane.b32.xlu0 %v2767, 28
    %v2932 = vpop.permute.xlu0 %2931
    %2933 = vrot.lane.b32.xlu0 %v2768, 28
    %v2934 = vpop.permute.xlu0 %2933
    %2935 = vrot.lane.b32.xlu0 %v2769, 28
    %v2936 = vpop.permute.xlu0 %2935
    %2937 = vrot.lane.b32.xlu0 %v2770, 28
    %v2938 = vpop.permute.xlu0 %2937
    %2939 = vrot.lane.b32.xlu0 %v2771, 28
    %v2940 = vpop.permute.xlu0 %2939
    %2941 = vrot.lane.b32.xlu0 %v2772, 28
    %v2942 = vpop.permute.xlu0 %2941
    %2943 = vrot.lane.b32.xlu0 %v2773, 28
    %v2944 = vpop.permute.xlu0 %2943
    %2945 = vrot.lane.b32.xlu0 %v2774, 28
    %v2946 = vpop.permute.xlu0 %2945
    %2947 = vrot.lane.b32.xlu0 %v2775, 28
    %v2948 = vpop.permute.xlu0 %2947
    %2949 = vrot.lane.b32.xlu0 %v2776, 28
    %v2950 = vpop.permute.xlu0 %2949
    %2951 = vrot.lane.b32.xlu0 %v2777, 28
    %v2952 = vpop.permute.xlu0 %2951
    %2953 = vrot.lane.b32.xlu0 %v2778, 28
    %v2954 = vpop.permute.xlu0 %2953
    %2955 = vrot.lane.b32.xlu0 %v2779, 28
    %v2956 = vpop.permute.xlu0 %2955
    %2957 = vrot.lane.b32.xlu0 %v2780, 28
    %v2958 = vpop.permute.xlu0 %2957
    %2959 = vrot.lane.b32.xlu0 %v2781, 28
    %v2960 = vpop.permute.xlu0 %2959
    %2961 = vrot.lane.b32.xlu0 %v2782, 28
    %v2962 = vpop.permute.xlu0 %2961
    %2963 = vrot.lane.b32.xlu0 %v2783, 28
    %v2964 = vpop.permute.xlu0 %2963
    %2965 = vrot.lane.b32.xlu0 %v2784, 28
    %v2966 = vpop.permute.xlu0 %2965
    %2967 = vrot.lane.b32.xlu0 %v2785, 28
    %v2968 = vpop.permute.xlu0 %2967
    %2969 = vrot.lane.b32.xlu0 %v2786, 28
    %v2970 = vpop.permute.xlu0 %2969
    %2971 = vrot.lane.b32.xlu0 %v2787, 28
    %v2972 = vpop.permute.xlu0 %2971
    %2973 = vrot.lane.b32.xlu0 %v2788, 28
    %v2974 = vpop.permute.xlu0 %2973
    %2975 = vrot.lane.b32.xlu0 %v2789, 28
    %v2976 = vpop.permute.xlu0 %2975
    %2977 = vrot.lane.b32.xlu0 %v2790, 28
    %v2978 = vpop.permute.xlu0 %2977
    %2979 = vrot.lane.b32.xlu0 %v2791, 28
    %v2980 = vpop.permute.xlu0 %2979
    %2981 = vrot.lane.b32.xlu0 %v2792, 28
    %v2982 = vpop.permute.xlu0 %2981
    %2983 = vrot.lane.b32.xlu0 %v2793, 28
    %v2984 = vpop.permute.xlu0 %2983
    %2985 = vrot.lane.b32.xlu0 %v2794, 28
    %v2986 = vpop.permute.xlu0 %2985
    %vm3051 = vcmask 261344
    %3052 = vst.msk [vmem:[#allocation3] sm:$0xff] %vm3051, %v2860
    %3053 = vst.msk [vmem:[#allocation3 + $0x8] sm:$0xff] %vm3051, %v2862
    %3054 = vst.msk [vmem:[#allocation3 + $0x10] sm:$0xff] %vm3051, %v2864
    %3055 = vst.msk [vmem:[#allocation3 + $0x18] sm:$0xff] %vm3051, %v2866
    %3056 = vst.msk [vmem:[#allocation3 + $0x20] sm:$0xff] %vm3051, %v2868
    %3057 = vst.msk [vmem:[#allocation3 + $0x28] sm:$0xff] %vm3051, %v2870
    %3058 = vst.msk [vmem:[#allocation3 + $0x30] sm:$0xff] %vm3051, %v2872
    %3059 = vst.msk [vmem:[#allocation3 + $0x38] sm:$0xff] %vm3051, %v2874
    %3060 = vst.msk [vmem:[#allocation3 + $0x40] sm:$0xff] %vm3051, %v2876
    %3061 = vst.msk [vmem:[#allocation3 + $0x48] sm:$0xff] %vm3051, %v2878
    %3062 = vst.msk [vmem:[#allocation3 + $0x50] sm:$0xff] %vm3051, %v2880
    %3063 = vst.msk [vmem:[#allocation3 + $0x58] sm:$0xff] %vm3051, %v2882
    %3064 = vst.msk [vmem:[#allocation3 + $0x60] sm:$0xff] %vm3051, %v2884
    %3065 = vst.msk [vmem:[#allocation3 + $0x68] sm:$0xff] %vm3051, %v2886
    %3066 = vst.msk [vmem:[#allocation3 + $0x70] sm:$0xff] %vm3051, %v2888
    %3067 = vst.msk [vmem:[#allocation3 + $0x78] sm:$0xff] %vm3051, %v2890
    %3068 = vst.msk [vmem:[#allocation3 + $0x80] sm:$0xff] %vm3051, %v2892
    %3069 = vst.msk [vmem:[#allocation3 + $0x88] sm:$0xff] %vm3051, %v2894
    %3070 = vst.msk [vmem:[#allocation3 + $0x90] sm:$0xff] %vm3051, %v2896
    %3071 = vst.msk [vmem:[#allocation3 + $0x98] sm:$0xff] %vm3051, %v2898
    %3072 = vst.msk [vmem:[#allocation3 + $0xa0] sm:$0xff] %vm3051, %v2900
    %3073 = vst.msk [vmem:[#allocation3 + $0xa8] sm:$0xff] %vm3051, %v2902
    %3074 = vst.msk [vmem:[#allocation3 + $0xb0] sm:$0xff] %vm3051, %v2904
    %3075 = vst.msk [vmem:[#allocation3 + $0xb8] sm:$0xff] %vm3051, %v2906
    %3076 = vst.msk [vmem:[#allocation3 + $0xc0] sm:$0xff] %vm3051, %v2908
    %3077 = vst.msk [vmem:[#allocation3 + $0xc8] sm:$0xff] %vm3051, %v2910
    %3078 = vst.msk [vmem:[#allocation3 + $0xd0] sm:$0xff] %vm3051, %v2912
    %3079 = vst.msk [vmem:[#allocation3 + $0xd8] sm:$0xff] %vm3051, %v2914
    %3080 = vst.msk [vmem:[#allocation3 + $0xe0] sm:$0xff] %vm3051, %v2916
    %3081 = vst.msk [vmem:[#allocation3 + $0xe8] sm:$0xff] %vm3051, %v2918
    %3082 = vst.msk [vmem:[#allocation3 + $0xf0] sm:$0xff] %vm3051, %v2920
    %3083 = vst.msk [vmem:[#allocation3 + $0xf8] sm:$0xff] %vm3051, %v2922
    %3084 = vst.msk [vmem:[#allocation3 + $0x100] sm:$0xff] %vm3051, %v2924
    %3085 = vst.msk [vmem:[#allocation3 + $0x108] sm:$0xff] %vm3051, %v2926
    %3086 = vst.msk [vmem:[#allocation3 + $0x110] sm:$0xff] %vm3051, %v2928
    %3087 = vst.msk [vmem:[#allocation3 + $0x118] sm:$0xff] %vm3051, %v2930
    %3088 = vst.msk [vmem:[#allocation3 + $0x120] sm:$0xff] %vm3051, %v2932
    %3089 = vst.msk [vmem:[#allocation3 + $0x128] sm:$0xff] %vm3051, %v2934
    %3090 = vst.msk [vmem:[#allocation3 + $0x130] sm:$0xff] %vm3051, %v2936
    %3091 = vst.msk [vmem:[#allocation3 + $0x138] sm:$0xff] %vm3051, %v2938
    %3092 = vst.msk [vmem:[#allocation3 + $0x140] sm:$0xff] %vm3051, %v2940
    %3093 = vst.msk [vmem:[#allocation3 + $0x148] sm:$0xff] %vm3051, %v2942
    %3094 = vst.msk [vmem:[#allocation3 + $0x150] sm:$0xff] %vm3051, %v2944
    %3095 = vst.msk [vmem:[#allocation3 + $0x158] sm:$0xff] %vm3051, %v2946
    %3096 = vst.msk [vmem:[#allocation3 + $0x160] sm:$0xff] %vm3051, %v2948
    %3097 = vst.msk [vmem:[#allocation3 + $0x168] sm:$0xff] %vm3051, %v2950
    %3098 = vst.msk [vmem:[#allocation3 + $0x170] sm:$0xff] %vm3051, %v2952
    %3099 = vst.msk [vmem:[#allocation3 + $0x178] sm:$0xff] %vm3051, %v2954
    %3100 = vst.msk [vmem:[#allocation3 + $0x180] sm:$0xff] %vm3051, %v2956
    %3101 = vst.msk [vmem:[#allocation3 + $0x188] sm:$0xff] %vm3051, %v2958
    %3102 = vst.msk [vmem:[#allocation3 + $0x190] sm:$0xff] %vm3051, %v2960
    %3103 = vst.msk [vmem:[#allocation3 + $0x198] sm:$0xff] %vm3051, %v2962
    %3104 = vst.msk [vmem:[#allocation3 + $0x1a0] sm:$0xff] %vm3051, %v2964
    %3105 = vst.msk [vmem:[#allocation3 + $0x1a8] sm:$0xff] %vm3051, %v2966
    %3106 = vst.msk [vmem:[#allocation3 + $0x1b0] sm:$0xff] %vm3051, %v2968
    %3107 = vst.msk [vmem:[#allocation3 + $0x1b8] sm:$0xff] %vm3051, %v2970
    %3108 = vst.msk [vmem:[#allocation3 + $0x1c0] sm:$0xff] %vm3051, %v2972
    %3109 = vst.msk [vmem:[#allocation3 + $0x1c8] sm:$0xff] %vm3051, %v2974
    %3110 = vst.msk [vmem:[#allocation3 + $0x1d0] sm:$0xff] %vm3051, %v2976
    %3111 = vst.msk [vmem:[#allocation3 + $0x1d8] sm:$0xff] %vm3051, %v2978
    %3112 = vst.msk [vmem:[#allocation3 + $0x1e0] sm:$0xff] %vm3051, %v2980
    %3113 = vst.msk [vmem:[#allocation3 + $0x1e8] sm:$0xff] %vm3051, %v2982
    %3114 = vst.msk [vmem:[#allocation3 + $0x1f0] sm:$0xff] %vm3051, %v2984
    %3115 = vst.msk [vmem:[#allocation3 + $0x1f8] sm:$0xff] %vm3051, %v2986
    %v3116 = vld [vmem:[%s2345 + $0x2] sm:$0xff]
    %v3117 = vld [vmem:[%s2345 + $0xa] sm:$0xff]
    %v3118 = vld [vmem:[%s2345 + $0x1a] sm:$0xff]
    %v3119 = vld [vmem:[%s2345 + $0x22] sm:$0xff]
    %v3120 = vld [vmem:[%s2345 + $0x32] sm:$0xff]
    %v3121 = vld [vmem:[%s2345 + $0x3a] sm:$0xff]
    %v3122 = vld [vmem:[%s2345 + $0x4a] sm:$0xff]
    %v3123 = vld [vmem:[%s2345 + $0x52] sm:$0xff]
    %v3124 = vld [vmem:[%s2345 + $0x62] sm:$0xff]
    %v3125 = vld [vmem:[%s2345 + $0x6a] sm:$0xff]
    %v3126 = vld [vmem:[%s2345 + $0x7a] sm:$0xff]
    %v3127 = vld [vmem:[%s2345 + $0x82] sm:$0xff]
    %v3128 = vld [vmem:[%s2345 + $0x92] sm:$0xff]
    %v3129 = vld [vmem:[%s2345 + $0x9a] sm:$0xff]
    %v3130 = vld [vmem:[%s2345 + $0xaa] sm:$0xff]
    %v3131 = vld [vmem:[%s2345 + $0xb2] sm:$0xff]
    %v3132 = vld [vmem:[%s2345 + $0xc2] sm:$0xff]
    %v3133 = vld [vmem:[%s2345 + $0xca] sm:$0xff]
    %v3134 = vld [vmem:[%s2345 + $0xda] sm:$0xff]
    %v3135 = vld [vmem:[%s2345 + $0xe2] sm:$0xff]
    %v3136 = vld [vmem:[%s2345 + $0xf2] sm:$0xff]
    %v3137 = vld [vmem:[%s2345 + $0xfa] sm:$0xff]
    %v3138 = vld [vmem:[%s2345 + $0x10a] sm:$0xff]
    %v3139 = vld [vmem:[%s2345 + $0x112] sm:$0xff]
    %v3140 = vld [vmem:[%s2345 + $0x122] sm:$0xff]
    %v3141 = vld [vmem:[%s2345 + $0x12a] sm:$0xff]
    %v3142 = vld [vmem:[%s2345 + $0x13a] sm:$0xff]
    %v3143 = vld [vmem:[%s2345 + $0x142] sm:$0xff]
    %v3144 = vld [vmem:[%s2345 + $0x152] sm:$0xff]
    %v3145 = vld [vmem:[%s2345 + $0x15a] sm:$0xff]
    %v3146 = vld [vmem:[%s2345 + $0x16a] sm:$0xff]
    %v3147 = vld [vmem:[%s2345 + $0x172] sm:$0xff]
    %v3148 = vld [vmem:[%s2345 + $0x1b2] sm:$0xff]
    %v3149 = vld [vmem:[%s2345 + $0x1ba] sm:$0xff]
    %v3150 = vld [vmem:[%s2345 + $0x1ca] sm:$0xff]
    %v3151 = vld [vmem:[%s2345 + $0x1d2] sm:$0xff]
    %v3152 = vld [vmem:[%s2345 + $0x1e2] sm:$0xff]
    %v3153 = vld [vmem:[%s2345 + $0x1ea] sm:$0xff]
    %v3154 = vld [vmem:[%s2345 + $0x1fa] sm:$0xff]
    %v3155 = vld [vmem:[%s2345 + $0x202] sm:$0xff]
    %v3156 = vld [vmem:[%s2345 + $0x212] sm:$0xff]
    %v3157 = vld [vmem:[%s2345 + $0x21a] sm:$0xff]
    %v3158 = vld [vmem:[%s2345 + $0x22a] sm:$0xff]
    %v3159 = vld [vmem:[%s2345 + $0x232] sm:$0xff]
    %v3160 = vld [vmem:[%s2345 + $0x242] sm:$0xff]
    %v3161 = vld [vmem:[%s2345 + $0x24a] sm:$0xff]
    %v3162 = vld [vmem:[%s2345 + $0x25a] sm:$0xff]
    %v3163 = vld [vmem:[%s2345 + $0x262] sm:$0xff]
    %v3164 = vld [vmem:[%s2345 + $0x272] sm:$0xff]
    %v3165 = vld [vmem:[%s2345 + $0x27a] sm:$0xff]
    %v3166 = vld [vmem:[%s2345 + $0x28a] sm:$0xff]
    %v3167 = vld [vmem:[%s2345 + $0x292] sm:$0xff]
    %v3168 = vld [vmem:[%s2345 + $0x2a2] sm:$0xff]
    %v3169 = vld [vmem:[%s2345 + $0x2aa] sm:$0xff]
    %v3170 = vld [vmem:[%s2345 + $0x2ba] sm:$0xff]
    %v3171 = vld [vmem:[%s2345 + $0x2c2] sm:$0xff]
    %v3172 = vld [vmem:[%s2345 + $0x2d2] sm:$0xff]
    %v3173 = vld [vmem:[%s2345 + $0x2da] sm:$0xff]
    %v3174 = vld [vmem:[%s2345 + $0x2ea] sm:$0xff]
    %v3175 = vld [vmem:[%s2345 + $0x2f2] sm:$0xff]
    %v3176 = vld [vmem:[%s2345 + $0x302] sm:$0xff]
    %v3177 = vld [vmem:[%s2345 + $0x30a] sm:$0xff]
    %v3178 = vld [vmem:[%s2345 + $0x31a] sm:$0xff]
    %v3179 = vld [vmem:[%s2345 + $0x322] sm:$0xff]
    %3244 = vrot.lane.b32.xlu0 %v3116, 32
    %v3245 = vpop.permute.xlu0 %3244
    %3246 = vrot.lane.b32.xlu0 %v3117, 32
    %v3247 = vpop.permute.xlu0 %3246
    %3248 = vrot.lane.b32.xlu0 %v3118, 32
    %v3249 = vpop.permute.xlu0 %3248
    %3250 = vrot.lane.b32.xlu0 %v3119, 32
    %v3251 = vpop.permute.xlu0 %3250
    %3252 = vrot.lane.b32.xlu0 %v3120, 32
    %v3253 = vpop.permute.xlu0 %3252
    %3254 = vrot.lane.b32.xlu0 %v3121, 32
    %v3255 = vpop.permute.xlu0 %3254
    %3256 = vrot.lane.b32.xlu0 %v3122, 32
    %v3257 = vpop.permute.xlu0 %3256
    %3258 = vrot.lane.b32.xlu0 %v3123, 32
    %v3259 = vpop.permute.xlu0 %3258
    %3260 = vrot.lane.b32.xlu0 %v3124, 32
    %v3261 = vpop.permute.xlu0 %3260
    %3262 = vrot.lane.b32.xlu0 %v3125, 32
    %v3263 = vpop.permute.xlu0 %3262
    %3264 = vrot.lane.b32.xlu0 %v3126, 32
    %v3265 = vpop.permute.xlu0 %3264
    %3266 = vrot.lane.b32.xlu0 %v3127, 32
    %v3267 = vpop.permute.xlu0 %3266
    %3268 = vrot.lane.b32.xlu0 %v3128, 32
    %v3269 = vpop.permute.xlu0 %3268
    %3270 = vrot.lane.b32.xlu0 %v3129, 32
    %v3271 = vpop.permute.xlu0 %3270
    %3272 = vrot.lane.b32.xlu0 %v3130, 32
    %v3273 = vpop.permute.xlu0 %3272
    %3274 = vrot.lane.b32.xlu0 %v3131, 32
    %v3275 = vpop.permute.xlu0 %3274
    %3276 = vrot.lane.b32.xlu0 %v3132, 32
    %v3277 = vpop.permute.xlu0 %3276
    %3278 = vrot.lane.b32.xlu0 %v3133, 32
    %v3279 = vpop.permute.xlu0 %3278
    %3280 = vrot.lane.b32.xlu0 %v3134, 32
    %v3281 = vpop.permute.xlu0 %3280
    %3282 = vrot.lane.b32.xlu0 %v3135, 32
    %v3283 = vpop.permute.xlu0 %3282
    %3284 = vrot.lane.b32.xlu0 %v3136, 32
    %v3285 = vpop.permute.xlu0 %3284
    %3286 = vrot.lane.b32.xlu0 %v3137, 32
    %v3287 = vpop.permute.xlu0 %3286
    %3288 = vrot.lane.b32.xlu0 %v3138, 32
    %v3289 = vpop.permute.xlu0 %3288
    %3290 = vrot.lane.b32.xlu0 %v3139, 32
    %v3291 = vpop.permute.xlu0 %3290
    %3292 = vrot.lane.b32.xlu0 %v3140, 32
    %v3293 = vpop.permute.xlu0 %3292
    %3294 = vrot.lane.b32.xlu0 %v3141, 32
    %v3295 = vpop.permute.xlu0 %3294
    %3296 = vrot.lane.b32.xlu0 %v3142, 32
    %v3297 = vpop.permute.xlu0 %3296
    %3298 = vrot.lane.b32.xlu0 %v3143, 32
    %v3299 = vpop.permute.xlu0 %3298
    %3300 = vrot.lane.b32.xlu0 %v3144, 32
    %v3301 = vpop.permute.xlu0 %3300
    %3302 = vrot.lane.b32.xlu0 %v3145, 32
    %v3303 = vpop.permute.xlu0 %3302
    %3304 = vrot.lane.b32.xlu0 %v3146, 32
    %v3305 = vpop.permute.xlu0 %3304
    %3306 = vrot.lane.b32.xlu0 %v3147, 32
    %v3307 = vpop.permute.xlu0 %3306
    %3308 = vrot.lane.b32.xlu0 %v3148, 32
    %v3309 = vpop.permute.xlu0 %3308
    %3310 = vrot.lane.b32.xlu0 %v3149, 32
    %v3311 = vpop.permute.xlu0 %3310
    %3312 = vrot.lane.b32.xlu0 %v3150, 32
    %v3313 = vpop.permute.xlu0 %3312
    %3314 = vrot.lane.b32.xlu0 %v3151, 32
    %v3315 = vpop.permute.xlu0 %3314
    %3316 = vrot.lane.b32.xlu0 %v3152, 32
    %v3317 = vpop.permute.xlu0 %3316
    %3318 = vrot.lane.b32.xlu0 %v3153, 32
    %v3319 = vpop.permute.xlu0 %3318
    %3320 = vrot.lane.b32.xlu0 %v3154, 32
    %v3321 = vpop.permute.xlu0 %3320
    %3322 = vrot.lane.b32.xlu0 %v3155, 32
    %v3323 = vpop.permute.xlu0 %3322
    %3324 = vrot.lane.b32.xlu0 %v3156, 32
    %v3325 = vpop.permute.xlu0 %3324
    %3326 = vrot.lane.b32.xlu0 %v3157, 32
    %v3327 = vpop.permute.xlu0 %3326
    %3328 = vrot.lane.b32.xlu0 %v3158, 32
    %v3329 = vpop.permute.xlu0 %3328
    %3330 = vrot.lane.b32.xlu0 %v3159, 32
    %v3331 = vpop.permute.xlu0 %3330
    %3332 = vrot.lane.b32.xlu0 %v3160, 32
    %v3333 = vpop.permute.xlu0 %3332
    %3334 = vrot.lane.b32.xlu0 %v3161, 32
    %v3335 = vpop.permute.xlu0 %3334
    %3336 = vrot.lane.b32.xlu0 %v3162, 32
    %v3337 = vpop.permute.xlu0 %3336
    %3338 = vrot.lane.b32.xlu0 %v3163, 32
    %v3339 = vpop.permute.xlu0 %3338
    %3340 = vrot.lane.b32.xlu0 %v3164, 32
    %v3341 = vpop.permute.xlu0 %3340
    %3342 = vrot.lane.b32.xlu0 %v3165, 32
    %v3343 = vpop.permute.xlu0 %3342
    %3344 = vrot.lane.b32.xlu0 %v3166, 32
    %v3345 = vpop.permute.xlu0 %3344
    %3346 = vrot.lane.b32.xlu0 %v3167, 32
    %v3347 = vpop.permute.xlu0 %3346
    %3348 = vrot.lane.b32.xlu0 %v3168, 32
    %v3349 = vpop.permute.xlu0 %3348
    %3350 = vrot.lane.b32.xlu0 %v3169, 32
    %v3351 = vpop.permute.xlu0 %3350
    %3352 = vrot.lane.b32.xlu0 %v3170, 32
    %v3353 = vpop.permute.xlu0 %3352
    %3354 = vrot.lane.b32.xlu0 %v3171, 32
    %v3355 = vpop.permute.xlu0 %3354
    %3356 = vrot.lane.b32.xlu0 %v3172, 32
    %v3357 = vpop.permute.xlu0 %3356
    %3358 = vrot.lane.b32.xlu0 %v3173, 32
    %v3359 = vpop.permute.xlu0 %3358
    %3360 = vrot.lane.b32.xlu0 %v3174, 32
    %v3361 = vpop.permute.xlu0 %3360
    %3362 = vrot.lane.b32.xlu0 %v3175, 32
    %v3363 = vpop.permute.xlu0 %3362
    %3364 = vrot.lane.b32.xlu0 %v3176, 32
    %v3365 = vpop.permute.xlu0 %3364
    %3366 = vrot.lane.b32.xlu0 %v3177, 32
    %v3367 = vpop.permute.xlu0 %3366
    %3368 = vrot.lane.b32.xlu0 %v3178, 32
    %v3369 = vpop.permute.xlu0 %3368
    %3370 = vrot.lane.b32.xlu0 %v3179, 32
    %v3371 = vpop.permute.xlu0 %3370
    %vm3436 = vcmask 294144
    %3437 = vst.msk [vmem:[#allocation3] sm:$0xff] %vm3436, %v3245
    %3438 = vst.msk [vmem:[#allocation3 + $0x8] sm:$0xff] %vm3436, %v3247
    %3439 = vst.msk [vmem:[#allocation3 + $0x10] sm:$0xff] %vm3436, %v3249
    %3440 = vst.msk [vmem:[#allocation3 + $0x18] sm:$0xff] %vm3436, %v3251
    %3441 = vst.msk [vmem:[#allocation3 + $0x20] sm:$0xff] %vm3436, %v3253
    %3442 = vst.msk [vmem:[#allocation3 + $0x28] sm:$0xff] %vm3436, %v3255
    %3443 = vst.msk [vmem:[#allocation3 + $0x30] sm:$0xff] %vm3436, %v3257
    %3444 = vst.msk [vmem:[#allocation3 + $0x38] sm:$0xff] %vm3436, %v3259
    %3445 = vst.msk [vmem:[#allocation3 + $0x40] sm:$0xff] %vm3436, %v3261
    %3446 = vst.msk [vmem:[#allocation3 + $0x48] sm:$0xff] %vm3436, %v3263
    %3447 = vst.msk [vmem:[#allocation3 + $0x50] sm:$0xff] %vm3436, %v3265
    %3448 = vst.msk [vmem:[#allocation3 + $0x58] sm:$0xff] %vm3436, %v3267
    %3449 = vst.msk [vmem:[#allocation3 + $0x60] sm:$0xff] %vm3436, %v3269
    %3450 = vst.msk [vmem:[#allocation3 + $0x68] sm:$0xff] %vm3436, %v3271
    %3451 = vst.msk [vmem:[#allocation3 + $0x70] sm:$0xff] %vm3436, %v3273
    %3452 = vst.msk [vmem:[#allocation3 + $0x78] sm:$0xff] %vm3436, %v3275
    %3453 = vst.msk [vmem:[#allocation3 + $0x80] sm:$0xff] %vm3436, %v3277
    %3454 = vst.msk [vmem:[#allocation3 + $0x88] sm:$0xff] %vm3436, %v3279
    %3455 = vst.msk [vmem:[#allocation3 + $0x90] sm:$0xff] %vm3436, %v3281
    %3456 = vst.msk [vmem:[#allocation3 + $0x98] sm:$0xff] %vm3436, %v3283
    %3457 = vst.msk [vmem:[#allocation3 + $0xa0] sm:$0xff] %vm3436, %v3285
    %3458 = vst.msk [vmem:[#allocation3 + $0xa8] sm:$0xff] %vm3436, %v3287
    %3459 = vst.msk [vmem:[#allocation3 + $0xb0] sm:$0xff] %vm3436, %v3289
    %3460 = vst.msk [vmem:[#allocation3 + $0xb8] sm:$0xff] %vm3436, %v3291
    %3461 = vst.msk [vmem:[#allocation3 + $0xc0] sm:$0xff] %vm3436, %v3293
    %3462 = vst.msk [vmem:[#allocation3 + $0xc8] sm:$0xff] %vm3436, %v3295
    %3463 = vst.msk [vmem:[#allocation3 + $0xd0] sm:$0xff] %vm3436, %v3297
    %3464 = vst.msk [vmem:[#allocation3 + $0xd8] sm:$0xff] %vm3436, %v3299
    %3465 = vst.msk [vmem:[#allocation3 + $0xe0] sm:$0xff] %vm3436, %v3301
    %3466 = vst.msk [vmem:[#allocation3 + $0xe8] sm:$0xff] %vm3436, %v3303
    %3467 = vst.msk [vmem:[#allocation3 + $0xf0] sm:$0xff] %vm3436, %v3305
    %3468 = vst.msk [vmem:[#allocation3 + $0xf8] sm:$0xff] %vm3436, %v3307
    %3469 = vst.msk [vmem:[#allocation3 + $0x100] sm:$0xff] %vm3436, %v3309
    %3470 = vst.msk [vmem:[#allocation3 + $0x108] sm:$0xff] %vm3436, %v3311
    %3471 = vst.msk [vmem:[#allocation3 + $0x110] sm:$0xff] %vm3436, %v3313
    %3472 = vst.msk [vmem:[#allocation3 + $0x118] sm:$0xff] %vm3436, %v3315
    %3473 = vst.msk [vmem:[#allocation3 + $0x120] sm:$0xff] %vm3436, %v3317
    %3474 = vst.msk [vmem:[#allocation3 + $0x128] sm:$0xff] %vm3436, %v3319
    %3475 = vst.msk [vmem:[#allocation3 + $0x130] sm:$0xff] %vm3436, %v3321
    %3476 = vst.msk [vmem:[#allocation3 + $0x138] sm:$0xff] %vm3436, %v3323
    %3477 = vst.msk [vmem:[#allocation3 + $0x140] sm:$0xff] %vm3436, %v3325
    %3478 = vst.msk [vmem:[#allocation3 + $0x148] sm:$0xff] %vm3436, %v3327
    %3479 = vst.msk [vmem:[#allocation3 + $0x150] sm:$0xff] %vm3436, %v3329
    %3480 = vst.msk [vmem:[#allocation3 + $0x158] sm:$0xff] %vm3436, %v3331
    %3481 = vst.msk [vmem:[#allocation3 + $0x160] sm:$0xff] %vm3436, %v3333
    %3482 = vst.msk [vmem:[#allocation3 + $0x168] sm:$0xff] %vm3436, %v3335
    %3483 = vst.msk [vmem:[#allocation3 + $0x170] sm:$0xff] %vm3436, %v3337
    %3484 = vst.msk [vmem:[#allocation3 + $0x178] sm:$0xff] %vm3436, %v3339
    %3485 = vst.msk [vmem:[#allocation3 + $0x180] sm:$0xff] %vm3436, %v3341
    %3486 = vst.msk [vmem:[#allocation3 + $0x188] sm:$0xff] %vm3436, %v3343
    %3487 = vst.msk [vmem:[#allocation3 + $0x190] sm:$0xff] %vm3436, %v3345
    %3488 = vst.msk [vmem:[#allocation3 + $0x198] sm:$0xff] %vm3436, %v3347
    %3489 = vst.msk [vmem:[#allocation3 + $0x1a0] sm:$0xff] %vm3436, %v3349
    %3490 = vst.msk [vmem:[#allocation3 + $0x1a8] sm:$0xff] %vm3436, %v3351
    %3491 = vst.msk [vmem:[#allocation3 + $0x1b0] sm:$0xff] %vm3436, %v3353
    %3492 = vst.msk [vmem:[#allocation3 + $0x1b8] sm:$0xff] %vm3436, %v3355
    %3493 = vst.msk [vmem:[#allocation3 + $0x1c0] sm:$0xff] %vm3436, %v3357
    %3494 = vst.msk [vmem:[#allocation3 + $0x1c8] sm:$0xff] %vm3436, %v3359
    %3495 = vst.msk [vmem:[#allocation3 + $0x1d0] sm:$0xff] %vm3436, %v3361
    %3496 = vst.msk [vmem:[#allocation3 + $0x1d8] sm:$0xff] %vm3436, %v3363
    %3497 = vst.msk [vmem:[#allocation3 + $0x1e0] sm:$0xff] %vm3436, %v3365
    %3498 = vst.msk [vmem:[#allocation3 + $0x1e8] sm:$0xff] %vm3436, %v3367
    %3499 = vst.msk [vmem:[#allocation3 + $0x1f0] sm:$0xff] %vm3436, %v3369
    %3500 = vst.msk [vmem:[#allocation3 + $0x1f8] sm:$0xff] %vm3436, %v3371
    %v3501 = vld [vmem:[#allocation3] sm:$0xff]
    %v3502 = vld [vmem:[#allocation3 + $0x8] sm:$0xff]
    %v3503 = vld [vmem:[#allocation3 + $0x10] sm:$0xff]
    %v3504 = vld [vmem:[#allocation3 + $0x18] sm:$0xff]
    %v3505 = vld [vmem:[#allocation3 + $0x20] sm:$0xff]
    %v3506 = vld [vmem:[#allocation3 + $0x28] sm:$0xff]
    %v3507 = vld [vmem:[#allocation3 + $0x30] sm:$0xff]
    %v3508 = vld [vmem:[#allocation3 + $0x38] sm:$0xff]
    %v3509 = vld [vmem:[#allocation3 + $0x40] sm:$0xff]
    %v3510 = vld [vmem:[#allocation3 + $0x48] sm:$0xff]
    %v3511 = vld [vmem:[#allocation3 + $0x50] sm:$0xff]
    %v3512 = vld [vmem:[#allocation3 + $0x58] sm:$0xff]
    %v3513 = vld [vmem:[#allocation3 + $0x60] sm:$0xff]
    %v3514 = vld [vmem:[#allocation3 + $0x68] sm:$0xff]
    %v3515 = vld [vmem:[#allocation3 + $0x70] sm:$0xff]
    %v3516 = vld [vmem:[#allocation3 + $0x78] sm:$0xff]
    %v3517 = vld [vmem:[#allocation3 + $0x80] sm:$0xff]
    %v3518 = vld [vmem:[#allocation3 + $0x88] sm:$0xff]
    %v3519 = vld [vmem:[#allocation3 + $0x90] sm:$0xff]
    %v3520 = vld [vmem:[#allocation3 + $0x98] sm:$0xff]
    %v3521 = vld [vmem:[#allocation3 + $0xa0] sm:$0xff]
    %v3522 = vld [vmem:[#allocation3 + $0xa8] sm:$0xff]
    %v3523 = vld [vmem:[#allocation3 + $0xb0] sm:$0xff]
    %v3524 = vld [vmem:[#allocation3 + $0xb8] sm:$0xff]
    %v3525 = vld [vmem:[#allocation3 + $0xc0] sm:$0xff]
    %v3526 = vld [vmem:[#allocation3 + $0xc8] sm:$0xff]
    %v3527 = vld [vmem:[#allocation3 + $0xd0] sm:$0xff]
    %v3528 = vld [vmem:[#allocation3 + $0xd8] sm:$0xff]
    %v3529 = vld [vmem:[#allocation3 + $0xe0] sm:$0xff]
    %v3530 = vld [vmem:[#allocation3 + $0xe8] sm:$0xff]
    %v3531 = vld [vmem:[#allocation3 + $0xf0] sm:$0xff]
    %v3532 = vld [vmem:[#allocation3 + $0xf8] sm:$0xff]
    %v3533 = vld [vmem:[#allocation3 + $0x100] sm:$0xff]
    %v3534 = vld [vmem:[#allocation3 + $0x108] sm:$0xff]
    %v3535 = vld [vmem:[#allocation3 + $0x110] sm:$0xff]
    %v3536 = vld [vmem:[#allocation3 + $0x118] sm:$0xff]
    %v3537 = vld [vmem:[#allocation3 + $0x120] sm:$0xff]
    %v3538 = vld [vmem:[#allocation3 + $0x128] sm:$0xff]
    %v3539 = vld [vmem:[#allocation3 + $0x130] sm:$0xff]
    %v3540 = vld [vmem:[#allocation3 + $0x138] sm:$0xff]
    %v3541 = vld [vmem:[#allocation3 + $0x140] sm:$0xff]
    %v3542 = vld [vmem:[#allocation3 + $0x148] sm:$0xff]
    %v3543 = vld [vmem:[#allocation3 + $0x150] sm:$0xff]
    %v3544 = vld [vmem:[#allocation3 + $0x158] sm:$0xff]
    %v3545 = vld [vmem:[#allocation3 + $0x160] sm:$0xff]
    %v3546 = vld [vmem:[#allocation3 + $0x168] sm:$0xff]
    %v3547 = vld [vmem:[#allocation3 + $0x170] sm:$0xff]
    %v3548 = vld [vmem:[#allocation3 + $0x178] sm:$0xff]
    %v3549 = vld [vmem:[#allocation3 + $0x180] sm:$0xff]
    %v3550 = vld [vmem:[#allocation3 + $0x188] sm:$0xff]
    %v3551 = vld [vmem:[#allocation3 + $0x190] sm:$0xff]
    %v3552 = vld [vmem:[#allocation3 + $0x198] sm:$0xff]
    %v3553 = vld [vmem:[#allocation3 + $0x1a0] sm:$0xff]
    %v3554 = vld [vmem:[#allocation3 + $0x1a8] sm:$0xff]
    %v3555 = vld [vmem:[#allocation3 + $0x1b0] sm:$0xff]
    %v3556 = vld [vmem:[#allocation3 + $0x1b8] sm:$0xff]
    %v3557 = vld [vmem:[#allocation3 + $0x1c0] sm:$0xff]
    %v3558 = vld [vmem:[#allocation3 + $0x1c8] sm:$0xff]
    %v3559 = vld [vmem:[#allocation3 + $0x1d0] sm:$0xff]
    %v3560 = vld [vmem:[#allocation3 + $0x1d8] sm:$0xff]
    %v3561 = vld [vmem:[#allocation3 + $0x1e0] sm:$0xff]
    %v3562 = vld [vmem:[#allocation3 + $0x1e8] sm:$0xff]
    %v3563 = vld [vmem:[#allocation3 + $0x1f0] sm:$0xff]
    %v3564 = vld [vmem:[#allocation3 + $0x1f8] sm:$0xff]
    %v3565 = vld [vmem:[%s1] sm:$0xff]
    %v3566 = vld [vmem:[%s1 + $0x8] sm:$0xff]
    %v3567 = vld [vmem:[%s1 + $0x10] sm:$0xff]
    %v3568 = vld [vmem:[%s1 + $0x18] sm:$0xff]
    %v3569 = vld [vmem:[%s1 + $0x20] sm:$0xf]
    %v3570 = vld [vmem:[%s2] sm:$0x1]
    %v3572 = vlaneseq
    %v3573 = vshrl.u32 %v3572, 7
    %v3574 = vsub.s32 0, %v3573
    %v3575 = vrot.slane %v3570, %v3574
    %vm3577 = vcmask 293888
    %v3579 = vsel %vm3577, %v3501, 0
    %v3582 = vsel %vm3577, %v3502, 0
    %v3585 = vsel %vm3577, %v3503, 0
    %v3588 = vsel %vm3577, %v3504, 0
    %v3591 = vsel %vm3577, %v3505, 0
    %v3594 = vsel %vm3577, %v3506, 0
    %v3597 = vsel %vm3577, %v3507, 0
    %v3600 = vsel %vm3577, %v3508, 0
    %v3603 = vsel %vm3577, %v3509, 0
    %v3606 = vsel %vm3577, %v3510, 0
    %v3609 = vsel %vm3577, %v3511, 0
    %v3612 = vsel %vm3577, %v3512, 0
    %v3615 = vsel %vm3577, %v3513, 0
    %v3618 = vsel %vm3577, %v3514, 0
    %v3621 = vsel %vm3577, %v3515, 0
    %v3624 = vsel %vm3577, %v3516, 0
    %v3627 = vsel %vm3577, %v3517, 0
    %v3630 = vsel %vm3577, %v3518, 0
    %v3633 = vsel %vm3577, %v3519, 0
    %v3636 = vsel %vm3577, %v3520, 0
    %v3639 = vsel %vm3577, %v3521, 0
    %v3642 = vsel %vm3577, %v3522, 0
    %v3645 = vsel %vm3577, %v3523, 0
    %v3648 = vsel %vm3577, %v3524, 0
    %v3651 = vsel %vm3577, %v3525, 0
    %v3654 = vsel %vm3577, %v3526, 0
    %v3657 = vsel %vm3577, %v3527, 0
    %v3660 = vsel %vm3577, %v3528, 0
    %v3663 = vsel %vm3577, %v3529, 0
    %v3666 = vsel %vm3577, %v3530, 0
    %v3669 = vsel %vm3577, %v3531, 0
    %v3672 = vsel %vm3577, %v3532, 0
    %v3675 = vsel %vm3577, %v3533, 0
    %v3678 = vsel %vm3577, %v3534, 0
    %v3681 = vsel %vm3577, %v3535, 0
    %v3684 = vsel %vm3577, %v3536, 0
    %v3687 = vsel %vm3577, %v3537, 0
    %v3690 = vsel %vm3577, %v3538, 0
    %v3693 = vsel %vm3577, %v3539, 0
    %v3696 = vsel %vm3577, %v3540, 0
    %v3699 = vsel %vm3577, %v3541, 0
    %v3702 = vsel %vm3577, %v3542, 0
    %v3705 = vsel %vm3577, %v3543, 0
    %v3708 = vsel %vm3577, %v3544, 0
    %v3711 = vsel %vm3577, %v3545, 0
    %v3714 = vsel %vm3577, %v3546, 0
    %v3717 = vsel %vm3577, %v3547, 0
    %v3720 = vsel %vm3577, %v3548, 0
    %v3723 = vsel %vm3577, %v3549, 0
    %v3726 = vsel %vm3577, %v3550, 0
    %v3729 = vsel %vm3577, %v3551, 0
    %v3732 = vsel %vm3577, %v3552, 0
    %v3735 = vsel %vm3577, %v3553, 0
    %v3738 = vsel %vm3577, %v3554, 0
    %v3741 = vsel %vm3577, %v3555, 0
    %v3744 = vsel %vm3577, %v3556, 0
    %v3747 = vsel %vm3577, %v3557, 0
    %v3750 = vsel %vm3577, %v3558, 0
    %v3753 = vsel %vm3577, %v3559, 0
    %v3756 = vsel %vm3577, %v3560, 0
    %v3759 = vsel %vm3577, %v3561, 0
    %v3762 = vsel %vm3577, %v3562, 0
    %v3765 = vsel %vm3577, %v3563, 0
    %v3768 = vsel %vm3577, %v3564, 0
    %vm3770 = vcmask 1043456
    %v3772 = vsel %vm3770, %v3569, 0
    %3774 = vmatprep.subr.mxu0 0.0
    %3775 = vmatpush1.msra.mxu0 %v3565
    %3776 = vmatprep.subr.mxu0 0.0
    %3777 = vmatpush1.msra.mxu0 %v3566
    %3778 = vmatprep.subr.mxu0 0.0
    %3779 = vmatpush1.msra.mxu0 %v3567
    %3780 = vmatprep.subr.mxu0 0.0
    %3781 = vmatpush1.msra.mxu0 %v3568
    %3782 = vmatprep.subr.mxu0 0.0
    %3783 = vmatpush1.msra.mxu0 %v3772
    %3784 = vmatprep.subr.mxu0 0.0
    %3785 = vmatpush1.msra.mxu0 0.0
    %3786 = vmatprep.subr.mxu0 0.0
    %3787 = vmatpush1.msra.mxu0 0.0
    %3788 = vmatprep.subr.mxu0 0.0
    %3789 = vmatpush1.msra.mxu0 0.0
    %3790 = vmatprep.subr.mxu0 0.0
    %3791 = vmatpush1.msra.mxu0 0.0
    %3792 = vmatprep.subr.mxu0 0.0
    %3793 = vmatpush1.msra.mxu0 0.0
    %3794 = vmatprep.subr.mxu0 0.0
    %3795 = vmatpush1.msra.mxu0 0.0
    %3796 = vmatprep.subr.mxu0 0.0
    %3797 = vmatpush1.msra.mxu0 0.0
    %3798 = vmatprep.subr.mxu0 0.0
    %3799 = vmatpush1.msra.mxu0 0.0
    %3800 = vmatprep.subr.mxu0 0.0
    %3801 = vmatpush1.msra.mxu0 0.0
    %3802 = vmatprep.subr.mxu0 0.0
    %3803 = vmatpush1.msra.mxu0 0.0
    %3804 = vmatprep.subr.mxu0 0.0
    %3805 = vmatpush1.msra.mxu0 0.0
    %3806 = vmatprep.subr.mxu0 0.0
    %3807 = vmatpush1.msra.mxu0 0.0
    %3808 = vmatprep.subr.mxu0 0.0
    %3809 = vmatpush1.msra.mxu0 0.0
    %3810 = vmatprep.subr.mxu0 0.0
    %3811 = vmatpush1.msra.mxu0 0.0
    %3812 = vmatprep.subr.mxu0 0.0
    %3813 = vmatpush1.msra.mxu0 0.0
    %3814 = vmatprep.subr.mxu0 0.0
    %3815 = vmatpush1.msra.mxu0 0.0
    %3816 = vmatprep.subr.mxu0 0.0
    %3817 = vmatpush1.msra.mxu0 0.0
    %3818 = vmatprep.subr.mxu0 0.0
    %3819 = vmatpush1.msra.mxu0 0.0
    %3820 = vmatprep.subr.mxu0 0.0
    %3821 = vmatpush1.msra.mxu0 0.0
    %3822 = vmatprep.subr.mxu0 0.0
    %3823 = vmatpush1.msra.mxu0 0.0
    %3824 = vmatprep.subr.mxu0 0.0
    %3825 = vmatpush1.msra.mxu0 0.0
    %3826 = vmatprep.subr.mxu0 0.0
    %3827 = vmatpush1.msra.mxu0 0.0
    %3828 = vmatprep.subr.mxu0 0.0
    %3829 = vmatpush1.msra.mxu0 0.0
    %3830 = vmatprep.subr.mxu0 0.0
    %3831 = vmatpush1.msra.mxu0 0.0
    %3832 = vmatprep.subr.mxu0 0.0
    %3833 = vmatpush1.msra.mxu0 0.0
    %3834 = vmatprep.subr.mxu0 0.0
    %3835 = vmatpush1.msra.mxu0 0.0
    %3836 = vmatprep.subr.mxu0 0.0
    %3837 = vmatpush1.msra.mxu0 0.0
    %3838 = vmatprep.mubr.f32.mxu0 0.0
    %3839 = vmatmul.mubr.f32.gmra.mrb[0].mxu0 %v3579
    %v3840 = vpop.f32.mrb[0].mxu0
    %v3841 = vadd.f32 %v3575, %v3840
    %v3842 = vpop.f32.mrb[0].mxu0
    %3843 = vmatprep.mubr.f32.mxu0 0.0
    %3844 = vmatmul.mubr.f32.gmra.mrb[0].mxu0 %v3582
    %v3845 = vpop.f32.mrb[0].mxu0
    %v3846 = vadd.f32 %v3575, %v3845
    %v3847 = vpop.f32.mrb[0].mxu0
    %3848 = vmatprep.mubr.f32.mxu0 0.0
    %3849 = vmatmul.mubr.f32.gmra.mrb[0].mxu0 %v3585
    %v3850 = vpop.f32.mrb[0].mxu0
    %v3851 = vadd.f32 %v3575, %v3850
    %v3852 = vpop.f32.mrb[0].mxu0
    %3853 = vmatprep.mubr.f32.mxu0 0.0
    %3854 = vmatmul.mubr.f32.gmra.mrb[0].mxu0 %v3588
    %v3855 = vpop.f32.mrb[0].mxu0
    %v3856 = vadd.f32 %v3575, %v3855
    %v3857 = vpop.f32.mrb[0].mxu0
    %3858 = vmatprep.mubr.f32.mxu0 0.0
    %3859 = vmatmul.mubr.f32.gmra.mrb[0].mxu0 %v3591
    %v3860 = vpop.f32.mrb[0].mxu0
    %v3861 = vadd.f32 %v3575, %v3860
    %v3862 = vpop.f32.mrb[0].mxu0
    %3863 = vmatprep.mubr.f32.mxu0 0.0
    %3864 = vmatmul.mubr.f32.gmra.mrb[0].mxu0 %v3594
    %v3865 = vpop.f32.mrb[0].mxu0
    %v3866 = vadd.f32 %v3575, %v3865
    %v3867 = vpop.f32.mrb[0].mxu0
    %3868 = vmatprep.mubr.f32.mxu0 0.0
    %3869 = vmatmul.mubr.f32.gmra.mrb[0].mxu0 %v3597
    %v3870 = vpop.f32.mrb[0].mxu0
    %v3871 = vadd.f32 %v3575, %v3870
    %v3872 = vpop.f32.mrb[0].mxu0
    %3873 = vmatprep.mubr.f32.mxu0 0.0
    %3874 = vmatmul.mubr.f32.gmra.mrb[0].mxu0 %v3600
    %v3875 = vpop.f32.mrb[0].mxu0
    %v3876 = vadd.f32 %v3575, %v3875
    %v3877 = vpop.f32.mrb[0].mxu0
    %3878 = vmatprep.mubr.f32.mxu0 0.0
    %3879 = vmatmul.mubr.f32.gmra.mrb[0].mxu0 %v3603
    %v3880 = vpop.f32.mrb[0].mxu0
    %v3881 = vadd.f32 %v3575, %v3880
    %v3882 = vpop.f32.mrb[0].mxu0
    %3883 = vmatprep.mubr.f32.mxu0 0.0
    %3884 = vmatmul.mubr.f32.gmra.mrb[0].mxu0 %v3606
    %v3885 = vpop.f32.mrb[0].mxu0
    %v3886 = vadd.f32 %v3575, %v3885
    %v3887 = vpop.f32.mrb[0].mxu0
    %3888 = vmatprep.mubr.f32.mxu0 0.0
    %3889 = vmatmul.mubr.f32.gmra.mrb[0].mxu0 %v3609
    %v3890 = vpop.f32.mrb[0].mxu0
    %v3891 = vadd.f32 %v3575, %v3890
    %v3892 = vpop.f32.mrb[0].mxu0
    %3893 = vmatprep.mubr.f32.mxu0 0.0
    %3894 = vmatmul.mubr.f32.gmra.mrb[0].mxu0 %v3612
    %v3895 = vpop.f32.mrb[0].mxu0
    %v3896 = vadd.f32 %v3575, %v3895
    %v3897 = vpop.f32.mrb[0].mxu0
    %3898 = vmatprep.mubr.f32.mxu0 0.0
    %3899 = vmatmul.mubr.f32.gmra.mrb[0].mxu0 %v3615
    %v3900 = vpop.f32.mrb[0].mxu0
    %v3901 = vadd.f32 %v3575, %v3900
    %v3902 = vpop.f32.mrb[0].mxu0
    %3903 = vmatprep.mubr.f32.mxu0 0.0
    %3904 = vmatmul.mubr.f32.gmra.mrb[0].mxu0 %v3618
    %v3905 = vpop.f32.mrb[0].mxu0
    %v3906 = vadd.f32 %v3575, %v3905
    %v3907 = vpop.f32.mrb[0].mxu0
    %3908 = vmatprep.mubr.f32.mxu0 0.0
    %3909 = vmatmul.mubr.f32.gmra.mrb[0].mxu0 %v3621
    %v3910 = vpop.f32.mrb[0].mxu0
    %v3911 = vadd.f32 %v3575, %v3910
    %v3912 = vpop.f32.mrb[0].mxu0
    %3913 = vmatprep.mubr.f32.mxu0 0.0
    %3914 = vmatmul.mubr.f32.gmra.mrb[0].mxu0 %v3624
    %v3915 = vpop.f32.mrb[0].mxu0
    %v3916 = vadd.f32 %v3575, %v3915
    %v3917 = vpop.f32.mrb[0].mxu0
    %3918 = vmatprep.mubr.f32.mxu0 0.0
    %3919 = vmatmul.mubr.f32.gmra.mrb[0].mxu0 %v3627
    %v3920 = vpop.f32.mrb[0].mxu0
    %v3921 = vadd.f32 %v3575, %v3920
    %v3922 = vpop.f32.mrb[0].mxu0
    %3923 = vmatprep.mubr.f32.mxu0 0.0
    %3924 = vmatmul.mubr.f32.gmra.mrb[0].mxu0 %v3630
    %v3925 = vpop.f32.mrb[0].mxu0
    %v3926 = vadd.f32 %v3575, %v3925
    %v3927 = vpop.f32.mrb[0].mxu0
    %3928 = vmatprep.mubr.f32.mxu0 0.0
    %3929 = vmatmul.mubr.f32.gmra.mrb[0].mxu0 %v3633
    %v3930 = vpop.f32.mrb[0].mxu0
    %v3931 = vadd.f32 %v3575, %v3930
    %v3932 = vpop.f32.mrb[0].mxu0
    %3933 = vmatprep.mubr.f32.mxu0 0.0
    %3934 = vmatmul.mubr.f32.gmra.mrb[0].mxu0 %v3636
    %v3935 = vpop.f32.mrb[0].mxu0
    %v3936 = vadd.f32 %v3575, %v3935
    %v3937 = vpop.f32.mrb[0].mxu0
    %3938 = vmatprep.mubr.f32.mxu0 0.0
    %3939 = vmatmul.mubr.f32.gmra.mrb[0].mxu0 %v3639
    %v3940 = vpop.f32.mrb[0].mxu0
    %v3941 = vadd.f32 %v3575, %v3940
    %v3942 = vpop.f32.mrb[0].mxu0
    %3943 = vmatprep.mubr.f32.mxu0 0.0
    %3944 = vmatmul.mubr.f32.gmra.mrb[0].mxu0 %v3642
    %v3945 = vpop.f32.mrb[0].mxu0
    %v3946 = vadd.f32 %v3575, %v3945
    %v3947 = vpop.f32.mrb[0].mxu0
    %3948 = vmatprep.mubr.f32.mxu0 0.0
    %3949 = vmatmul.mubr.f32.gmra.mrb[0].mxu0 %v3645
    %v3950 = vpop.f32.mrb[0].mxu0
    %v3951 = vadd.f32 %v3575, %v3950
    %v3952 = vpop.f32.mrb[0].mxu0
    %3953 = vmatprep.mubr.f32.mxu0 0.0
    %3954 = vmatmul.mubr.f32.gmra.mrb[0].mxu0 %v3648
    %v3955 = vpop.f32.mrb[0].mxu0
    %v3956 = vadd.f32 %v3575, %v3955
    %v3957 = vpop.f32.mrb[0].mxu0
    %3958 = vmatprep.mubr.f32.mxu0 0.0
    %3959 = vmatmul.mubr.f32.gmra.mrb[0].mxu0 %v3651
    %v3960 = vpop.f32.mrb[0].mxu0
    %v3961 = vadd.f32 %v3575, %v3960
    %v3962 = vpop.f32.mrb[0].mxu0
    %3963 = vmatprep.mubr.f32.mxu0 0.0
    %3964 = vmatmul.mubr.f32.gmra.mrb[0].mxu0 %v3654
    %v3965 = vpop.f32.mrb[0].mxu0
    %v3966 = vadd.f32 %v3575, %v3965
    %v3967 = vpop.f32.mrb[0].mxu0
    %3968 = vmatprep.mubr.f32.mxu0 0.0
    %3969 = vmatmul.mubr.f32.gmra.mrb[0].mxu0 %v3657
    %v3970 = vpop.f32.mrb[0].mxu0
    %v3971 = vadd.f32 %v3575, %v3970
    %v3972 = vpop.f32.mrb[0].mxu0
    %3973 = vmatprep.mubr.f32.mxu0 0.0
    %3974 = vmatmul.mubr.f32.gmra.mrb[0].mxu0 %v3660
    %v3975 = vpop.f32.mrb[0].mxu0
    %v3976 = vadd.f32 %v3575, %v3975
    %v3977 = vpop.f32.mrb[0].mxu0
    %3978 = vmatprep.mubr.f32.mxu0 0.0
    %3979 = vmatmul.mubr.f32.gmra.mrb[0].mxu0 %v3663
    %v3980 = vpop.f32.mrb[0].mxu0
    %v3981 = vadd.f32 %v3575, %v3980
    %v3982 = vpop.f32.mrb[0].mxu0
    %3983 = vmatprep.mubr.f32.mxu0 0.0
    %3984 = vmatmul.mubr.f32.gmra.mrb[0].mxu0 %v3666
    %v3985 = vpop.f32.mrb[0].mxu0
    %v3986 = vadd.f32 %v3575, %v3985
    %v3987 = vpop.f32.mrb[0].mxu0
    %3988 = vmatprep.mubr.f32.mxu0 0.0
    %3989 = vmatmul.mubr.f32.gmra.mrb[0].mxu0 %v3669
    %v3990 = vpop.f32.mrb[0].mxu0
    %v3991 = vadd.f32 %v3575, %v3990
    %v3992 = vpop.f32.mrb[0].mxu0
    %3993 = vmatprep.mubr.f32.mxu0 0.0
    %3994 = vmatmul.mubr.f32.gmra.mrb[0].mxu0 %v3672
    %v3995 = vpop.f32.mrb[0].mxu0
    %v3996 = vadd.f32 %v3575, %v3995
    %v3997 = vpop.f32.mrb[0].mxu0
    %3998 = vmatprep.mubr.f32.mxu0 0.0
    %3999 = vmatmul.mubr.f32.gmra.mrb[0].mxu0 %v3675
    %v4000 = vpop.f32.mrb[0].mxu0
    %v4001 = vadd.f32 %v3575, %v4000
    %v4002 = vpop.f32.mrb[0].mxu0
    %4003 = vmatprep.mubr.f32.mxu0 0.0
    %4004 = vmatmul.mubr.f32.gmra.mrb[0].mxu0 %v3678
    %v4005 = vpop.f32.mrb[0].mxu0
    %v4006 = vadd.f32 %v3575, %v4005
    %v4007 = vpop.f32.mrb[0].mxu0
    %4008 = vmatprep.mubr.f32.mxu0 0.0
    %4009 = vmatmul.mubr.f32.gmra.mrb[0].mxu0 %v3681
    %v4010 = vpop.f32.mrb[0].mxu0
    %v4011 = vadd.f32 %v3575, %v4010
    %v4012 = vpop.f32.mrb[0].mxu0
    %4013 = vmatprep.mubr.f32.mxu0 0.0
    %4014 = vmatmul.mubr.f32.gmra.mrb[0].mxu0 %v3684
    %v4015 = vpop.f32.mrb[0].mxu0
    %v4016 = vadd.f32 %v3575, %v4015
    %v4017 = vpop.f32.mrb[0].mxu0
    %4018 = vmatprep.mubr.f32.mxu0 0.0
    %4019 = vmatmul.mubr.f32.gmra.mrb[0].mxu0 %v3687
    %v4020 = vpop.f32.mrb[0].mxu0
    %v4021 = vadd.f32 %v3575, %v4020
    %v4022 = vpop.f32.mrb[0].mxu0
    %4023 = vmatprep.mubr.f32.mxu0 0.0
    %4024 = vmatmul.mubr.f32.gmra.mrb[0].mxu0 %v3690
    %v4025 = vpop.f32.mrb[0].mxu0
    %v4026 = vadd.f32 %v3575, %v4025
    %v4027 = vpop.f32.mrb[0].mxu0
    %4028 = vmatprep.mubr.f32.mxu0 0.0
    %4029 = vmatmul.mubr.f32.gmra.mrb[0].mxu0 %v3693
    %v4030 = vpop.f32.mrb[0].mxu0
    %v4031 = vadd.f32 %v3575, %v4030
    %v4032 = vpop.f32.mrb[0].mxu0
    %4033 = vmatprep.mubr.f32.mxu0 0.0
    %4034 = vmatmul.mubr.f32.gmra.mrb[0].mxu0 %v3696
    %v4035 = vpop.f32.mrb[0].mxu0
    %v4036 = vadd.f32 %v3575, %v4035
    %v4037 = vpop.f32.mrb[0].mxu0
    %4038 = vmatprep.mubr.f32.mxu0 0.0
    %4039 = vmatmul.mubr.f32.gmra.mrb[0].mxu0 %v3699
    %v4040 = vpop.f32.mrb[0].mxu0
    %v4041 = vadd.f32 %v3575, %v4040
    %v4042 = vpop.f32.mrb[0].mxu0
    %4043 = vmatprep.mubr.f32.mxu0 0.0
    %4044 = vmatmul.mubr.f32.gmra.mrb[0].mxu0 %v3702
    %v4045 = vpop.f32.mrb[0].mxu0
    %v4046 = vadd.f32 %v3575, %v4045
    %v4047 = vpop.f32.mrb[0].mxu0
    %4048 = vmatprep.mubr.f32.mxu0 0.0
    %4049 = vmatmul.mubr.f32.gmra.mrb[0].mxu0 %v3705
    %v4050 = vpop.f32.mrb[0].mxu0
    %v4051 = vadd.f32 %v3575, %v4050
    %v4052 = vpop.f32.mrb[0].mxu0
    %4053 = vmatprep.mubr.f32.mxu0 0.0
    %4054 = vmatmul.mubr.f32.gmra.mrb[0].mxu0 %v3708
    %v4055 = vpop.f32.mrb[0].mxu0
    %v4056 = vadd.f32 %v3575, %v4055
    %v4057 = vpop.f32.mrb[0].mxu0
    %4058 = vmatprep.mubr.f32.mxu0 0.0
    %4059 = vmatmul.mubr.f32.gmra.mrb[0].mxu0 %v3711
    %v4060 = vpop.f32.mrb[0].mxu0
    %v4061 = vadd.f32 %v3575, %v4060
    %v4062 = vpop.f32.mrb[0].mxu0
    %4063 = vmatprep.mubr.f32.mxu0 0.0
    %4064 = vmatmul.mubr.f32.gmra.mrb[0].mxu0 %v3714
    %v4065 = vpop.f32.mrb[0].mxu0
    %v4066 = vadd.f32 %v3575, %v4065
    %v4067 = vpop.f32.mrb[0].mxu0
    %4068 = vmatprep.mubr.f32.mxu0 0.0
    %4069 = vmatmul.mubr.f32.gmra.mrb[0].mxu0 %v3717
    %v4070 = vpop.f32.mrb[0].mxu0
    %v4071 = vadd.f32 %v3575, %v4070
    %v4072 = vpop.f32.mrb[0].mxu0
    %4073 = vmatprep.mubr.f32.mxu0 0.0
    %4074 = vmatmul.mubr.f32.gmra.mrb[0].mxu0 %v3720
    %v4075 = vpop.f32.mrb[0].mxu0
    %v4076 = vadd.f32 %v3575, %v4075
    %v4077 = vpop.f32.mrb[0].mxu0
    %4078 = vmatprep.mubr.f32.mxu0 0.0
    %4079 = vmatmul.mubr.f32.gmra.mrb[0].mxu0 %v3723
    %v4080 = vpop.f32.mrb[0].mxu0
    %v4081 = vadd.f32 %v3575, %v4080
    %v4082 = vpop.f32.mrb[0].mxu0
    %4083 = vmatprep.mubr.f32.mxu0 0.0
    %4084 = vmatmul.mubr.f32.gmra.mrb[0].mxu0 %v3726
    %v4085 = vpop.f32.mrb[0].mxu0
    %v4086 = vadd.f32 %v3575, %v4085
    %v4087 = vpop.f32.mrb[0].mxu0
    %4088 = vmatprep.mubr.f32.mxu0 0.0
    %4089 = vmatmul.mubr.f32.gmra.mrb[0].mxu0 %v3729
    %v4090 = vpop.f32.mrb[0].mxu0
    %v4091 = vadd.f32 %v3575, %v4090
    %v4092 = vpop.f32.mrb[0].mxu0
    %4093 = vmatprep.mubr.f32.mxu0 0.0
    %4094 = vmatmul.mubr.f32.gmra.mrb[0].mxu0 %v3732
    %v4095 = vpop.f32.mrb[0].mxu0
    %v4096 = vadd.f32 %v3575, %v4095
    %v4097 = vpop.f32.mrb[0].mxu0
    %4098 = vmatprep.mubr.f32.mxu0 0.0
    %4099 = vmatmul.mubr.f32.gmra.mrb[0].mxu0 %v3735
    %v4100 = vpop.f32.mrb[0].mxu0
    %v4101 = vadd.f32 %v3575, %v4100
    %v4102 = vpop.f32.mrb[0].mxu0
    %4103 = vmatprep.mubr.f32.mxu0 0.0
    %4104 = vmatmul.mubr.f32.gmra.mrb[0].mxu0 %v3738
    %v4105 = vpop.f32.mrb[0].mxu0
    %v4106 = vadd.f32 %v3575, %v4105
    %v4107 = vpop.f32.mrb[0].mxu0
    %4108 = vmatprep.mubr.f32.mxu0 0.0
    %4109 = vmatmul.mubr.f32.gmra.mrb[0].mxu0 %v3741
    %v4110 = vpop.f32.mrb[0].mxu0
    %v4111 = vadd.f32 %v3575, %v4110
    %v4112 = vpop.f32.mrb[0].mxu0
    %4113 = vmatprep.mubr.f32.mxu0 0.0
    %4114 = vmatmul.mubr.f32.gmra.mrb[0].mxu0 %v3744
    %v4115 = vpop.f32.mrb[0].mxu0
    %v4116 = vadd.f32 %v3575, %v4115
    %v4117 = vpop.f32.mrb[0].mxu0
    %4118 = vmatprep.mubr.f32.mxu0 0.0
    %4119 = vmatmul.mubr.f32.gmra.mrb[0].mxu0 %v3747
    %v4120 = vpop.f32.mrb[0].mxu0
    %v4121 = vadd.f32 %v3575, %v4120
    %v4122 = vpop.f32.mrb[0].mxu0
    %4123 = vmatprep.mubr.f32.mxu0 0.0
    %4124 = vmatmul.mubr.f32.gmra.mrb[0].mxu0 %v3750
    %v4125 = vpop.f32.mrb[0].mxu0
    %v4126 = vadd.f32 %v3575, %v4125
    %v4127 = vpop.f32.mrb[0].mxu0
    %4128 = vmatprep.mubr.f32.mxu0 0.0
    %4129 = vmatmul.mubr.f32.gmra.mrb[0].mxu0 %v3753
    %v4130 = vpop.f32.mrb[0].mxu0
    %v4131 = vadd.f32 %v3575, %v4130
    %v4132 = vpop.f32.mrb[0].mxu0
    %4133 = vmatprep.mubr.f32.mxu0 0.0
    %4134 = vmatmul.mubr.f32.gmra.mrb[0].mxu0 %v3756
    %v4135 = vpop.f32.mrb[0].mxu0
    %v4136 = vadd.f32 %v3575, %v4135
    %v4137 = vpop.f32.mrb[0].mxu0
    %4138 = vmatprep.mubr.f32.mxu0 0.0
    %4139 = vmatmul.mubr.f32.gmra.mrb[0].mxu0 %v3759
    %v4140 = vpop.f32.mrb[0].mxu0
    %v4141 = vadd.f32 %v3575, %v4140
    %v4142 = vpop.f32.mrb[0].mxu0
    %4143 = vmatprep.mubr.f32.mxu0 0.0
    %4144 = vmatmul.mubr.f32.gmra.mrb[0].mxu0 %v3762
    %v4145 = vpop.f32.mrb[0].mxu0
    %v4146 = vadd.f32 %v3575, %v4145
    %v4147 = vpop.f32.mrb[0].mxu0
    %4148 = vmatprep.mubr.f32.mxu0 0.0
    %4149 = vmatmul.mubr.f32.gmra.mrb[0].mxu0 %v3765
    %v4150 = vpop.f32.mrb[0].mxu0
    %v4151 = vadd.f32 %v3575, %v4150
    %v4152 = vpop.f32.mrb[0].mxu0
    %4153 = vmatprep.mubr.f32.mxu0 0.0
    %4154 = vmatmul.mubr.f32.gmra.mrb[0].mxu0 %v3768
    %v4155 = vpop.f32.mrb[0].mxu0
    %v4156 = vadd.f32 %v3575, %v4155
    %v4157 = vpop.f32.mrb[0].mxu0
    %4158 = vdwg.mxu0
    %v4159 = vmax.f32 %v3841, 0.0
    %v4160 = vmax.f32 %v3846, 0.0
    %v4161 = vmax.f32 %v3851, 0.0
    %v4162 = vmax.f32 %v3856, 0.0
    %v4163 = vmax.f32 %v3861, 0.0
    %v4164 = vmax.f32 %v3866, 0.0
    %v4165 = vmax.f32 %v3871, 0.0
    %v4166 = vmax.f32 %v3876, 0.0
    %v4167 = vmax.f32 %v3881, 0.0
    %v4168 = vmax.f32 %v3886, 0.0
    %v4169 = vmax.f32 %v3891, 0.0
    %v4170 = vmax.f32 %v3896, 0.0
    %v4171 = vmax.f32 %v3901, 0.0
    %v4172 = vmax.f32 %v3906, 0.0
    %v4173 = vmax.f32 %v3911, 0.0
    %v4174 = vmax.f32 %v3916, 0.0
    %v4175 = vmax.f32 %v3921, 0.0
    %v4176 = vmax.f32 %v3926, 0.0
    %v4177 = vmax.f32 %v3931, 0.0
    %v4178 = vmax.f32 %v3936, 0.0
    %v4179 = vmax.f32 %v3941, 0.0
    %v4180 = vmax.f32 %v3946, 0.0
    %v4181 = vmax.f32 %v3951, 0.0
    %v4182 = vmax.f32 %v3956, 0.0
    %v4183 = vmax.f32 %v3961, 0.0
    %v4184 = vmax.f32 %v3966, 0.0
    %v4185 = vmax.f32 %v3971, 0.0
    %v4186 = vmax.f32 %v3976, 0.0
    %v4187 = vmax.f32 %v3981, 0.0
    %v4188 = vmax.f32 %v3986, 0.0
    %v4189 = vmax.f32 %v3991, 0.0
    %v4190 = vmax.f32 %v3996, 0.0
    %v4191 = vmax.f32 %v4001, 0.0
    %v4192 = vmax.f32 %v4006, 0.0
    %v4193 = vmax.f32 %v4011, 0.0
    %v4194 = vmax.f32 %v4016, 0.0
    %v4195 = vmax.f32 %v4021, 0.0
    %v4196 = vmax.f32 %v4026, 0.0
    %v4197 = vmax.f32 %v4031, 0.0
    %v4198 = vmax.f32 %v4036, 0.0
    %v4199 = vmax.f32 %v4041, 0.0
    %v4200 = vmax.f32 %v4046, 0.0
    %v4201 = vmax.f32 %v4051, 0.0
    %v4202 = vmax.f32 %v4056, 0.0
    %v4203 = vmax.f32 %v4061, 0.0
    %v4204 = vmax.f32 %v4066, 0.0
    %v4205 = vmax.f32 %v4071, 0.0
    %v4206 = vmax.f32 %v4076, 0.0
    %v4207 = vmax.f32 %v4081, 0.0
    %v4208 = vmax.f32 %v4086, 0.0
    %v4209 = vmax.f32 %v4091, 0.0
    %v4210 = vmax.f32 %v4096, 0.0
    %v4211 = vmax.f32 %v4101, 0.0
    %v4212 = vmax.f32 %v4106, 0.0
    %v4213 = vmax.f32 %v4111, 0.0
    %v4214 = vmax.f32 %v4116, 0.0
    %v4215 = vmax.f32 %v4121, 0.0
    %v4216 = vmax.f32 %v4126, 0.0
    %v4217 = vmax.f32 %v4131, 0.0
    %v4218 = vmax.f32 %v4136, 0.0
    %v4219 = vmax.f32 %v4141, 0.0
    %v4220 = vmax.f32 %v4146, 0.0
    %v4221 = vmax.f32 %v4151, 0.0
    %v4222 = vmax.f32 %v4156, 0.0
    %v4287 = vcombine.high %v4159, %v4159
    %v4289 = vunpack.c.l.s4 1983009808
    %v4290 = vunpack.c.0.s8 %v4289
    %v4291 = vlaneseq
    %v4292 = vshrl.u32 %v4291, 7
    %v4293 = vsub.s32 %v4290, %v4292
    %v4294 = vrot.slane %v4159, %v4293
    %v4296 = vunpack.c.l.s4 1983009808
    %v4297 = vunpack.c.0.s8 %v4296
    %v4298 = vlaneseq
    %v4299 = vshrl.u32 %v4298, 7
    %v4300 = vsub.s32 %v4297, %v4299
    %v4301 = vrot.slane %v4287, %v4300
    %v4302 = vcombine.high %v4294, %v4294
    %v4303 = vcombine.high %v4301, %v4301
    %v4304 = vcombine.high %v4160, %v4160
    %v4306 = vunpack.c.l.s4 1983009808
    %v4307 = vunpack.c.0.s8 %v4306
    %v4308 = vlaneseq
    %v4309 = vshrl.u32 %v4308, 7
    %v4310 = vsub.s32 %v4307, %v4309
    %v4311 = vrot.slane %v4160, %v4310
    %v4313 = vunpack.c.l.s4 1983009808
    %v4314 = vunpack.c.0.s8 %v4313
    %v4315 = vlaneseq
    %v4316 = vshrl.u32 %v4315, 7
    %v4317 = vsub.s32 %v4314, %v4316
    %v4318 = vrot.slane %v4304, %v4317
    %v4319 = vcombine.high %v4311, %v4311
    %v4320 = vcombine.high %v4318, %v4318
    %v4321 = vcombine.high %v4161, %v4161
    %v4323 = vunpack.c.l.s4 1983009808
    %v4324 = vunpack.c.0.s8 %v4323
    %v4325 = vlaneseq
    %v4326 = vshrl.u32 %v4325, 7
    %v4327 = vsub.s32 %v4324, %v4326
    %v4328 = vrot.slane %v4161, %v4327
    %v4330 = vunpack.c.l.s4 1983009808
    %v4331 = vunpack.c.0.s8 %v4330
    %v4332 = vlaneseq
    %v4333 = vshrl.u32 %v4332, 7
    %v4334 = vsub.s32 %v4331, %v4333
    %v4335 = vrot.slane %v4321, %v4334
    %v4336 = vcombine.high %v4328, %v4328
    %v4337 = vcombine.high %v4335, %v4335
    %v4338 = vcombine.high %v4162, %v4162
    %v4340 = vunpack.c.l.s4 1983009808
    %v4341 = vunpack.c.0.s8 %v4340
    %v4342 = vlaneseq
    %v4343 = vshrl.u32 %v4342, 7
    %v4344 = vsub.s32 %v4341, %v4343
    %v4345 = vrot.slane %v4162, %v4344
    %v4347 = vunpack.c.l.s4 1983009808
    %v4348 = vunpack.c.0.s8 %v4347
    %v4349 = vlaneseq
    %v4350 = vshrl.u32 %v4349, 7
    %v4351 = vsub.s32 %v4348, %v4350
    %v4352 = vrot.slane %v4338, %v4351
    %v4353 = vcombine.high %v4345, %v4345
    %v4354 = vcombine.high %v4352, %v4352
    %v4355 = vcombine.high %v4163, %v4163
    %v4357 = vunpack.c.l.s4 1983009808
    %v4358 = vunpack.c.0.s8 %v4357
    %v4359 = vlaneseq
    %v4360 = vshrl.u32 %v4359, 7
    %v4361 = vsub.s32 %v4358, %v4360
    %v4362 = vrot.slane %v4163, %v4361
    %v4364 = vunpack.c.l.s4 1983009808
    %v4365 = vunpack.c.0.s8 %v4364
    %v4366 = vlaneseq
    %v4367 = vshrl.u32 %v4366, 7
    %v4368 = vsub.s32 %v4365, %v4367
    %v4369 = vrot.slane %v4355, %v4368
    %v4370 = vcombine.high %v4362, %v4362
    %v4371 = vcombine.high %v4369, %v4369
    %v4372 = vcombine.high %v4164, %v4164
    %v4374 = vunpack.c.l.s4 1983009808
    %v4375 = vunpack.c.0.s8 %v4374
    %v4376 = vlaneseq
    %v4377 = vshrl.u32 %v4376, 7
    %v4378 = vsub.s32 %v4375, %v4377
    %v4379 = vrot.slane %v4164, %v4378
    %v4381 = vunpack.c.l.s4 1983009808
    %v4382 = vunpack.c.0.s8 %v4381
    %v4383 = vlaneseq
    %v4384 = vshrl.u32 %v4383, 7
    %v4385 = vsub.s32 %v4382, %v4384
    %v4386 = vrot.slane %v4372, %v4385
    %v4387 = vcombine.high %v4379, %v4379
    %v4388 = vcombine.high %v4386, %v4386
    %v4389 = vcombine.high %v4165, %v4165
    %v4391 = vunpack.c.l.s4 1983009808
    %v4392 = vunpack.c.0.s8 %v4391
    %v4393 = vlaneseq
    %v4394 = vshrl.u32 %v4393, 7
    %v4395 = vsub.s32 %v4392, %v4394
    %v4396 = vrot.slane %v4165, %v4395
    %v4398 = vunpack.c.l.s4 1983009808
    %v4399 = vunpack.c.0.s8 %v4398
    %v4400 = vlaneseq
    %v4401 = vshrl.u32 %v4400, 7
    %v4402 = vsub.s32 %v4399, %v4401
    %v4403 = vrot.slane %v4389, %v4402
    %v4404 = vcombine.high %v4396, %v4396
    %v4405 = vcombine.high %v4403, %v4403
    %v4406 = vcombine.high %v4166, %v4166
    %v4408 = vunpack.c.l.s4 1983009808
    %v4409 = vunpack.c.0.s8 %v4408
    %v4410 = vlaneseq
    %v4411 = vshrl.u32 %v4410, 7
    %v4412 = vsub.s32 %v4409, %v4411
    %v4413 = vrot.slane %v4166, %v4412
    %v4415 = vunpack.c.l.s4 1983009808
    %v4416 = vunpack.c.0.s8 %v4415
    %v4417 = vlaneseq
    %v4418 = vshrl.u32 %v4417, 7
    %v4419 = vsub.s32 %v4416, %v4418
    %v4420 = vrot.slane %v4406, %v4419
    %v4421 = vcombine.high %v4413, %v4413
    %v4422 = vcombine.high %v4420, %v4420
    %v4423 = vcombine.high %v4167, %v4167
    %v4425 = vunpack.c.l.s4 1983009808
    %v4426 = vunpack.c.0.s8 %v4425
    %v4427 = vlaneseq
    %v4428 = vshrl.u32 %v4427, 7
    %v4429 = vsub.s32 %v4426, %v4428
    %v4430 = vrot.slane %v4167, %v4429
    %v4432 = vunpack.c.l.s4 1983009808
    %v4433 = vunpack.c.0.s8 %v4432
    %v4434 = vlaneseq
    %v4435 = vshrl.u32 %v4434, 7
    %v4436 = vsub.s32 %v4433, %v4435
    %v4437 = vrot.slane %v4423, %v4436
    %v4438 = vcombine.high %v4430, %v4430
    %v4439 = vcombine.high %v4437, %v4437
    %v4440 = vcombine.high %v4168, %v4168
    %v4442 = vunpack.c.l.s4 1983009808
    %v4443 = vunpack.c.0.s8 %v4442
    %v4444 = vlaneseq
    %v4445 = vshrl.u32 %v4444, 7
    %v4446 = vsub.s32 %v4443, %v4445
    %v4447 = vrot.slane %v4168, %v4446
    %v4449 = vunpack.c.l.s4 1983009808
    %v4450 = vunpack.c.0.s8 %v4449
    %v4451 = vlaneseq
    %v4452 = vshrl.u32 %v4451, 7
    %v4453 = vsub.s32 %v4450, %v4452
    %v4454 = vrot.slane %v4440, %v4453
    %v4455 = vcombine.high %v4447, %v4447
    %v4456 = vcombine.high %v4454, %v4454
    %v4457 = vcombine.high %v4169, %v4169
    %v4459 = vunpack.c.l.s4 1983009808
    %v4460 = vunpack.c.0.s8 %v4459
    %v4461 = vlaneseq
    %v4462 = vshrl.u32 %v4461, 7
    %v4463 = vsub.s32 %v4460, %v4462
    %v4464 = vrot.slane %v4169, %v4463
    %v4466 = vunpack.c.l.s4 1983009808
    %v4467 = vunpack.c.0.s8 %v4466
    %v4468 = vlaneseq
    %v4469 = vshrl.u32 %v4468, 7
    %v4470 = vsub.s32 %v4467, %v4469
    %v4471 = vrot.slane %v4457, %v4470
    %v4472 = vcombine.high %v4464, %v4464
    %v4473 = vcombine.high %v4471, %v4471
    %v4474 = vcombine.high %v4170, %v4170
    %v4476 = vunpack.c.l.s4 1983009808
    %v4477 = vunpack.c.0.s8 %v4476
    %v4478 = vlaneseq
    %v4479 = vshrl.u32 %v4478, 7
    %v4480 = vsub.s32 %v4477, %v4479
    %v4481 = vrot.slane %v4170, %v4480
    %v4483 = vunpack.c.l.s4 1983009808
    %v4484 = vunpack.c.0.s8 %v4483
    %v4485 = vlaneseq
    %v4486 = vshrl.u32 %v4485, 7
    %v4487 = vsub.s32 %v4484, %v4486
    %v4488 = vrot.slane %v4474, %v4487
    %v4489 = vcombine.high %v4481, %v4481
    %v4490 = vcombine.high %v4488, %v4488
    %v4491 = vcombine.high %v4171, %v4171
    %v4493 = vunpack.c.l.s4 1983009808
    %v4494 = vunpack.c.0.s8 %v4493
    %v4495 = vlaneseq
    %v4496 = vshrl.u32 %v4495, 7
    %v4497 = vsub.s32 %v4494, %v4496
    %v4498 = vrot.slane %v4171, %v4497
    %v4500 = vunpack.c.l.s4 1983009808
    %v4501 = vunpack.c.0.s8 %v4500
    %v4502 = vlaneseq
    %v4503 = vshrl.u32 %v4502, 7
    %v4504 = vsub.s32 %v4501, %v4503
    %v4505 = vrot.slane %v4491, %v4504
    %v4506 = vcombine.high %v4498, %v4498
    %v4507 = vcombine.high %v4505, %v4505
    %v4508 = vcombine.high %v4172, %v4172
    %v4510 = vunpack.c.l.s4 1983009808
    %v4511 = vunpack.c.0.s8 %v4510
    %v4512 = vlaneseq
    %v4513 = vshrl.u32 %v4512, 7
    %v4514 = vsub.s32 %v4511, %v4513
    %v4515 = vrot.slane %v4172, %v4514
    %v4517 = vunpack.c.l.s4 1983009808
    %v4518 = vunpack.c.0.s8 %v4517
    %v4519 = vlaneseq
    %v4520 = vshrl.u32 %v4519, 7
    %v4521 = vsub.s32 %v4518, %v4520
    %v4522 = vrot.slane %v4508, %v4521
    %v4523 = vcombine.high %v4515, %v4515
    %v4524 = vcombine.high %v4522, %v4522
    %v4525 = vcombine.high %v4173, %v4173
    %v4527 = vunpack.c.l.s4 1983009808
    %v4528 = vunpack.c.0.s8 %v4527
    %v4529 = vlaneseq
    %v4530 = vshrl.u32 %v4529, 7
    %v4531 = vsub.s32 %v4528, %v4530
    %v4532 = vrot.slane %v4173, %v4531
    %v4534 = vunpack.c.l.s4 1983009808
    %v4535 = vunpack.c.0.s8 %v4534
    %v4536 = vlaneseq
    %v4537 = vshrl.u32 %v4536, 7
    %v4538 = vsub.s32 %v4535, %v4537
    %v4539 = vrot.slane %v4525, %v4538
    %v4540 = vcombine.high %v4532, %v4532
    %v4541 = vcombine.high %v4539, %v4539
    %v4542 = vcombine.high %v4174, %v4174
    %v4544 = vunpack.c.l.s4 1983009808
    %v4545 = vunpack.c.0.s8 %v4544
    %v4546 = vlaneseq
    %v4547 = vshrl.u32 %v4546, 7
    %v4548 = vsub.s32 %v4545, %v4547
    %v4549 = vrot.slane %v4174, %v4548
    %v4551 = vunpack.c.l.s4 1983009808
    %v4552 = vunpack.c.0.s8 %v4551
    %v4553 = vlaneseq
    %v4554 = vshrl.u32 %v4553, 7
    %v4555 = vsub.s32 %v4552, %v4554
    %v4556 = vrot.slane %v4542, %v4555
    %v4557 = vcombine.high %v4549, %v4549
    %v4558 = vcombine.high %v4556, %v4556
    %v4559 = vcombine.high %v4175, %v4175
    %v4561 = vunpack.c.l.s4 1983009808
    %v4562 = vunpack.c.0.s8 %v4561
    %v4563 = vlaneseq
    %v4564 = vshrl.u32 %v4563, 7
    %v4565 = vsub.s32 %v4562, %v4564
    %v4566 = vrot.slane %v4175, %v4565
    %v4568 = vunpack.c.l.s4 1983009808
    %v4569 = vunpack.c.0.s8 %v4568
    %v4570 = vlaneseq
    %v4571 = vshrl.u32 %v4570, 7
    %v4572 = vsub.s32 %v4569, %v4571
    %v4573 = vrot.slane %v4559, %v4572
    %v4574 = vcombine.high %v4566, %v4566
    %v4575 = vcombine.high %v4573, %v4573
    %v4576 = vcombine.high %v4176, %v4176
    %v4578 = vunpack.c.l.s4 1983009808
    %v4579 = vunpack.c.0.s8 %v4578
    %v4580 = vlaneseq
    %v4581 = vshrl.u32 %v4580, 7
    %v4582 = vsub.s32 %v4579, %v4581
    %v4583 = vrot.slane %v4176, %v4582
    %v4585 = vunpack.c.l.s4 1983009808
    %v4586 = vunpack.c.0.s8 %v4585
    %v4587 = vlaneseq
    %v4588 = vshrl.u32 %v4587, 7
    %v4589 = vsub.s32 %v4586, %v4588
    %v4590 = vrot.slane %v4576, %v4589
    %v4591 = vcombine.high %v4583, %v4583
    %v4592 = vcombine.high %v4590, %v4590
    %v4593 = vcombine.high %v4177, %v4177
    %v4595 = vunpack.c.l.s4 1983009808
    %v4596 = vunpack.c.0.s8 %v4595
    %v4597 = vlaneseq
    %v4598 = vshrl.u32 %v4597, 7
    %v4599 = vsub.s32 %v4596, %v4598
    %v4600 = vrot.slane %v4177, %v4599
    %v4602 = vunpack.c.l.s4 1983009808
    %v4603 = vunpack.c.0.s8 %v4602
    %v4604 = vlaneseq
    %v4605 = vshrl.u32 %v4604, 7
    %v4606 = vsub.s32 %v4603, %v4605
    %v4607 = vrot.slane %v4593, %v4606
    %v4608 = vcombine.high %v4600, %v4600
    %v4609 = vcombine.high %v4607, %v4607
    %v4610 = vcombine.high %v4178, %v4178
    %v4612 = vunpack.c.l.s4 1983009808
    %v4613 = vunpack.c.0.s8 %v4612
    %v4614 = vlaneseq
    %v4615 = vshrl.u32 %v4614, 7
    %v4616 = vsub.s32 %v4613, %v4615
    %v4617 = vrot.slane %v4178, %v4616
    %v4619 = vunpack.c.l.s4 1983009808
    %v4620 = vunpack.c.0.s8 %v4619
    %v4621 = vlaneseq
    %v4622 = vshrl.u32 %v4621, 7
    %v4623 = vsub.s32 %v4620, %v4622
    %v4624 = vrot.slane %v4610, %v4623
    %v4625 = vcombine.high %v4617, %v4617
    %v4626 = vcombine.high %v4624, %v4624
    %v4627 = vcombine.high %v4179, %v4179
    %v4629 = vunpack.c.l.s4 1983009808
    %v4630 = vunpack.c.0.s8 %v4629
    %v4631 = vlaneseq
    %v4632 = vshrl.u32 %v4631, 7
    %v4633 = vsub.s32 %v4630, %v4632
    %v4634 = vrot.slane %v4179, %v4633
    %v4636 = vunpack.c.l.s4 1983009808
    %v4637 = vunpack.c.0.s8 %v4636
    %v4638 = vlaneseq
    %v4639 = vshrl.u32 %v4638, 7
    %v4640 = vsub.s32 %v4637, %v4639
    %v4641 = vrot.slane %v4627, %v4640
    %v4642 = vcombine.high %v4634, %v4634
    %v4643 = vcombine.high %v4641, %v4641
    %v4644 = vcombine.high %v4180, %v4180
    %v4646 = vunpack.c.l.s4 1983009808
    %v4647 = vunpack.c.0.s8 %v4646
    %v4648 = vlaneseq
    %v4649 = vshrl.u32 %v4648, 7
    %v4650 = vsub.s32 %v4647, %v4649
    %v4651 = vrot.slane %v4180, %v4650
    %v4653 = vunpack.c.l.s4 1983009808
    %v4654 = vunpack.c.0.s8 %v4653
    %v4655 = vlaneseq
    %v4656 = vshrl.u32 %v4655, 7
    %v4657 = vsub.s32 %v4654, %v4656
    %v4658 = vrot.slane %v4644, %v4657
    %v4659 = vcombine.high %v4651, %v4651
    %v4660 = vcombine.high %v4658, %v4658
    %v4661 = vcombine.high %v4181, %v4181
    %v4663 = vunpack.c.l.s4 1983009808
    %v4664 = vunpack.c.0.s8 %v4663
    %v4665 = vlaneseq
    %v4666 = vshrl.u32 %v4665, 7
    %v4667 = vsub.s32 %v4664, %v4666
    %v4668 = vrot.slane %v4181, %v4667
    %v4670 = vunpack.c.l.s4 1983009808
    %v4671 = vunpack.c.0.s8 %v4670
    %v4672 = vlaneseq
    %v4673 = vshrl.u32 %v4672, 7
    %v4674 = vsub.s32 %v4671, %v4673
    %v4675 = vrot.slane %v4661, %v4674
    %v4676 = vcombine.high %v4668, %v4668
    %v4677 = vcombine.high %v4675, %v4675
    %v4678 = vcombine.high %v4182, %v4182
    %v4680 = vunpack.c.l.s4 1983009808
    %v4681 = vunpack.c.0.s8 %v4680
    %v4682 = vlaneseq
    %v4683 = vshrl.u32 %v4682, 7
    %v4684 = vsub.s32 %v4681, %v4683
    %v4685 = vrot.slane %v4182, %v4684
    %v4687 = vunpack.c.l.s4 1983009808
    %v4688 = vunpack.c.0.s8 %v4687
    %v4689 = vlaneseq
    %v4690 = vshrl.u32 %v4689, 7
    %v4691 = vsub.s32 %v4688, %v4690
    %v4692 = vrot.slane %v4678, %v4691
    %v4693 = vcombine.high %v4685, %v4685
    %v4694 = vcombine.high %v4692, %v4692
    %v4695 = vcombine.high %v4183, %v4183
    %v4697 = vunpack.c.l.s4 1983009808
    %v4698 = vunpack.c.0.s8 %v4697
    %v4699 = vlaneseq
    %v4700 = vshrl.u32 %v4699, 7
    %v4701 = vsub.s32 %v4698, %v4700
    %v4702 = vrot.slane %v4183, %v4701
    %v4704 = vunpack.c.l.s4 1983009808
    %v4705 = vunpack.c.0.s8 %v4704
    %v4706 = vlaneseq
    %v4707 = vshrl.u32 %v4706, 7
    %v4708 = vsub.s32 %v4705, %v4707
    %v4709 = vrot.slane %v4695, %v4708
    %v4710 = vcombine.high %v4702, %v4702
    %v4711 = vcombine.high %v4709, %v4709
    %v4712 = vcombine.high %v4184, %v4184
    %v4714 = vunpack.c.l.s4 1983009808
    %v4715 = vunpack.c.0.s8 %v4714
    %v4716 = vlaneseq
    %v4717 = vshrl.u32 %v4716, 7
    %v4718 = vsub.s32 %v4715, %v4717
    %v4719 = vrot.slane %v4184, %v4718
    %v4721 = vunpack.c.l.s4 1983009808
    %v4722 = vunpack.c.0.s8 %v4721
    %v4723 = vlaneseq
    %v4724 = vshrl.u32 %v4723, 7
    %v4725 = vsub.s32 %v4722, %v4724
    %v4726 = vrot.slane %v4712, %v4725
    %v4727 = vcombine.high %v4719, %v4719
    %v4728 = vcombine.high %v4726, %v4726
    %v4729 = vcombine.high %v4185, %v4185
    %v4731 = vunpack.c.l.s4 1983009808
    %v4732 = vunpack.c.0.s8 %v4731
    %v4733 = vlaneseq
    %v4734 = vshrl.u32 %v4733, 7
    %v4735 = vsub.s32 %v4732, %v4734
    %v4736 = vrot.slane %v4185, %v4735
    %v4738 = vunpack.c.l.s4 1983009808
    %v4739 = vunpack.c.0.s8 %v4738
    %v4740 = vlaneseq
    %v4741 = vshrl.u32 %v4740, 7
    %v4742 = vsub.s32 %v4739, %v4741
    %v4743 = vrot.slane %v4729, %v4742
    %v4744 = vcombine.high %v4736, %v4736
    %v4745 = vcombine.high %v4743, %v4743
    %v4746 = vcombine.high %v4186, %v4186
    %v4748 = vunpack.c.l.s4 1983009808
    %v4749 = vunpack.c.0.s8 %v4748
    %v4750 = vlaneseq
    %v4751 = vshrl.u32 %v4750, 7
    %v4752 = vsub.s32 %v4749, %v4751
    %v4753 = vrot.slane %v4186, %v4752
    %v4755 = vunpack.c.l.s4 1983009808
    %v4756 = vunpack.c.0.s8 %v4755
    %v4757 = vlaneseq
    %v4758 = vshrl.u32 %v4757, 7
    %v4759 = vsub.s32 %v4756, %v4758
    %v4760 = vrot.slane %v4746, %v4759
    %v4761 = vcombine.high %v4753, %v4753
    %v4762 = vcombine.high %v4760, %v4760
    %v4763 = vcombine.high %v4187, %v4187
    %v4765 = vunpack.c.l.s4 1983009808
    %v4766 = vunpack.c.0.s8 %v4765
    %v4767 = vlaneseq
    %v4768 = vshrl.u32 %v4767, 7
    %v4769 = vsub.s32 %v4766, %v4768
    %v4770 = vrot.slane %v4187, %v4769
    %v4772 = vunpack.c.l.s4 1983009808
    %v4773 = vunpack.c.0.s8 %v4772
    %v4774 = vlaneseq
    %v4775 = vshrl.u32 %v4774, 7
    %v4776 = vsub.s32 %v4773, %v4775
    %v4777 = vrot.slane %v4763, %v4776
    %v4778 = vcombine.high %v4770, %v4770
    %v4779 = vcombine.high %v4777, %v4777
    %v4780 = vcombine.high %v4188, %v4188
    %v4782 = vunpack.c.l.s4 1983009808
    %v4783 = vunpack.c.0.s8 %v4782
    %v4784 = vlaneseq
    %v4785 = vshrl.u32 %v4784, 7
    %v4786 = vsub.s32 %v4783, %v4785
    %v4787 = vrot.slane %v4188, %v4786
    %v4789 = vunpack.c.l.s4 1983009808
    %v4790 = vunpack.c.0.s8 %v4789
    %v4791 = vlaneseq
    %v4792 = vshrl.u32 %v4791, 7
    %v4793 = vsub.s32 %v4790, %v4792
    %v4794 = vrot.slane %v4780, %v4793
    %v4795 = vcombine.high %v4787, %v4787
    %v4796 = vcombine.high %v4794, %v4794
    %v4797 = vcombine.high %v4189, %v4189
    %v4799 = vunpack.c.l.s4 1983009808
    %v4800 = vunpack.c.0.s8 %v4799
    %v4801 = vlaneseq
    %v4802 = vshrl.u32 %v4801, 7
    %v4803 = vsub.s32 %v4800, %v4802
    %v4804 = vrot.slane %v4189, %v4803
    %v4806 = vunpack.c.l.s4 1983009808
    %v4807 = vunpack.c.0.s8 %v4806
    %v4808 = vlaneseq
    %v4809 = vshrl.u32 %v4808, 7
    %v4810 = vsub.s32 %v4807, %v4809
    %v4811 = vrot.slane %v4797, %v4810
    %v4812 = vcombine.high %v4804, %v4804
    %v4813 = vcombine.high %v4811, %v4811
    %v4814 = vcombine.high %v4190, %v4190
    %v4816 = vunpack.c.l.s4 1983009808
    %v4817 = vunpack.c.0.s8 %v4816
    %v4818 = vlaneseq
    %v4819 = vshrl.u32 %v4818, 7
    %v4820 = vsub.s32 %v4817, %v4819
    %v4821 = vrot.slane %v4190, %v4820
    %v4823 = vunpack.c.l.s4 1983009808
    %v4824 = vunpack.c.0.s8 %v4823
    %v4825 = vlaneseq
    %v4826 = vshrl.u32 %v4825, 7
    %v4827 = vsub.s32 %v4824, %v4826
    %v4828 = vrot.slane %v4814, %v4827
    %v4829 = vcombine.high %v4821, %v4821
    %v4830 = vcombine.high %v4828, %v4828
    %v4831 = vcombine.high %v4191, %v4191
    %v4833 = vunpack.c.l.s4 1983009808
    %v4834 = vunpack.c.0.s8 %v4833
    %v4835 = vlaneseq
    %v4836 = vshrl.u32 %v4835, 7
    %v4837 = vsub.s32 %v4834, %v4836
    %v4838 = vrot.slane %v4191, %v4837
    %v4840 = vunpack.c.l.s4 1983009808
    %v4841 = vunpack.c.0.s8 %v4840
    %v4842 = vlaneseq
    %v4843 = vshrl.u32 %v4842, 7
    %v4844 = vsub.s32 %v4841, %v4843
    %v4845 = vrot.slane %v4831, %v4844
    %v4846 = vcombine.high %v4838, %v4838
    %v4847 = vcombine.high %v4845, %v4845
    %v4848 = vcombine.high %v4192, %v4192
    %v4850 = vunpack.c.l.s4 1983009808
    %v4851 = vunpack.c.0.s8 %v4850
    %v4852 = vlaneseq
    %v4853 = vshrl.u32 %v4852, 7
    %v4854 = vsub.s32 %v4851, %v4853
    %v4855 = vrot.slane %v4192, %v4854
    %v4857 = vunpack.c.l.s4 1983009808
    %v4858 = vunpack.c.0.s8 %v4857
    %v4859 = vlaneseq
    %v4860 = vshrl.u32 %v4859, 7
    %v4861 = vsub.s32 %v4858, %v4860
    %v4862 = vrot.slane %v4848, %v4861
    %v4863 = vcombine.high %v4855, %v4855
    %v4864 = vcombine.high %v4862, %v4862
    %v4865 = vcombine.high %v4193, %v4193
    %v4867 = vunpack.c.l.s4 1983009808
    %v4868 = vunpack.c.0.s8 %v4867
    %v4869 = vlaneseq
    %v4870 = vshrl.u32 %v4869, 7
    %v4871 = vsub.s32 %v4868, %v4870
    %v4872 = vrot.slane %v4193, %v4871
    %v4874 = vunpack.c.l.s4 1983009808
    %v4875 = vunpack.c.0.s8 %v4874
    %v4876 = vlaneseq
    %v4877 = vshrl.u32 %v4876, 7
    %v4878 = vsub.s32 %v4875, %v4877
    %v4879 = vrot.slane %v4865, %v4878
    %v4880 = vcombine.high %v4872, %v4872
    %v4881 = vcombine.high %v4879, %v4879
    %v4882 = vcombine.high %v4194, %v4194
    %v4884 = vunpack.c.l.s4 1983009808
    %v4885 = vunpack.c.0.s8 %v4884
    %v4886 = vlaneseq
    %v4887 = vshrl.u32 %v4886, 7
    %v4888 = vsub.s32 %v4885, %v4887
    %v4889 = vrot.slane %v4194, %v4888
    %v4891 = vunpack.c.l.s4 1983009808
    %v4892 = vunpack.c.0.s8 %v4891
    %v4893 = vlaneseq
    %v4894 = vshrl.u32 %v4893, 7
    %v4895 = vsub.s32 %v4892, %v4894
    %v4896 = vrot.slane %v4882, %v4895
    %v4897 = vcombine.high %v4889, %v4889
    %v4898 = vcombine.high %v4896, %v4896
    %v4899 = vcombine.high %v4195, %v4195
    %v4901 = vunpack.c.l.s4 1983009808
    %v4902 = vunpack.c.0.s8 %v4901
    %v4903 = vlaneseq
    %v4904 = vshrl.u32 %v4903, 7
    %v4905 = vsub.s32 %v4902, %v4904
    %v4906 = vrot.slane %v4195, %v4905
    %v4908 = vunpack.c.l.s4 1983009808
    %v4909 = vunpack.c.0.s8 %v4908
    %v4910 = vlaneseq
    %v4911 = vshrl.u32 %v4910, 7
    %v4912 = vsub.s32 %v4909, %v4911
    %v4913 = vrot.slane %v4899, %v4912
    %v4914 = vcombine.high %v4906, %v4906
    %v4915 = vcombine.high %v4913, %v4913
    %v4916 = vcombine.high %v4196, %v4196
    %v4918 = vunpack.c.l.s4 1983009808
    %v4919 = vunpack.c.0.s8 %v4918
    %v4920 = vlaneseq
    %v4921 = vshrl.u32 %v4920, 7
    %v4922 = vsub.s32 %v4919, %v4921
    %v4923 = vrot.slane %v4196, %v4922
    %v4925 = vunpack.c.l.s4 1983009808
    %v4926 = vunpack.c.0.s8 %v4925
    %v4927 = vlaneseq
    %v4928 = vshrl.u32 %v4927, 7
    %v4929 = vsub.s32 %v4926, %v4928
    %v4930 = vrot.slane %v4916, %v4929
    %v4931 = vcombine.high %v4923, %v4923
    %v4932 = vcombine.high %v4930, %v4930
    %v4933 = vcombine.high %v4197, %v4197
    %v4935 = vunpack.c.l.s4 1983009808
    %v4936 = vunpack.c.0.s8 %v4935
    %v4937 = vlaneseq
    %v4938 = vshrl.u32 %v4937, 7
    %v4939 = vsub.s32 %v4936, %v4938
    %v4940 = vrot.slane %v4197, %v4939
    %v4942 = vunpack.c.l.s4 1983009808
    %v4943 = vunpack.c.0.s8 %v4942
    %v4944 = vlaneseq
    %v4945 = vshrl.u32 %v4944, 7
    %v4946 = vsub.s32 %v4943, %v4945
    %v4947 = vrot.slane %v4933, %v4946
    %v4948 = vcombine.high %v4940, %v4940
    %v4949 = vcombine.high %v4947, %v4947
    %v4950 = vcombine.high %v4198, %v4198
    %v4952 = vunpack.c.l.s4 1983009808
    %v4953 = vunpack.c.0.s8 %v4952
    %v4954 = vlaneseq
    %v4955 = vshrl.u32 %v4954, 7
    %v4956 = vsub.s32 %v4953, %v4955
    %v4957 = vrot.slane %v4198, %v4956
    %v4959 = vunpack.c.l.s4 1983009808
    %v4960 = vunpack.c.0.s8 %v4959
    %v4961 = vlaneseq
    %v4962 = vshrl.u32 %v4961, 7
    %v4963 = vsub.s32 %v4960, %v4962
    %v4964 = vrot.slane %v4950, %v4963
    %v4965 = vcombine.high %v4957, %v4957
    %v4966 = vcombine.high %v4964, %v4964
    %v4967 = vcombine.high %v4199, %v4199
    %v4969 = vunpack.c.l.s4 1983009808
    %v4970 = vunpack.c.0.s8 %v4969
    %v4971 = vlaneseq
    %v4972 = vshrl.u32 %v4971, 7
    %v4973 = vsub.s32 %v4970, %v4972
    %v4974 = vrot.slane %v4199, %v4973
    %v4976 = vunpack.c.l.s4 1983009808
    %v4977 = vunpack.c.0.s8 %v4976
    %v4978 = vlaneseq
    %v4979 = vshrl.u32 %v4978, 7
    %v4980 = vsub.s32 %v4977, %v4979
    %v4981 = vrot.slane %v4967, %v4980
    %v4982 = vcombine.high %v4974, %v4974
    %v4983 = vcombine.high %v4981, %v4981
    %v4984 = vcombine.high %v4200, %v4200
    %v4986 = vunpack.c.l.s4 1983009808
    %v4987 = vunpack.c.0.s8 %v4986
    %v4988 = vlaneseq
    %v4989 = vshrl.u32 %v4988, 7
    %v4990 = vsub.s32 %v4987, %v4989
    %v4991 = vrot.slane %v4200, %v4990
    %v4993 = vunpack.c.l.s4 1983009808
    %v4994 = vunpack.c.0.s8 %v4993
    %v4995 = vlaneseq
    %v4996 = vshrl.u32 %v4995, 7
    %v4997 = vsub.s32 %v4994, %v4996
    %v4998 = vrot.slane %v4984, %v4997
    %v4999 = vcombine.high %v4991, %v4991
    %v5000 = vcombine.high %v4998, %v4998
    %v5001 = vcombine.high %v4201, %v4201
    %v5003 = vunpack.c.l.s4 1983009808
    %v5004 = vunpack.c.0.s8 %v5003
    %v5005 = vlaneseq
    %v5006 = vshrl.u32 %v5005, 7
    %v5007 = vsub.s32 %v5004, %v5006
    %v5008 = vrot.slane %v4201, %v5007
    %v5010 = vunpack.c.l.s4 1983009808
    %v5011 = vunpack.c.0.s8 %v5010
    %v5012 = vlaneseq
    %v5013 = vshrl.u32 %v5012, 7
    %v5014 = vsub.s32 %v5011, %v5013
    %v5015 = vrot.slane %v5001, %v5014
    %v5016 = vcombine.high %v5008, %v5008
    %v5017 = vcombine.high %v5015, %v5015
    %v5018 = vcombine.high %v4202, %v4202
    %v5020 = vunpack.c.l.s4 1983009808
    %v5021 = vunpack.c.0.s8 %v5020
    %v5022 = vlaneseq
    %v5023 = vshrl.u32 %v5022, 7
    %v5024 = vsub.s32 %v5021, %v5023
    %v5025 = vrot.slane %v4202, %v5024
    %v5027 = vunpack.c.l.s4 1983009808
    %v5028 = vunpack.c.0.s8 %v5027
    %v5029 = vlaneseq
    %v5030 = vshrl.u32 %v5029, 7
    %v5031 = vsub.s32 %v5028, %v5030
    %v5032 = vrot.slane %v5018, %v5031
    %v5033 = vcombine.high %v5025, %v5025
    %v5034 = vcombine.high %v5032, %v5032
    %v5035 = vcombine.high %v4203, %v4203
    %v5037 = vunpack.c.l.s4 1983009808
    %v5038 = vunpack.c.0.s8 %v5037
    %v5039 = vlaneseq
    %v5040 = vshrl.u32 %v5039, 7
    %v5041 = vsub.s32 %v5038, %v5040
    %v5042 = vrot.slane %v4203, %v5041
    %v5044 = vunpack.c.l.s4 1983009808
    %v5045 = vunpack.c.0.s8 %v5044
    %v5046 = vlaneseq
    %v5047 = vshrl.u32 %v5046, 7
    %v5048 = vsub.s32 %v5045, %v5047
    %v5049 = vrot.slane %v5035, %v5048
    %v5050 = vcombine.high %v5042, %v5042
    %v5051 = vcombine.high %v5049, %v5049
    %v5052 = vcombine.high %v4204, %v4204
    %v5054 = vunpack.c.l.s4 1983009808
    %v5055 = vunpack.c.0.s8 %v5054
    %v5056 = vlaneseq
    %v5057 = vshrl.u32 %v5056, 7
    %v5058 = vsub.s32 %v5055, %v5057
    %v5059 = vrot.slane %v4204, %v5058
    %v5061 = vunpack.c.l.s4 1983009808
    %v5062 = vunpack.c.0.s8 %v5061
    %v5063 = vlaneseq
    %v5064 = vshrl.u32 %v5063, 7
    %v5065 = vsub.s32 %v5062, %v5064
    %v5066 = vrot.slane %v5052, %v5065
    %v5067 = vcombine.high %v5059, %v5059
    %v5068 = vcombine.high %v5066, %v5066
    %v5069 = vcombine.high %v4205, %v4205
    %v5071 = vunpack.c.l.s4 1983009808
    %v5072 = vunpack.c.0.s8 %v5071
    %v5073 = vlaneseq
    %v5074 = vshrl.u32 %v5073, 7
    %v5075 = vsub.s32 %v5072, %v5074
    %v5076 = vrot.slane %v4205, %v5075
    %v5078 = vunpack.c.l.s4 1983009808
    %v5079 = vunpack.c.0.s8 %v5078
    %v5080 = vlaneseq
    %v5081 = vshrl.u32 %v5080, 7
    %v5082 = vsub.s32 %v5079, %v5081
    %v5083 = vrot.slane %v5069, %v5082
    %v5084 = vcombine.high %v5076, %v5076
    %v5085 = vcombine.high %v5083, %v5083
    %v5086 = vcombine.high %v4206, %v4206
    %v5088 = vunpack.c.l.s4 1983009808
    %v5089 = vunpack.c.0.s8 %v5088
    %v5090 = vlaneseq
    %v5091 = vshrl.u32 %v5090, 7
    %v5092 = vsub.s32 %v5089, %v5091
    %v5093 = vrot.slane %v4206, %v5092
    %v5095 = vunpack.c.l.s4 1983009808
    %v5096 = vunpack.c.0.s8 %v5095
    %v5097 = vlaneseq
    %v5098 = vshrl.u32 %v5097, 7
    %v5099 = vsub.s32 %v5096, %v5098
    %v5100 = vrot.slane %v5086, %v5099
    %v5101 = vcombine.high %v5093, %v5093
    %v5102 = vcombine.high %v5100, %v5100
    %v5103 = vcombine.high %v4207, %v4207
    %v5105 = vunpack.c.l.s4 1983009808
    %v5106 = vunpack.c.0.s8 %v5105
    %v5107 = vlaneseq
    %v5108 = vshrl.u32 %v5107, 7
    %v5109 = vsub.s32 %v5106, %v5108
    %v5110 = vrot.slane %v4207, %v5109
    %v5112 = vunpack.c.l.s4 1983009808
    %v5113 = vunpack.c.0.s8 %v5112
    %v5114 = vlaneseq
    %v5115 = vshrl.u32 %v5114, 7
    %v5116 = vsub.s32 %v5113, %v5115
    %v5117 = vrot.slane %v5103, %v5116
    %v5118 = vcombine.high %v5110, %v5110
    %v5119 = vcombine.high %v5117, %v5117
    %v5120 = vcombine.high %v4208, %v4208
    %v5122 = vunpack.c.l.s4 1983009808
    %v5123 = vunpack.c.0.s8 %v5122
    %v5124 = vlaneseq
    %v5125 = vshrl.u32 %v5124, 7
    %v5126 = vsub.s32 %v5123, %v5125
    %v5127 = vrot.slane %v4208, %v5126
    %v5129 = vunpack.c.l.s4 1983009808
    %v5130 = vunpack.c.0.s8 %v5129
    %v5131 = vlaneseq
    %v5132 = vshrl.u32 %v5131, 7
    %v5133 = vsub.s32 %v5130, %v5132
    %v5134 = vrot.slane %v5120, %v5133
    %v5135 = vcombine.high %v5127, %v5127
    %v5136 = vcombine.high %v5134, %v5134
    %v5137 = vcombine.high %v4209, %v4209
    %v5139 = vunpack.c.l.s4 1983009808
    %v5140 = vunpack.c.0.s8 %v5139
    %v5141 = vlaneseq
    %v5142 = vshrl.u32 %v5141, 7
    %v5143 = vsub.s32 %v5140, %v5142
    %v5144 = vrot.slane %v4209, %v5143
    %v5146 = vunpack.c.l.s4 1983009808
    %v5147 = vunpack.c.0.s8 %v5146
    %v5148 = vlaneseq
    %v5149 = vshrl.u32 %v5148, 7
    %v5150 = vsub.s32 %v5147, %v5149
    %v5151 = vrot.slane %v5137, %v5150
    %v5152 = vcombine.high %v5144, %v5144
    %v5153 = vcombine.high %v5151, %v5151
    %v5154 = vcombine.high %v4210, %v4210
    %v5156 = vunpack.c.l.s4 1983009808
    %v5157 = vunpack.c.0.s8 %v5156
    %v5158 = vlaneseq
    %v5159 = vshrl.u32 %v5158, 7
    %v5160 = vsub.s32 %v5157, %v5159
    %v5161 = vrot.slane %v4210, %v5160
    %v5163 = vunpack.c.l.s4 1983009808
    %v5164 = vunpack.c.0.s8 %v5163
    %v5165 = vlaneseq
    %v5166 = vshrl.u32 %v5165, 7
    %v5167 = vsub.s32 %v5164, %v5166
    %v5168 = vrot.slane %v5154, %v5167
    %v5169 = vcombine.high %v5161, %v5161
    %v5170 = vcombine.high %v5168, %v5168
    %v5171 = vcombine.high %v4211, %v4211
    %v5173 = vunpack.c.l.s4 1983009808
    %v5174 = vunpack.c.0.s8 %v5173
    %v5175 = vlaneseq
    %v5176 = vshrl.u32 %v5175, 7
    %v5177 = vsub.s32 %v5174, %v5176
    %v5178 = vrot.slane %v4211, %v5177
    %v5180 = vunpack.c.l.s4 1983009808
    %v5181 = vunpack.c.0.s8 %v5180
    %v5182 = vlaneseq
    %v5183 = vshrl.u32 %v5182, 7
    %v5184 = vsub.s32 %v5181, %v5183
    %v5185 = vrot.slane %v5171, %v5184
    %v5186 = vcombine.high %v5178, %v5178
    %v5187 = vcombine.high %v5185, %v5185
    %v5188 = vcombine.high %v4212, %v4212
    %v5190 = vunpack.c.l.s4 1983009808
    %v5191 = vunpack.c.0.s8 %v5190
    %v5192 = vlaneseq
    %v5193 = vshrl.u32 %v5192, 7
    %v5194 = vsub.s32 %v5191, %v5193
    %v5195 = vrot.slane %v4212, %v5194
    %v5197 = vunpack.c.l.s4 1983009808
    %v5198 = vunpack.c.0.s8 %v5197
    %v5199 = vlaneseq
    %v5200 = vshrl.u32 %v5199, 7
    %v5201 = vsub.s32 %v5198, %v5200
    %v5202 = vrot.slane %v5188, %v5201
    %v5203 = vcombine.high %v5195, %v5195
    %v5204 = vcombine.high %v5202, %v5202
    %v5205 = vcombine.high %v4213, %v4213
    %v5207 = vunpack.c.l.s4 1983009808
    %v5208 = vunpack.c.0.s8 %v5207
    %v5209 = vlaneseq
    %v5210 = vshrl.u32 %v5209, 7
    %v5211 = vsub.s32 %v5208, %v5210
    %v5212 = vrot.slane %v4213, %v5211
    %v5214 = vunpack.c.l.s4 1983009808
    %v5215 = vunpack.c.0.s8 %v5214
    %v5216 = vlaneseq
    %v5217 = vshrl.u32 %v5216, 7
    %v5218 = vsub.s32 %v5215, %v5217
    %v5219 = vrot.slane %v5205, %v5218
    %v5220 = vcombine.high %v5212, %v5212
    %v5221 = vcombine.high %v5219, %v5219
    %v5222 = vcombine.high %v4214, %v4214
    %v5224 = vunpack.c.l.s4 1983009808
    %v5225 = vunpack.c.0.s8 %v5224
    %v5226 = vlaneseq
    %v5227 = vshrl.u32 %v5226, 7
    %v5228 = vsub.s32 %v5225, %v5227
    %v5229 = vrot.slane %v4214, %v5228
    %v5231 = vunpack.c.l.s4 1983009808
    %v5232 = vunpack.c.0.s8 %v5231
    %v5233 = vlaneseq
    %v5234 = vshrl.u32 %v5233, 7
    %v5235 = vsub.s32 %v5232, %v5234
    %v5236 = vrot.slane %v5222, %v5235
    %v5237 = vcombine.high %v5229, %v5229
    %v5238 = vcombine.high %v5236, %v5236
    %v5239 = vcombine.high %v4215, %v4215
    %v5241 = vunpack.c.l.s4 1983009808
    %v5242 = vunpack.c.0.s8 %v5241
    %v5243 = vlaneseq
    %v5244 = vshrl.u32 %v5243, 7
    %v5245 = vsub.s32 %v5242, %v5244
    %v5246 = vrot.slane %v4215, %v5245
    %v5248 = vunpack.c.l.s4 1983009808
    %v5249 = vunpack.c.0.s8 %v5248
    %v5250 = vlaneseq
    %v5251 = vshrl.u32 %v5250, 7
    %v5252 = vsub.s32 %v5249, %v5251
    %v5253 = vrot.slane %v5239, %v5252
    %v5254 = vcombine.high %v5246, %v5246
    %v5255 = vcombine.high %v5253, %v5253
    %v5256 = vcombine.high %v4216, %v4216
    %v5258 = vunpack.c.l.s4 1983009808
    %v5259 = vunpack.c.0.s8 %v5258
    %v5260 = vlaneseq
    %v5261 = vshrl.u32 %v5260, 7
    %v5262 = vsub.s32 %v5259, %v5261
    %v5263 = vrot.slane %v4216, %v5262
    %v5265 = vunpack.c.l.s4 1983009808
    %v5266 = vunpack.c.0.s8 %v5265
    %v5267 = vlaneseq
    %v5268 = vshrl.u32 %v5267, 7
    %v5269 = vsub.s32 %v5266, %v5268
    %v5270 = vrot.slane %v5256, %v5269
    %v5271 = vcombine.high %v5263, %v5263
    %v5272 = vcombine.high %v5270, %v5270
    %v5273 = vcombine.high %v4217, %v4217
    %v5275 = vunpack.c.l.s4 1983009808
    %v5276 = vunpack.c.0.s8 %v5275
    %v5277 = vlaneseq
    %v5278 = vshrl.u32 %v5277, 7
    %v5279 = vsub.s32 %v5276, %v5278
    %v5280 = vrot.slane %v4217, %v5279
    %v5282 = vunpack.c.l.s4 1983009808
    %v5283 = vunpack.c.0.s8 %v5282
    %v5284 = vlaneseq
    %v5285 = vshrl.u32 %v5284, 7
    %v5286 = vsub.s32 %v5283, %v5285
    %v5287 = vrot.slane %v5273, %v5286
    %v5288 = vcombine.high %v5280, %v5280
    %v5289 = vcombine.high %v5287, %v5287
    %v5290 = vcombine.high %v4218, %v4218
    %v5292 = vunpack.c.l.s4 1983009808
    %v5293 = vunpack.c.0.s8 %v5292
    %v5294 = vlaneseq
    %v5295 = vshrl.u32 %v5294, 7
    %v5296 = vsub.s32 %v5293, %v5295
    %v5297 = vrot.slane %v4218, %v5296
    %v5299 = vunpack.c.l.s4 1983009808
    %v5300 = vunpack.c.0.s8 %v5299
    %v5301 = vlaneseq
    %v5302 = vshrl.u32 %v5301, 7
    %v5303 = vsub.s32 %v5300, %v5302
    %v5304 = vrot.slane %v5290, %v5303
    %v5305 = vcombine.high %v5297, %v5297
    %v5306 = vcombine.high %v5304, %v5304
    %v5307 = vcombine.high %v4219, %v4219
    %v5309 = vunpack.c.l.s4 1983009808
    %v5310 = vunpack.c.0.s8 %v5309
    %v5311 = vlaneseq
    %v5312 = vshrl.u32 %v5311, 7
    %v5313 = vsub.s32 %v5310, %v5312
    %v5314 = vrot.slane %v4219, %v5313
    %v5316 = vunpack.c.l.s4 1983009808
    %v5317 = vunpack.c.0.s8 %v5316
    %v5318 = vlaneseq
    %v5319 = vshrl.u32 %v5318, 7
    %v5320 = vsub.s32 %v5317, %v5319
    %v5321 = vrot.slane %v5307, %v5320
    %v5322 = vcombine.high %v5314, %v5314
    %v5323 = vcombine.high %v5321, %v5321
    %v5324 = vcombine.high %v4220, %v4220
    %v5326 = vunpack.c.l.s4 1983009808
    %v5327 = vunpack.c.0.s8 %v5326
    %v5328 = vlaneseq
    %v5329 = vshrl.u32 %v5328, 7
    %v5330 = vsub.s32 %v5327, %v5329
    %v5331 = vrot.slane %v4220, %v5330
    %v5333 = vunpack.c.l.s4 1983009808
    %v5334 = vunpack.c.0.s8 %v5333
    %v5335 = vlaneseq
    %v5336 = vshrl.u32 %v5335, 7
    %v5337 = vsub.s32 %v5334, %v5336
    %v5338 = vrot.slane %v5324, %v5337
    %v5339 = vcombine.high %v5331, %v5331
    %v5340 = vcombine.high %v5338, %v5338
    %v5341 = vcombine.high %v4221, %v4221
    %v5343 = vunpack.c.l.s4 1983009808
    %v5344 = vunpack.c.0.s8 %v5343
    %v5345 = vlaneseq
    %v5346 = vshrl.u32 %v5345, 7
    %v5347 = vsub.s32 %v5344, %v5346
    %v5348 = vrot.slane %v4221, %v5347
    %v5350 = vunpack.c.l.s4 1983009808
    %v5351 = vunpack.c.0.s8 %v5350
    %v5352 = vlaneseq
    %v5353 = vshrl.u32 %v5352, 7
    %v5354 = vsub.s32 %v5351, %v5353
    %v5355 = vrot.slane %v5341, %v5354
    %v5356 = vcombine.high %v5348, %v5348
    %v5357 = vcombine.high %v5355, %v5355
    %v5358 = vcombine.high %v4222, %v4222
    %v5360 = vunpack.c.l.s4 1983009808
    %v5361 = vunpack.c.0.s8 %v5360
    %v5362 = vlaneseq
    %v5363 = vshrl.u32 %v5362, 7
    %v5364 = vsub.s32 %v5361, %v5363
    %v5365 = vrot.slane %v4222, %v5364
    %v5367 = vunpack.c.l.s4 1983009808
    %v5368 = vunpack.c.0.s8 %v5367
    %v5369 = vlaneseq
    %v5370 = vshrl.u32 %v5369, 7
    %v5371 = vsub.s32 %v5368, %v5370
    %v5372 = vrot.slane %v5358, %v5371
    %v5373 = vcombine.high %v5365, %v5365
    %v5374 = vcombine.high %v5372, %v5372
    %vm5631 = vcmask 123904
    %v5632 = vsel %vm5631, %v4294, -inf
    %v5633 = vrot.slane %v5632, 4
    %v5634 = vmax.f32 %v5632, %v5633
    %v5635 = vrot.slane %v5634, 2
    %v5636 = vmax.f32 %v5634, %v5635
    %v5637 = vrot.slane %v5636, 1
    %v5638 = vmax.f32 %v5636, %v5637
    %v5639 = vsel %vm5631, %v4302, -inf
    %v5640 = vrot.slane %v5639, 4
    %v5641 = vmax.f32 %v5639, %v5640
    %v5642 = vrot.slane %v5641, 2
    %v5643 = vmax.f32 %v5641, %v5642
    %v5644 = vrot.slane %v5643, 1
    %v5645 = vmax.f32 %v5643, %v5644
    %v5646 = vsel %vm5631, %v4301, -inf
    %v5647 = vrot.slane %v5646, 4
    %v5648 = vmax.f32 %v5646, %v5647
    %v5649 = vrot.slane %v5648, 2
    %v5650 = vmax.f32 %v5648, %v5649
    %v5651 = vrot.slane %v5650, 1
    %v5652 = vmax.f32 %v5650, %v5651
    %v5653 = vsel %vm5631, %v4303, -inf
    %v5654 = vrot.slane %v5653, 4
    %v5655 = vmax.f32 %v5653, %v5654
    %v5656 = vrot.slane %v5655, 2
    %v5657 = vmax.f32 %v5655, %v5656
    %v5658 = vrot.slane %v5657, 1
    %v5659 = vmax.f32 %v5657, %v5658
    %v5660 = vsel %vm5631, %v4311, -inf
    %v5661 = vrot.slane %v5660, 4
    %v5662 = vmax.f32 %v5660, %v5661
    %v5663 = vrot.slane %v5662, 2
    %v5664 = vmax.f32 %v5662, %v5663
    %v5665 = vrot.slane %v5664, 1
    %v5666 = vmax.f32 %v5664, %v5665
    %v5667 = vsel %vm5631, %v4319, -inf
    %v5668 = vrot.slane %v5667, 4
    %v5669 = vmax.f32 %v5667, %v5668
    %v5670 = vrot.slane %v5669, 2
    %v5671 = vmax.f32 %v5669, %v5670
    %v5672 = vrot.slane %v5671, 1
    %v5673 = vmax.f32 %v5671, %v5672
    %v5674 = vsel %vm5631, %v4318, -inf
    %v5675 = vrot.slane %v5674, 4
    %v5676 = vmax.f32 %v5674, %v5675
    %v5677 = vrot.slane %v5676, 2
    %v5678 = vmax.f32 %v5676, %v5677
    %v5679 = vrot.slane %v5678, 1
    %v5680 = vmax.f32 %v5678, %v5679
    %v5681 = vsel %vm5631, %v4320, -inf
    %v5682 = vrot.slane %v5681, 4
    %v5683 = vmax.f32 %v5681, %v5682
    %v5684 = vrot.slane %v5683, 2
    %v5685 = vmax.f32 %v5683, %v5684
    %v5686 = vrot.slane %v5685, 1
    %v5687 = vmax.f32 %v5685, %v5686
    %v5688 = vsel %vm5631, %v4328, -inf
    %v5689 = vrot.slane %v5688, 4
    %v5690 = vmax.f32 %v5688, %v5689
    %v5691 = vrot.slane %v5690, 2
    %v5692 = vmax.f32 %v5690, %v5691
    %v5693 = vrot.slane %v5692, 1
    %v5694 = vmax.f32 %v5692, %v5693
    %v5695 = vsel %vm5631, %v4336, -inf
    %v5696 = vrot.slane %v5695, 4
    %v5697 = vmax.f32 %v5695, %v5696
    %v5698 = vrot.slane %v5697, 2
    %v5699 = vmax.f32 %v5697, %v5698
    %v5700 = vrot.slane %v5699, 1
    %v5701 = vmax.f32 %v5699, %v5700
    %v5702 = vsel %vm5631, %v4335, -inf
    %v5703 = vrot.slane %v5702, 4
    %v5704 = vmax.f32 %v5702, %v5703
    %v5705 = vrot.slane %v5704, 2
    %v5706 = vmax.f32 %v5704, %v5705
    %v5707 = vrot.slane %v5706, 1
    %v5708 = vmax.f32 %v5706, %v5707
    %v5709 = vsel %vm5631, %v4337, -inf
    %v5710 = vrot.slane %v5709, 4
    %v5711 = vmax.f32 %v5709, %v5710
    %v5712 = vrot.slane %v5711, 2
    %v5713 = vmax.f32 %v5711, %v5712
    %v5714 = vrot.slane %v5713, 1
    %v5715 = vmax.f32 %v5713, %v5714
    %v5716 = vsel %vm5631, %v4345, -inf
    %v5717 = vrot.slane %v5716, 4
    %v5718 = vmax.f32 %v5716, %v5717
    %v5719 = vrot.slane %v5718, 2
    %v5720 = vmax.f32 %v5718, %v5719
    %v5721 = vrot.slane %v5720, 1
    %v5722 = vmax.f32 %v5720, %v5721
    %v5723 = vsel %vm5631, %v4353, -inf
    %v5724 = vrot.slane %v5723, 4
    %v5725 = vmax.f32 %v5723, %v5724
    %v5726 = vrot.slane %v5725, 2
    %v5727 = vmax.f32 %v5725, %v5726
    %v5728 = vrot.slane %v5727, 1
    %v5729 = vmax.f32 %v5727, %v5728
    %v5730 = vsel %vm5631, %v4352, -inf
    %v5731 = vrot.slane %v5730, 4
    %v5732 = vmax.f32 %v5730, %v5731
    %v5733 = vrot.slane %v5732, 2
    %v5734 = vmax.f32 %v5732, %v5733
    %v5735 = vrot.slane %v5734, 1
    %v5736 = vmax.f32 %v5734, %v5735
    %v5737 = vsel %vm5631, %v4354, -inf
    %v5738 = vrot.slane %v5737, 4
    %v5739 = vmax.f32 %v5737, %v5738
    %v5740 = vrot.slane %v5739, 2
    %v5741 = vmax.f32 %v5739, %v5740
    %v5742 = vrot.slane %v5741, 1
    %v5743 = vmax.f32 %v5741, %v5742
    %v5744 = vsel %vm5631, %v4362, -inf
    %v5745 = vrot.slane %v5744, 4
    %v5746 = vmax.f32 %v5744, %v5745
    %v5747 = vrot.slane %v5746, 2
    %v5748 = vmax.f32 %v5746, %v5747
    %v5749 = vrot.slane %v5748, 1
    %v5750 = vmax.f32 %v5748, %v5749
    %v5751 = vsel %vm5631, %v4370, -inf
    %v5752 = vrot.slane %v5751, 4
    %v5753 = vmax.f32 %v5751, %v5752
    %v5754 = vrot.slane %v5753, 2
    %v5755 = vmax.f32 %v5753, %v5754
    %v5756 = vrot.slane %v5755, 1
    %v5757 = vmax.f32 %v5755, %v5756
    %v5758 = vsel %vm5631, %v4369, -inf
    %v5759 = vrot.slane %v5758, 4
    %v5760 = vmax.f32 %v5758, %v5759
    %v5761 = vrot.slane %v5760, 2
    %v5762 = vmax.f32 %v5760, %v5761
    %v5763 = vrot.slane %v5762, 1
    %v5764 = vmax.f32 %v5762, %v5763
    %v5765 = vsel %vm5631, %v4371, -inf
    %v5766 = vrot.slane %v5765, 4
    %v5767 = vmax.f32 %v5765, %v5766
    %v5768 = vrot.slane %v5767, 2
    %v5769 = vmax.f32 %v5767, %v5768
    %v5770 = vrot.slane %v5769, 1
    %v5771 = vmax.f32 %v5769, %v5770
    %v5772 = vsel %vm5631, %v4379, -inf
    %v5773 = vrot.slane %v5772, 4
    %v5774 = vmax.f32 %v5772, %v5773
    %v5775 = vrot.slane %v5774, 2
    %v5776 = vmax.f32 %v5774, %v5775
    %v5777 = vrot.slane %v5776, 1
    %v5778 = vmax.f32 %v5776, %v5777
    %v5779 = vsel %vm5631, %v4387, -inf
    %v5780 = vrot.slane %v5779, 4
    %v5781 = vmax.f32 %v5779, %v5780
    %v5782 = vrot.slane %v5781, 2
    %v5783 = vmax.f32 %v5781, %v5782
    %v5784 = vrot.slane %v5783, 1
    %v5785 = vmax.f32 %v5783, %v5784
    %v5786 = vsel %vm5631, %v4386, -inf
    %v5787 = vrot.slane %v5786, 4
    %v5788 = vmax.f32 %v5786, %v5787
    %v5789 = vrot.slane %v5788, 2
    %v5790 = vmax.f32 %v5788, %v5789
    %v5791 = vrot.slane %v5790, 1
    %v5792 = vmax.f32 %v5790, %v5791
    %v5793 = vsel %vm5631, %v4388, -inf
    %v5794 = vrot.slane %v5793, 4
    %v5795 = vmax.f32 %v5793, %v5794
    %v5796 = vrot.slane %v5795, 2
    %v5797 = vmax.f32 %v5795, %v5796
    %v5798 = vrot.slane %v5797, 1
    %v5799 = vmax.f32 %v5797, %v5798
    %v5800 = vsel %vm5631, %v4396, -inf
    %v5801 = vrot.slane %v5800, 4
    %v5802 = vmax.f32 %v5800, %v5801
    %v5803 = vrot.slane %v5802, 2
    %v5804 = vmax.f32 %v5802, %v5803
    %v5805 = vrot.slane %v5804, 1
    %v5806 = vmax.f32 %v5804, %v5805
    %v5807 = vsel %vm5631, %v4404, -inf
    %v5808 = vrot.slane %v5807, 4
    %v5809 = vmax.f32 %v5807, %v5808
    %v5810 = vrot.slane %v5809, 2
    %v5811 = vmax.f32 %v5809, %v5810
    %v5812 = vrot.slane %v5811, 1
    %v5813 = vmax.f32 %v5811, %v5812
    %v5814 = vsel %vm5631, %v4403, -inf
    %v5815 = vrot.slane %v5814, 4
    %v5816 = vmax.f32 %v5814, %v5815
    %v5817 = vrot.slane %v5816, 2
    %v5818 = vmax.f32 %v5816, %v5817
    %v5819 = vrot.slane %v5818, 1
    %v5820 = vmax.f32 %v5818, %v5819
    %v5821 = vsel %vm5631, %v4405, -inf
    %v5822 = vrot.slane %v5821, 4
    %v5823 = vmax.f32 %v5821, %v5822
    %v5824 = vrot.slane %v5823, 2
    %v5825 = vmax.f32 %v5823, %v5824
    %v5826 = vrot.slane %v5825, 1
    %v5827 = vmax.f32 %v5825, %v5826
    %v5828 = vsel %vm5631, %v4413, -inf
    %v5829 = vrot.slane %v5828, 4
    %v5830 = vmax.f32 %v5828, %v5829
    %v5831 = vrot.slane %v5830, 2
    %v5832 = vmax.f32 %v5830, %v5831
    %v5833 = vrot.slane %v5832, 1
    %v5834 = vmax.f32 %v5832, %v5833
    %v5835 = vsel %vm5631, %v4421, -inf
    %v5836 = vrot.slane %v5835, 4
    %v5837 = vmax.f32 %v5835, %v5836
    %v5838 = vrot.slane %v5837, 2
    %v5839 = vmax.f32 %v5837, %v5838
    %v5840 = vrot.slane %v5839, 1
    %v5841 = vmax.f32 %v5839, %v5840
    %v5842 = vsel %vm5631, %v4420, -inf
    %v5843 = vrot.slane %v5842, 4
    %v5844 = vmax.f32 %v5842, %v5843
    %v5845 = vrot.slane %v5844, 2
    %v5846 = vmax.f32 %v5844, %v5845
    %v5847 = vrot.slane %v5846, 1
    %v5848 = vmax.f32 %v5846, %v5847
    %v5849 = vsel %vm5631, %v4422, -inf
    %v5850 = vrot.slane %v5849, 4
    %v5851 = vmax.f32 %v5849, %v5850
    %v5852 = vrot.slane %v5851, 2
    %v5853 = vmax.f32 %v5851, %v5852
    %v5854 = vrot.slane %v5853, 1
    %v5855 = vmax.f32 %v5853, %v5854
    %v5856 = vsel %vm5631, %v4430, -inf
    %v5857 = vrot.slane %v5856, 4
    %v5858 = vmax.f32 %v5856, %v5857
    %v5859 = vrot.slane %v5858, 2
    %v5860 = vmax.f32 %v5858, %v5859
    %v5861 = vrot.slane %v5860, 1
    %v5862 = vmax.f32 %v5860, %v5861
    %v5863 = vsel %vm5631, %v4438, -inf
    %v5864 = vrot.slane %v5863, 4
    %v5865 = vmax.f32 %v5863, %v5864
    %v5866 = vrot.slane %v5865, 2
    %v5867 = vmax.f32 %v5865, %v5866
    %v5868 = vrot.slane %v5867, 1
    %v5869 = vmax.f32 %v5867, %v5868
    %v5870 = vsel %vm5631, %v4437, -inf
    %v5871 = vrot.slane %v5870, 4
    %v5872 = vmax.f32 %v5870, %v5871
    %v5873 = vrot.slane %v5872, 2
    %v5874 = vmax.f32 %v5872, %v5873
    %v5875 = vrot.slane %v5874, 1
    %v5876 = vmax.f32 %v5874, %v5875
    %v5877 = vsel %vm5631, %v4439, -inf
    %v5878 = vrot.slane %v5877, 4
    %v5879 = vmax.f32 %v5877, %v5878
    %v5880 = vrot.slane %v5879, 2
    %v5881 = vmax.f32 %v5879, %v5880
    %v5882 = vrot.slane %v5881, 1
    %v5883 = vmax.f32 %v5881, %v5882
    %v5884 = vsel %vm5631, %v4447, -inf
    %v5885 = vrot.slane %v5884, 4
    %v5886 = vmax.f32 %v5884, %v5885
    %v5887 = vrot.slane %v5886, 2
    %v5888 = vmax.f32 %v5886, %v5887
    %v5889 = vrot.slane %v5888, 1
    %v5890 = vmax.f32 %v5888, %v5889
    %v5891 = vsel %vm5631, %v4455, -inf
    %v5892 = vrot.slane %v5891, 4
    %v5893 = vmax.f32 %v5891, %v5892
    %v5894 = vrot.slane %v5893, 2
    %v5895 = vmax.f32 %v5893, %v5894
    %v5896 = vrot.slane %v5895, 1
    %v5897 = vmax.f32 %v5895, %v5896
    %v5898 = vsel %vm5631, %v4454, -inf
    %v5899 = vrot.slane %v5898, 4
    %v5900 = vmax.f32 %v5898, %v5899
    %v5901 = vrot.slane %v5900, 2
    %v5902 = vmax.f32 %v5900, %v5901
    %v5903 = vrot.slane %v5902, 1
    %v5904 = vmax.f32 %v5902, %v5903
    %v5905 = vsel %vm5631, %v4456, -inf
    %v5906 = vrot.slane %v5905, 4
    %v5907 = vmax.f32 %v5905, %v5906
    %v5908 = vrot.slane %v5907, 2
    %v5909 = vmax.f32 %v5907, %v5908
    %v5910 = vrot.slane %v5909, 1
    %v5911 = vmax.f32 %v5909, %v5910
    %v5912 = vsel %vm5631, %v4464, -inf
    %v5913 = vrot.slane %v5912, 4
    %v5914 = vmax.f32 %v5912, %v5913
    %v5915 = vrot.slane %v5914, 2
    %v5916 = vmax.f32 %v5914, %v5915
    %v5917 = vrot.slane %v5916, 1
    %v5918 = vmax.f32 %v5916, %v5917
    %v5919 = vsel %vm5631, %v4472, -inf
    %v5920 = vrot.slane %v5919, 4
    %v5921 = vmax.f32 %v5919, %v5920
    %v5922 = vrot.slane %v5921, 2
    %v5923 = vmax.f32 %v5921, %v5922
    %v5924 = vrot.slane %v5923, 1
    %v5925 = vmax.f32 %v5923, %v5924
    %v5926 = vsel %vm5631, %v4471, -inf
    %v5927 = vrot.slane %v5926, 4
    %v5928 = vmax.f32 %v5926, %v5927
    %v5929 = vrot.slane %v5928, 2
    %v5930 = vmax.f32 %v5928, %v5929
    %v5931 = vrot.slane %v5930, 1
    %v5932 = vmax.f32 %v5930, %v5931
    %v5933 = vsel %vm5631, %v4473, -inf
    %v5934 = vrot.slane %v5933, 4
    %v5935 = vmax.f32 %v5933, %v5934
    %v5936 = vrot.slane %v5935, 2
    %v5937 = vmax.f32 %v5935, %v5936
    %v5938 = vrot.slane %v5937, 1
    %v5939 = vmax.f32 %v5937, %v5938
    %v5940 = vsel %vm5631, %v4481, -inf
    %v5941 = vrot.slane %v5940, 4
    %v5942 = vmax.f32 %v5940, %v5941
    %v5943 = vrot.slane %v5942, 2
    %v5944 = vmax.f32 %v5942, %v5943
    %v5945 = vrot.slane %v5944, 1
    %v5946 = vmax.f32 %v5944, %v5945
    %v5947 = vsel %vm5631, %v4489, -inf
    %v5948 = vrot.slane %v5947, 4
    %v5949 = vmax.f32 %v5947, %v5948
    %v5950 = vrot.slane %v5949, 2
    %v5951 = vmax.f32 %v5949, %v5950
    %v5952 = vrot.slane %v5951, 1
    %v5953 = vmax.f32 %v5951, %v5952
    %v5954 = vsel %vm5631, %v4488, -inf
    %v5955 = vrot.slane %v5954, 4
    %v5956 = vmax.f32 %v5954, %v5955
    %v5957 = vrot.slane %v5956, 2
    %v5958 = vmax.f32 %v5956, %v5957
    %v5959 = vrot.slane %v5958, 1
    %v5960 = vmax.f32 %v5958, %v5959
    %v5961 = vsel %vm5631, %v4490, -inf
    %v5962 = vrot.slane %v5961, 4
    %v5963 = vmax.f32 %v5961, %v5962
    %v5964 = vrot.slane %v5963, 2
    %v5965 = vmax.f32 %v5963, %v5964
    %v5966 = vrot.slane %v5965, 1
    %v5967 = vmax.f32 %v5965, %v5966
    %v5968 = vsel %vm5631, %v4498, -inf
    %v5969 = vrot.slane %v5968, 4
    %v5970 = vmax.f32 %v5968, %v5969
    %v5971 = vrot.slane %v5970, 2
    %v5972 = vmax.f32 %v5970, %v5971
    %v5973 = vrot.slane %v5972, 1
    %v5974 = vmax.f32 %v5972, %v5973
    %v5975 = vsel %vm5631, %v4506, -inf
    %v5976 = vrot.slane %v5975, 4
    %v5977 = vmax.f32 %v5975, %v5976
    %v5978 = vrot.slane %v5977, 2
    %v5979 = vmax.f32 %v5977, %v5978
    %v5980 = vrot.slane %v5979, 1
    %v5981 = vmax.f32 %v5979, %v5980
    %v5982 = vsel %vm5631, %v4505, -inf
    %v5983 = vrot.slane %v5982, 4
    %v5984 = vmax.f32 %v5982, %v5983
    %v5985 = vrot.slane %v5984, 2
    %v5986 = vmax.f32 %v5984, %v5985
    %v5987 = vrot.slane %v5986, 1
    %v5988 = vmax.f32 %v5986, %v5987
    %v5989 = vsel %vm5631, %v4507, -inf
    %v5990 = vrot.slane %v5989, 4
    %v5991 = vmax.f32 %v5989, %v5990
    %v5992 = vrot.slane %v5991, 2
    %v5993 = vmax.f32 %v5991, %v5992
    %v5994 = vrot.slane %v5993, 1
    %v5995 = vmax.f32 %v5993, %v5994
    %v5996 = vsel %vm5631, %v4515, -inf
    %v5997 = vrot.slane %v5996, 4
    %v5998 = vmax.f32 %v5996, %v5997
    %v5999 = vrot.slane %v5998, 2
    %v6000 = vmax.f32 %v5998, %v5999
    %v6001 = vrot.slane %v6000, 1
    %v6002 = vmax.f32 %v6000, %v6001
    %v6003 = vsel %vm5631, %v4523, -inf
    %v6004 = vrot.slane %v6003, 4
    %v6005 = vmax.f32 %v6003, %v6004
    %v6006 = vrot.slane %v6005, 2
    %v6007 = vmax.f32 %v6005, %v6006
    %v6008 = vrot.slane %v6007, 1
    %v6009 = vmax.f32 %v6007, %v6008
    %v6010 = vsel %vm5631, %v4522, -inf
    %v6011 = vrot.slane %v6010, 4
    %v6012 = vmax.f32 %v6010, %v6011
    %v6013 = vrot.slane %v6012, 2
    %v6014 = vmax.f32 %v6012, %v6013
    %v6015 = vrot.slane %v6014, 1
    %v6016 = vmax.f32 %v6014, %v6015
    %v6017 = vsel %vm5631, %v4524, -inf
    %v6018 = vrot.slane %v6017, 4
    %v6019 = vmax.f32 %v6017, %v6018
    %v6020 = vrot.slane %v6019, 2
    %v6021 = vmax.f32 %v6019, %v6020
    %v6022 = vrot.slane %v6021, 1
    %v6023 = vmax.f32 %v6021, %v6022
    %v6024 = vsel %vm5631, %v4532, -inf
    %v6025 = vrot.slane %v6024, 4
    %v6026 = vmax.f32 %v6024, %v6025
    %v6027 = vrot.slane %v6026, 2
    %v6028 = vmax.f32 %v6026, %v6027
    %v6029 = vrot.slane %v6028, 1
    %v6030 = vmax.f32 %v6028, %v6029
    %v6031 = vsel %vm5631, %v4540, -inf
    %v6032 = vrot.slane %v6031, 4
    %v6033 = vmax.f32 %v6031, %v6032
    %v6034 = vrot.slane %v6033, 2
    %v6035 = vmax.f32 %v6033, %v6034
    %v6036 = vrot.slane %v6035, 1
    %v6037 = vmax.f32 %v6035, %v6036
    %v6038 = vsel %vm5631, %v4539, -inf
    %v6039 = vrot.slane %v6038, 4
    %v6040 = vmax.f32 %v6038, %v6039
    %v6041 = vrot.slane %v6040, 2
    %v6042 = vmax.f32 %v6040, %v6041
    %v6043 = vrot.slane %v6042, 1
    %v6044 = vmax.f32 %v6042, %v6043
    %v6045 = vsel %vm5631, %v4541, -inf
    %v6046 = vrot.slane %v6045, 4
    %v6047 = vmax.f32 %v6045, %v6046
    %v6048 = vrot.slane %v6047, 2
    %v6049 = vmax.f32 %v6047, %v6048
    %v6050 = vrot.slane %v6049, 1
    %v6051 = vmax.f32 %v6049, %v6050
    %v6052 = vsel %vm5631, %v4549, -inf
    %v6053 = vrot.slane %v6052, 4
    %v6054 = vmax.f32 %v6052, %v6053
    %v6055 = vrot.slane %v6054, 2
    %v6056 = vmax.f32 %v6054, %v6055
    %v6057 = vrot.slane %v6056, 1
    %v6058 = vmax.f32 %v6056, %v6057
    %v6059 = vsel %vm5631, %v4557, -inf
    %v6060 = vrot.slane %v6059, 4
    %v6061 = vmax.f32 %v6059, %v6060
    %v6062 = vrot.slane %v6061, 2
    %v6063 = vmax.f32 %v6061, %v6062
    %v6064 = vrot.slane %v6063, 1
    %v6065 = vmax.f32 %v6063, %v6064
    %v6066 = vsel %vm5631, %v4556, -inf
    %v6067 = vrot.slane %v6066, 4
    %v6068 = vmax.f32 %v6066, %v6067
    %v6069 = vrot.slane %v6068, 2
    %v6070 = vmax.f32 %v6068, %v6069
    %v6071 = vrot.slane %v6070, 1
    %v6072 = vmax.f32 %v6070, %v6071
    %v6073 = vsel %vm5631, %v4558, -inf
    %v6074 = vrot.slane %v6073, 4
    %v6075 = vmax.f32 %v6073, %v6074
    %v6076 = vrot.slane %v6075, 2
    %v6077 = vmax.f32 %v6075, %v6076
    %v6078 = vrot.slane %v6077, 1
    %v6079 = vmax.f32 %v6077, %v6078
    %v6080 = vsel %vm5631, %v4566, -inf
    %v6081 = vrot.slane %v6080, 4
    %v6082 = vmax.f32 %v6080, %v6081
    %v6083 = vrot.slane %v6082, 2
    %v6084 = vmax.f32 %v6082, %v6083
    %v6085 = vrot.slane %v6084, 1
    %v6086 = vmax.f32 %v6084, %v6085
    %v6087 = vsel %vm5631, %v4574, -inf
    %v6088 = vrot.slane %v6087, 4
    %v6089 = vmax.f32 %v6087, %v6088
    %v6090 = vrot.slane %v6089, 2
    %v6091 = vmax.f32 %v6089, %v6090
    %v6092 = vrot.slane %v6091, 1
    %v6093 = vmax.f32 %v6091, %v6092
    %v6094 = vsel %vm5631, %v4573, -inf
    %v6095 = vrot.slane %v6094, 4
    %v6096 = vmax.f32 %v6094, %v6095
    %v6097 = vrot.slane %v6096, 2
    %v6098 = vmax.f32 %v6096, %v6097
    %v6099 = vrot.slane %v6098, 1
    %v6100 = vmax.f32 %v6098, %v6099
    %v6101 = vsel %vm5631, %v4575, -inf
    %v6102 = vrot.slane %v6101, 4
    %v6103 = vmax.f32 %v6101, %v6102
    %v6104 = vrot.slane %v6103, 2
    %v6105 = vmax.f32 %v6103, %v6104
    %v6106 = vrot.slane %v6105, 1
    %v6107 = vmax.f32 %v6105, %v6106
    %v6108 = vsel %vm5631, %v4583, -inf
    %v6109 = vrot.slane %v6108, 4
    %v6110 = vmax.f32 %v6108, %v6109
    %v6111 = vrot.slane %v6110, 2
    %v6112 = vmax.f32 %v6110, %v6111
    %v6113 = vrot.slane %v6112, 1
    %v6114 = vmax.f32 %v6112, %v6113
    %v6115 = vsel %vm5631, %v4591, -inf
    %v6116 = vrot.slane %v6115, 4
    %v6117 = vmax.f32 %v6115, %v6116
    %v6118 = vrot.slane %v6117, 2
    %v6119 = vmax.f32 %v6117, %v6118
    %v6120 = vrot.slane %v6119, 1
    %v6121 = vmax.f32 %v6119, %v6120
    %v6122 = vsel %vm5631, %v4590, -inf
    %v6123 = vrot.slane %v6122, 4
    %v6124 = vmax.f32 %v6122, %v6123
    %v6125 = vrot.slane %v6124, 2
    %v6126 = vmax.f32 %v6124, %v6125
    %v6127 = vrot.slane %v6126, 1
    %v6128 = vmax.f32 %v6126, %v6127
    %v6129 = vsel %vm5631, %v4592, -inf
    %v6130 = vrot.slane %v6129, 4
    %v6131 = vmax.f32 %v6129, %v6130
    %v6132 = vrot.slane %v6131, 2
    %v6133 = vmax.f32 %v6131, %v6132
    %v6134 = vrot.slane %v6133, 1
    %v6135 = vmax.f32 %v6133, %v6134
    %v6136 = vsel %vm5631, %v4600, -inf
    %v6137 = vrot.slane %v6136, 4
    %v6138 = vmax.f32 %v6136, %v6137
    %v6139 = vrot.slane %v6138, 2
    %v6140 = vmax.f32 %v6138, %v6139
    %v6141 = vrot.slane %v6140, 1
    %v6142 = vmax.f32 %v6140, %v6141
    %v6143 = vsel %vm5631, %v4608, -inf
    %v6144 = vrot.slane %v6143, 4
    %v6145 = vmax.f32 %v6143, %v6144
    %v6146 = vrot.slane %v6145, 2
    %v6147 = vmax.f32 %v6145, %v6146
    %v6148 = vrot.slane %v6147, 1
    %v6149 = vmax.f32 %v6147, %v6148
    %v6150 = vsel %vm5631, %v4607, -inf
    %v6151 = vrot.slane %v6150, 4
    %v6152 = vmax.f32 %v6150, %v6151
    %v6153 = vrot.slane %v6152, 2
    %v6154 = vmax.f32 %v6152, %v6153
    %v6155 = vrot.slane %v6154, 1
    %v6156 = vmax.f32 %v6154, %v6155
    %v6157 = vsel %vm5631, %v4609, -inf
    %v6158 = vrot.slane %v6157, 4
    %v6159 = vmax.f32 %v6157, %v6158
    %v6160 = vrot.slane %v6159, 2
    %v6161 = vmax.f32 %v6159, %v6160
    %v6162 = vrot.slane %v6161, 1
    %v6163 = vmax.f32 %v6161, %v6162
    %v6164 = vsel %vm5631, %v4617, -inf
    %v6165 = vrot.slane %v6164, 4
    %v6166 = vmax.f32 %v6164, %v6165
    %v6167 = vrot.slane %v6166, 2
    %v6168 = vmax.f32 %v6166, %v6167
    %v6169 = vrot.slane %v6168, 1
    %v6170 = vmax.f32 %v6168, %v6169
    %v6171 = vsel %vm5631, %v4625, -inf
    %v6172 = vrot.slane %v6171, 4
    %v6173 = vmax.f32 %v6171, %v6172
    %v6174 = vrot.slane %v6173, 2
    %v6175 = vmax.f32 %v6173, %v6174
    %v6176 = vrot.slane %v6175, 1
    %v6177 = vmax.f32 %v6175, %v6176
    %v6178 = vsel %vm5631, %v4624, -inf
    %v6179 = vrot.slane %v6178, 4
    %v6180 = vmax.f32 %v6178, %v6179
    %v6181 = vrot.slane %v6180, 2
    %v6182 = vmax.f32 %v6180, %v6181
    %v6183 = vrot.slane %v6182, 1
    %v6184 = vmax.f32 %v6182, %v6183
    %v6185 = vsel %vm5631, %v4626, -inf
    %v6186 = vrot.slane %v6185, 4
    %v6187 = vmax.f32 %v6185, %v6186
    %v6188 = vrot.slane %v6187, 2
    %v6189 = vmax.f32 %v6187, %v6188
    %v6190 = vrot.slane %v6189, 1
    %v6191 = vmax.f32 %v6189, %v6190
    %v6192 = vsel %vm5631, %v4634, -inf
    %v6193 = vrot.slane %v6192, 4
    %v6194 = vmax.f32 %v6192, %v6193
    %v6195 = vrot.slane %v6194, 2
    %v6196 = vmax.f32 %v6194, %v6195
    %v6197 = vrot.slane %v6196, 1
    %v6198 = vmax.f32 %v6196, %v6197
    %v6199 = vsel %vm5631, %v4642, -inf
    %v6200 = vrot.slane %v6199, 4
    %v6201 = vmax.f32 %v6199, %v6200
    %v6202 = vrot.slane %v6201, 2
    %v6203 = vmax.f32 %v6201, %v6202
    %v6204 = vrot.slane %v6203, 1
    %v6205 = vmax.f32 %v6203, %v6204
    %v6206 = vsel %vm5631, %v4641, -inf
    %v6207 = vrot.slane %v6206, 4
    %v6208 = vmax.f32 %v6206, %v6207
    %v6209 = vrot.slane %v6208, 2
    %v6210 = vmax.f32 %v6208, %v6209
    %v6211 = vrot.slane %v6210, 1
    %v6212 = vmax.f32 %v6210, %v6211
    %v6213 = vsel %vm5631, %v4643, -inf
    %v6214 = vrot.slane %v6213, 4
    %v6215 = vmax.f32 %v6213, %v6214
    %v6216 = vrot.slane %v6215, 2
    %v6217 = vmax.f32 %v6215, %v6216
    %v6218 = vrot.slane %v6217, 1
    %v6219 = vmax.f32 %v6217, %v6218
    %v6220 = vsel %vm5631, %v4651, -inf
    %v6221 = vrot.slane %v6220, 4
    %v6222 = vmax.f32 %v6220, %v6221
    %v6223 = vrot.slane %v6222, 2
    %v6224 = vmax.f32 %v6222, %v6223
    %v6225 = vrot.slane %v6224, 1
    %v6226 = vmax.f32 %v6224, %v6225
    %v6227 = vsel %vm5631, %v4659, -inf
    %v6228 = vrot.slane %v6227, 4
    %v6229 = vmax.f32 %v6227, %v6228
    %v6230 = vrot.slane %v6229, 2
    %v6231 = vmax.f32 %v6229, %v6230
    %v6232 = vrot.slane %v6231, 1
    %v6233 = vmax.f32 %v6231, %v6232
    %v6234 = vsel %vm5631, %v4658, -inf
    %v6235 = vrot.slane %v6234, 4
    %v6236 = vmax.f32 %v6234, %v6235
    %v6237 = vrot.slane %v6236, 2
    %v6238 = vmax.f32 %v6236, %v6237
    %v6239 = vrot.slane %v6238, 1
    %v6240 = vmax.f32 %v6238, %v6239
    %v6241 = vsel %vm5631, %v4660, -inf
    %v6242 = vrot.slane %v6241, 4
    %v6243 = vmax.f32 %v6241, %v6242
    %v6244 = vrot.slane %v6243, 2
    %v6245 = vmax.f32 %v6243, %v6244
    %v6246 = vrot.slane %v6245, 1
    %v6247 = vmax.f32 %v6245, %v6246
    %v6248 = vsel %vm5631, %v4668, -inf
    %v6249 = vrot.slane %v6248, 4
    %v6250 = vmax.f32 %v6248, %v6249
    %v6251 = vrot.slane %v6250, 2
    %v6252 = vmax.f32 %v6250, %v6251
    %v6253 = vrot.slane %v6252, 1
    %v6254 = vmax.f32 %v6252, %v6253
    %v6255 = vsel %vm5631, %v4676, -inf
    %v6256 = vrot.slane %v6255, 4
    %v6257 = vmax.f32 %v6255, %v6256
    %v6258 = vrot.slane %v6257, 2
    %v6259 = vmax.f32 %v6257, %v6258
    %v6260 = vrot.slane %v6259, 1
    %v6261 = vmax.f32 %v6259, %v6260
    %v6262 = vsel %vm5631, %v4675, -inf
    %v6263 = vrot.slane %v6262, 4
    %v6264 = vmax.f32 %v6262, %v6263
    %v6265 = vrot.slane %v6264, 2
    %v6266 = vmax.f32 %v6264, %v6265
    %v6267 = vrot.slane %v6266, 1
    %v6268 = vmax.f32 %v6266, %v6267
    %v6269 = vsel %vm5631, %v4677, -inf
    %v6270 = vrot.slane %v6269, 4
    %v6271 = vmax.f32 %v6269, %v6270
    %v6272 = vrot.slane %v6271, 2
    %v6273 = vmax.f32 %v6271, %v6272
    %v6274 = vrot.slane %v6273, 1
    %v6275 = vmax.f32 %v6273, %v6274
    %v6276 = vsel %vm5631, %v4685, -inf
    %v6277 = vrot.slane %v6276, 4
    %v6278 = vmax.f32 %v6276, %v6277
    %v6279 = vrot.slane %v6278, 2
    %v6280 = vmax.f32 %v6278, %v6279
    %v6281 = vrot.slane %v6280, 1
    %v6282 = vmax.f32 %v6280, %v6281
    %v6283 = vsel %vm5631, %v4693, -inf
    %v6284 = vrot.slane %v6283, 4
    %v6285 = vmax.f32 %v6283, %v6284
    %v6286 = vrot.slane %v6285, 2
    %v6287 = vmax.f32 %v6285, %v6286
    %v6288 = vrot.slane %v6287, 1
    %v6289 = vmax.f32 %v6287, %v6288
    %v6290 = vsel %vm5631, %v4692, -inf
    %v6291 = vrot.slane %v6290, 4
    %v6292 = vmax.f32 %v6290, %v6291
    %v6293 = vrot.slane %v6292, 2
    %v6294 = vmax.f32 %v6292, %v6293
    %v6295 = vrot.slane %v6294, 1
    %v6296 = vmax.f32 %v6294, %v6295
    %v6297 = vsel %vm5631, %v4694, -inf
    %v6298 = vrot.slane %v6297, 4
    %v6299 = vmax.f32 %v6297, %v6298
    %v6300 = vrot.slane %v6299, 2
    %v6301 = vmax.f32 %v6299, %v6300
    %v6302 = vrot.slane %v6301, 1
    %v6303 = vmax.f32 %v6301, %v6302
    %v6304 = vsel %vm5631, %v4702, -inf
    %v6305 = vrot.slane %v6304, 4
    %v6306 = vmax.f32 %v6304, %v6305
    %v6307 = vrot.slane %v6306, 2
    %v6308 = vmax.f32 %v6306, %v6307
    %v6309 = vrot.slane %v6308, 1
    %v6310 = vmax.f32 %v6308, %v6309
    %v6311 = vsel %vm5631, %v4710, -inf
    %v6312 = vrot.slane %v6311, 4
    %v6313 = vmax.f32 %v6311, %v6312
    %v6314 = vrot.slane %v6313, 2
    %v6315 = vmax.f32 %v6313, %v6314
    %v6316 = vrot.slane %v6315, 1
    %v6317 = vmax.f32 %v6315, %v6316
    %v6318 = vsel %vm5631, %v4709, -inf
    %v6319 = vrot.slane %v6318, 4
    %v6320 = vmax.f32 %v6318, %v6319
    %v6321 = vrot.slane %v6320, 2
    %v6322 = vmax.f32 %v6320, %v6321
    %v6323 = vrot.slane %v6322, 1
    %v6324 = vmax.f32 %v6322, %v6323
    %v6325 = vsel %vm5631, %v4711, -inf
    %v6326 = vrot.slane %v6325, 4
    %v6327 = vmax.f32 %v6325, %v6326
    %v6328 = vrot.slane %v6327, 2
    %v6329 = vmax.f32 %v6327, %v6328
    %v6330 = vrot.slane %v6329, 1
    %v6331 = vmax.f32 %v6329, %v6330
    %v6332 = vsel %vm5631, %v4719, -inf
    %v6333 = vrot.slane %v6332, 4
    %v6334 = vmax.f32 %v6332, %v6333
    %v6335 = vrot.slane %v6334, 2
    %v6336 = vmax.f32 %v6334, %v6335
    %v6337 = vrot.slane %v6336, 1
    %v6338 = vmax.f32 %v6336, %v6337
    %v6339 = vsel %vm5631, %v4727, -inf
    %v6340 = vrot.slane %v6339, 4
    %v6341 = vmax.f32 %v6339, %v6340
    %v6342 = vrot.slane %v6341, 2
    %v6343 = vmax.f32 %v6341, %v6342
    %v6344 = vrot.slane %v6343, 1
    %v6345 = vmax.f32 %v6343, %v6344
    %v6346 = vsel %vm5631, %v4726, -inf
    %v6347 = vrot.slane %v6346, 4
    %v6348 = vmax.f32 %v6346, %v6347
    %v6349 = vrot.slane %v6348, 2
    %v6350 = vmax.f32 %v6348, %v6349
    %v6351 = vrot.slane %v6350, 1
    %v6352 = vmax.f32 %v6350, %v6351
    %v6353 = vsel %vm5631, %v4728, -inf
    %v6354 = vrot.slane %v6353, 4
    %v6355 = vmax.f32 %v6353, %v6354
    %v6356 = vrot.slane %v6355, 2
    %v6357 = vmax.f32 %v6355, %v6356
    %v6358 = vrot.slane %v6357, 1
    %v6359 = vmax.f32 %v6357, %v6358
    %v6360 = vsel %vm5631, %v4736, -inf
    %v6361 = vrot.slane %v6360, 4
    %v6362 = vmax.f32 %v6360, %v6361
    %v6363 = vrot.slane %v6362, 2
    %v6364 = vmax.f32 %v6362, %v6363
    %v6365 = vrot.slane %v6364, 1
    %v6366 = vmax.f32 %v6364, %v6365
    %v6367 = vsel %vm5631, %v4744, -inf
    %v6368 = vrot.slane %v6367, 4
    %v6369 = vmax.f32 %v6367, %v6368
    %v6370 = vrot.slane %v6369, 2
    %v6371 = vmax.f32 %v6369, %v6370
    %v6372 = vrot.slane %v6371, 1
    %v6373 = vmax.f32 %v6371, %v6372
    %v6374 = vsel %vm5631, %v4743, -inf
    %v6375 = vrot.slane %v6374, 4
    %v6376 = vmax.f32 %v6374, %v6375
    %v6377 = vrot.slane %v6376, 2
    %v6378 = vmax.f32 %v6376, %v6377
    %v6379 = vrot.slane %v6378, 1
    %v6380 = vmax.f32 %v6378, %v6379
    %v6381 = vsel %vm5631, %v4745, -inf
    %v6382 = vrot.slane %v6381, 4
    %v6383 = vmax.f32 %v6381, %v6382
    %v6384 = vrot.slane %v6383, 2
    %v6385 = vmax.f32 %v6383, %v6384
    %v6386 = vrot.slane %v6385, 1
    %v6387 = vmax.f32 %v6385, %v6386
    %v6388 = vsel %vm5631, %v4753, -inf
    %v6389 = vrot.slane %v6388, 4
    %v6390 = vmax.f32 %v6388, %v6389
    %v6391 = vrot.slane %v6390, 2
    %v6392 = vmax.f32 %v6390, %v6391
    %v6393 = vrot.slane %v6392, 1
    %v6394 = vmax.f32 %v6392, %v6393
    %v6395 = vsel %vm5631, %v4761, -inf
    %v6396 = vrot.slane %v6395, 4
    %v6397 = vmax.f32 %v6395, %v6396
    %v6398 = vrot.slane %v6397, 2
    %v6399 = vmax.f32 %v6397, %v6398
    %v6400 = vrot.slane %v6399, 1
    %v6401 = vmax.f32 %v6399, %v6400
    %v6402 = vsel %vm5631, %v4760, -inf
    %v6403 = vrot.slane %v6402, 4
    %v6404 = vmax.f32 %v6402, %v6403
    %v6405 = vrot.slane %v6404, 2
    %v6406 = vmax.f32 %v6404, %v6405
    %v6407 = vrot.slane %v6406, 1
    %v6408 = vmax.f32 %v6406, %v6407
    %v6409 = vsel %vm5631, %v4762, -inf
    %v6410 = vrot.slane %v6409, 4
    %v6411 = vmax.f32 %v6409, %v6410
    %v6412 = vrot.slane %v6411, 2
    %v6413 = vmax.f32 %v6411, %v6412
    %v6414 = vrot.slane %v6413, 1
    %v6415 = vmax.f32 %v6413, %v6414
    %v6416 = vsel %vm5631, %v4770, -inf
    %v6417 = vrot.slane %v6416, 4
    %v6418 = vmax.f32 %v6416, %v6417
    %v6419 = vrot.slane %v6418, 2
    %v6420 = vmax.f32 %v6418, %v6419
    %v6421 = vrot.slane %v6420, 1
    %v6422 = vmax.f32 %v6420, %v6421
    %v6423 = vsel %vm5631, %v4778, -inf
    %v6424 = vrot.slane %v6423, 4
    %v6425 = vmax.f32 %v6423, %v6424
    %v6426 = vrot.slane %v6425, 2
    %v6427 = vmax.f32 %v6425, %v6426
    %v6428 = vrot.slane %v6427, 1
    %v6429 = vmax.f32 %v6427, %v6428
    %v6430 = vsel %vm5631, %v4777, -inf
    %v6431 = vrot.slane %v6430, 4
    %v6432 = vmax.f32 %v6430, %v6431
    %v6433 = vrot.slane %v6432, 2
    %v6434 = vmax.f32 %v6432, %v6433
    %v6435 = vrot.slane %v6434, 1
    %v6436 = vmax.f32 %v6434, %v6435
    %v6437 = vsel %vm5631, %v4779, -inf
    %v6438 = vrot.slane %v6437, 4
    %v6439 = vmax.f32 %v6437, %v6438
    %v6440 = vrot.slane %v6439, 2
    %v6441 = vmax.f32 %v6439, %v6440
    %v6442 = vrot.slane %v6441, 1
    %v6443 = vmax.f32 %v6441, %v6442
    %v6444 = vsel %vm5631, %v4787, -inf
    %v6445 = vrot.slane %v6444, 4
    %v6446 = vmax.f32 %v6444, %v6445
    %v6447 = vrot.slane %v6446, 2
    %v6448 = vmax.f32 %v6446, %v6447
    %v6449 = vrot.slane %v6448, 1
    %v6450 = vmax.f32 %v6448, %v6449
    %v6451 = vsel %vm5631, %v4795, -inf
    %v6452 = vrot.slane %v6451, 4
    %v6453 = vmax.f32 %v6451, %v6452
    %v6454 = vrot.slane %v6453, 2
    %v6455 = vmax.f32 %v6453, %v6454
    %v6456 = vrot.slane %v6455, 1
    %v6457 = vmax.f32 %v6455, %v6456
    %v6458 = vsel %vm5631, %v4794, -inf
    %v6459 = vrot.slane %v6458, 4
    %v6460 = vmax.f32 %v6458, %v6459
    %v6461 = vrot.slane %v6460, 2
    %v6462 = vmax.f32 %v6460, %v6461
    %v6463 = vrot.slane %v6462, 1
    %v6464 = vmax.f32 %v6462, %v6463
    %v6465 = vsel %vm5631, %v4796, -inf
    %v6466 = vrot.slane %v6465, 4
    %v6467 = vmax.f32 %v6465, %v6466
    %v6468 = vrot.slane %v6467, 2
    %v6469 = vmax.f32 %v6467, %v6468
    %v6470 = vrot.slane %v6469, 1
    %v6471 = vmax.f32 %v6469, %v6470
    %v6472 = vsel %vm5631, %v4804, -inf
    %v6473 = vrot.slane %v6472, 4
    %v6474 = vmax.f32 %v6472, %v6473
    %v6475 = vrot.slane %v6474, 2
    %v6476 = vmax.f32 %v6474, %v6475
    %v6477 = vrot.slane %v6476, 1
    %v6478 = vmax.f32 %v6476, %v6477
    %v6479 = vsel %vm5631, %v4812, -inf
    %v6480 = vrot.slane %v6479, 4
    %v6481 = vmax.f32 %v6479, %v6480
    %v6482 = vrot.slane %v6481, 2
    %v6483 = vmax.f32 %v6481, %v6482
    %v6484 = vrot.slane %v6483, 1
    %v6485 = vmax.f32 %v6483, %v6484
    %v6486 = vsel %vm5631, %v4811, -inf
    %v6487 = vrot.slane %v6486, 4
    %v6488 = vmax.f32 %v6486, %v6487
    %v6489 = vrot.slane %v6488, 2
    %v6490 = vmax.f32 %v6488, %v6489
    %v6491 = vrot.slane %v6490, 1
    %v6492 = vmax.f32 %v6490, %v6491
    %v6493 = vsel %vm5631, %v4813, -inf
    %v6494 = vrot.slane %v6493, 4
    %v6495 = vmax.f32 %v6493, %v6494
    %v6496 = vrot.slane %v6495, 2
    %v6497 = vmax.f32 %v6495, %v6496
    %v6498 = vrot.slane %v6497, 1
    %v6499 = vmax.f32 %v6497, %v6498
    %v6500 = vsel %vm5631, %v4821, -inf
    %v6501 = vrot.slane %v6500, 4
    %v6502 = vmax.f32 %v6500, %v6501
    %v6503 = vrot.slane %v6502, 2
    %v6504 = vmax.f32 %v6502, %v6503
    %v6505 = vrot.slane %v6504, 1
    %v6506 = vmax.f32 %v6504, %v6505
    %v6507 = vsel %vm5631, %v4829, -inf
    %v6508 = vrot.slane %v6507, 4
    %v6509 = vmax.f32 %v6507, %v6508
    %v6510 = vrot.slane %v6509, 2
    %v6511 = vmax.f32 %v6509, %v6510
    %v6512 = vrot.slane %v6511, 1
    %v6513 = vmax.f32 %v6511, %v6512
    %v6514 = vsel %vm5631, %v4828, -inf
    %v6515 = vrot.slane %v6514, 4
    %v6516 = vmax.f32 %v6514, %v6515
    %v6517 = vrot.slane %v6516, 2
    %v6518 = vmax.f32 %v6516, %v6517
    %v6519 = vrot.slane %v6518, 1
    %v6520 = vmax.f32 %v6518, %v6519
    %v6521 = vsel %vm5631, %v4830, -inf
    %v6522 = vrot.slane %v6521, 4
    %v6523 = vmax.f32 %v6521, %v6522
    %v6524 = vrot.slane %v6523, 2
    %v6525 = vmax.f32 %v6523, %v6524
    %v6526 = vrot.slane %v6525, 1
    %v6527 = vmax.f32 %v6525, %v6526
    %v6528 = vsel %vm5631, %v4838, -inf
    %v6529 = vrot.slane %v6528, 4
    %v6530 = vmax.f32 %v6528, %v6529
    %v6531 = vrot.slane %v6530, 2
    %v6532 = vmax.f32 %v6530, %v6531
    %v6533 = vrot.slane %v6532, 1
    %v6534 = vmax.f32 %v6532, %v6533
    %v6535 = vsel %vm5631, %v4846, -inf
    %v6536 = vrot.slane %v6535, 4
    %v6537 = vmax.f32 %v6535, %v6536
    %v6538 = vrot.slane %v6537, 2
    %v6539 = vmax.f32 %v6537, %v6538
    %v6540 = vrot.slane %v6539, 1
    %v6541 = vmax.f32 %v6539, %v6540
    %v6542 = vsel %vm5631, %v4845, -inf
    %v6543 = vrot.slane %v6542, 4
    %v6544 = vmax.f32 %v6542, %v6543
    %v6545 = vrot.slane %v6544, 2
    %v6546 = vmax.f32 %v6544, %v6545
    %v6547 = vrot.slane %v6546, 1
    %v6548 = vmax.f32 %v6546, %v6547
    %v6549 = vsel %vm5631, %v4847, -inf
    %v6550 = vrot.slane %v6549, 4
    %v6551 = vmax.f32 %v6549, %v6550
    %v6552 = vrot.slane %v6551, 2
    %v6553 = vmax.f32 %v6551, %v6552
    %v6554 = vrot.slane %v6553, 1
    %v6555 = vmax.f32 %v6553, %v6554
    %v6556 = vsel %vm5631, %v4855, -inf
    %v6557 = vrot.slane %v6556, 4
    %v6558 = vmax.f32 %v6556, %v6557
    %v6559 = vrot.slane %v6558, 2
    %v6560 = vmax.f32 %v6558, %v6559
    %v6561 = vrot.slane %v6560, 1
    %v6562 = vmax.f32 %v6560, %v6561
    %v6563 = vsel %vm5631, %v4863, -inf
    %v6564 = vrot.slane %v6563, 4
    %v6565 = vmax.f32 %v6563, %v6564
    %v6566 = vrot.slane %v6565, 2
    %v6567 = vmax.f32 %v6565, %v6566
    %v6568 = vrot.slane %v6567, 1
    %v6569 = vmax.f32 %v6567, %v6568
    %v6570 = vsel %vm5631, %v4862, -inf
    %v6571 = vrot.slane %v6570, 4
    %v6572 = vmax.f32 %v6570, %v6571
    %v6573 = vrot.slane %v6572, 2
    %v6574 = vmax.f32 %v6572, %v6573
    %v6575 = vrot.slane %v6574, 1
    %v6576 = vmax.f32 %v6574, %v6575
    %v6577 = vsel %vm5631, %v4864, -inf
    %v6578 = vrot.slane %v6577, 4
    %v6579 = vmax.f32 %v6577, %v6578
    %v6580 = vrot.slane %v6579, 2
    %v6581 = vmax.f32 %v6579, %v6580
    %v6582 = vrot.slane %v6581, 1
    %v6583 = vmax.f32 %v6581, %v6582
    %v6584 = vsel %vm5631, %v4872, -inf
    %v6585 = vrot.slane %v6584, 4
    %v6586 = vmax.f32 %v6584, %v6585
    %v6587 = vrot.slane %v6586, 2
    %v6588 = vmax.f32 %v6586, %v6587
    %v6589 = vrot.slane %v6588, 1
    %v6590 = vmax.f32 %v6588, %v6589
    %v6591 = vsel %vm5631, %v4880, -inf
    %v6592 = vrot.slane %v6591, 4
    %v6593 = vmax.f32 %v6591, %v6592
    %v6594 = vrot.slane %v6593, 2
    %v6595 = vmax.f32 %v6593, %v6594
    %v6596 = vrot.slane %v6595, 1
    %v6597 = vmax.f32 %v6595, %v6596
    %v6598 = vsel %vm5631, %v4879, -inf
    %v6599 = vrot.slane %v6598, 4
    %v6600 = vmax.f32 %v6598, %v6599
    %v6601 = vrot.slane %v6600, 2
    %v6602 = vmax.f32 %v6600, %v6601
    %v6603 = vrot.slane %v6602, 1
    %v6604 = vmax.f32 %v6602, %v6603
    %v6605 = vsel %vm5631, %v4881, -inf
    %v6606 = vrot.slane %v6605, 4
    %v6607 = vmax.f32 %v6605, %v6606
    %v6608 = vrot.slane %v6607, 2
    %v6609 = vmax.f32 %v6607, %v6608
    %v6610 = vrot.slane %v6609, 1
    %v6611 = vmax.f32 %v6609, %v6610
    %v6612 = vsel %vm5631, %v4889, -inf
    %v6613 = vrot.slane %v6612, 4
    %v6614 = vmax.f32 %v6612, %v6613
    %v6615 = vrot.slane %v6614, 2
    %v6616 = vmax.f32 %v6614, %v6615
    %v6617 = vrot.slane %v6616, 1
    %v6618 = vmax.f32 %v6616, %v6617
    %v6619 = vsel %vm5631, %v4897, -inf
    %v6620 = vrot.slane %v6619, 4
    %v6621 = vmax.f32 %v6619, %v6620
    %v6622 = vrot.slane %v6621, 2
    %v6623 = vmax.f32 %v6621, %v6622
    %v6624 = vrot.slane %v6623, 1
    %v6625 = vmax.f32 %v6623, %v6624
    %v6626 = vsel %vm5631, %v4896, -inf
    %v6627 = vrot.slane %v6626, 4
    %v6628 = vmax.f32 %v6626, %v6627
    %v6629 = vrot.slane %v6628, 2
    %v6630 = vmax.f32 %v6628, %v6629
    %v6631 = vrot.slane %v6630, 1
    %v6632 = vmax.f32 %v6630, %v6631
    %v6633 = vsel %vm5631, %v4898, -inf
    %v6634 = vrot.slane %v6633, 4
    %v6635 = vmax.f32 %v6633, %v6634
    %v6636 = vrot.slane %v6635, 2
    %v6637 = vmax.f32 %v6635, %v6636
    %v6638 = vrot.slane %v6637, 1
    %v6639 = vmax.f32 %v6637, %v6638
    %v6640 = vsel %vm5631, %v4906, -inf
    %v6641 = vrot.slane %v6640, 4
    %v6642 = vmax.f32 %v6640, %v6641
    %v6643 = vrot.slane %v6642, 2
    %v6644 = vmax.f32 %v6642, %v6643
    %v6645 = vrot.slane %v6644, 1
    %v6646 = vmax.f32 %v6644, %v6645
    %v6647 = vsel %vm5631, %v4914, -inf
    %v6648 = vrot.slane %v6647, 4
    %v6649 = vmax.f32 %v6647, %v6648
    %v6650 = vrot.slane %v6649, 2
    %v6651 = vmax.f32 %v6649, %v6650
    %v6652 = vrot.slane %v6651, 1
    %v6653 = vmax.f32 %v6651, %v6652
    %v6654 = vsel %vm5631, %v4913, -inf
    %v6655 = vrot.slane %v6654, 4
    %v6656 = vmax.f32 %v6654, %v6655
    %v6657 = vrot.slane %v6656, 2
    %v6658 = vmax.f32 %v6656, %v6657
    %v6659 = vrot.slane %v6658, 1
    %v6660 = vmax.f32 %v6658, %v6659
    %v6661 = vsel %vm5631, %v4915, -inf
    %v6662 = vrot.slane %v6661, 4
    %v6663 = vmax.f32 %v6661, %v6662
    %v6664 = vrot.slane %v6663, 2
    %v6665 = vmax.f32 %v6663, %v6664
    %v6666 = vrot.slane %v6665, 1
    %v6667 = vmax.f32 %v6665, %v6666
    %v6668 = vsel %vm5631, %v4923, -inf
    %v6669 = vrot.slane %v6668, 4
    %v6670 = vmax.f32 %v6668, %v6669
    %v6671 = vrot.slane %v6670, 2
    %v6672 = vmax.f32 %v6670, %v6671
    %v6673 = vrot.slane %v6672, 1
    %v6674 = vmax.f32 %v6672, %v6673
    %v6675 = vsel %vm5631, %v4931, -inf
    %v6676 = vrot.slane %v6675, 4
    %v6677 = vmax.f32 %v6675, %v6676
    %v6678 = vrot.slane %v6677, 2
    %v6679 = vmax.f32 %v6677, %v6678
    %v6680 = vrot.slane %v6679, 1
    %v6681 = vmax.f32 %v6679, %v6680
    %v6682 = vsel %vm5631, %v4930, -inf
    %v6683 = vrot.slane %v6682, 4
    %v6684 = vmax.f32 %v6682, %v6683
    %v6685 = vrot.slane %v6684, 2
    %v6686 = vmax.f32 %v6684, %v6685
    %v6687 = vrot.slane %v6686, 1
    %v6688 = vmax.f32 %v6686, %v6687
    %v6689 = vsel %vm5631, %v4932, -inf
    %v6690 = vrot.slane %v6689, 4
    %v6691 = vmax.f32 %v6689, %v6690
    %v6692 = vrot.slane %v6691, 2
    %v6693 = vmax.f32 %v6691, %v6692
    %v6694 = vrot.slane %v6693, 1
    %v6695 = vmax.f32 %v6693, %v6694
    %v6696 = vsel %vm5631, %v4940, -inf
    %v6697 = vrot.slane %v6696, 4
    %v6698 = vmax.f32 %v6696, %v6697
    %v6699 = vrot.slane %v6698, 2
    %v6700 = vmax.f32 %v6698, %v6699
    %v6701 = vrot.slane %v6700, 1
    %v6702 = vmax.f32 %v6700, %v6701
    %v6703 = vsel %vm5631, %v4948, -inf
    %v6704 = vrot.slane %v6703, 4
    %v6705 = vmax.f32 %v6703, %v6704
    %v6706 = vrot.slane %v6705, 2
    %v6707 = vmax.f32 %v6705, %v6706
    %v6708 = vrot.slane %v6707, 1
    %v6709 = vmax.f32 %v6707, %v6708
    %v6710 = vsel %vm5631, %v4947, -inf
    %v6711 = vrot.slane %v6710, 4
    %v6712 = vmax.f32 %v6710, %v6711
    %v6713 = vrot.slane %v6712, 2
    %v6714 = vmax.f32 %v6712, %v6713
    %v6715 = vrot.slane %v6714, 1
    %v6716 = vmax.f32 %v6714, %v6715
    %v6717 = vsel %vm5631, %v4949, -inf
    %v6718 = vrot.slane %v6717, 4
    %v6719 = vmax.f32 %v6717, %v6718
    %v6720 = vrot.slane %v6719, 2
    %v6721 = vmax.f32 %v6719, %v6720
    %v6722 = vrot.slane %v6721, 1
    %v6723 = vmax.f32 %v6721, %v6722
    %v6724 = vsel %vm5631, %v4957, -inf
    %v6725 = vrot.slane %v6724, 4
    %v6726 = vmax.f32 %v6724, %v6725
    %v6727 = vrot.slane %v6726, 2
    %v6728 = vmax.f32 %v6726, %v6727
    %v6729 = vrot.slane %v6728, 1
    %v6730 = vmax.f32 %v6728, %v6729
    %v6731 = vsel %vm5631, %v4965, -inf
    %v6732 = vrot.slane %v6731, 4
    %v6733 = vmax.f32 %v6731, %v6732
    %v6734 = vrot.slane %v6733, 2
    %v6735 = vmax.f32 %v6733, %v6734
    %v6736 = vrot.slane %v6735, 1
    %v6737 = vmax.f32 %v6735, %v6736
    %v6738 = vsel %vm5631, %v4964, -inf
    %v6739 = vrot.slane %v6738, 4
    %v6740 = vmax.f32 %v6738, %v6739
    %v6741 = vrot.slane %v6740, 2
    %v6742 = vmax.f32 %v6740, %v6741
    %v6743 = vrot.slane %v6742, 1
    %v6744 = vmax.f32 %v6742, %v6743
    %v6745 = vsel %vm5631, %v4966, -inf
    %v6746 = vrot.slane %v6745, 4
    %v6747 = vmax.f32 %v6745, %v6746
    %v6748 = vrot.slane %v6747, 2
    %v6749 = vmax.f32 %v6747, %v6748
    %v6750 = vrot.slane %v6749, 1
    %v6751 = vmax.f32 %v6749, %v6750
    %v6752 = vsel %vm5631, %v4974, -inf
    %v6753 = vrot.slane %v6752, 4
    %v6754 = vmax.f32 %v6752, %v6753
    %v6755 = vrot.slane %v6754, 2
    %v6756 = vmax.f32 %v6754, %v6755
    %v6757 = vrot.slane %v6756, 1
    %v6758 = vmax.f32 %v6756, %v6757
    %v6759 = vsel %vm5631, %v4982, -inf
    %v6760 = vrot.slane %v6759, 4
    %v6761 = vmax.f32 %v6759, %v6760
    %v6762 = vrot.slane %v6761, 2
    %v6763 = vmax.f32 %v6761, %v6762
    %v6764 = vrot.slane %v6763, 1
    %v6765 = vmax.f32 %v6763, %v6764
    %v6766 = vsel %vm5631, %v4981, -inf
    %v6767 = vrot.slane %v6766, 4
    %v6768 = vmax.f32 %v6766, %v6767
    %v6769 = vrot.slane %v6768, 2
    %v6770 = vmax.f32 %v6768, %v6769
    %v6771 = vrot.slane %v6770, 1
    %v6772 = vmax.f32 %v6770, %v6771
    %v6773 = vsel %vm5631, %v4983, -inf
    %v6774 = vrot.slane %v6773, 4
    %v6775 = vmax.f32 %v6773, %v6774
    %v6776 = vrot.slane %v6775, 2
    %v6777 = vmax.f32 %v6775, %v6776
    %v6778 = vrot.slane %v6777, 1
    %v6779 = vmax.f32 %v6777, %v6778
    %v6780 = vsel %vm5631, %v4991, -inf
    %v6781 = vrot.slane %v6780, 4
    %v6782 = vmax.f32 %v6780, %v6781
    %v6783 = vrot.slane %v6782, 2
    %v6784 = vmax.f32 %v6782, %v6783
    %v6785 = vrot.slane %v6784, 1
    %v6786 = vmax.f32 %v6784, %v6785
    %v6787 = vsel %vm5631, %v4999, -inf
    %v6788 = vrot.slane %v6787, 4
    %v6789 = vmax.f32 %v6787, %v6788
    %v6790 = vrot.slane %v6789, 2
    %v6791 = vmax.f32 %v6789, %v6790
    %v6792 = vrot.slane %v6791, 1
    %v6793 = vmax.f32 %v6791, %v6792
    %v6794 = vsel %vm5631, %v4998, -inf
    %v6795 = vrot.slane %v6794, 4
    %v6796 = vmax.f32 %v6794, %v6795
    %v6797 = vrot.slane %v6796, 2
    %v6798 = vmax.f32 %v6796, %v6797
    %v6799 = vrot.slane %v6798, 1
    %v6800 = vmax.f32 %v6798, %v6799
    %v6801 = vsel %vm5631, %v5000, -inf
    %v6802 = vrot.slane %v6801, 4
    %v6803 = vmax.f32 %v6801, %v6802
    %v6804 = vrot.slane %v6803, 2
    %v6805 = vmax.f32 %v6803, %v6804
    %v6806 = vrot.slane %v6805, 1
    %v6807 = vmax.f32 %v6805, %v6806
    %v6808 = vsel %vm5631, %v5008, -inf
    %v6809 = vrot.slane %v6808, 4
    %v6810 = vmax.f32 %v6808, %v6809
    %v6811 = vrot.slane %v6810, 2
    %v6812 = vmax.f32 %v6810, %v6811
    %v6813 = vrot.slane %v6812, 1
    %v6814 = vmax.f32 %v6812, %v6813
    %v6815 = vsel %vm5631, %v5016, -inf
    %v6816 = vrot.slane %v6815, 4
    %v6817 = vmax.f32 %v6815, %v6816
    %v6818 = vrot.slane %v6817, 2
    %v6819 = vmax.f32 %v6817, %v6818
    %v6820 = vrot.slane %v6819, 1
    %v6821 = vmax.f32 %v6819, %v6820
    %v6822 = vsel %vm5631, %v5015, -inf
    %v6823 = vrot.slane %v6822, 4
    %v6824 = vmax.f32 %v6822, %v6823
    %v6825 = vrot.slane %v6824, 2
    %v6826 = vmax.f32 %v6824, %v6825
    %v6827 = vrot.slane %v6826, 1
    %v6828 = vmax.f32 %v6826, %v6827
    %v6829 = vsel %vm5631, %v5017, -inf
    %v6830 = vrot.slane %v6829, 4
    %v6831 = vmax.f32 %v6829, %v6830
    %v6832 = vrot.slane %v6831, 2
    %v6833 = vmax.f32 %v6831, %v6832
    %v6834 = vrot.slane %v6833, 1
    %v6835 = vmax.f32 %v6833, %v6834
    %v6836 = vsel %vm5631, %v5025, -inf
    %v6837 = vrot.slane %v6836, 4
    %v6838 = vmax.f32 %v6836, %v6837
    %v6839 = vrot.slane %v6838, 2
    %v6840 = vmax.f32 %v6838, %v6839
    %v6841 = vrot.slane %v6840, 1
    %v6842 = vmax.f32 %v6840, %v6841
    %v6843 = vsel %vm5631, %v5033, -inf
    %v6844 = vrot.slane %v6843, 4
    %v6845 = vmax.f32 %v6843, %v6844
    %v6846 = vrot.slane %v6845, 2
    %v6847 = vmax.f32 %v6845, %v6846
    %v6848 = vrot.slane %v6847, 1
    %v6849 = vmax.f32 %v6847, %v6848
    %v6850 = vsel %vm5631, %v5032, -inf
    %v6851 = vrot.slane %v6850, 4
    %v6852 = vmax.f32 %v6850, %v6851
    %v6853 = vrot.slane %v6852, 2
    %v6854 = vmax.f32 %v6852, %v6853
    %v6855 = vrot.slane %v6854, 1
    %v6856 = vmax.f32 %v6854, %v6855
    %v6857 = vsel %vm5631, %v5034, -inf
    %v6858 = vrot.slane %v6857, 4
    %v6859 = vmax.f32 %v6857, %v6858
    %v6860 = vrot.slane %v6859, 2
    %v6861 = vmax.f32 %v6859, %v6860
    %v6862 = vrot.slane %v6861, 1
    %v6863 = vmax.f32 %v6861, %v6862
    %v6864 = vsel %vm5631, %v5042, -inf
    %v6865 = vrot.slane %v6864, 4
    %v6866 = vmax.f32 %v6864, %v6865
    %v6867 = vrot.slane %v6866, 2
    %v6868 = vmax.f32 %v6866, %v6867
    %v6869 = vrot.slane %v6868, 1
    %v6870 = vmax.f32 %v6868, %v6869
    %v6871 = vsel %vm5631, %v5050, -inf
    %v6872 = vrot.slane %v6871, 4
    %v6873 = vmax.f32 %v6871, %v6872
    %v6874 = vrot.slane %v6873, 2
    %v6875 = vmax.f32 %v6873, %v6874
    %v6876 = vrot.slane %v6875, 1
    %v6877 = vmax.f32 %v6875, %v6876
    %v6878 = vsel %vm5631, %v5049, -inf
    %v6879 = vrot.slane %v6878, 4
    %v6880 = vmax.f32 %v6878, %v6879
    %v6881 = vrot.slane %v6880, 2
    %v6882 = vmax.f32 %v6880, %v6881
    %v6883 = vrot.slane %v6882, 1
    %v6884 = vmax.f32 %v6882, %v6883
    %v6885 = vsel %vm5631, %v5051, -inf
    %v6886 = vrot.slane %v6885, 4
    %v6887 = vmax.f32 %v6885, %v6886
    %v6888 = vrot.slane %v6887, 2
    %v6889 = vmax.f32 %v6887, %v6888
    %v6890 = vrot.slane %v6889, 1
    %v6891 = vmax.f32 %v6889, %v6890
    %v6892 = vsel %vm5631, %v5059, -inf
    %v6893 = vrot.slane %v6892, 4
    %v6894 = vmax.f32 %v6892, %v6893
    %v6895 = vrot.slane %v6894, 2
    %v6896 = vmax.f32 %v6894, %v6895
    %v6897 = vrot.slane %v6896, 1
    %v6898 = vmax.f32 %v6896, %v6897
    %v6899 = vsel %vm5631, %v5067, -inf
    %v6900 = vrot.slane %v6899, 4
    %v6901 = vmax.f32 %v6899, %v6900
    %v6902 = vrot.slane %v6901, 2
    %v6903 = vmax.f32 %v6901, %v6902
    %v6904 = vrot.slane %v6903, 1
    %v6905 = vmax.f32 %v6903, %v6904
    %v6906 = vsel %vm5631, %v5066, -inf
    %v6907 = vrot.slane %v6906, 4
    %v6908 = vmax.f32 %v6906, %v6907
    %v6909 = vrot.slane %v6908, 2
    %v6910 = vmax.f32 %v6908, %v6909
    %v6911 = vrot.slane %v6910, 1
    %v6912 = vmax.f32 %v6910, %v6911
    %v6913 = vsel %vm5631, %v5068, -inf
    %v6914 = vrot.slane %v6913, 4
    %v6915 = vmax.f32 %v6913, %v6914
    %v6916 = vrot.slane %v6915, 2
    %v6917 = vmax.f32 %v6915, %v6916
    %v6918 = vrot.slane %v6917, 1
    %v6919 = vmax.f32 %v6917, %v6918
    %v6920 = vsel %vm5631, %v5076, -inf
    %v6921 = vrot.slane %v6920, 4
    %v6922 = vmax.f32 %v6920, %v6921
    %v6923 = vrot.slane %v6922, 2
    %v6924 = vmax.f32 %v6922, %v6923
    %v6925 = vrot.slane %v6924, 1
    %v6926 = vmax.f32 %v6924, %v6925
    %v6927 = vsel %vm5631, %v5084, -inf
    %v6928 = vrot.slane %v6927, 4
    %v6929 = vmax.f32 %v6927, %v6928
    %v6930 = vrot.slane %v6929, 2
    %v6931 = vmax.f32 %v6929, %v6930
    %v6932 = vrot.slane %v6931, 1
    %v6933 = vmax.f32 %v6931, %v6932
    %v6934 = vsel %vm5631, %v5083, -inf
    %v6935 = vrot.slane %v6934, 4
    %v6936 = vmax.f32 %v6934, %v6935
    %v6937 = vrot.slane %v6936, 2
    %v6938 = vmax.f32 %v6936, %v6937
    %v6939 = vrot.slane %v6938, 1
    %v6940 = vmax.f32 %v6938, %v6939
    %v6941 = vsel %vm5631, %v5085, -inf
    %v6942 = vrot.slane %v6941, 4
    %v6943 = vmax.f32 %v6941, %v6942
    %v6944 = vrot.slane %v6943, 2
    %v6945 = vmax.f32 %v6943, %v6944
    %v6946 = vrot.slane %v6945, 1
    %v6947 = vmax.f32 %v6945, %v6946
    %v6948 = vsel %vm5631, %v5093, -inf
    %v6949 = vrot.slane %v6948, 4
    %v6950 = vmax.f32 %v6948, %v6949
    %v6951 = vrot.slane %v6950, 2
    %v6952 = vmax.f32 %v6950, %v6951
    %v6953 = vrot.slane %v6952, 1
    %v6954 = vmax.f32 %v6952, %v6953
    %v6955 = vsel %vm5631, %v5101, -inf
    %v6956 = vrot.slane %v6955, 4
    %v6957 = vmax.f32 %v6955, %v6956
    %v6958 = vrot.slane %v6957, 2
    %v6959 = vmax.f32 %v6957, %v6958
    %v6960 = vrot.slane %v6959, 1
    %v6961 = vmax.f32 %v6959, %v6960
    %v6962 = vsel %vm5631, %v5100, -inf
    %v6963 = vrot.slane %v6962, 4
    %v6964 = vmax.f32 %v6962, %v6963
    %v6965 = vrot.slane %v6964, 2
    %v6966 = vmax.f32 %v6964, %v6965
    %v6967 = vrot.slane %v6966, 1
    %v6968 = vmax.f32 %v6966, %v6967
    %v6969 = vsel %vm5631, %v5102, -inf
    %v6970 = vrot.slane %v6969, 4
    %v6971 = vmax.f32 %v6969, %v6970
    %v6972 = vrot.slane %v6971, 2
    %v6973 = vmax.f32 %v6971, %v6972
    %v6974 = vrot.slane %v6973, 1
    %v6975 = vmax.f32 %v6973, %v6974
    %v6976 = vsel %vm5631, %v5110, -inf
    %v6977 = vrot.slane %v6976, 4
    %v6978 = vmax.f32 %v6976, %v6977
    %v6979 = vrot.slane %v6978, 2
    %v6980 = vmax.f32 %v6978, %v6979
    %v6981 = vrot.slane %v6980, 1
    %v6982 = vmax.f32 %v6980, %v6981
    %v6983 = vsel %vm5631, %v5118, -inf
    %v6984 = vrot.slane %v6983, 4
    %v6985 = vmax.f32 %v6983, %v6984
    %v6986 = vrot.slane %v6985, 2
    %v6987 = vmax.f32 %v6985, %v6986
    %v6988 = vrot.slane %v6987, 1
    %v6989 = vmax.f32 %v6987, %v6988
    %v6990 = vsel %vm5631, %v5117, -inf
    %v6991 = vrot.slane %v6990, 4
    %v6992 = vmax.f32 %v6990, %v6991
    %v6993 = vrot.slane %v6992, 2
    %v6994 = vmax.f32 %v6992, %v6993
    %v6995 = vrot.slane %v6994, 1
    %v6996 = vmax.f32 %v6994, %v6995
    %v6997 = vsel %vm5631, %v5119, -inf
    %v6998 = vrot.slane %v6997, 4
    %v6999 = vmax.f32 %v6997, %v6998
    %v7000 = vrot.slane %v6999, 2
    %v7001 = vmax.f32 %v6999, %v7000
    %v7002 = vrot.slane %v7001, 1
    %v7003 = vmax.f32 %v7001, %v7002
    %v7004 = vsel %vm5631, %v5127, -inf
    %v7005 = vrot.slane %v7004, 4
    %v7006 = vmax.f32 %v7004, %v7005
    %v7007 = vrot.slane %v7006, 2
    %v7008 = vmax.f32 %v7006, %v7007
    %v7009 = vrot.slane %v7008, 1
    %v7010 = vmax.f32 %v7008, %v7009
    %v7011 = vsel %vm5631, %v5135, -inf
    %v7012 = vrot.slane %v7011, 4
    %v7013 = vmax.f32 %v7011, %v7012
    %v7014 = vrot.slane %v7013, 2
    %v7015 = vmax.f32 %v7013, %v7014
    %v7016 = vrot.slane %v7015, 1
    %v7017 = vmax.f32 %v7015, %v7016
    %v7018 = vsel %vm5631, %v5134, -inf
    %v7019 = vrot.slane %v7018, 4
    %v7020 = vmax.f32 %v7018, %v7019
    %v7021 = vrot.slane %v7020, 2
    %v7022 = vmax.f32 %v7020, %v7021
    %v7023 = vrot.slane %v7022, 1
    %v7024 = vmax.f32 %v7022, %v7023
    %v7025 = vsel %vm5631, %v5136, -inf
    %v7026 = vrot.slane %v7025, 4
    %v7027 = vmax.f32 %v7025, %v7026
    %v7028 = vrot.slane %v7027, 2
    %v7029 = vmax.f32 %v7027, %v7028
    %v7030 = vrot.slane %v7029, 1
    %v7031 = vmax.f32 %v7029, %v7030
    %v7032 = vsel %vm5631, %v5144, -inf
    %v7033 = vrot.slane %v7032, 4
    %v7034 = vmax.f32 %v7032, %v7033
    %v7035 = vrot.slane %v7034, 2
    %v7036 = vmax.f32 %v7034, %v7035
    %v7037 = vrot.slane %v7036, 1
    %v7038 = vmax.f32 %v7036, %v7037
    %v7039 = vsel %vm5631, %v5152, -inf
    %v7040 = vrot.slane %v7039, 4
    %v7041 = vmax.f32 %v7039, %v7040
    %v7042 = vrot.slane %v7041, 2
    %v7043 = vmax.f32 %v7041, %v7042
    %v7044 = vrot.slane %v7043, 1
    %v7045 = vmax.f32 %v7043, %v7044
    %v7046 = vsel %vm5631, %v5151, -inf
    %v7047 = vrot.slane %v7046, 4
    %v7048 = vmax.f32 %v7046, %v7047
    %v7049 = vrot.slane %v7048, 2
    %v7050 = vmax.f32 %v7048, %v7049
    %v7051 = vrot.slane %v7050, 1
    %v7052 = vmax.f32 %v7050, %v7051
    %v7053 = vsel %vm5631, %v5153, -inf
    %v7054 = vrot.slane %v7053, 4
    %v7055 = vmax.f32 %v7053, %v7054
    %v7056 = vrot.slane %v7055, 2
    %v7057 = vmax.f32 %v7055, %v7056
    %v7058 = vrot.slane %v7057, 1
    %v7059 = vmax.f32 %v7057, %v7058
    %v7060 = vsel %vm5631, %v5161, -inf
    %v7061 = vrot.slane %v7060, 4
    %v7062 = vmax.f32 %v7060, %v7061
    %v7063 = vrot.slane %v7062, 2
    %v7064 = vmax.f32 %v7062, %v7063
    %v7065 = vrot.slane %v7064, 1
    %v7066 = vmax.f32 %v7064, %v7065
    %v7067 = vsel %vm5631, %v5169, -inf
    %v7068 = vrot.slane %v7067, 4
    %v7069 = vmax.f32 %v7067, %v7068
    %v7070 = vrot.slane %v7069, 2
    %v7071 = vmax.f32 %v7069, %v7070
    %v7072 = vrot.slane %v7071, 1
    %v7073 = vmax.f32 %v7071, %v7072
    %v7074 = vsel %vm5631, %v5168, -inf
    %v7075 = vrot.slane %v7074, 4
    %v7076 = vmax.f32 %v7074, %v7075
    %v7077 = vrot.slane %v7076, 2
    %v7078 = vmax.f32 %v7076, %v7077
    %v7079 = vrot.slane %v7078, 1
    %v7080 = vmax.f32 %v7078, %v7079
    %v7081 = vsel %vm5631, %v5170, -inf
    %v7082 = vrot.slane %v7081, 4
    %v7083 = vmax.f32 %v7081, %v7082
    %v7084 = vrot.slane %v7083, 2
    %v7085 = vmax.f32 %v7083, %v7084
    %v7086 = vrot.slane %v7085, 1
    %v7087 = vmax.f32 %v7085, %v7086
    %v7088 = vsel %vm5631, %v5178, -inf
    %v7089 = vrot.slane %v7088, 4
    %v7090 = vmax.f32 %v7088, %v7089
    %v7091 = vrot.slane %v7090, 2
    %v7092 = vmax.f32 %v7090, %v7091
    %v7093 = vrot.slane %v7092, 1
    %v7094 = vmax.f32 %v7092, %v7093
    %v7095 = vsel %vm5631, %v5186, -inf
    %v7096 = vrot.slane %v7095, 4
    %v7097 = vmax.f32 %v7095, %v7096
    %v7098 = vrot.slane %v7097, 2
    %v7099 = vmax.f32 %v7097, %v7098
    %v7100 = vrot.slane %v7099, 1
    %v7101 = vmax.f32 %v7099, %v7100
    %v7102 = vsel %vm5631, %v5185, -inf
    %v7103 = vrot.slane %v7102, 4
    %v7104 = vmax.f32 %v7102, %v7103
    %v7105 = vrot.slane %v7104, 2
    %v7106 = vmax.f32 %v7104, %v7105
    %v7107 = vrot.slane %v7106, 1
    %v7108 = vmax.f32 %v7106, %v7107
    %v7109 = vsel %vm5631, %v5187, -inf
    %v7110 = vrot.slane %v7109, 4
    %v7111 = vmax.f32 %v7109, %v7110
    %v7112 = vrot.slane %v7111, 2
    %v7113 = vmax.f32 %v7111, %v7112
    %v7114 = vrot.slane %v7113, 1
    %v7115 = vmax.f32 %v7113, %v7114
    %v7116 = vsel %vm5631, %v5195, -inf
    %v7117 = vrot.slane %v7116, 4
    %v7118 = vmax.f32 %v7116, %v7117
    %v7119 = vrot.slane %v7118, 2
    %v7120 = vmax.f32 %v7118, %v7119
    %v7121 = vrot.slane %v7120, 1
    %v7122 = vmax.f32 %v7120, %v7121
    %v7123 = vsel %vm5631, %v5203, -inf
    %v7124 = vrot.slane %v7123, 4
    %v7125 = vmax.f32 %v7123, %v7124
    %v7126 = vrot.slane %v7125, 2
    %v7127 = vmax.f32 %v7125, %v7126
    %v7128 = vrot.slane %v7127, 1
    %v7129 = vmax.f32 %v7127, %v7128
    %v7130 = vsel %vm5631, %v5202, -inf
    %v7131 = vrot.slane %v7130, 4
    %v7132 = vmax.f32 %v7130, %v7131
    %v7133 = vrot.slane %v7132, 2
    %v7134 = vmax.f32 %v7132, %v7133
    %v7135 = vrot.slane %v7134, 1
    %v7136 = vmax.f32 %v7134, %v7135
    %v7137 = vsel %vm5631, %v5204, -inf
    %v7138 = vrot.slane %v7137, 4
    %v7139 = vmax.f32 %v7137, %v7138
    %v7140 = vrot.slane %v7139, 2
    %v7141 = vmax.f32 %v7139, %v7140
    %v7142 = vrot.slane %v7141, 1
    %v7143 = vmax.f32 %v7141, %v7142
    %v7144 = vsel %vm5631, %v5212, -inf
    %v7145 = vrot.slane %v7144, 4
    %v7146 = vmax.f32 %v7144, %v7145
    %v7147 = vrot.slane %v7146, 2
    %v7148 = vmax.f32 %v7146, %v7147
    %v7149 = vrot.slane %v7148, 1
    %v7150 = vmax.f32 %v7148, %v7149
    %v7151 = vsel %vm5631, %v5220, -inf
    %v7152 = vrot.slane %v7151, 4
    %v7153 = vmax.f32 %v7151, %v7152
    %v7154 = vrot.slane %v7153, 2
    %v7155 = vmax.f32 %v7153, %v7154
    %v7156 = vrot.slane %v7155, 1
    %v7157 = vmax.f32 %v7155, %v7156
    %v7158 = vsel %vm5631, %v5219, -inf
    %v7159 = vrot.slane %v7158, 4
    %v7160 = vmax.f32 %v7158, %v7159
    %v7161 = vrot.slane %v7160, 2
    %v7162 = vmax.f32 %v7160, %v7161
    %v7163 = vrot.slane %v7162, 1
    %v7164 = vmax.f32 %v7162, %v7163
    %v7165 = vsel %vm5631, %v5221, -inf
    %v7166 = vrot.slane %v7165, 4
    %v7167 = vmax.f32 %v7165, %v7166
    %v7168 = vrot.slane %v7167, 2
    %v7169 = vmax.f32 %v7167, %v7168
    %v7170 = vrot.slane %v7169, 1
    %v7171 = vmax.f32 %v7169, %v7170
    %v7172 = vsel %vm5631, %v5229, -inf
    %v7173 = vrot.slane %v7172, 4
    %v7174 = vmax.f32 %v7172, %v7173
    %v7175 = vrot.slane %v7174, 2
    %v7176 = vmax.f32 %v7174, %v7175
    %v7177 = vrot.slane %v7176, 1
    %v7178 = vmax.f32 %v7176, %v7177
    %v7179 = vsel %vm5631, %v5237, -inf
    %v7180 = vrot.slane %v7179, 4
    %v7181 = vmax.f32 %v7179, %v7180
    %v7182 = vrot.slane %v7181, 2
    %v7183 = vmax.f32 %v7181, %v7182
    %v7184 = vrot.slane %v7183, 1
    %v7185 = vmax.f32 %v7183, %v7184
    %v7186 = vsel %vm5631, %v5236, -inf
    %v7187 = vrot.slane %v7186, 4
    %v7188 = vmax.f32 %v7186, %v7187
    %v7189 = vrot.slane %v7188, 2
    %v7190 = vmax.f32 %v7188, %v7189
    %v7191 = vrot.slane %v7190, 1
    %v7192 = vmax.f32 %v7190, %v7191
    %v7193 = vsel %vm5631, %v5238, -inf
    %v7194 = vrot.slane %v7193, 4
    %v7195 = vmax.f32 %v7193, %v7194
    %v7196 = vrot.slane %v7195, 2
    %v7197 = vmax.f32 %v7195, %v7196
    %v7198 = vrot.slane %v7197, 1
    %v7199 = vmax.f32 %v7197, %v7198
    %v7200 = vsel %vm5631, %v5246, -inf
    %v7201 = vrot.slane %v7200, 4
    %v7202 = vmax.f32 %v7200, %v7201
    %v7203 = vrot.slane %v7202, 2
    %v7204 = vmax.f32 %v7202, %v7203
    %v7205 = vrot.slane %v7204, 1
    %v7206 = vmax.f32 %v7204, %v7205
    %v7207 = vsel %vm5631, %v5254, -inf
    %v7208 = vrot.slane %v7207, 4
    %v7209 = vmax.f32 %v7207, %v7208
    %v7210 = vrot.slane %v7209, 2
    %v7211 = vmax.f32 %v7209, %v7210
    %v7212 = vrot.slane %v7211, 1
    %v7213 = vmax.f32 %v7211, %v7212
    %v7214 = vsel %vm5631, %v5253, -inf
    %v7215 = vrot.slane %v7214, 4
    %v7216 = vmax.f32 %v7214, %v7215
    %v7217 = vrot.slane %v7216, 2
    %v7218 = vmax.f32 %v7216, %v7217
    %v7219 = vrot.slane %v7218, 1
    %v7220 = vmax.f32 %v7218, %v7219
    %v7221 = vsel %vm5631, %v5255, -inf
    %v7222 = vrot.slane %v7221, 4
    %v7223 = vmax.f32 %v7221, %v7222
    %v7224 = vrot.slane %v7223, 2
    %v7225 = vmax.f32 %v7223, %v7224
    %v7226 = vrot.slane %v7225, 1
    %v7227 = vmax.f32 %v7225, %v7226
    %v7228 = vsel %vm5631, %v5263, -inf
    %v7229 = vrot.slane %v7228, 4
    %v7230 = vmax.f32 %v7228, %v7229
    %v7231 = vrot.slane %v7230, 2
    %v7232 = vmax.f32 %v7230, %v7231
    %v7233 = vrot.slane %v7232, 1
    %v7234 = vmax.f32 %v7232, %v7233
    %v7235 = vsel %vm5631, %v5271, -inf
    %v7236 = vrot.slane %v7235, 4
    %v7237 = vmax.f32 %v7235, %v7236
    %v7238 = vrot.slane %v7237, 2
    %v7239 = vmax.f32 %v7237, %v7238
    %v7240 = vrot.slane %v7239, 1
    %v7241 = vmax.f32 %v7239, %v7240
    %v7242 = vsel %vm5631, %v5270, -inf
    %v7243 = vrot.slane %v7242, 4
    %v7244 = vmax.f32 %v7242, %v7243
    %v7245 = vrot.slane %v7244, 2
    %v7246 = vmax.f32 %v7244, %v7245
    %v7247 = vrot.slane %v7246, 1
    %v7248 = vmax.f32 %v7246, %v7247
    %v7249 = vsel %vm5631, %v5272, -inf
    %v7250 = vrot.slane %v7249, 4
    %v7251 = vmax.f32 %v7249, %v7250
    %v7252 = vrot.slane %v7251, 2
    %v7253 = vmax.f32 %v7251, %v7252
    %v7254 = vrot.slane %v7253, 1
    %v7255 = vmax.f32 %v7253, %v7254
    %v7256 = vsel %vm5631, %v5280, -inf
    %v7257 = vrot.slane %v7256, 4
    %v7258 = vmax.f32 %v7256, %v7257
    %v7259 = vrot.slane %v7258, 2
    %v7260 = vmax.f32 %v7258, %v7259
    %v7261 = vrot.slane %v7260, 1
    %v7262 = vmax.f32 %v7260, %v7261
    %v7263 = vsel %vm5631, %v5288, -inf
    %v7264 = vrot.slane %v7263, 4
    %v7265 = vmax.f32 %v7263, %v7264
    %v7266 = vrot.slane %v7265, 2
    %v7267 = vmax.f32 %v7265, %v7266
    %v7268 = vrot.slane %v7267, 1
    %v7269 = vmax.f32 %v7267, %v7268
    %v7270 = vsel %vm5631, %v5287, -inf
    %v7271 = vrot.slane %v7270, 4
    %v7272 = vmax.f32 %v7270, %v7271
    %v7273 = vrot.slane %v7272, 2
    %v7274 = vmax.f32 %v7272, %v7273
    %v7275 = vrot.slane %v7274, 1
    %v7276 = vmax.f32 %v7274, %v7275
    %v7277 = vsel %vm5631, %v5289, -inf
    %v7278 = vrot.slane %v7277, 4
    %v7279 = vmax.f32 %v7277, %v7278
    %v7280 = vrot.slane %v7279, 2
    %v7281 = vmax.f32 %v7279, %v7280
    %v7282 = vrot.slane %v7281, 1
    %v7283 = vmax.f32 %v7281, %v7282
    %v7284 = vsel %vm5631, %v5297, -inf
    %v7285 = vrot.slane %v7284, 4
    %v7286 = vmax.f32 %v7284, %v7285
    %v7287 = vrot.slane %v7286, 2
    %v7288 = vmax.f32 %v7286, %v7287
    %v7289 = vrot.slane %v7288, 1
    %v7290 = vmax.f32 %v7288, %v7289
    %v7291 = vsel %vm5631, %v5305, -inf
    %v7292 = vrot.slane %v7291, 4
    %v7293 = vmax.f32 %v7291, %v7292
    %v7294 = vrot.slane %v7293, 2
    %v7295 = vmax.f32 %v7293, %v7294
    %v7296 = vrot.slane %v7295, 1
    %v7297 = vmax.f32 %v7295, %v7296
    %v7298 = vsel %vm5631, %v5304, -inf
    %v7299 = vrot.slane %v7298, 4
    %v7300 = vmax.f32 %v7298, %v7299
    %v7301 = vrot.slane %v7300, 2
    %v7302 = vmax.f32 %v7300, %v7301
    %v7303 = vrot.slane %v7302, 1
    %v7304 = vmax.f32 %v7302, %v7303
    %v7305 = vsel %vm5631, %v5306, -inf
    %v7306 = vrot.slane %v7305, 4
    %v7307 = vmax.f32 %v7305, %v7306
    %v7308 = vrot.slane %v7307, 2
    %v7309 = vmax.f32 %v7307, %v7308
    %v7310 = vrot.slane %v7309, 1
    %v7311 = vmax.f32 %v7309, %v7310
    %v7312 = vsel %vm5631, %v5314, -inf
    %v7313 = vrot.slane %v7312, 4
    %v7314 = vmax.f32 %v7312, %v7313
    %v7315 = vrot.slane %v7314, 2
    %v7316 = vmax.f32 %v7314, %v7315
    %v7317 = vrot.slane %v7316, 1
    %v7318 = vmax.f32 %v7316, %v7317
    %v7319 = vsel %vm5631, %v5322, -inf
    %v7320 = vrot.slane %v7319, 4
    %v7321 = vmax.f32 %v7319, %v7320
    %v7322 = vrot.slane %v7321, 2
    %v7323 = vmax.f32 %v7321, %v7322
    %v7324 = vrot.slane %v7323, 1
    %v7325 = vmax.f32 %v7323, %v7324
    %v7326 = vsel %vm5631, %v5321, -inf
    %v7327 = vrot.slane %v7326, 4
    %v7328 = vmax.f32 %v7326, %v7327
    %v7329 = vrot.slane %v7328, 2
    %v7330 = vmax.f32 %v7328, %v7329
    %v7331 = vrot.slane %v7330, 1
    %v7332 = vmax.f32 %v7330, %v7331
    %v7333 = vsel %vm5631, %v5323, -inf
    %v7334 = vrot.slane %v7333, 4
    %v7335 = vmax.f32 %v7333, %v7334
    %v7336 = vrot.slane %v7335, 2
    %v7337 = vmax.f32 %v7335, %v7336
    %v7338 = vrot.slane %v7337, 1
    %v7339 = vmax.f32 %v7337, %v7338
    %v7340 = vsel %vm5631, %v5331, -inf
    %v7341 = vrot.slane %v7340, 4
    %v7342 = vmax.f32 %v7340, %v7341
    %v7343 = vrot.slane %v7342, 2
    %v7344 = vmax.f32 %v7342, %v7343
    %v7345 = vrot.slane %v7344, 1
    %v7346 = vmax.f32 %v7344, %v7345
    %v7347 = vsel %vm5631, %v5339, -inf
    %v7348 = vrot.slane %v7347, 4
    %v7349 = vmax.f32 %v7347, %v7348
    %v7350 = vrot.slane %v7349, 2
    %v7351 = vmax.f32 %v7349, %v7350
    %v7352 = vrot.slane %v7351, 1
    %v7353 = vmax.f32 %v7351, %v7352
    %v7354 = vsel %vm5631, %v5338, -inf
    %v7355 = vrot.slane %v7354, 4
    %v7356 = vmax.f32 %v7354, %v7355
    %v7357 = vrot.slane %v7356, 2
    %v7358 = vmax.f32 %v7356, %v7357
    %v7359 = vrot.slane %v7358, 1
    %v7360 = vmax.f32 %v7358, %v7359
    %v7361 = vsel %vm5631, %v5340, -inf
    %v7362 = vrot.slane %v7361, 4
    %v7363 = vmax.f32 %v7361, %v7362
    %v7364 = vrot.slane %v7363, 2
    %v7365 = vmax.f32 %v7363, %v7364
    %v7366 = vrot.slane %v7365, 1
    %v7367 = vmax.f32 %v7365, %v7366
    %v7368 = vsel %vm5631, %v5348, -inf
    %v7369 = vrot.slane %v7368, 4
    %v7370 = vmax.f32 %v7368, %v7369
    %v7371 = vrot.slane %v7370, 2
    %v7372 = vmax.f32 %v7370, %v7371
    %v7373 = vrot.slane %v7372, 1
    %v7374 = vmax.f32 %v7372, %v7373
    %v7375 = vsel %vm5631, %v5356, -inf
    %v7376 = vrot.slane %v7375, 4
    %v7377 = vmax.f32 %v7375, %v7376
    %v7378 = vrot.slane %v7377, 2
    %v7379 = vmax.f32 %v7377, %v7378
    %v7380 = vrot.slane %v7379, 1
    %v7381 = vmax.f32 %v7379, %v7380
    %v7382 = vsel %vm5631, %v5355, -inf
    %v7383 = vrot.slane %v7382, 4
    %v7384 = vmax.f32 %v7382, %v7383
    %v7385 = vrot.slane %v7384, 2
    %v7386 = vmax.f32 %v7384, %v7385
    %v7387 = vrot.slane %v7386, 1
    %v7388 = vmax.f32 %v7386, %v7387
    %v7389 = vsel %vm5631, %v5357, -inf
    %v7390 = vrot.slane %v7389, 4
    %v7391 = vmax.f32 %v7389, %v7390
    %v7392 = vrot.slane %v7391, 2
    %v7393 = vmax.f32 %v7391, %v7392
    %v7394 = vrot.slane %v7393, 1
    %v7395 = vmax.f32 %v7393, %v7394
    %v7396 = vsel %vm5631, %v5365, -inf
    %v7397 = vrot.slane %v7396, 4
    %v7398 = vmax.f32 %v7396, %v7397
    %v7399 = vrot.slane %v7398, 2
    %v7400 = vmax.f32 %v7398, %v7399
    %v7401 = vrot.slane %v7400, 1
    %v7402 = vmax.f32 %v7400, %v7401
    %v7403 = vsel %vm5631, %v5373, -inf
    %v7404 = vrot.slane %v7403, 4
    %v7405 = vmax.f32 %v7403, %v7404
    %v7406 = vrot.slane %v7405, 2
    %v7407 = vmax.f32 %v7405, %v7406
    %v7408 = vrot.slane %v7407, 1
    %v7409 = vmax.f32 %v7407, %v7408
    %v7410 = vsel %vm5631, %v5372, -inf
    %v7411 = vrot.slane %v7410, 4
    %v7412 = vmax.f32 %v7410, %v7411
    %v7413 = vrot.slane %v7412, 2
    %v7414 = vmax.f32 %v7412, %v7413
    %v7415 = vrot.slane %v7414, 1
    %v7416 = vmax.f32 %v7414, %v7415
    %v7417 = vsel %vm5631, %v5374, -inf
    %v7418 = vrot.slane %v7417, 4
    %v7419 = vmax.f32 %v7417, %v7418
    %v7420 = vrot.slane %v7419, 2
    %v7421 = vmax.f32 %v7419, %v7420
    %v7422 = vrot.slane %v7421, 1
    %v7423 = vmax.f32 %v7421, %v7422
    %vm7424 = vcmask 130048
    %v7425 = vsel %vm7424, %v5638, -inf
    %v7426 = vsel %vm7424, %v5694, -inf
    %v7427 = vmax.f32 %v7425, %v7426
    %v7428 = vsel %vm7424, %v5645, -inf
    %v7429 = vsel %vm7424, %v5701, -inf
    %v7430 = vmax.f32 %v7428, %v7429
    %v7431 = vsel %vm7424, %v5652, -inf
    %v7432 = vsel %vm7424, %v5708, -inf
    %v7433 = vmax.f32 %v7431, %v7432
    %v7434 = vsel %vm7424, %v5659, -inf
    %v7435 = vsel %vm7424, %v5715, -inf
    %v7436 = vmax.f32 %v7434, %v7435
    %v7437 = vsel %vm7424, %v5666, -inf
    %v7438 = vsel %vm7424, %v5722, -inf
    %v7439 = vmax.f32 %v7437, %v7438
    %v7440 = vsel %vm7424, %v5673, -inf
    %v7441 = vsel %vm7424, %v5729, -inf
    %v7442 = vmax.f32 %v7440, %v7441
    %v7443 = vsel %vm7424, %v5680, -inf
    %v7444 = vsel %vm7424, %v5736, -inf
    %v7445 = vmax.f32 %v7443, %v7444
    %v7446 = vsel %vm7424, %v5687, -inf
    %v7447 = vsel %vm7424, %v5743, -inf
    %v7448 = vmax.f32 %v7446, %v7447
    %v7449 = vsel %vm7424, %v5750, -inf
    %v7450 = vsel %vm7424, %v5806, -inf
    %v7451 = vmax.f32 %v7449, %v7450
    %v7452 = vsel %vm7424, %v5757, -inf
    %v7453 = vsel %vm7424, %v5813, -inf
    %v7454 = vmax.f32 %v7452, %v7453
    %v7455 = vsel %vm7424, %v5764, -inf
    %v7456 = vsel %vm7424, %v5820, -inf
    %v7457 = vmax.f32 %v7455, %v7456
    %v7458 = vsel %vm7424, %v5771, -inf
    %v7459 = vsel %vm7424, %v5827, -inf
    %v7460 = vmax.f32 %v7458, %v7459
    %v7461 = vsel %vm7424, %v5778, -inf
    %v7462 = vsel %vm7424, %v5834, -inf
    %v7463 = vmax.f32 %v7461, %v7462
    %v7464 = vsel %vm7424, %v5785, -inf
    %v7465 = vsel %vm7424, %v5841, -inf
    %v7466 = vmax.f32 %v7464, %v7465
    %v7467 = vsel %vm7424, %v5792, -inf
    %v7468 = vsel %vm7424, %v5848, -inf
    %v7469 = vmax.f32 %v7467, %v7468
    %v7470 = vsel %vm7424, %v5799, -inf
    %v7471 = vsel %vm7424, %v5855, -inf
    %v7472 = vmax.f32 %v7470, %v7471
    %v7473 = vsel %vm7424, %v5862, -inf
    %v7474 = vsel %vm7424, %v5918, -inf
    %v7475 = vmax.f32 %v7473, %v7474
    %v7476 = vsel %vm7424, %v5869, -inf
    %v7477 = vsel %vm7424, %v5925, -inf
    %v7478 = vmax.f32 %v7476, %v7477
    %v7479 = vsel %vm7424, %v5876, -inf
    %v7480 = vsel %vm7424, %v5932, -inf
    %v7481 = vmax.f32 %v7479, %v7480
    %v7482 = vsel %vm7424, %v5883, -inf
    %v7483 = vsel %vm7424, %v5939, -inf
    %v7484 = vmax.f32 %v7482, %v7483
    %v7485 = vsel %vm7424, %v5890, -inf
    %v7486 = vsel %vm7424, %v5946, -inf
    %v7487 = vmax.f32 %v7485, %v7486
    %v7488 = vsel %vm7424, %v5897, -inf
    %v7489 = vsel %vm7424, %v5953, -inf
    %v7490 = vmax.f32 %v7488, %v7489
    %v7491 = vsel %vm7424, %v5904, -inf
    %v7492 = vsel %vm7424, %v5960, -inf
    %v7493 = vmax.f32 %v7491, %v7492
    %v7494 = vsel %vm7424, %v5911, -inf
    %v7495 = vsel %vm7424, %v5967, -inf
    %v7496 = vmax.f32 %v7494, %v7495
    %v7497 = vsel %vm7424, %v5974, -inf
    %v7498 = vsel %vm7424, %v6030, -inf
    %v7499 = vmax.f32 %v7497, %v7498
    %v7500 = vsel %vm7424, %v5981, -inf
    %v7501 = vsel %vm7424, %v6037, -inf
    %v7502 = vmax.f32 %v7500, %v7501
    %v7503 = vsel %vm7424, %v5988, -inf
    %v7504 = vsel %vm7424, %v6044, -inf
    %v7505 = vmax.f32 %v7503, %v7504
    %v7506 = vsel %vm7424, %v5995, -inf
    %v7507 = vsel %vm7424, %v6051, -inf
    %v7508 = vmax.f32 %v7506, %v7507
    %v7509 = vsel %vm7424, %v6002, -inf
    %v7510 = vsel %vm7424, %v6058, -inf
    %v7511 = vmax.f32 %v7509, %v7510
    %v7512 = vsel %vm7424, %v6009, -inf
    %v7513 = vsel %vm7424, %v6065, -inf
    %v7514 = vmax.f32 %v7512, %v7513
    %v7515 = vsel %vm7424, %v6016, -inf
    %v7516 = vsel %vm7424, %v6072, -inf
    %v7517 = vmax.f32 %v7515, %v7516
    %v7518 = vsel %vm7424, %v6023, -inf
    %v7519 = vsel %vm7424, %v6079, -inf
    %v7520 = vmax.f32 %v7518, %v7519
    %v7521 = vsel %vm7424, %v6086, -inf
    %v7522 = vsel %vm7424, %v6142, -inf
    %v7523 = vmax.f32 %v7521, %v7522
    %v7524 = vsel %vm7424, %v6093, -inf
    %v7525 = vsel %vm7424, %v6149, -inf
    %v7526 = vmax.f32 %v7524, %v7525
    %v7527 = vsel %vm7424, %v6100, -inf
    %v7528 = vsel %vm7424, %v6156, -inf
    %v7529 = vmax.f32 %v7527, %v7528
    %v7530 = vsel %vm7424, %v6107, -inf
    %v7531 = vsel %vm7424, %v6163, -inf
    %v7532 = vmax.f32 %v7530, %v7531
    %v7533 = vsel %vm7424, %v6114, -inf
    %v7534 = vsel %vm7424, %v6170, -inf
    %v7535 = vmax.f32 %v7533, %v7534
    %v7536 = vsel %vm7424, %v6121, -inf
    %v7537 = vsel %vm7424, %v6177, -inf
    %v7538 = vmax.f32 %v7536, %v7537
    %v7539 = vsel %vm7424, %v6128, -inf
    %v7540 = vsel %vm7424, %v6184, -inf
    %v7541 = vmax.f32 %v7539, %v7540
    %v7542 = vsel %vm7424, %v6135, -inf
    %v7543 = vsel %vm7424, %v6191, -inf
    %v7544 = vmax.f32 %v7542, %v7543
    %v7545 = vsel %vm7424, %v6198, -inf
    %v7546 = vsel %vm7424, %v6254, -inf
    %v7547 = vmax.f32 %v7545, %v7546
    %v7548 = vsel %vm7424, %v6205, -inf
    %v7549 = vsel %vm7424, %v6261, -inf
    %v7550 = vmax.f32 %v7548, %v7549
    %v7551 = vsel %vm7424, %v6212, -inf
    %v7552 = vsel %vm7424, %v6268, -inf
    %v7553 = vmax.f32 %v7551, %v7552
    %v7554 = vsel %vm7424, %v6219, -inf
    %v7555 = vsel %vm7424, %v6275, -inf
    %v7556 = vmax.f32 %v7554, %v7555
    %v7557 = vsel %vm7424, %v6226, -inf
    %v7558 = vsel %vm7424, %v6282, -inf
    %v7559 = vmax.f32 %v7557, %v7558
    %v7560 = vsel %vm7424, %v6233, -inf
    %v7561 = vsel %vm7424, %v6289, -inf
    %v7562 = vmax.f32 %v7560, %v7561
    %v7563 = vsel %vm7424, %v6240, -inf
    %v7564 = vsel %vm7424, %v6296, -inf
    %v7565 = vmax.f32 %v7563, %v7564
    %v7566 = vsel %vm7424, %v6247, -inf
    %v7567 = vsel %vm7424, %v6303, -inf
    %v7568 = vmax.f32 %v7566, %v7567
    %v7569 = vsel %vm7424, %v6310, -inf
    %v7570 = vsel %vm7424, %v6366, -inf
    %v7571 = vmax.f32 %v7569, %v7570
    %v7572 = vsel %vm7424, %v6317, -inf
    %v7573 = vsel %vm7424, %v6373, -inf
    %v7574 = vmax.f32 %v7572, %v7573
    %v7575 = vsel %vm7424, %v6324, -inf
    %v7576 = vsel %vm7424, %v6380, -inf
    %v7577 = vmax.f32 %v7575, %v7576
    %v7578 = vsel %vm7424, %v6331, -inf
    %v7579 = vsel %vm7424, %v6387, -inf
    %v7580 = vmax.f32 %v7578, %v7579
    %v7581 = vsel %vm7424, %v6338, -inf
    %v7582 = vsel %vm7424, %v6394, -inf
    %v7583 = vmax.f32 %v7581, %v7582
    %v7584 = vsel %vm7424, %v6345, -inf
    %v7585 = vsel %vm7424, %v6401, -inf
    %v7586 = vmax.f32 %v7584, %v7585
    %v7587 = vsel %vm7424, %v6352, -inf
    %v7588 = vsel %vm7424, %v6408, -inf
    %v7589 = vmax.f32 %v7587, %v7588
    %v7590 = vsel %vm7424, %v6359, -inf
    %v7591 = vsel %vm7424, %v6415, -inf
    %v7592 = vmax.f32 %v7590, %v7591
    %v7593 = vsel %vm7424, %v6422, -inf
    %v7594 = vsel %vm7424, %v6478, -inf
    %v7595 = vmax.f32 %v7593, %v7594
    %v7596 = vsel %vm7424, %v6429, -inf
    %v7597 = vsel %vm7424, %v6485, -inf
    %v7598 = vmax.f32 %v7596, %v7597
    %v7599 = vsel %vm7424, %v6436, -inf
    %v7600 = vsel %vm7424, %v6492, -inf
    %v7601 = vmax.f32 %v7599, %v7600
    %v7602 = vsel %vm7424, %v6443, -inf
    %v7603 = vsel %vm7424, %v6499, -inf
    %v7604 = vmax.f32 %v7602, %v7603
    %v7605 = vsel %vm7424, %v6450, -inf
    %v7606 = vsel %vm7424, %v6506, -inf
    %v7607 = vmax.f32 %v7605, %v7606
    %v7608 = vsel %vm7424, %v6457, -inf
    %v7609 = vsel %vm7424, %v6513, -inf
    %v7610 = vmax.f32 %v7608, %v7609
    %v7611 = vsel %vm7424, %v6464, -inf
    %v7612 = vsel %vm7424, %v6520, -inf
    %v7613 = vmax.f32 %v7611, %v7612
    %v7614 = vsel %vm7424, %v6471, -inf
    %v7615 = vsel %vm7424, %v6527, -inf
    %v7616 = vmax.f32 %v7614, %v7615
    %v7617 = vsel %vm7424, %v6534, -inf
    %v7618 = vsel %vm7424, %v6590, -inf
    %v7619 = vmax.f32 %v7617, %v7618
    %v7620 = vsel %vm7424, %v6541, -inf
    %v7621 = vsel %vm7424, %v6597, -inf
    %v7622 = vmax.f32 %v7620, %v7621
    %v7623 = vsel %vm7424, %v6548, -inf
    %v7624 = vsel %vm7424, %v6604, -inf
    %v7625 = vmax.f32 %v7623, %v7624
    %v7626 = vsel %vm7424, %v6555, -inf
    %v7627 = vsel %vm7424, %v6611, -inf
    %v7628 = vmax.f32 %v7626, %v7627
    %v7629 = vsel %vm7424, %v6562, -inf
    %v7630 = vsel %vm7424, %v6618, -inf
    %v7631 = vmax.f32 %v7629, %v7630
    %v7632 = vsel %vm7424, %v6569, -inf
    %v7633 = vsel %vm7424, %v6625, -inf
    %v7634 = vmax.f32 %v7632, %v7633
    %v7635 = vsel %vm7424, %v6576, -inf
    %v7636 = vsel %vm7424, %v6632, -inf
    %v7637 = vmax.f32 %v7635, %v7636
    %v7638 = vsel %vm7424, %v6583, -inf
    %v7639 = vsel %vm7424, %v6639, -inf
    %v7640 = vmax.f32 %v7638, %v7639
    %v7641 = vsel %vm7424, %v6646, -inf
    %v7642 = vsel %vm7424, %v6702, -inf
    %v7643 = vmax.f32 %v7641, %v7642
    %v7644 = vsel %vm7424, %v6653, -inf
    %v7645 = vsel %vm7424, %v6709, -inf
    %v7646 = vmax.f32 %v7644, %v7645
    %v7647 = vsel %vm7424, %v6660, -inf
    %v7648 = vsel %vm7424, %v6716, -inf
    %v7649 = vmax.f32 %v7647, %v7648
    %v7650 = vsel %vm7424, %v6667, -inf
    %v7651 = vsel %vm7424, %v6723, -inf
    %v7652 = vmax.f32 %v7650, %v7651
    %v7653 = vsel %vm7424, %v6674, -inf
    %v7654 = vsel %vm7424, %v6730, -inf
    %v7655 = vmax.f32 %v7653, %v7654
    %v7656 = vsel %vm7424, %v6681, -inf
    %v7657 = vsel %vm7424, %v6737, -inf
    %v7658 = vmax.f32 %v7656, %v7657
    %v7659 = vsel %vm7424, %v6688, -inf
    %v7660 = vsel %vm7424, %v6744, -inf
    %v7661 = vmax.f32 %v7659, %v7660
    %v7662 = vsel %vm7424, %v6695, -inf
    %v7663 = vsel %vm7424, %v6751, -inf
    %v7664 = vmax.f32 %v7662, %v7663
    %v7665 = vsel %vm7424, %v6758, -inf
    %v7666 = vsel %vm7424, %v6814, -inf
    %v7667 = vmax.f32 %v7665, %v7666
    %v7668 = vsel %vm7424, %v6765, -inf
    %v7669 = vsel %vm7424, %v6821, -inf
    %v7670 = vmax.f32 %v7668, %v7669
    %v7671 = vsel %vm7424, %v6772, -inf
    %v7672 = vsel %vm7424, %v6828, -inf
    %v7673 = vmax.f32 %v7671, %v7672
    %v7674 = vsel %vm7424, %v6779, -inf
    %v7675 = vsel %vm7424, %v6835, -inf
    %v7676 = vmax.f32 %v7674, %v7675
    %v7677 = vsel %vm7424, %v6786, -inf
    %v7678 = vsel %vm7424, %v6842, -inf
    %v7679 = vmax.f32 %v7677, %v7678
    %v7680 = vsel %vm7424, %v6793, -inf
    %v7681 = vsel %vm7424, %v6849, -inf
    %v7682 = vmax.f32 %v7680, %v7681
    %v7683 = vsel %vm7424, %v6800, -inf
    %v7684 = vsel %vm7424, %v6856, -inf
    %v7685 = vmax.f32 %v7683, %v7684
    %v7686 = vsel %vm7424, %v6807, -inf
    %v7687 = vsel %vm7424, %v6863, -inf
    %v7688 = vmax.f32 %v7686, %v7687
    %v7689 = vsel %vm7424, %v6870, -inf
    %v7690 = vsel %vm7424, %v6926, -inf
    %v7691 = vmax.f32 %v7689, %v7690
    %v7692 = vsel %vm7424, %v6877, -inf
    %v7693 = vsel %vm7424, %v6933, -inf
    %v7694 = vmax.f32 %v7692, %v7693
    %v7695 = vsel %vm7424, %v6884, -inf
    %v7696 = vsel %vm7424, %v6940, -inf
    %v7697 = vmax.f32 %v7695, %v7696
    %v7698 = vsel %vm7424, %v6891, -inf
    %v7699 = vsel %vm7424, %v6947, -inf
    %v7700 = vmax.f32 %v7698, %v7699
    %v7701 = vsel %vm7424, %v6898, -inf
    %v7702 = vsel %vm7424, %v6954, -inf
    %v7703 = vmax.f32 %v7701, %v7702
    %v7704 = vsel %vm7424, %v6905, -inf
    %v7705 = vsel %vm7424, %v6961, -inf
    %v7706 = vmax.f32 %v7704, %v7705
    %v7707 = vsel %vm7424, %v6912, -inf
    %v7708 = vsel %vm7424, %v6968, -inf
    %v7709 = vmax.f32 %v7707, %v7708
    %v7710 = vsel %vm7424, %v6919, -inf
    %v7711 = vsel %vm7424, %v6975, -inf
    %v7712 = vmax.f32 %v7710, %v7711
    %v7713 = vsel %vm7424, %v6982, -inf
    %v7714 = vsel %vm7424, %v7038, -inf
    %v7715 = vmax.f32 %v7713, %v7714
    %v7716 = vsel %vm7424, %v6989, -inf
    %v7717 = vsel %vm7424, %v7045, -inf
    %v7718 = vmax.f32 %v7716, %v7717
    %v7719 = vsel %vm7424, %v6996, -inf
    %v7720 = vsel %vm7424, %v7052, -inf
    %v7721 = vmax.f32 %v7719, %v7720
    %v7722 = vsel %vm7424, %v7003, -inf
    %v7723 = vsel %vm7424, %v7059, -inf
    %v7724 = vmax.f32 %v7722, %v7723
    %v7725 = vsel %vm7424, %v7010, -inf
    %v7726 = vsel %vm7424, %v7066, -inf
    %v7727 = vmax.f32 %v7725, %v7726
    %v7728 = vsel %vm7424, %v7017, -inf
    %v7729 = vsel %vm7424, %v7073, -inf
    %v7730 = vmax.f32 %v7728, %v7729
    %v7731 = vsel %vm7424, %v7024, -inf
    %v7732 = vsel %vm7424, %v7080, -inf
    %v7733 = vmax.f32 %v7731, %v7732
    %v7734 = vsel %vm7424, %v7031, -inf
    %v7735 = vsel %vm7424, %v7087, -inf
    %v7736 = vmax.f32 %v7734, %v7735
    %v7737 = vsel %vm7424, %v7094, -inf
    %v7738 = vsel %vm7424, %v7150, -inf
    %v7739 = vmax.f32 %v7737, %v7738
    %v7740 = vsel %vm7424, %v7101, -inf
    %v7741 = vsel %vm7424, %v7157, -inf
    %v7742 = vmax.f32 %v7740, %v7741
    %v7743 = vsel %vm7424, %v7108, -inf
    %v7744 = vsel %vm7424, %v7164, -inf
    %v7745 = vmax.f32 %v7743, %v7744
    %v7746 = vsel %vm7424, %v7115, -inf
    %v7747 = vsel %vm7424, %v7171, -inf
    %v7748 = vmax.f32 %v7746, %v7747
    %v7749 = vsel %vm7424, %v7122, -inf
    %v7750 = vsel %vm7424, %v7178, -inf
    %v7751 = vmax.f32 %v7749, %v7750
    %v7752 = vsel %vm7424, %v7129, -inf
    %v7753 = vsel %vm7424, %v7185, -inf
    %v7754 = vmax.f32 %v7752, %v7753
    %v7755 = vsel %vm7424, %v7136, -inf
    %v7756 = vsel %vm7424, %v7192, -inf
    %v7757 = vmax.f32 %v7755, %v7756
    %v7758 = vsel %vm7424, %v7143, -inf
    %v7759 = vsel %vm7424, %v7199, -inf
    %v7760 = vmax.f32 %v7758, %v7759
    %v7761 = vsel %vm7424, %v7206, -inf
    %v7762 = vsel %vm7424, %v7262, -inf
    %v7763 = vmax.f32 %v7761, %v7762
    %v7764 = vsel %vm7424, %v7213, -inf
    %v7765 = vsel %vm7424, %v7269, -inf
    %v7766 = vmax.f32 %v7764, %v7765
    %v7767 = vsel %vm7424, %v7220, -inf
    %v7768 = vsel %vm7424, %v7276, -inf
    %v7769 = vmax.f32 %v7767, %v7768
    %v7770 = vsel %vm7424, %v7227, -inf
    %v7771 = vsel %vm7424, %v7283, -inf
    %v7772 = vmax.f32 %v7770, %v7771
    %v7773 = vsel %vm7424, %v7234, -inf
    %v7774 = vsel %vm7424, %v7290, -inf
    %v7775 = vmax.f32 %v7773, %v7774
    %v7776 = vsel %vm7424, %v7241, -inf
    %v7777 = vsel %vm7424, %v7297, -inf
    %v7778 = vmax.f32 %v7776, %v7777
    %v7779 = vsel %vm7424, %v7248, -inf
    %v7780 = vsel %vm7424, %v7304, -inf
    %v7781 = vmax.f32 %v7779, %v7780
    %v7782 = vsel %vm7424, %v7255, -inf
    %v7783 = vsel %vm7424, %v7311, -inf
    %v7784 = vmax.f32 %v7782, %v7783
    %v7785 = vsel %vm7424, %v7318, -inf
    %v7786 = vsel %vm7424, %v7374, -inf
    %v7787 = vmax.f32 %v7785, %v7786
    %v7788 = vsel %vm7424, %v7325, -inf
    %v7789 = vsel %vm7424, %v7381, -inf
    %v7790 = vmax.f32 %v7788, %v7789
    %v7791 = vsel %vm7424, %v7332, -inf
    %v7792 = vsel %vm7424, %v7388, -inf
    %v7793 = vmax.f32 %v7791, %v7792
    %v7794 = vsel %vm7424, %v7339, -inf
    %v7795 = vsel %vm7424, %v7395, -inf
    %v7796 = vmax.f32 %v7794, %v7795
    %v7797 = vsel %vm7424, %v7346, -inf
    %v7798 = vsel %vm7424, %v7402, -inf
    %v7799 = vmax.f32 %v7797, %v7798
    %v7800 = vsel %vm7424, %v7353, -inf
    %v7801 = vsel %vm7424, %v7409, -inf
    %v7802 = vmax.f32 %v7800, %v7801
    %v7803 = vsel %vm7424, %v7360, -inf
    %v7804 = vsel %vm7424, %v7416, -inf
    %v7805 = vmax.f32 %v7803, %v7804
    %v7806 = vsel %vm7424, %v7367, -inf
    %v7807 = vsel %vm7424, %v7423, -inf
    %v7808 = vmax.f32 %v7806, %v7807
    %7809 = vst.msk [vmem:[#allocation4] sm:$0xff] %vm7424, 0.0
    %7810 = vst.msk [vmem:[#allocation4 + $0x8] sm:$0x3] %vm5631, 0.0
    %7811 = vst.msk [vmem:[#allocation4 + $0x10] sm:$0xff] %vm7424, 0.0
    %7812 = vst.msk [vmem:[#allocation4 + $0x18] sm:$0x3] %vm5631, 0.0
    %7813 = vst.msk [vmem:[#allocation4 + $0x20] sm:$0xff] %vm7424, 0.0
    %7814 = vst.msk [vmem:[#allocation4 + $0x28] sm:$0x3] %vm5631, 0.0
    %7815 = vst.msk [vmem:[#allocation4 + $0x30] sm:$0xff] %vm7424, 0.0
    %7816 = vst.msk [vmem:[#allocation4 + $0x38] sm:$0x3] %vm5631, 0.0
    %7817 = vst.msk [vmem:[#allocation4 + $0x40] sm:$0xff] %vm7424, 0.0
    %7818 = vst.msk [vmem:[#allocation4 + $0x48] sm:$0x3] %vm5631, 0.0
    %7819 = vst.msk [vmem:[#allocation4 + $0x50] sm:$0xff] %vm7424, 0.0
    %7820 = vst.msk [vmem:[#allocation4 + $0x58] sm:$0x3] %vm5631, 0.0
    %7821 = vst.msk [vmem:[#allocation4 + $0x60] sm:$0xff] %vm7424, 0.0
    %7822 = vst.msk [vmem:[#allocation4 + $0x68] sm:$0x3] %vm5631, 0.0
    %7823 = vst.msk [vmem:[#allocation4 + $0x70] sm:$0xff] %vm7424, 0.0
    %7824 = vst.msk [vmem:[#allocation4 + $0x78] sm:$0x3] %vm5631, 0.0
    %7825 = vst.msk [vmem:[#allocation4 + $0x80] sm:$0xff] %vm7424, 0.0
    %7826 = vst.msk [vmem:[#allocation4 + $0x88] sm:$0x3] %vm5631, 0.0
    %7827 = vst.msk [vmem:[#allocation4 + $0x90] sm:$0xff] %vm7424, 0.0
    %7828 = vst.msk [vmem:[#allocation4 + $0x98] sm:$0x3] %vm5631, 0.0
    %7829 = vst.msk [vmem:[#allocation4 + $0xa0] sm:$0xff] %vm7424, 0.0
    %7830 = vst.msk [vmem:[#allocation4 + $0xa8] sm:$0x3] %vm5631, 0.0
    %7831 = vst.msk [vmem:[#allocation4 + $0xb0] sm:$0xff] %vm7424, 0.0
    %7832 = vst.msk [vmem:[#allocation4 + $0xb8] sm:$0x3] %vm5631, 0.0
    %7833 = vst.msk [vmem:[#allocation4 + $0xc0] sm:$0xff] %vm7424, 0.0
    %7834 = vst.msk [vmem:[#allocation4 + $0xc8] sm:$0x3] %vm5631, 0.0
    %7835 = vst.msk [vmem:[#allocation4 + $0xd0] sm:$0xff] %vm7424, 0.0
    %7836 = vst.msk [vmem:[#allocation4 + $0xd8] sm:$0x3] %vm5631, 0.0
    %7837 = vst.msk [vmem:[#allocation4 + $0xe0] sm:$0xff] %vm7424, 0.0
    %7838 = vst.msk [vmem:[#allocation4 + $0xe8] sm:$0x3] %vm5631, 0.0
    %7839 = vst.msk [vmem:[#allocation4 + $0xf0] sm:$0xff] %vm7424, 0.0
    %7840 = vst.msk [vmem:[#allocation4 + $0xf8] sm:$0x3] %vm5631, 0.0
    %7841 = vst.msk [vmem:[#allocation4 + $0x100] sm:$0xff] %vm7424, 0.0
    %7842 = vst.msk [vmem:[#allocation4 + $0x108] sm:$0x3] %vm5631, 0.0
    %7843 = vst.msk [vmem:[#allocation4 + $0x110] sm:$0xff] %vm7424, 0.0
    %7844 = vst.msk [vmem:[#allocation4 + $0x118] sm:$0x3] %vm5631, 0.0
    %7845 = vst.msk [vmem:[#allocation4 + $0x120] sm:$0xff] %vm7424, 0.0
    %7846 = vst.msk [vmem:[#allocation4 + $0x128] sm:$0x3] %vm5631, 0.0
    %7847 = vst.msk [vmem:[#allocation4 + $0x130] sm:$0xff] %vm7424, 0.0
    %7848 = vst.msk [vmem:[#allocation4 + $0x138] sm:$0x3] %vm5631, 0.0
    %vm7977 = vcmask 1041409
    %v7978 = vsel %vm7977, %v7430, %v7427
    %vm7979 = vcmask 1042434
    %v7980 = vsel %vm7979, %v7433, %v7978
    %vm7981 = vcmask 1043459
    %v7982 = vsel %vm7981, %v7436, %v7980
    %vm7983 = vcmask 1044484
    %v7984 = vsel %vm7983, %v7439, %v7982
    %vm7985 = vcmask 1045509
    %v7986 = vsel %vm7985, %v7442, %v7984
    %vm7987 = vcmask 1046534
    %v7988 = vsel %vm7987, %v7445, %v7986
    %vm7989 = vcmask 1047559
    %v7990 = vsel %vm7989, %v7448, %v7988
    %v7991 = vsel %vm7977, %v7454, %v7451
    %v7992 = vsel %vm7979, %v7457, %v7991
    %v7993 = vsel %vm7981, %v7460, %v7992
    %v7994 = vsel %vm7983, %v7463, %v7993
    %v7995 = vsel %vm7985, %v7466, %v7994
    %v7996 = vsel %vm7987, %v7469, %v7995
    %v7997 = vsel %vm7989, %v7472, %v7996
    %v7998 = vsel %vm7977, %v7478, %v7475
    %v7999 = vsel %vm7979, %v7481, %v7998
    %v8000 = vsel %vm7981, %v7484, %v7999
    %v8001 = vsel %vm7983, %v7487, %v8000
    %v8002 = vsel %vm7985, %v7490, %v8001
    %v8003 = vsel %vm7987, %v7493, %v8002
    %v8004 = vsel %vm7989, %v7496, %v8003
    %v8005 = vsel %vm7977, %v7502, %v7499
    %v8006 = vsel %vm7979, %v7505, %v8005
    %v8007 = vsel %vm7981, %v7508, %v8006
    %v8008 = vsel %vm7983, %v7511, %v8007
    %v8009 = vsel %vm7985, %v7514, %v8008
    %v8010 = vsel %vm7987, %v7517, %v8009
    %v8011 = vsel %vm7989, %v7520, %v8010
    %v8012 = vsel %vm7977, %v7526, %v7523
    %v8013 = vsel %vm7979, %v7529, %v8012
    %v8014 = vsel %vm7981, %v7532, %v8013
    %v8015 = vsel %vm7983, %v7535, %v8014
    %v8016 = vsel %vm7985, %v7538, %v8015
    %v8017 = vsel %vm7987, %v7541, %v8016
    %v8018 = vsel %vm7989, %v7544, %v8017
    %v8019 = vsel %vm7977, %v7550, %v7547
    %v8020 = vsel %vm7979, %v7553, %v8019
    %v8021 = vsel %vm7981, %v7556, %v8020
    %v8022 = vsel %vm7983, %v7559, %v8021
    %v8023 = vsel %vm7985, %v7562, %v8022
    %v8024 = vsel %vm7987, %v7565, %v8023
    %v8025 = vsel %vm7989, %v7568, %v8024
    %v8026 = vsel %vm7977, %v7574, %v7571
    %v8027 = vsel %vm7979, %v7577, %v8026
    %v8028 = vsel %vm7981, %v7580, %v8027
    %v8029 = vsel %vm7983, %v7583, %v8028
    %v8030 = vsel %vm7985, %v7586, %v8029
    %v8031 = vsel %vm7987, %v7589, %v8030
    %v8032 = vsel %vm7989, %v7592, %v8031
    %v8033 = vsel %vm7977, %v7598, %v7595
    %v8034 = vsel %vm7979, %v7601, %v8033
    %v8035 = vsel %vm7981, %v7604, %v8034
    %v8036 = vsel %vm7983, %v7607, %v8035
    %v8037 = vsel %vm7985, %v7610, %v8036
    %v8038 = vsel %vm7987, %v7613, %v8037
    %v8039 = vsel %vm7989, %v7616, %v8038
    %v8040 = vsel %vm7977, %v7622, %v7619
    %v8041 = vsel %vm7979, %v7625, %v8040
    %v8042 = vsel %vm7981, %v7628, %v8041
    %v8043 = vsel %vm7983, %v7631, %v8042
    %v8044 = vsel %vm7985, %v7634, %v8043
    %v8045 = vsel %vm7987, %v7637, %v8044
    %v8046 = vsel %vm7989, %v7640, %v8045
    %v8047 = vsel %vm7977, %v7646, %v7643
    %v8048 = vsel %vm7979, %v7649, %v8047
    %v8049 = vsel %vm7981, %v7652, %v8048
    %v8050 = vsel %vm7983, %v7655, %v8049
    %v8051 = vsel %vm7985, %v7658, %v8050
    %v8052 = vsel %vm7987, %v7661, %v8051
    %v8053 = vsel %vm7989, %v7664, %v8052
    %v8054 = vsel %vm7977, %v7670, %v7667
    %v8055 = vsel %vm7979, %v7673, %v8054
    %v8056 = vsel %vm7981, %v7676, %v8055
    %v8057 = vsel %vm7983, %v7679, %v8056
    %v8058 = vsel %vm7985, %v7682, %v8057
    %v8059 = vsel %vm7987, %v7685, %v8058
    %v8060 = vsel %vm7989, %v7688, %v8059
    %v8061 = vsel %vm7977, %v7694, %v7691
    %v8062 = vsel %vm7979, %v7697, %v8061
    %v8063 = vsel %vm7981, %v7700, %v8062
    %v8064 = vsel %vm7983, %v7703, %v8063
    %v8065 = vsel %vm7985, %v7706, %v8064
    %v8066 = vsel %vm7987, %v7709, %v8065
    %v8067 = vsel %vm7989, %v7712, %v8066
    %v8068 = vsel %vm7977, %v7718, %v7715
    %v8069 = vsel %vm7979, %v7721, %v8068
    %v8070 = vsel %vm7981, %v7724, %v8069
    %v8071 = vsel %vm7983, %v7727, %v8070
    %v8072 = vsel %vm7985, %v7730, %v8071
    %v8073 = vsel %vm7987, %v7733, %v8072
    %v8074 = vsel %vm7989, %v7736, %v8073
    %v8075 = vsel %vm7977, %v7742, %v7739
    %v8076 = vsel %vm7979, %v7745, %v8075
    %v8077 = vsel %vm7981, %v7748, %v8076
    %v8078 = vsel %vm7983, %v7751, %v8077
    %v8079 = vsel %vm7985, %v7754, %v8078
    %v8080 = vsel %vm7987, %v7757, %v8079
    %v8081 = vsel %vm7989, %v7760, %v8080
    %v8082 = vsel %vm7977, %v7766, %v7763
    %v8083 = vsel %vm7979, %v7769, %v8082
    %v8084 = vsel %vm7981, %v7772, %v8083
    %v8085 = vsel %vm7983, %v7775, %v8084
    %v8086 = vsel %vm7985, %v7778, %v8085
    %v8087 = vsel %vm7987, %v7781, %v8086
    %v8088 = vsel %vm7989, %v7784, %v8087
    %v8089 = vsel %vm7977, %v7790, %v7787
    %v8090 = vsel %vm7979, %v7793, %v8089
    %v8091 = vsel %vm7981, %v7796, %v8090
    %v8092 = vsel %vm7983, %v7799, %v8091
    %v8093 = vsel %vm7985, %v7802, %v8092
    %v8094 = vsel %vm7987, %v7805, %v8093
    %v8095 = vsel %vm7989, %v7808, %v8094
    %s8112 = scalar_lea.vmem [#allocation4], 16
    %8113 = vst.msk [vmem:[%s8112 + $0x1] sm:$0xff] %vm7424, %v7990
    %8114 = vst.msk [vmem:[%s8112 + $0x11] sm:$0xff] %vm7424, %v7997
    %8115 = vst.msk [vmem:[%s8112 + $0x21] sm:$0xff] %vm7424, %v8004
    %8116 = vst.msk [vmem:[%s8112 + $0x31] sm:$0xff] %vm7424, %v8011
    %8117 = vst.msk [vmem:[%s8112 + $0x41] sm:$0xff] %vm7424, %v8018
    %8118 = vst.msk [vmem:[%s8112 + $0x51] sm:$0xff] %vm7424, %v8025
    %8119 = vst.msk [vmem:[%s8112 + $0x61] sm:$0xff] %vm7424, %v8032
    %8120 = vst.msk [vmem:[%s8112 + $0x71] sm:$0xff] %vm7424, %v8039
    %8121 = vst.msk [vmem:[%s8112 + $0xa1] sm:$0xff] %vm7424, %v8046
    %8122 = vst.msk [vmem:[%s8112 + $0xb1] sm:$0xff] %vm7424, %v8053
    %8123 = vst.msk [vmem:[%s8112 + $0xc1] sm:$0xff] %vm7424, %v8060
    %8124 = vst.msk [vmem:[%s8112 + $0xd1] sm:$0xff] %vm7424, %v8067
    %8125 = vst.msk [vmem:[%s8112 + $0xe1] sm:$0xff] %vm7424, %v8074
    %8126 = vst.msk [vmem:[%s8112 + $0xf1] sm:$0xff] %vm7424, %v8081
    %8127 = vst.msk [vmem:[%s8112 + $0x101] sm:$0xff] %vm7424, %v8088
    %8128 = vst.msk [vmem:[%s8112 + $0x111] sm:$0xff] %vm7424, %v8095
    %v8129 = vld [vmem:[#allocation4] sm:$0xff]
    %v8130 = vld [vmem:[#allocation4 + $0x10] sm:$0xff]
    %v8131 = vld [vmem:[#allocation4 + $0x20] sm:$0xff]
    %v8132 = vld [vmem:[#allocation4 + $0x30] sm:$0xff]
    %v8133 = vld [vmem:[#allocation4 + $0x40] sm:$0xff]
    %v8134 = vld [vmem:[#allocation4 + $0x50] sm:$0xff]
    %v8135 = vld [vmem:[#allocation4 + $0x60] sm:$0xff]
    %v8136 = vld [vmem:[#allocation4 + $0x70] sm:$0xff]
    %v8137 = vld [vmem:[#allocation4 + $0xa0] sm:$0xff]
    %v8138 = vld [vmem:[#allocation4 + $0xb0] sm:$0xff]
    %v8139 = vld [vmem:[#allocation4 + $0xc0] sm:$0xff]
    %v8140 = vld [vmem:[#allocation4 + $0xd0] sm:$0xff]
    %v8141 = vld [vmem:[#allocation4 + $0xe0] sm:$0xff]
    %v8142 = vld [vmem:[#allocation4 + $0xf0] sm:$0xff]
    %v8143 = vld [vmem:[#allocation4 + $0x100] sm:$0xff]
    %v8144 = vld [vmem:[#allocation4 + $0x110] sm:$0xff]
    %8145 = vst.msk [vmem:[#allocation5] sm:$0xff] %vm7424, %v8129
    %8146 = vst.msk [vmem:[#allocation5 + $0x10] sm:$0xff] %vm7424, %v8130
    %8147 = vst.msk [vmem:[#allocation5 + $0x20] sm:$0xff] %vm7424, %v8131
    %8148 = vst.msk [vmem:[#allocation5 + $0x30] sm:$0xff] %vm7424, %v8132
    %8149 = vst.msk [vmem:[#allocation5 + $0x40] sm:$0xff] %vm7424, %v8133
    %8150 = vst.msk [vmem:[#allocation5 + $0x50] sm:$0xff] %vm7424, %v8134
    %8151 = vst.msk [vmem:[#allocation5 + $0x60] sm:$0xff] %vm7424, %v8135
    %8152 = vst.msk [vmem:[#allocation5 + $0x70] sm:$0xff] %vm7424, %v8136
    %8153 = vst.msk [vmem:[#allocation5 + $0x80] sm:$0xff] %vm7424, %v8137
    %8154 = vst.msk [vmem:[#allocation5 + $0x90] sm:$0xff] %vm7424, %v8138
    %8155 = vst.msk [vmem:[#allocation5 + $0xa0] sm:$0xff] %vm7424, %v8139
    %8156 = vst.msk [vmem:[#allocation5 + $0xb0] sm:$0xff] %vm7424, %v8140
    %8157 = vst.msk [vmem:[#allocation5 + $0xc0] sm:$0xff] %vm7424, %v8141
    %8158 = vst.msk [vmem:[#allocation5 + $0xd0] sm:$0xff] %vm7424, %v8142
    %8159 = vst.msk [vmem:[#allocation5 + $0xe0] sm:$0xff] %vm7424, %v8143
    %8160 = vst.msk [vmem:[#allocation5 + $0xf0] sm:$0xff] %vm7424, %v8144
    %v8161 = vld [vmem:[#allocation4 + $0x1] sm:$0xff]
    %v8162 = vld [vmem:[#allocation4 + $0x11] sm:$0xff]
    %v8163 = vld [vmem:[#allocation4 + $0x21] sm:$0xff]
    %v8164 = vld [vmem:[#allocation4 + $0x31] sm:$0xff]
    %v8165 = vld [vmem:[#allocation4 + $0x41] sm:$0xff]
    %v8166 = vld [vmem:[#allocation4 + $0x51] sm:$0xff]
    %v8167 = vld [vmem:[#allocation4 + $0x61] sm:$0xff]
    %v8168 = vld [vmem:[#allocation4 + $0x71] sm:$0xff]
    %v8169 = vld [vmem:[#allocation4 + $0xa1] sm:$0xff]
    %v8170 = vld [vmem:[#allocation4 + $0xb1] sm:$0xff]
    %v8171 = vld [vmem:[#allocation4 + $0xc1] sm:$0xff]
    %v8172 = vld [vmem:[#allocation4 + $0xd1] sm:$0xff]
    %v8173 = vld [vmem:[#allocation4 + $0xe1] sm:$0xff]
    %v8174 = vld [vmem:[#allocation4 + $0xf1] sm:$0xff]
    %v8175 = vld [vmem:[#allocation4 + $0x101] sm:$0xff]
    %v8176 = vld [vmem:[#allocation4 + $0x111] sm:$0xff]
    %8193 = vrot.lane.b32.xlu0 %v8161, 16
    %v8194 = vpop.permute.xlu0 %8193
    %8195 = vrot.lane.b32.xlu0 %v8162, 16
    %v8196 = vpop.permute.xlu0 %8195
    %8197 = vrot.lane.b32.xlu0 %v8163, 16
    %v8198 = vpop.permute.xlu0 %8197
    %8199 = vrot.lane.b32.xlu0 %v8164, 16
    %v8200 = vpop.permute.xlu0 %8199
    %8201 = vrot.lane.b32.xlu0 %v8165, 16
    %v8202 = vpop.permute.xlu0 %8201
    %8203 = vrot.lane.b32.xlu0 %v8166, 16
    %v8204 = vpop.permute.xlu0 %8203
    %8205 = vrot.lane.b32.xlu0 %v8167, 16
    %v8206 = vpop.permute.xlu0 %8205
    %8207 = vrot.lane.b32.xlu0 %v8168, 16
    %v8208 = vpop.permute.xlu0 %8207
    %8209 = vrot.lane.b32.xlu0 %v8169, 16
    %v8210 = vpop.permute.xlu0 %8209
    %8211 = vrot.lane.b32.xlu0 %v8170, 16
    %v8212 = vpop.permute.xlu0 %8211
    %8213 = vrot.lane.b32.xlu0 %v8171, 16
    %v8214 = vpop.permute.xlu0 %8213
    %8215 = vrot.lane.b32.xlu0 %v8172, 16
    %v8216 = vpop.permute.xlu0 %8215
    %8217 = vrot.lane.b32.xlu0 %v8173, 16
    %v8218 = vpop.permute.xlu0 %8217
    %8219 = vrot.lane.b32.xlu0 %v8174, 16
    %v8220 = vpop.permute.xlu0 %8219
    %8221 = vrot.lane.b32.xlu0 %v8175, 16
    %v8222 = vpop.permute.xlu0 %8221
    %8223 = vrot.lane.b32.xlu0 %v8176, 16
    %v8224 = vpop.permute.xlu0 %8223
    %vm8241 = vcmask 261248
    %8242 = vst.msk [vmem:[#allocation5] sm:$0xff] %vm8241, %v8194
    %8243 = vst.msk [vmem:[#allocation5 + $0x10] sm:$0xff] %vm8241, %v8196
    %8244 = vst.msk [vmem:[#allocation5 + $0x20] sm:$0xff] %vm8241, %v8198
    %8245 = vst.msk [vmem:[#allocation5 + $0x30] sm:$0xff] %vm8241, %v8200
    %8246 = vst.msk [vmem:[#allocation5 + $0x40] sm:$0xff] %vm8241, %v8202
    %8247 = vst.msk [vmem:[#allocation5 + $0x50] sm:$0xff] %vm8241, %v8204
    %8248 = vst.msk [vmem:[#allocation5 + $0x60] sm:$0xff] %vm8241, %v8206
    %8249 = vst.msk [vmem:[#allocation5 + $0x70] sm:$0xff] %vm8241, %v8208
    %8250 = vst.msk [vmem:[#allocation5 + $0x80] sm:$0xff] %vm8241, %v8210
    %8251 = vst.msk [vmem:[#allocation5 + $0x90] sm:$0xff] %vm8241, %v8212
    %8252 = vst.msk [vmem:[#allocation5 + $0xa0] sm:$0xff] %vm8241, %v8214
    %8253 = vst.msk [vmem:[#allocation5 + $0xb0] sm:$0xff] %vm8241, %v8216
    %8254 = vst.msk [vmem:[#allocation5 + $0xc0] sm:$0xff] %vm8241, %v8218
    %8255 = vst.msk [vmem:[#allocation5 + $0xd0] sm:$0xff] %vm8241, %v8220
    %8256 = vst.msk [vmem:[#allocation5 + $0xe0] sm:$0xff] %vm8241, %v8222
    %8257 = vst.msk [vmem:[#allocation5 + $0xf0] sm:$0xff] %vm8241, %v8224
    %v8258 = vld [vmem:[#allocation4 + $0x2] sm:$0xff]
    %v8259 = vld [vmem:[#allocation4 + $0x12] sm:$0xff]
    %v8260 = vld [vmem:[#allocation4 + $0x22] sm:$0xff]
    %v8261 = vld [vmem:[#allocation4 + $0x32] sm:$0xff]
    %v8262 = vld [vmem:[#allocation4 + $0x42] sm:$0xff]
    %v8263 = vld [vmem:[#allocation4 + $0x52] sm:$0xff]
    %v8264 = vld [vmem:[#allocation4 + $0x62] sm:$0xff]
    %v8265 = vld [vmem:[#allocation4 + $0x72] sm:$0xff]
    %v8266 = vld [vmem:[#allocation4 + $0xa2] sm:$0xff]
    %v8267 = vld [vmem:[#allocation4 + $0xb2] sm:$0xff]
    %v8268 = vld [vmem:[#allocation4 + $0xc2] sm:$0xff]
    %v8269 = vld [vmem:[#allocation4 + $0xd2] sm:$0xff]
    %v8270 = vld [vmem:[#allocation4 + $0xe2] sm:$0xff]
    %v8271 = vld [vmem:[#allocation4 + $0xf2] sm:$0xff]
    %v8272 = vld [vmem:[#allocation4 + $0x102] sm:$0xff]
    %v8273 = vld [vmem:[#allocation4 + $0x112] sm:$0xff]
    %8290 = vrot.lane.b32.xlu0 %v8258, 32
    %v8291 = vpop.permute.xlu0 %8290
    %8292 = vrot.lane.b32.xlu0 %v8259, 32
    %v8293 = vpop.permute.xlu0 %8292
    %8294 = vrot.lane.b32.xlu0 %v8260, 32
    %v8295 = vpop.permute.xlu0 %8294
    %8296 = vrot.lane.b32.xlu0 %v8261, 32
    %v8297 = vpop.permute.xlu0 %8296
    %8298 = vrot.lane.b32.xlu0 %v8262, 32
    %v8299 = vpop.permute.xlu0 %8298
    %8300 = vrot.lane.b32.xlu0 %v8263, 32
    %v8301 = vpop.permute.xlu0 %8300
    %8302 = vrot.lane.b32.xlu0 %v8264, 32
    %v8303 = vpop.permute.xlu0 %8302
    %8304 = vrot.lane.b32.xlu0 %v8265, 32
    %v8305 = vpop.permute.xlu0 %8304
    %8306 = vrot.lane.b32.xlu0 %v8266, 32
    %v8307 = vpop.permute.xlu0 %8306
    %8308 = vrot.lane.b32.xlu0 %v8267, 32
    %v8309 = vpop.permute.xlu0 %8308
    %8310 = vrot.lane.b32.xlu0 %v8268, 32
    %v8311 = vpop.permute.xlu0 %8310
    %8312 = vrot.lane.b32.xlu0 %v8269, 32
    %v8313 = vpop.permute.xlu0 %8312
    %8314 = vrot.lane.b32.xlu0 %v8270, 32
    %v8315 = vpop.permute.xlu0 %8314
    %8316 = vrot.lane.b32.xlu0 %v8271, 32
    %v8317 = vpop.permute.xlu0 %8316
    %8318 = vrot.lane.b32.xlu0 %v8272, 32
    %v8319 = vpop.permute.xlu0 %8318
    %8320 = vrot.lane.b32.xlu0 %v8273, 32
    %v8321 = vpop.permute.xlu0 %8320
    %vm8338 = vcmask 392448
    %8339 = vst.msk [vmem:[#allocation5] sm:$0xff] %vm8338, %v8291
    %8340 = vst.msk [vmem:[#allocation5 + $0x10] sm:$0xff] %vm8338, %v8293
    %8341 = vst.msk [vmem:[#allocation5 + $0x20] sm:$0xff] %vm8338, %v8295
    %8342 = vst.msk [vmem:[#allocation5 + $0x30] sm:$0xff] %vm8338, %v8297
    %8343 = vst.msk [vmem:[#allocation5 + $0x40] sm:$0xff] %vm8338, %v8299
    %8344 = vst.msk [vmem:[#allocation5 + $0x50] sm:$0xff] %vm8338, %v8301
    %8345 = vst.msk [vmem:[#allocation5 + $0x60] sm:$0xff] %vm8338, %v8303
    %8346 = vst.msk [vmem:[#allocation5 + $0x70] sm:$0xff] %vm8338, %v8305
    %8347 = vst.msk [vmem:[#allocation5 + $0x80] sm:$0xff] %vm8338, %v8307
    %8348 = vst.msk [vmem:[#allocation5 + $0x90] sm:$0xff] %vm8338, %v8309
    %8349 = vst.msk [vmem:[#allocation5 + $0xa0] sm:$0xff] %vm8338, %v8311
    %8350 = vst.msk [vmem:[#allocation5 + $0xb0] sm:$0xff] %vm8338, %v8313
    %8351 = vst.msk [vmem:[#allocation5 + $0xc0] sm:$0xff] %vm8338, %v8315
    %8352 = vst.msk [vmem:[#allocation5 + $0xd0] sm:$0xff] %vm8338, %v8317
    %8353 = vst.msk [vmem:[#allocation5 + $0xe0] sm:$0xff] %vm8338, %v8319
    %8354 = vst.msk [vmem:[#allocation5 + $0xf0] sm:$0xff] %vm8338, %v8321
    %v8355 = vld [vmem:[%s8112] sm:$0xff]
    %v8356 = vld [vmem:[%s8112 + $0x10] sm:$0xff]
    %v8357 = vld [vmem:[%s8112 + $0x20] sm:$0xff]
    %v8358 = vld [vmem:[%s8112 + $0x30] sm:$0xff]
    %v8359 = vld [vmem:[%s8112 + $0x40] sm:$0xff]
    %v8360 = vld [vmem:[%s8112 + $0x50] sm:$0xff]
    %v8361 = vld [vmem:[%s8112 + $0x60] sm:$0xff]
    %v8362 = vld [vmem:[%s8112 + $0x70] sm:$0xff]
    %v8363 = vld [vmem:[%s8112 + $0xa0] sm:$0xff]
    %v8364 = vld [vmem:[%s8112 + $0xb0] sm:$0xff]
    %v8365 = vld [vmem:[%s8112 + $0xc0] sm:$0xff]
    %v8366 = vld [vmem:[%s8112 + $0xd0] sm:$0xff]
    %v8367 = vld [vmem:[%s8112 + $0xe0] sm:$0xff]
    %v8368 = vld [vmem:[%s8112 + $0xf0] sm:$0xff]
    %v8369 = vld [vmem:[%s8112 + $0x100] sm:$0xff]
    %v8370 = vld [vmem:[%s8112 + $0x110] sm:$0xff]
    %8387 = vrot.lane.b32.xlu0 %v8355, 48
    %v8388 = vpop.permute.xlu0 %8387
    %8389 = vrot.lane.b32.xlu0 %v8356, 48
    %v8390 = vpop.permute.xlu0 %8389
    %8391 = vrot.lane.b32.xlu0 %v8357, 48
    %v8392 = vpop.permute.xlu0 %8391
    %8393 = vrot.lane.b32.xlu0 %v8358, 48
    %v8394 = vpop.permute.xlu0 %8393
    %8395 = vrot.lane.b32.xlu0 %v8359, 48
    %v8396 = vpop.permute.xlu0 %8395
    %8397 = vrot.lane.b32.xlu0 %v8360, 48
    %v8398 = vpop.permute.xlu0 %8397
    %8399 = vrot.lane.b32.xlu0 %v8361, 48
    %v8400 = vpop.permute.xlu0 %8399
    %8401 = vrot.lane.b32.xlu0 %v8362, 48
    %v8402 = vpop.permute.xlu0 %8401
    %8403 = vrot.lane.b32.xlu0 %v8363, 48
    %v8404 = vpop.permute.xlu0 %8403
    %8405 = vrot.lane.b32.xlu0 %v8364, 48
    %v8406 = vpop.permute.xlu0 %8405
    %8407 = vrot.lane.b32.xlu0 %v8365, 48
    %v8408 = vpop.permute.xlu0 %8407
    %8409 = vrot.lane.b32.xlu0 %v8366, 48
    %v8410 = vpop.permute.xlu0 %8409
    %8411 = vrot.lane.b32.xlu0 %v8367, 48
    %v8412 = vpop.permute.xlu0 %8411
    %8413 = vrot.lane.b32.xlu0 %v8368, 48
    %v8414 = vpop.permute.xlu0 %8413
    %8415 = vrot.lane.b32.xlu0 %v8369, 48
    %v8416 = vpop.permute.xlu0 %8415
    %8417 = vrot.lane.b32.xlu0 %v8370, 48
    %v8418 = vpop.permute.xlu0 %8417
    %vm8435 = vcmask 523648
    %8436 = vst.msk [vmem:[#allocation5] sm:$0xff] %vm8435, %v8388
    %8437 = vst.msk [vmem:[#allocation5 + $0x10] sm:$0xff] %vm8435, %v8390
    %8438 = vst.msk [vmem:[#allocation5 + $0x20] sm:$0xff] %vm8435, %v8392
    %8439 = vst.msk [vmem:[#allocation5 + $0x30] sm:$0xff] %vm8435, %v8394
    %8440 = vst.msk [vmem:[#allocation5 + $0x40] sm:$0xff] %vm8435, %v8396
    %8441 = vst.msk [vmem:[#allocation5 + $0x50] sm:$0xff] %vm8435, %v8398
    %8442 = vst.msk [vmem:[#allocation5 + $0x60] sm:$0xff] %vm8435, %v8400
    %8443 = vst.msk [vmem:[#allocation5 + $0x70] sm:$0xff] %vm8435, %v8402
    %8444 = vst.msk [vmem:[#allocation5 + $0x80] sm:$0xff] %vm8435, %v8404
    %8445 = vst.msk [vmem:[#allocation5 + $0x90] sm:$0xff] %vm8435, %v8406
    %8446 = vst.msk [vmem:[#allocation5 + $0xa0] sm:$0xff] %vm8435, %v8408
    %8447 = vst.msk [vmem:[#allocation5 + $0xb0] sm:$0xff] %vm8435, %v8410
    %8448 = vst.msk [vmem:[#allocation5 + $0xc0] sm:$0xff] %vm8435, %v8412
    %8449 = vst.msk [vmem:[#allocation5 + $0xd0] sm:$0xff] %vm8435, %v8414
    %8450 = vst.msk [vmem:[#allocation5 + $0xe0] sm:$0xff] %vm8435, %v8416
    %8451 = vst.msk [vmem:[#allocation5 + $0xf0] sm:$0xff] %vm8435, %v8418
    %v8452 = vld [vmem:[%s8112 + $0x1] sm:$0xff]
    %v8453 = vld [vmem:[%s8112 + $0x11] sm:$0xff]
    %v8454 = vld [vmem:[%s8112 + $0x21] sm:$0xff]
    %v8455 = vld [vmem:[%s8112 + $0x31] sm:$0xff]
    %v8456 = vld [vmem:[%s8112 + $0x41] sm:$0xff]
    %v8457 = vld [vmem:[%s8112 + $0x51] sm:$0xff]
    %v8458 = vld [vmem:[%s8112 + $0x61] sm:$0xff]
    %v8459 = vld [vmem:[%s8112 + $0x71] sm:$0xff]
    %v8460 = vld [vmem:[%s8112 + $0xa1] sm:$0xff]
    %v8461 = vld [vmem:[%s8112 + $0xb1] sm:$0xff]
    %v8462 = vld [vmem:[%s8112 + $0xc1] sm:$0xff]
    %v8463 = vld [vmem:[%s8112 + $0xd1] sm:$0xff]
    %v8464 = vld [vmem:[%s8112 + $0xe1] sm:$0xff]
    %v8465 = vld [vmem:[%s8112 + $0xf1] sm:$0xff]
    %v8466 = vld [vmem:[%s8112 + $0x101] sm:$0xff]
    %v8467 = vld [vmem:[%s8112 + $0x111] sm:$0xff]
    %8484 = vrot.lane.b32.xlu0 %v8452, 64
    %v8485 = vpop.permute.xlu0 %8484
    %8486 = vrot.lane.b32.xlu0 %v8453, 64
    %v8487 = vpop.permute.xlu0 %8486
    %8488 = vrot.lane.b32.xlu0 %v8454, 64
    %v8489 = vpop.permute.xlu0 %8488
    %8490 = vrot.lane.b32.xlu0 %v8455, 64
    %v8491 = vpop.permute.xlu0 %8490
    %8492 = vrot.lane.b32.xlu0 %v8456, 64
    %v8493 = vpop.permute.xlu0 %8492
    %8494 = vrot.lane.b32.xlu0 %v8457, 64
    %v8495 = vpop.permute.xlu0 %8494
    %8496 = vrot.lane.b32.xlu0 %v8458, 64
    %v8497 = vpop.permute.xlu0 %8496
    %8498 = vrot.lane.b32.xlu0 %v8459, 64
    %v8499 = vpop.permute.xlu0 %8498
    %8500 = vrot.lane.b32.xlu0 %v8460, 64
    %v8501 = vpop.permute.xlu0 %8500
    %8502 = vrot.lane.b32.xlu0 %v8461, 64
    %v8503 = vpop.permute.xlu0 %8502
    %8504 = vrot.lane.b32.xlu0 %v8462, 64
    %v8505 = vpop.permute.xlu0 %8504
    %8506 = vrot.lane.b32.xlu0 %v8463, 64
    %v8507 = vpop.permute.xlu0 %8506
    %8508 = vrot.lane.b32.xlu0 %v8464, 64
    %v8509 = vpop.permute.xlu0 %8508
    %8510 = vrot.lane.b32.xlu0 %v8465, 64
    %v8511 = vpop.permute.xlu0 %8510
    %8512 = vrot.lane.b32.xlu0 %v8466, 64
    %v8513 = vpop.permute.xlu0 %8512
    %8514 = vrot.lane.b32.xlu0 %v8467, 64
    %v8515 = vpop.permute.xlu0 %8514
    %vm8532 = vcmask 654848
    %8533 = vst.msk [vmem:[#allocation5] sm:$0xff] %vm8532, %v8485
    %8534 = vst.msk [vmem:[#allocation5 + $0x10] sm:$0xff] %vm8532, %v8487
    %8535 = vst.msk [vmem:[#allocation5 + $0x20] sm:$0xff] %vm8532, %v8489
    %8536 = vst.msk [vmem:[#allocation5 + $0x30] sm:$0xff] %vm8532, %v8491
    %8537 = vst.msk [vmem:[#allocation5 + $0x40] sm:$0xff] %vm8532, %v8493
    %8538 = vst.msk [vmem:[#allocation5 + $0x50] sm:$0xff] %vm8532, %v8495
    %8539 = vst.msk [vmem:[#allocation5 + $0x60] sm:$0xff] %vm8532, %v8497
    %8540 = vst.msk [vmem:[#allocation5 + $0x70] sm:$0xff] %vm8532, %v8499
    %8541 = vst.msk [vmem:[#allocation5 + $0x80] sm:$0xff] %vm8532, %v8501
    %8542 = vst.msk [vmem:[#allocation5 + $0x90] sm:$0xff] %vm8532, %v8503
    %8543 = vst.msk [vmem:[#allocation5 + $0xa0] sm:$0xff] %vm8532, %v8505
    %8544 = vst.msk [vmem:[#allocation5 + $0xb0] sm:$0xff] %vm8532, %v8507
    %8545 = vst.msk [vmem:[#allocation5 + $0xc0] sm:$0xff] %vm8532, %v8509
    %8546 = vst.msk [vmem:[#allocation5 + $0xd0] sm:$0xff] %vm8532, %v8511
    %8547 = vst.msk [vmem:[#allocation5 + $0xe0] sm:$0xff] %vm8532, %v8513
    %8548 = vst.msk [vmem:[#allocation5 + $0xf0] sm:$0xff] %vm8532, %v8515
    %v8549 = vld [vmem:[%s8112 + $0x2] sm:$0xff]
    %v8550 = vld [vmem:[%s8112 + $0x12] sm:$0xff]
    %v8551 = vld [vmem:[%s8112 + $0x22] sm:$0xff]
    %v8552 = vld [vmem:[%s8112 + $0x32] sm:$0xff]
    %v8553 = vld [vmem:[%s8112 + $0x42] sm:$0xff]
    %v8554 = vld [vmem:[%s8112 + $0x52] sm:$0xff]
    %v8555 = vld [vmem:[%s8112 + $0x62] sm:$0xff]
    %v8556 = vld [vmem:[%s8112 + $0x72] sm:$0xff]
    %v8557 = vld [vmem:[%s8112 + $0xa2] sm:$0xff]
    %v8558 = vld [vmem:[%s8112 + $0xb2] sm:$0xff]
    %v8559 = vld [vmem:[%s8112 + $0xc2] sm:$0xff]
    %v8560 = vld [vmem:[%s8112 + $0xd2] sm:$0xff]
    %v8561 = vld [vmem:[%s8112 + $0xe2] sm:$0xff]
    %v8562 = vld [vmem:[%s8112 + $0xf2] sm:$0xff]
    %v8563 = vld [vmem:[%s8112 + $0x102] sm:$0xff]
    %v8564 = vld [vmem:[%s8112 + $0x112] sm:$0xff]
    %8581 = vrot.lane.b32.xlu0 %v8549, 80
    %v8582 = vpop.permute.xlu0 %8581
    %8583 = vrot.lane.b32.xlu0 %v8550, 80
    %v8584 = vpop.permute.xlu0 %8583
    %8585 = vrot.lane.b32.xlu0 %v8551, 80
    %v8586 = vpop.permute.xlu0 %8585
    %8587 = vrot.lane.b32.xlu0 %v8552, 80
    %v8588 = vpop.permute.xlu0 %8587
    %8589 = vrot.lane.b32.xlu0 %v8553, 80
    %v8590 = vpop.permute.xlu0 %8589
    %8591 = vrot.lane.b32.xlu0 %v8554, 80
    %v8592 = vpop.permute.xlu0 %8591
    %8593 = vrot.lane.b32.xlu0 %v8555, 80
    %v8594 = vpop.permute.xlu0 %8593
    %8595 = vrot.lane.b32.xlu0 %v8556, 80
    %v8596 = vpop.permute.xlu0 %8595
    %8597 = vrot.lane.b32.xlu0 %v8557, 80
    %v8598 = vpop.permute.xlu0 %8597
    %8599 = vrot.lane.b32.xlu0 %v8558, 80
    %v8600 = vpop.permute.xlu0 %8599
    %8601 = vrot.lane.b32.xlu0 %v8559, 80
    %v8602 = vpop.permute.xlu0 %8601
    %8603 = vrot.lane.b32.xlu0 %v8560, 80
    %v8604 = vpop.permute.xlu0 %8603
    %8605 = vrot.lane.b32.xlu0 %v8561, 80
    %v8606 = vpop.permute.xlu0 %8605
    %8607 = vrot.lane.b32.xlu0 %v8562, 80
    %v8608 = vpop.permute.xlu0 %8607
    %8609 = vrot.lane.b32.xlu0 %v8563, 80
    %v8610 = vpop.permute.xlu0 %8609
    %8611 = vrot.lane.b32.xlu0 %v8564, 80
    %v8612 = vpop.permute.xlu0 %8611
    %vm8629 = vcmask 786048
    %8630 = vst.msk [vmem:[#allocation5] sm:$0xff] %vm8629, %v8582
    %8631 = vst.msk [vmem:[#allocation5 + $0x10] sm:$0xff] %vm8629, %v8584
    %8632 = vst.msk [vmem:[#allocation5 + $0x20] sm:$0xff] %vm8629, %v8586
    %8633 = vst.msk [vmem:[#allocation5 + $0x30] sm:$0xff] %vm8629, %v8588
    %8634 = vst.msk [vmem:[#allocation5 + $0x40] sm:$0xff] %vm8629, %v8590
    %8635 = vst.msk [vmem:[#allocation5 + $0x50] sm:$0xff] %vm8629, %v8592
    %8636 = vst.msk [vmem:[#allocation5 + $0x60] sm:$0xff] %vm8629, %v8594
    %8637 = vst.msk [vmem:[#allocation5 + $0x70] sm:$0xff] %vm8629, %v8596
    %8638 = vst.msk [vmem:[#allocation5 + $0x80] sm:$0xff] %vm8629, %v8598
    %8639 = vst.msk [vmem:[#allocation5 + $0x90] sm:$0xff] %vm8629, %v8600
    %8640 = vst.msk [vmem:[#allocation5 + $0xa0] sm:$0xff] %vm8629, %v8602
    %8641 = vst.msk [vmem:[#allocation5 + $0xb0] sm:$0xff] %vm8629, %v8604
    %8642 = vst.msk [vmem:[#allocation5 + $0xc0] sm:$0xff] %vm8629, %v8606
    %8643 = vst.msk [vmem:[#allocation5 + $0xd0] sm:$0xff] %vm8629, %v8608
    %8644 = vst.msk [vmem:[#allocation5 + $0xe0] sm:$0xff] %vm8629, %v8610
    %8645 = vst.msk [vmem:[#allocation5 + $0xf0] sm:$0xff] %vm8629, %v8612
    %s8646 = scalar_lea.vmem [#allocation4], 32
    %v8647 = vld [vmem:[%s8646] sm:$0xff]
    %v8648 = vld [vmem:[%s8646 + $0x10] sm:$0xff]
    %v8649 = vld [vmem:[%s8646 + $0x20] sm:$0xff]
    %v8650 = vld [vmem:[%s8646 + $0x30] sm:$0xff]
    %v8651 = vld [vmem:[%s8646 + $0x40] sm:$0xff]
    %v8652 = vld [vmem:[%s8646 + $0x50] sm:$0xff]
    %v8653 = vld [vmem:[%s8646 + $0x60] sm:$0xff]
    %v8654 = vld [vmem:[%s8646 + $0x70] sm:$0xff]
    %v8655 = vld [vmem:[%s8646 + $0xa0] sm:$0xff]
    %v8656 = vld [vmem:[%s8646 + $0xb0] sm:$0xff]
    %v8657 = vld [vmem:[%s8646 + $0xc0] sm:$0xff]
    %v8658 = vld [vmem:[%s8646 + $0xd0] sm:$0xff]
    %v8659 = vld [vmem:[%s8646 + $0xe0] sm:$0xff]
    %v8660 = vld [vmem:[%s8646 + $0xf0] sm:$0xff]
    %v8661 = vld [vmem:[%s8646 + $0x100] sm:$0xff]
    %v8662 = vld [vmem:[%s8646 + $0x110] sm:$0xff]
    %8679 = vrot.lane.b32.xlu0 %v8647, 96
    %v8680 = vpop.permute.xlu0 %8679
    %8681 = vrot.lane.b32.xlu0 %v8648, 96
    %v8682 = vpop.permute.xlu0 %8681
    %8683 = vrot.lane.b32.xlu0 %v8649, 96
    %v8684 = vpop.permute.xlu0 %8683
    %8685 = vrot.lane.b32.xlu0 %v8650, 96
    %v8686 = vpop.permute.xlu0 %8685
    %8687 = vrot.lane.b32.xlu0 %v8651, 96
    %v8688 = vpop.permute.xlu0 %8687
    %8689 = vrot.lane.b32.xlu0 %v8652, 96
    %v8690 = vpop.permute.xlu0 %8689
    %8691 = vrot.lane.b32.xlu0 %v8653, 96
    %v8692 = vpop.permute.xlu0 %8691
    %8693 = vrot.lane.b32.xlu0 %v8654, 96
    %v8694 = vpop.permute.xlu0 %8693
    %8695 = vrot.lane.b32.xlu0 %v8655, 96
    %v8696 = vpop.permute.xlu0 %8695
    %8697 = vrot.lane.b32.xlu0 %v8656, 96
    %v8698 = vpop.permute.xlu0 %8697
    %8699 = vrot.lane.b32.xlu0 %v8657, 96
    %v8700 = vpop.permute.xlu0 %8699
    %8701 = vrot.lane.b32.xlu0 %v8658, 96
    %v8702 = vpop.permute.xlu0 %8701
    %8703 = vrot.lane.b32.xlu0 %v8659, 96
    %v8704 = vpop.permute.xlu0 %8703
    %8705 = vrot.lane.b32.xlu0 %v8660, 96
    %v8706 = vpop.permute.xlu0 %8705
    %8707 = vrot.lane.b32.xlu0 %v8661, 96
    %v8708 = vpop.permute.xlu0 %8707
    %8709 = vrot.lane.b32.xlu0 %v8662, 96
    %v8710 = vpop.permute.xlu0 %8709
    %vm8727 = vcmask 917248
    %8728 = vst.msk [vmem:[#allocation5] sm:$0xff] %vm8727, %v8680
    %8729 = vst.msk [vmem:[#allocation5 + $0x10] sm:$0xff] %vm8727, %v8682
    %8730 = vst.msk [vmem:[#allocation5 + $0x20] sm:$0xff] %vm8727, %v8684
    %8731 = vst.msk [vmem:[#allocation5 + $0x30] sm:$0xff] %vm8727, %v8686
    %8732 = vst.msk [vmem:[#allocation5 + $0x40] sm:$0xff] %vm8727, %v8688
    %8733 = vst.msk [vmem:[#allocation5 + $0x50] sm:$0xff] %vm8727, %v8690
    %8734 = vst.msk [vmem:[#allocation5 + $0x60] sm:$0xff] %vm8727, %v8692
    %8735 = vst.msk [vmem:[#allocation5 + $0x70] sm:$0xff] %vm8727, %v8694
    %8736 = vst.msk [vmem:[#allocation5 + $0x80] sm:$0xff] %vm8727, %v8696
    %8737 = vst.msk [vmem:[#allocation5 + $0x90] sm:$0xff] %vm8727, %v8698
    %8738 = vst.msk [vmem:[#allocation5 + $0xa0] sm:$0xff] %vm8727, %v8700
    %8739 = vst.msk [vmem:[#allocation5 + $0xb0] sm:$0xff] %vm8727, %v8702
    %8740 = vst.msk [vmem:[#allocation5 + $0xc0] sm:$0xff] %vm8727, %v8704
    %8741 = vst.msk [vmem:[#allocation5 + $0xd0] sm:$0xff] %vm8727, %v8706
    %8742 = vst.msk [vmem:[#allocation5 + $0xe0] sm:$0xff] %vm8727, %v8708
    %8743 = vst.msk [vmem:[#allocation5 + $0xf0] sm:$0xff] %vm8727, %v8710
    %v8744 = vld [vmem:[%s8646 + $0x1] sm:$0xff]
    %v8745 = vld [vmem:[%s8646 + $0x11] sm:$0xff]
    %v8746 = vld [vmem:[%s8646 + $0x21] sm:$0xff]
    %v8747 = vld [vmem:[%s8646 + $0x31] sm:$0xff]
    %v8748 = vld [vmem:[%s8646 + $0x41] sm:$0xff]
    %v8749 = vld [vmem:[%s8646 + $0x51] sm:$0xff]
    %v8750 = vld [vmem:[%s8646 + $0x61] sm:$0xff]
    %v8751 = vld [vmem:[%s8646 + $0x71] sm:$0xff]
    %v8752 = vld [vmem:[%s8646 + $0xa1] sm:$0xff]
    %v8753 = vld [vmem:[%s8646 + $0xb1] sm:$0xff]
    %v8754 = vld [vmem:[%s8646 + $0xc1] sm:$0xff]
    %v8755 = vld [vmem:[%s8646 + $0xd1] sm:$0xff]
    %v8756 = vld [vmem:[%s8646 + $0xe1] sm:$0xff]
    %v8757 = vld [vmem:[%s8646 + $0xf1] sm:$0xff]
    %v8758 = vld [vmem:[%s8646 + $0x101] sm:$0xff]
    %v8759 = vld [vmem:[%s8646 + $0x111] sm:$0xff]
    %8776 = vrot.lane.b32.xlu0 %v8744, 112
    %v8777 = vpop.permute.xlu0 %8776
    %8778 = vrot.lane.b32.xlu0 %v8745, 112
    %v8779 = vpop.permute.xlu0 %8778
    %8780 = vrot.lane.b32.xlu0 %v8746, 112
    %v8781 = vpop.permute.xlu0 %8780
    %8782 = vrot.lane.b32.xlu0 %v8747, 112
    %v8783 = vpop.permute.xlu0 %8782
    %8784 = vrot.lane.b32.xlu0 %v8748, 112
    %v8785 = vpop.permute.xlu0 %8784
    %8786 = vrot.lane.b32.xlu0 %v8749, 112
    %v8787 = vpop.permute.xlu0 %8786
    %8788 = vrot.lane.b32.xlu0 %v8750, 112
    %v8789 = vpop.permute.xlu0 %8788
    %8790 = vrot.lane.b32.xlu0 %v8751, 112
    %v8791 = vpop.permute.xlu0 %8790
    %8792 = vrot.lane.b32.xlu0 %v8752, 112
    %v8793 = vpop.permute.xlu0 %8792
    %8794 = vrot.lane.b32.xlu0 %v8753, 112
    %v8795 = vpop.permute.xlu0 %8794
    %8796 = vrot.lane.b32.xlu0 %v8754, 112
    %v8797 = vpop.permute.xlu0 %8796
    %8798 = vrot.lane.b32.xlu0 %v8755, 112
    %v8799 = vpop.permute.xlu0 %8798
    %8800 = vrot.lane.b32.xlu0 %v8756, 112
    %v8801 = vpop.permute.xlu0 %8800
    %8802 = vrot.lane.b32.xlu0 %v8757, 112
    %v8803 = vpop.permute.xlu0 %8802
    %8804 = vrot.lane.b32.xlu0 %v8758, 112
    %v8805 = vpop.permute.xlu0 %8804
    %8806 = vrot.lane.b32.xlu0 %v8759, 112
    %v8807 = vpop.permute.xlu0 %8806
    %vm8824 = vcmask 1048448
    %8825 = vst.msk [vmem:[#allocation5] sm:$0xff] %vm8824, %v8777
    %8826 = vst.msk [vmem:[#allocation5 + $0x10] sm:$0xff] %vm8824, %v8779
    %8827 = vst.msk [vmem:[#allocation5 + $0x20] sm:$0xff] %vm8824, %v8781
    %8828 = vst.msk [vmem:[#allocation5 + $0x30] sm:$0xff] %vm8824, %v8783
    %8829 = vst.msk [vmem:[#allocation5 + $0x40] sm:$0xff] %vm8824, %v8785
    %8830 = vst.msk [vmem:[#allocation5 + $0x50] sm:$0xff] %vm8824, %v8787
    %8831 = vst.msk [vmem:[#allocation5 + $0x60] sm:$0xff] %vm8824, %v8789
    %8832 = vst.msk [vmem:[#allocation5 + $0x70] sm:$0xff] %vm8824, %v8791
    %8833 = vst.msk [vmem:[#allocation5 + $0x80] sm:$0xff] %vm8824, %v8793
    %8834 = vst.msk [vmem:[#allocation5 + $0x90] sm:$0xff] %vm8824, %v8795
    %8835 = vst.msk [vmem:[#allocation5 + $0xa0] sm:$0xff] %vm8824, %v8797
    %8836 = vst.msk [vmem:[#allocation5 + $0xb0] sm:$0xff] %vm8824, %v8799
    %8837 = vst.msk [vmem:[#allocation5 + $0xc0] sm:$0xff] %vm8824, %v8801
    %8838 = vst.msk [vmem:[#allocation5 + $0xd0] sm:$0xff] %vm8824, %v8803
    %8839 = vst.msk [vmem:[#allocation5 + $0xe0] sm:$0xff] %vm8824, %v8805
    %8840 = vst.msk [vmem:[#allocation5 + $0xf0] sm:$0xff] %vm8824, %v8807
    %v8841 = vld [vmem:[%s8646 + $0x2] sm:$0xff]
    %v8842 = vld [vmem:[%s8646 + $0x12] sm:$0xff]
    %v8843 = vld [vmem:[%s8646 + $0x22] sm:$0xff]
    %v8844 = vld [vmem:[%s8646 + $0x32] sm:$0xff]
    %v8845 = vld [vmem:[%s8646 + $0x42] sm:$0xff]
    %v8846 = vld [vmem:[%s8646 + $0x52] sm:$0xff]
    %v8847 = vld [vmem:[%s8646 + $0x62] sm:$0xff]
    %v8848 = vld [vmem:[%s8646 + $0x72] sm:$0xff]
    %v8849 = vld [vmem:[%s8646 + $0xa2] sm:$0xff]
    %v8850 = vld [vmem:[%s8646 + $0xb2] sm:$0xff]
    %v8851 = vld [vmem:[%s8646 + $0xc2] sm:$0xff]
    %v8852 = vld [vmem:[%s8646 + $0xd2] sm:$0xff]
    %v8853 = vld [vmem:[%s8646 + $0xe2] sm:$0xff]
    %v8854 = vld [vmem:[%s8646 + $0xf2] sm:$0xff]
    %v8855 = vld [vmem:[%s8646 + $0x102] sm:$0xff]
    %v8856 = vld [vmem:[%s8646 + $0x112] sm:$0xff]
    %8857 = vst.msk [vmem:[#allocation5 + $0x8] sm:$0xff] %vm7424, %v8841
    %8858 = vst.msk [vmem:[#allocation5 + $0x18] sm:$0xff] %vm7424, %v8842
    %8859 = vst.msk [vmem:[#allocation5 + $0x28] sm:$0xff] %vm7424, %v8843
    %8860 = vst.msk [vmem:[#allocation5 + $0x38] sm:$0xff] %vm7424, %v8844
    %8861 = vst.msk [vmem:[#allocation5 + $0x48] sm:$0xff] %vm7424, %v8845
    %8862 = vst.msk [vmem:[#allocation5 + $0x58] sm:$0xff] %vm7424, %v8846
    %8863 = vst.msk [vmem:[#allocation5 + $0x68] sm:$0xff] %vm7424, %v8847
    %8864 = vst.msk [vmem:[#allocation5 + $0x78] sm:$0xff] %vm7424, %v8848
    %8865 = vst.msk [vmem:[#allocation5 + $0x88] sm:$0xff] %vm7424, %v8849
    %8866 = vst.msk [vmem:[#allocation5 + $0x98] sm:$0xff] %vm7424, %v8850
    %8867 = vst.msk [vmem:[#allocation5 + $0xa8] sm:$0xff] %vm7424, %v8851
    %8868 = vst.msk [vmem:[#allocation5 + $0xb8] sm:$0xff] %vm7424, %v8852
    %8869 = vst.msk [vmem:[#allocation5 + $0xc8] sm:$0xff] %vm7424, %v8853
    %8870 = vst.msk [vmem:[#allocation5 + $0xd8] sm:$0xff] %vm7424, %v8854
    %8871 = vst.msk [vmem:[#allocation5 + $0xe8] sm:$0xff] %vm7424, %v8855
    %8872 = vst.msk [vmem:[#allocation5 + $0xf8] sm:$0xff] %vm7424, %v8856
    %v8873 = vld [vmem:[#allocation5] sm:$0xff]
    %v8874 = vld [vmem:[#allocation5 + $0x8] sm:$0xff]
    %v8875 = vld [vmem:[#allocation5 + $0x10] sm:$0xff]
    %v8876 = vld [vmem:[#allocation5 + $0x18] sm:$0xff]
    %v8877 = vld [vmem:[#allocation5 + $0x20] sm:$0xff]
    %v8878 = vld [vmem:[#allocation5 + $0x28] sm:$0xff]
    %v8879 = vld [vmem:[#allocation5 + $0x30] sm:$0xff]
    %v8880 = vld [vmem:[#allocation5 + $0x38] sm:$0xff]
    %v8881 = vld [vmem:[#allocation5 + $0x40] sm:$0xff]
    %v8882 = vld [vmem:[#allocation5 + $0x48] sm:$0xff]
    %v8883 = vld [vmem:[#allocation5 + $0x50] sm:$0xff]
    %v8884 = vld [vmem:[#allocation5 + $0x58] sm:$0xff]
    %v8885 = vld [vmem:[#allocation5 + $0x60] sm:$0xff]
    %v8886 = vld [vmem:[#allocation5 + $0x68] sm:$0xff]
    %v8887 = vld [vmem:[#allocation5 + $0x70] sm:$0xff]
    %v8888 = vld [vmem:[#allocation5 + $0x78] sm:$0xff]
    %v8889 = vld [vmem:[#allocation5 + $0x80] sm:$0xff]
    %v8890 = vld [vmem:[#allocation5 + $0x88] sm:$0xff]
    %v8891 = vld [vmem:[#allocation5 + $0x90] sm:$0xff]
    %v8892 = vld [vmem:[#allocation5 + $0x98] sm:$0xff]
    %v8893 = vld [vmem:[#allocation5 + $0xa0] sm:$0xff]
    %v8894 = vld [vmem:[#allocation5 + $0xa8] sm:$0xff]
    %v8895 = vld [vmem:[#allocation5 + $0xb0] sm:$0xff]
    %v8896 = vld [vmem:[#allocation5 + $0xb8] sm:$0xff]
    %v8897 = vld [vmem:[#allocation5 + $0xc0] sm:$0xff]
    %v8898 = vld [vmem:[#allocation5 + $0xc8] sm:$0xff]
    %v8899 = vld [vmem:[#allocation5 + $0xd0] sm:$0xff]
    %v8900 = vld [vmem:[#allocation5 + $0xd8] sm:$0xff]
    %v8901 = vld [vmem:[#allocation5 + $0xe0] sm:$0xff]
    %v8902 = vld [vmem:[#allocation5 + $0xe8] sm:$0xff]
    %v8903 = vld [vmem:[#allocation5 + $0xf0] sm:$0xff]
    %v8904 = vld [vmem:[#allocation5 + $0xf8] sm:$0xff]
    %v8905 = vld [vmem:[%s3] sm:$0xff]
    %v8906 = vld [vmem:[%s3 + $0x8] sm:$0xff]
    %v8907 = vld [vmem:[%s3 + $0x10] sm:$0xff]
    %v8908 = vld [vmem:[%s3 + $0x18] sm:$0xff]
    %v8909 = vld [vmem:[%s3 + $0x20] sm:$0xff]
    %v8910 = vld [vmem:[%s3 + $0x28] sm:$0xff]
    %v8911 = vld [vmem:[%s3 + $0x30] sm:$0xff]
    %v8912 = vld [vmem:[%s3 + $0x38] sm:$0xff]
    %v8913 = vld [vmem:[%s3 + $0x40] sm:$0xff]
    %v8914 = vld [vmem:[%s3 + $0x48] sm:$0xff]
    %v8915 = vld [vmem:[%s3 + $0x50] sm:$0xff]
    %v8916 = vld [vmem:[%s3 + $0x58] sm:$0xff]
    %v8917 = vld [vmem:[%s3 + $0x60] sm:$0xff]
    %v8918 = vld [vmem:[%s3 + $0x68] sm:$0xff]
    %v8919 = vld [vmem:[%s3 + $0x70] sm:$0xff]
    %v8920 = vld [vmem:[%s3 + $0x78] sm:$0xff]
    %v8921 = vld [vmem:[%s3 + $0x80] sm:$0xff]
    %v8922 = vld [vmem:[%s3 + $0x88] sm:$0xff]
    %v8923 = vld [vmem:[%s4] sm:$0x1]
    %v8925 = vlaneseq
    %v8926 = vshrl.u32 %v8925, 7
    %v8927 = vsub.s32 0, %v8926
    %v8928 = vrot.slane %v8923, %v8927
    %v8931 = vsel %vm7424, %v8874, 0
    %v8934 = vsel %vm7424, %v8876, 0
    %v8937 = vsel %vm7424, %v8878, 0
    %v8940 = vsel %vm7424, %v8880, 0
    %v8943 = vsel %vm7424, %v8882, 0
    %v8946 = vsel %vm7424, %v8884, 0
    %v8949 = vsel %vm7424, %v8886, 0
    %v8952 = vsel %vm7424, %v8888, 0
    %v8955 = vsel %vm7424, %v8890, 0
    %v8958 = vsel %vm7424, %v8892, 0
    %v8961 = vsel %vm7424, %v8894, 0
    %v8964 = vsel %vm7424, %v8896, 0
    %v8967 = vsel %vm7424, %v8898, 0
    %v8970 = vsel %vm7424, %v8900, 0
    %v8973 = vsel %vm7424, %v8902, 0
    %v8976 = vsel %vm7424, %v8904, 0
    %8978 = vmatprep.subr.mxu0 0.0
    %8979 = vmatpush1.msra.mxu0 %v8905
    %8980 = vmatprep.subr.mxu0 0.0
    %8981 = vmatpush1.msra.mxu0 %v8906
    %8982 = vmatprep.subr.mxu0 0.0
    %8983 = vmatpush1.msra.mxu0 %v8907
    %8984 = vmatprep.subr.mxu0 0.0
    %8985 = vmatpush1.msra.mxu0 %v8908
    %8986 = vmatprep.subr.mxu0 0.0
    %8987 = vmatpush1.msra.mxu0 %v8909
    %8988 = vmatprep.subr.mxu0 0.0
    %8989 = vmatpush1.msra.mxu0 %v8910
    %8990 = vmatprep.subr.mxu0 0.0
    %8991 = vmatpush1.msra.mxu0 %v8911
    %8992 = vmatprep.subr.mxu0 0.0
    %8993 = vmatpush1.msra.mxu0 %v8912
    %8994 = vmatprep.subr.mxu0 0.0
    %8995 = vmatpush1.msra.mxu0 %v8913
    %8996 = vmatprep.subr.mxu0 0.0
    %8997 = vmatpush1.msra.mxu0 %v8914
    %8998 = vmatprep.subr.mxu0 0.0
    %8999 = vmatpush1.msra.mxu0 %v8915
    %9000 = vmatprep.subr.mxu0 0.0
    %9001 = vmatpush1.msra.mxu0 %v8916
    %9002 = vmatprep.subr.mxu0 0.0
    %9003 = vmatpush1.msra.mxu0 %v8917
    %9004 = vmatprep.subr.mxu0 0.0
    %9005 = vmatpush1.msra.mxu0 %v8918
    %9006 = vmatprep.subr.mxu0 0.0
    %9007 = vmatpush1.msra.mxu0 %v8919
    %9008 = vmatprep.subr.mxu0 0.0
    %9009 = vmatpush1.msra.mxu0 %v8920
    %9010 = vmatprep.subr.mxu0 0.0
    %9011 = vmatpush1.msra.mxu0 %v8921
    %9012 = vmatprep.subr.mxu0 0.0
    %9013 = vmatpush1.msra.mxu0 %v8922
    %9014 = vmatprep.subr.mxu0 0.0
    %9015 = vmatpush1.msra.mxu0 0.0
    %9016 = vmatprep.subr.mxu0 0.0
    %9017 = vmatpush1.msra.mxu0 0.0
    %9018 = vmatprep.subr.mxu0 0.0
    %9019 = vmatpush1.msra.mxu0 0.0
    %9020 = vmatprep.subr.mxu0 0.0
    %9021 = vmatpush1.msra.mxu0 0.0
    %9022 = vmatprep.subr.mxu0 0.0
    %9023 = vmatpush1.msra.mxu0 0.0
    %9024 = vmatprep.subr.mxu0 0.0
    %9025 = vmatpush1.msra.mxu0 0.0
    %9026 = vmatprep.subr.mxu0 0.0
    %9027 = vmatpush1.msra.mxu0 0.0
    %9028 = vmatprep.subr.mxu0 0.0
    %9029 = vmatpush1.msra.mxu0 0.0
    %9030 = vmatprep.subr.mxu0 0.0
    %9031 = vmatpush1.msra.mxu0 0.0
    %9032 = vmatprep.subr.mxu0 0.0
    %9033 = vmatpush1.msra.mxu0 0.0
    %9034 = vmatprep.subr.mxu0 0.0
    %9035 = vmatpush1.msra.mxu0 0.0
    %9036 = vmatprep.subr.mxu0 0.0
    %9037 = vmatpush1.msra.mxu0 0.0
    %9038 = vmatprep.subr.mxu0 0.0
    %9039 = vmatpush1.msra.mxu0 0.0
    %9040 = vmatprep.subr.mxu0 0.0
    %9041 = vmatpush1.msra.mxu0 0.0
    %9042 = vmatprep.mubr.f32.mxu0 %v8931
    %9043 = vmatmul.mubr.f32.gmra.mrb[0].mxu0 %v8873
    %v9044 = vpop.f32.mrb[0].mxu0
    %v9045 = vadd.f32 %v8928, %v9044
    %v9046 = vpop.f32.mrb[0].mxu0
    %9047 = vmatprep.mubr.f32.mxu0 %v8934
    %9048 = vmatmul.mubr.f32.gmra.mrb[0].mxu0 %v8875
    %v9049 = vpop.f32.mrb[0].mxu0
    %v9050 = vadd.f32 %v8928, %v9049
    %v9051 = vpop.f32.mrb[0].mxu0
    %9052 = vmatprep.mubr.f32.mxu0 %v8937
    %9053 = vmatmul.mubr.f32.gmra.mrb[0].mxu0 %v8877
    %v9054 = vpop.f32.mrb[0].mxu0
    %v9055 = vadd.f32 %v8928, %v9054
    %v9056 = vpop.f32.mrb[0].mxu0
    %9057 = vmatprep.mubr.f32.mxu0 %v8940
    %9058 = vmatmul.mubr.f32.gmra.mrb[0].mxu0 %v8879
    %v9059 = vpop.f32.mrb[0].mxu0
    %v9060 = vadd.f32 %v8928, %v9059
    %v9061 = vpop.f32.mrb[0].mxu0
    %9062 = vmatprep.mubr.f32.mxu0 %v8943
    %9063 = vmatmul.mubr.f32.gmra.mrb[0].mxu0 %v8881
    %v9064 = vpop.f32.mrb[0].mxu0
    %v9065 = vadd.f32 %v8928, %v9064
    %v9066 = vpop.f32.mrb[0].mxu0
    %9067 = vmatprep.mubr.f32.mxu0 %v8946
    %9068 = vmatmul.mubr.f32.gmra.mrb[0].mxu0 %v8883
    %v9069 = vpop.f32.mrb[0].mxu0
    %v9070 = vadd.f32 %v8928, %v9069
    %v9071 = vpop.f32.mrb[0].mxu0
    %9072 = vmatprep.mubr.f32.mxu0 %v8949
    %9073 = vmatmul.mubr.f32.gmra.mrb[0].mxu0 %v8885
    %v9074 = vpop.f32.mrb[0].mxu0
    %v9075 = vadd.f32 %v8928, %v9074
    %v9076 = vpop.f32.mrb[0].mxu0
    %9077 = vmatprep.mubr.f32.mxu0 %v8952
    %9078 = vmatmul.mubr.f32.gmra.mrb[0].mxu0 %v8887
    %v9079 = vpop.f32.mrb[0].mxu0
    %v9080 = vadd.f32 %v8928, %v9079
    %v9081 = vpop.f32.mrb[0].mxu0
    %9082 = vmatprep.mubr.f32.mxu0 %v8955
    %9083 = vmatmul.mubr.f32.gmra.mrb[0].mxu0 %v8889
    %v9084 = vpop.f32.mrb[0].mxu0
    %v9085 = vadd.f32 %v8928, %v9084
    %v9086 = vpop.f32.mrb[0].mxu0
    %9087 = vmatprep.mubr.f32.mxu0 %v8958
    %9088 = vmatmul.mubr.f32.gmra.mrb[0].mxu0 %v8891
    %v9089 = vpop.f32.mrb[0].mxu0
    %v9090 = vadd.f32 %v8928, %v9089
    %v9091 = vpop.f32.mrb[0].mxu0
    %9092 = vmatprep.mubr.f32.mxu0 %v8961
    %9093 = vmatmul.mubr.f32.gmra.mrb[0].mxu0 %v8893
    %v9094 = vpop.f32.mrb[0].mxu0
    %v9095 = vadd.f32 %v8928, %v9094
    %v9096 = vpop.f32.mrb[0].mxu0
    %9097 = vmatprep.mubr.f32.mxu0 %v8964
    %9098 = vmatmul.mubr.f32.gmra.mrb[0].mxu0 %v8895
    %v9099 = vpop.f32.mrb[0].mxu0
    %v9100 = vadd.f32 %v8928, %v9099
    %v9101 = vpop.f32.mrb[0].mxu0
    %9102 = vmatprep.mubr.f32.mxu0 %v8967
    %9103 = vmatmul.mubr.f32.gmra.mrb[0].mxu0 %v8897
    %v9104 = vpop.f32.mrb[0].mxu0
    %v9105 = vadd.f32 %v8928, %v9104
    %v9106 = vpop.f32.mrb[0].mxu0
    %9107 = vmatprep.mubr.f32.mxu0 %v8970
    %9108 = vmatmul.mubr.f32.gmra.mrb[0].mxu0 %v8899
    %v9109 = vpop.f32.mrb[0].mxu0
    %v9110 = vadd.f32 %v8928, %v9109
    %v9111 = vpop.f32.mrb[0].mxu0
    %9112 = vmatprep.mubr.f32.mxu0 %v8973
    %9113 = vmatmul.mubr.f32.gmra.mrb[0].mxu0 %v8901
    %v9114 = vpop.f32.mrb[0].mxu0
    %v9115 = vadd.f32 %v8928, %v9114
    %v9116 = vpop.f32.mrb[0].mxu0
    %9117 = vmatprep.mubr.f32.mxu0 %v8976
    %9118 = vmatmul.mubr.f32.gmra.mrb[0].mxu0 %v8903
    %v9119 = vpop.f32.mrb[0].mxu0
    %v9120 = vadd.f32 %v8928, %v9119
    %v9121 = vpop.f32.mrb[0].mxu0
    %9122 = vdwg.mxu0
    %v9123 = vmax.f32 %v9045, 0.0
    %v9124 = vmax.f32 %v9050, 0.0
    %v9125 = vmax.f32 %v9055, 0.0
    %v9126 = vmax.f32 %v9060, 0.0
    %v9127 = vmax.f32 %v9065, 0.0
    %v9128 = vmax.f32 %v9070, 0.0
    %v9129 = vmax.f32 %v9075, 0.0
    %v9130 = vmax.f32 %v9080, 0.0
    %v9131 = vmax.f32 %v9085, 0.0
    %v9132 = vmax.f32 %v9090, 0.0
    %v9133 = vmax.f32 %v9095, 0.0
    %v9134 = vmax.f32 %v9100, 0.0
    %v9135 = vmax.f32 %v9105, 0.0
    %v9136 = vmax.f32 %v9110, 0.0
    %v9137 = vmax.f32 %v9115, 0.0
    %v9138 = vmax.f32 %v9120, 0.0
    %v9155 = vcombine.high %v9123, %v9123
    %v9157 = vunpack.c.l.s4 1983009808
    %v9158 = vunpack.c.0.s8 %v9157
    %v9159 = vlaneseq
    %v9160 = vshrl.u32 %v9159, 7
    %v9161 = vsub.s32 %v9158, %v9160
    %v9162 = vrot.slane %v9123, %v9161
    %v9164 = vunpack.c.l.s4 1983009808
    %v9165 = vunpack.c.0.s8 %v9164
    %v9166 = vlaneseq
    %v9167 = vshrl.u32 %v9166, 7
    %v9168 = vsub.s32 %v9165, %v9167
    %v9169 = vrot.slane %v9155, %v9168
    %v9170 = vcombine.high %v9162, %v9162
    %v9171 = vcombine.high %v9169, %v9169
    %v9172 = vcombine.high %v9124, %v9124
    %v9174 = vunpack.c.l.s4 1983009808
    %v9175 = vunpack.c.0.s8 %v9174
    %v9176 = vlaneseq
    %v9177 = vshrl.u32 %v9176, 7
    %v9178 = vsub.s32 %v9175, %v9177
    %v9179 = vrot.slane %v9124, %v9178
    %v9181 = vunpack.c.l.s4 1983009808
    %v9182 = vunpack.c.0.s8 %v9181
    %v9183 = vlaneseq
    %v9184 = vshrl.u32 %v9183, 7
    %v9185 = vsub.s32 %v9182, %v9184
    %v9186 = vrot.slane %v9172, %v9185
    %v9187 = vcombine.high %v9179, %v9179
    %v9188 = vcombine.high %v9186, %v9186
    %v9189 = vcombine.high %v9125, %v9125
    %v9191 = vunpack.c.l.s4 1983009808
    %v9192 = vunpack.c.0.s8 %v9191
    %v9193 = vlaneseq
    %v9194 = vshrl.u32 %v9193, 7
    %v9195 = vsub.s32 %v9192, %v9194
    %v9196 = vrot.slane %v9125, %v9195
    %v9198 = vunpack.c.l.s4 1983009808
    %v9199 = vunpack.c.0.s8 %v9198
    %v9200 = vlaneseq
    %v9201 = vshrl.u32 %v9200, 7
    %v9202 = vsub.s32 %v9199, %v9201
    %v9203 = vrot.slane %v9189, %v9202
    %v9204 = vcombine.high %v9196, %v9196
    %v9205 = vcombine.high %v9203, %v9203
    %v9206 = vcombine.high %v9126, %v9126
    %v9208 = vunpack.c.l.s4 1983009808
    %v9209 = vunpack.c.0.s8 %v9208
    %v9210 = vlaneseq
    %v9211 = vshrl.u32 %v9210, 7
    %v9212 = vsub.s32 %v9209, %v9211
    %v9213 = vrot.slane %v9126, %v9212
    %v9215 = vunpack.c.l.s4 1983009808
    %v9216 = vunpack.c.0.s8 %v9215
    %v9217 = vlaneseq
    %v9218 = vshrl.u32 %v9217, 7
    %v9219 = vsub.s32 %v9216, %v9218
    %v9220 = vrot.slane %v9206, %v9219
    %v9221 = vcombine.high %v9213, %v9213
    %v9222 = vcombine.high %v9220, %v9220
    %v9223 = vcombine.high %v9127, %v9127
    %v9225 = vunpack.c.l.s4 1983009808
    %v9226 = vunpack.c.0.s8 %v9225
    %v9227 = vlaneseq
    %v9228 = vshrl.u32 %v9227, 7
    %v9229 = vsub.s32 %v9226, %v9228
    %v9230 = vrot.slane %v9127, %v9229
    %v9232 = vunpack.c.l.s4 1983009808
    %v9233 = vunpack.c.0.s8 %v9232
    %v9234 = vlaneseq
    %v9235 = vshrl.u32 %v9234, 7
    %v9236 = vsub.s32 %v9233, %v9235
    %v9237 = vrot.slane %v9223, %v9236
    %v9238 = vcombine.high %v9230, %v9230
    %v9239 = vcombine.high %v9237, %v9237
    %v9240 = vcombine.high %v9128, %v9128
    %v9242 = vunpack.c.l.s4 1983009808
    %v9243 = vunpack.c.0.s8 %v9242
    %v9244 = vlaneseq
    %v9245 = vshrl.u32 %v9244, 7
    %v9246 = vsub.s32 %v9243, %v9245
    %v9247 = vrot.slane %v9128, %v9246
    %v9249 = vunpack.c.l.s4 1983009808
    %v9250 = vunpack.c.0.s8 %v9249
    %v9251 = vlaneseq
    %v9252 = vshrl.u32 %v9251, 7
    %v9253 = vsub.s32 %v9250, %v9252
    %v9254 = vrot.slane %v9240, %v9253
    %v9255 = vcombine.high %v9247, %v9247
    %v9256 = vcombine.high %v9254, %v9254
    %v9257 = vcombine.high %v9129, %v9129
    %v9259 = vunpack.c.l.s4 1983009808
    %v9260 = vunpack.c.0.s8 %v9259
    %v9261 = vlaneseq
    %v9262 = vshrl.u32 %v9261, 7
    %v9263 = vsub.s32 %v9260, %v9262
    %v9264 = vrot.slane %v9129, %v9263
    %v9266 = vunpack.c.l.s4 1983009808
    %v9267 = vunpack.c.0.s8 %v9266
    %v9268 = vlaneseq
    %v9269 = vshrl.u32 %v9268, 7
    %v9270 = vsub.s32 %v9267, %v9269
    %v9271 = vrot.slane %v9257, %v9270
    %v9272 = vcombine.high %v9264, %v9264
    %v9273 = vcombine.high %v9271, %v9271
    %v9274 = vcombine.high %v9130, %v9130
    %v9276 = vunpack.c.l.s4 1983009808
    %v9277 = vunpack.c.0.s8 %v9276
    %v9278 = vlaneseq
    %v9279 = vshrl.u32 %v9278, 7
    %v9280 = vsub.s32 %v9277, %v9279
    %v9281 = vrot.slane %v9130, %v9280
    %v9283 = vunpack.c.l.s4 1983009808
    %v9284 = vunpack.c.0.s8 %v9283
    %v9285 = vlaneseq
    %v9286 = vshrl.u32 %v9285, 7
    %v9287 = vsub.s32 %v9284, %v9286
    %v9288 = vrot.slane %v9274, %v9287
    %v9289 = vcombine.high %v9281, %v9281
    %v9290 = vcombine.high %v9288, %v9288
    %v9291 = vcombine.high %v9131, %v9131
    %v9293 = vunpack.c.l.s4 1983009808
    %v9294 = vunpack.c.0.s8 %v9293
    %v9295 = vlaneseq
    %v9296 = vshrl.u32 %v9295, 7
    %v9297 = vsub.s32 %v9294, %v9296
    %v9298 = vrot.slane %v9131, %v9297
    %v9300 = vunpack.c.l.s4 1983009808
    %v9301 = vunpack.c.0.s8 %v9300
    %v9302 = vlaneseq
    %v9303 = vshrl.u32 %v9302, 7
    %v9304 = vsub.s32 %v9301, %v9303
    %v9305 = vrot.slane %v9291, %v9304
    %v9306 = vcombine.high %v9298, %v9298
    %v9307 = vcombine.high %v9305, %v9305
    %v9308 = vcombine.high %v9132, %v9132
    %v9310 = vunpack.c.l.s4 1983009808
    %v9311 = vunpack.c.0.s8 %v9310
    %v9312 = vlaneseq
    %v9313 = vshrl.u32 %v9312, 7
    %v9314 = vsub.s32 %v9311, %v9313
    %v9315 = vrot.slane %v9132, %v9314
    %v9317 = vunpack.c.l.s4 1983009808
    %v9318 = vunpack.c.0.s8 %v9317
    %v9319 = vlaneseq
    %v9320 = vshrl.u32 %v9319, 7
    %v9321 = vsub.s32 %v9318, %v9320
    %v9322 = vrot.slane %v9308, %v9321
    %v9323 = vcombine.high %v9315, %v9315
    %v9324 = vcombine.high %v9322, %v9322
    %v9325 = vcombine.high %v9133, %v9133
    %v9327 = vunpack.c.l.s4 1983009808
    %v9328 = vunpack.c.0.s8 %v9327
    %v9329 = vlaneseq
    %v9330 = vshrl.u32 %v9329, 7
    %v9331 = vsub.s32 %v9328, %v9330
    %v9332 = vrot.slane %v9133, %v9331
    %v9334 = vunpack.c.l.s4 1983009808
    %v9335 = vunpack.c.0.s8 %v9334
    %v9336 = vlaneseq
    %v9337 = vshrl.u32 %v9336, 7
    %v9338 = vsub.s32 %v9335, %v9337
    %v9339 = vrot.slane %v9325, %v9338
    %v9340 = vcombine.high %v9332, %v9332
    %v9341 = vcombine.high %v9339, %v9339
    %v9342 = vcombine.high %v9134, %v9134
    %v9344 = vunpack.c.l.s4 1983009808
    %v9345 = vunpack.c.0.s8 %v9344
    %v9346 = vlaneseq
    %v9347 = vshrl.u32 %v9346, 7
    %v9348 = vsub.s32 %v9345, %v9347
    %v9349 = vrot.slane %v9134, %v9348
    %v9351 = vunpack.c.l.s4 1983009808
    %v9352 = vunpack.c.0.s8 %v9351
    %v9353 = vlaneseq
    %v9354 = vshrl.u32 %v9353, 7
    %v9355 = vsub.s32 %v9352, %v9354
    %v9356 = vrot.slane %v9342, %v9355
    %v9357 = vcombine.high %v9349, %v9349
    %v9358 = vcombine.high %v9356, %v9356
    %v9359 = vcombine.high %v9135, %v9135
    %v9361 = vunpack.c.l.s4 1983009808
    %v9362 = vunpack.c.0.s8 %v9361
    %v9363 = vlaneseq
    %v9364 = vshrl.u32 %v9363, 7
    %v9365 = vsub.s32 %v9362, %v9364
    %v9366 = vrot.slane %v9135, %v9365
    %v9368 = vunpack.c.l.s4 1983009808
    %v9369 = vunpack.c.0.s8 %v9368
    %v9370 = vlaneseq
    %v9371 = vshrl.u32 %v9370, 7
    %v9372 = vsub.s32 %v9369, %v9371
    %v9373 = vrot.slane %v9359, %v9372
    %v9374 = vcombine.high %v9366, %v9366
    %v9375 = vcombine.high %v9373, %v9373
    %v9376 = vcombine.high %v9136, %v9136
    %v9378 = vunpack.c.l.s4 1983009808
    %v9379 = vunpack.c.0.s8 %v9378
    %v9380 = vlaneseq
    %v9381 = vshrl.u32 %v9380, 7
    %v9382 = vsub.s32 %v9379, %v9381
    %v9383 = vrot.slane %v9136, %v9382
    %v9385 = vunpack.c.l.s4 1983009808
    %v9386 = vunpack.c.0.s8 %v9385
    %v9387 = vlaneseq
    %v9388 = vshrl.u32 %v9387, 7
    %v9389 = vsub.s32 %v9386, %v9388
    %v9390 = vrot.slane %v9376, %v9389
    %v9391 = vcombine.high %v9383, %v9383
    %v9392 = vcombine.high %v9390, %v9390
    %v9393 = vcombine.high %v9137, %v9137
    %v9395 = vunpack.c.l.s4 1983009808
    %v9396 = vunpack.c.0.s8 %v9395
    %v9397 = vlaneseq
    %v9398 = vshrl.u32 %v9397, 7
    %v9399 = vsub.s32 %v9396, %v9398
    %v9400 = vrot.slane %v9137, %v9399
    %v9402 = vunpack.c.l.s4 1983009808
    %v9403 = vunpack.c.0.s8 %v9402
    %v9404 = vlaneseq
    %v9405 = vshrl.u32 %v9404, 7
    %v9406 = vsub.s32 %v9403, %v9405
    %v9407 = vrot.slane %v9393, %v9406
    %v9408 = vcombine.high %v9400, %v9400
    %v9409 = vcombine.high %v9407, %v9407
    %v9410 = vcombine.high %v9138, %v9138
    %v9412 = vunpack.c.l.s4 1983009808
    %v9413 = vunpack.c.0.s8 %v9412
    %v9414 = vlaneseq
    %v9415 = vshrl.u32 %v9414, 7
    %v9416 = vsub.s32 %v9413, %v9415
    %v9417 = vrot.slane %v9138, %v9416
    %v9419 = vunpack.c.l.s4 1983009808
    %v9420 = vunpack.c.0.s8 %v9419
    %v9421 = vlaneseq
    %v9422 = vshrl.u32 %v9421, 7
    %v9423 = vsub.s32 %v9420, %v9422
    %v9424 = vrot.slane %v9410, %v9423
    %v9425 = vcombine.high %v9417, %v9417
    %v9426 = vcombine.high %v9424, %v9424
    %vm9491 = vcmask 254976
    %v9492 = vsel %vm9491, %v9162, -inf
    %v9493 = vrot.slane %v9492, 4
    %v9494 = vmax.f32 %v9492, %v9493
    %v9495 = vrot.slane %v9494, 2
    %v9496 = vmax.f32 %v9494, %v9495
    %v9497 = vrot.slane %v9496, 1
    %v9498 = vmax.f32 %v9496, %v9497
    %v9499 = vsel %vm9491, %v9170, -inf
    %v9500 = vrot.slane %v9499, 4
    %v9501 = vmax.f32 %v9499, %v9500
    %v9502 = vrot.slane %v9501, 2
    %v9503 = vmax.f32 %v9501, %v9502
    %v9504 = vrot.slane %v9503, 1
    %v9505 = vmax.f32 %v9503, %v9504
    %v9506 = vsel %vm9491, %v9169, -inf
    %v9507 = vrot.slane %v9506, 4
    %v9508 = vmax.f32 %v9506, %v9507
    %v9509 = vrot.slane %v9508, 2
    %v9510 = vmax.f32 %v9508, %v9509
    %v9511 = vrot.slane %v9510, 1
    %v9512 = vmax.f32 %v9510, %v9511
    %v9513 = vsel %vm9491, %v9171, -inf
    %v9514 = vrot.slane %v9513, 4
    %v9515 = vmax.f32 %v9513, %v9514
    %v9516 = vrot.slane %v9515, 2
    %v9517 = vmax.f32 %v9515, %v9516
    %v9518 = vrot.slane %v9517, 1
    %v9519 = vmax.f32 %v9517, %v9518
    %v9520 = vsel %vm9491, %v9179, -inf
    %v9521 = vrot.slane %v9520, 4
    %v9522 = vmax.f32 %v9520, %v9521
    %v9523 = vrot.slane %v9522, 2
    %v9524 = vmax.f32 %v9522, %v9523
    %v9525 = vrot.slane %v9524, 1
    %v9526 = vmax.f32 %v9524, %v9525
    %v9527 = vsel %vm9491, %v9187, -inf
    %v9528 = vrot.slane %v9527, 4
    %v9529 = vmax.f32 %v9527, %v9528
    %v9530 = vrot.slane %v9529, 2
    %v9531 = vmax.f32 %v9529, %v9530
    %v9532 = vrot.slane %v9531, 1
    %v9533 = vmax.f32 %v9531, %v9532
    %v9534 = vsel %vm9491, %v9186, -inf
    %v9535 = vrot.slane %v9534, 4
    %v9536 = vmax.f32 %v9534, %v9535
    %v9537 = vrot.slane %v9536, 2
    %v9538 = vmax.f32 %v9536, %v9537
    %v9539 = vrot.slane %v9538, 1
    %v9540 = vmax.f32 %v9538, %v9539
    %v9541 = vsel %vm9491, %v9188, -inf
    %v9542 = vrot.slane %v9541, 4
    %v9543 = vmax.f32 %v9541, %v9542
    %v9544 = vrot.slane %v9543, 2
    %v9545 = vmax.f32 %v9543, %v9544
    %v9546 = vrot.slane %v9545, 1
    %v9547 = vmax.f32 %v9545, %v9546
    %v9548 = vsel %vm9491, %v9196, -inf
    %v9549 = vrot.slane %v9548, 4
    %v9550 = vmax.f32 %v9548, %v9549
    %v9551 = vrot.slane %v9550, 2
    %v9552 = vmax.f32 %v9550, %v9551
    %v9553 = vrot.slane %v9552, 1
    %v9554 = vmax.f32 %v9552, %v9553
    %v9555 = vsel %vm9491, %v9204, -inf
    %v9556 = vrot.slane %v9555, 4
    %v9557 = vmax.f32 %v9555, %v9556
    %v9558 = vrot.slane %v9557, 2
    %v9559 = vmax.f32 %v9557, %v9558
    %v9560 = vrot.slane %v9559, 1
    %v9561 = vmax.f32 %v9559, %v9560
    %v9562 = vsel %vm9491, %v9203, -inf
    %v9563 = vrot.slane %v9562, 4
    %v9564 = vmax.f32 %v9562, %v9563
    %v9565 = vrot.slane %v9564, 2
    %v9566 = vmax.f32 %v9564, %v9565
    %v9567 = vrot.slane %v9566, 1
    %v9568 = vmax.f32 %v9566, %v9567
    %v9569 = vsel %vm9491, %v9205, -inf
    %v9570 = vrot.slane %v9569, 4
    %v9571 = vmax.f32 %v9569, %v9570
    %v9572 = vrot.slane %v9571, 2
    %v9573 = vmax.f32 %v9571, %v9572
    %v9574 = vrot.slane %v9573, 1
    %v9575 = vmax.f32 %v9573, %v9574
    %v9576 = vsel %vm9491, %v9213, -inf
    %v9577 = vrot.slane %v9576, 4
    %v9578 = vmax.f32 %v9576, %v9577
    %v9579 = vrot.slane %v9578, 2
    %v9580 = vmax.f32 %v9578, %v9579
    %v9581 = vrot.slane %v9580, 1
    %v9582 = vmax.f32 %v9580, %v9581
    %v9583 = vsel %vm9491, %v9221, -inf
    %v9584 = vrot.slane %v9583, 4
    %v9585 = vmax.f32 %v9583, %v9584
    %v9586 = vrot.slane %v9585, 2
    %v9587 = vmax.f32 %v9585, %v9586
    %v9588 = vrot.slane %v9587, 1
    %v9589 = vmax.f32 %v9587, %v9588
    %v9590 = vsel %vm9491, %v9220, -inf
    %v9591 = vrot.slane %v9590, 4
    %v9592 = vmax.f32 %v9590, %v9591
    %v9593 = vrot.slane %v9592, 2
    %v9594 = vmax.f32 %v9592, %v9593
    %v9595 = vrot.slane %v9594, 1
    %v9596 = vmax.f32 %v9594, %v9595
    %v9597 = vsel %vm9491, %v9222, -inf
    %v9598 = vrot.slane %v9597, 4
    %v9599 = vmax.f32 %v9597, %v9598
    %v9600 = vrot.slane %v9599, 2
    %v9601 = vmax.f32 %v9599, %v9600
    %v9602 = vrot.slane %v9601, 1
    %v9603 = vmax.f32 %v9601, %v9602
    %v9604 = vsel %vm9491, %v9230, -inf
    %v9605 = vrot.slane %v9604, 4
    %v9606 = vmax.f32 %v9604, %v9605
    %v9607 = vrot.slane %v9606, 2
    %v9608 = vmax.f32 %v9606, %v9607
    %v9609 = vrot.slane %v9608, 1
    %v9610 = vmax.f32 %v9608, %v9609
    %v9611 = vsel %vm9491, %v9238, -inf
    %v9612 = vrot.slane %v9611, 4
    %v9613 = vmax.f32 %v9611, %v9612
    %v9614 = vrot.slane %v9613, 2
    %v9615 = vmax.f32 %v9613, %v9614
    %v9616 = vrot.slane %v9615, 1
    %v9617 = vmax.f32 %v9615, %v9616
    %v9618 = vsel %vm9491, %v9237, -inf
    %v9619 = vrot.slane %v9618, 4
    %v9620 = vmax.f32 %v9618, %v9619
    %v9621 = vrot.slane %v9620, 2
    %v9622 = vmax.f32 %v9620, %v9621
    %v9623 = vrot.slane %v9622, 1
    %v9624 = vmax.f32 %v9622, %v9623
    %v9625 = vsel %vm9491, %v9239, -inf
    %v9626 = vrot.slane %v9625, 4
    %v9627 = vmax.f32 %v9625, %v9626
    %v9628 = vrot.slane %v9627, 2
    %v9629 = vmax.f32 %v9627, %v9628
    %v9630 = vrot.slane %v9629, 1
    %v9631 = vmax.f32 %v9629, %v9630
    %v9632 = vsel %vm9491, %v9247, -inf
    %v9633 = vrot.slane %v9632, 4
    %v9634 = vmax.f32 %v9632, %v9633
    %v9635 = vrot.slane %v9634, 2
    %v9636 = vmax.f32 %v9634, %v9635
    %v9637 = vrot.slane %v9636, 1
    %v9638 = vmax.f32 %v9636, %v9637
    %v9639 = vsel %vm9491, %v9255, -inf
    %v9640 = vrot.slane %v9639, 4
    %v9641 = vmax.f32 %v9639, %v9640
    %v9642 = vrot.slane %v9641, 2
    %v9643 = vmax.f32 %v9641, %v9642
    %v9644 = vrot.slane %v9643, 1
    %v9645 = vmax.f32 %v9643, %v9644
    %v9646 = vsel %vm9491, %v9254, -inf
    %v9647 = vrot.slane %v9646, 4
    %v9648 = vmax.f32 %v9646, %v9647
    %v9649 = vrot.slane %v9648, 2
    %v9650 = vmax.f32 %v9648, %v9649
    %v9651 = vrot.slane %v9650, 1
    %v9652 = vmax.f32 %v9650, %v9651
    %v9653 = vsel %vm9491, %v9256, -inf
    %v9654 = vrot.slane %v9653, 4
    %v9655 = vmax.f32 %v9653, %v9654
    %v9656 = vrot.slane %v9655, 2
    %v9657 = vmax.f32 %v9655, %v9656
    %v9658 = vrot.slane %v9657, 1
    %v9659 = vmax.f32 %v9657, %v9658
    %v9660 = vsel %vm9491, %v9264, -inf
    %v9661 = vrot.slane %v9660, 4
    %v9662 = vmax.f32 %v9660, %v9661
    %v9663 = vrot.slane %v9662, 2
    %v9664 = vmax.f32 %v9662, %v9663
    %v9665 = vrot.slane %v9664, 1
    %v9666 = vmax.f32 %v9664, %v9665
    %v9667 = vsel %vm9491, %v9272, -inf
    %v9668 = vrot.slane %v9667, 4
    %v9669 = vmax.f32 %v9667, %v9668
    %v9670 = vrot.slane %v9669, 2
    %v9671 = vmax.f32 %v9669, %v9670
    %v9672 = vrot.slane %v9671, 1
    %v9673 = vmax.f32 %v9671, %v9672
    %v9674 = vsel %vm9491, %v9271, -inf
    %v9675 = vrot.slane %v9674, 4
    %v9676 = vmax.f32 %v9674, %v9675
    %v9677 = vrot.slane %v9676, 2
    %v9678 = vmax.f32 %v9676, %v9677
    %v9679 = vrot.slane %v9678, 1
    %v9680 = vmax.f32 %v9678, %v9679
    %v9681 = vsel %vm9491, %v9273, -inf
    %v9682 = vrot.slane %v9681, 4
    %v9683 = vmax.f32 %v9681, %v9682
    %v9684 = vrot.slane %v9683, 2
    %v9685 = vmax.f32 %v9683, %v9684
    %v9686 = vrot.slane %v9685, 1
    %v9687 = vmax.f32 %v9685, %v9686
    %v9688 = vsel %vm9491, %v9281, -inf
    %v9689 = vrot.slane %v9688, 4
    %v9690 = vmax.f32 %v9688, %v9689
    %v9691 = vrot.slane %v9690, 2
    %v9692 = vmax.f32 %v9690, %v9691
    %v9693 = vrot.slane %v9692, 1
    %v9694 = vmax.f32 %v9692, %v9693
    %v9695 = vsel %vm9491, %v9289, -inf
    %v9696 = vrot.slane %v9695, 4
    %v9697 = vmax.f32 %v9695, %v9696
    %v9698 = vrot.slane %v9697, 2
    %v9699 = vmax.f32 %v9697, %v9698
    %v9700 = vrot.slane %v9699, 1
    %v9701 = vmax.f32 %v9699, %v9700
    %v9702 = vsel %vm9491, %v9288, -inf
    %v9703 = vrot.slane %v9702, 4
    %v9704 = vmax.f32 %v9702, %v9703
    %v9705 = vrot.slane %v9704, 2
    %v9706 = vmax.f32 %v9704, %v9705
    %v9707 = vrot.slane %v9706, 1
    %v9708 = vmax.f32 %v9706, %v9707
    %v9709 = vsel %vm9491, %v9290, -inf
    %v9710 = vrot.slane %v9709, 4
    %v9711 = vmax.f32 %v9709, %v9710
    %v9712 = vrot.slane %v9711, 2
    %v9713 = vmax.f32 %v9711, %v9712
    %v9714 = vrot.slane %v9713, 1
    %v9715 = vmax.f32 %v9713, %v9714
    %v9716 = vsel %vm9491, %v9298, -inf
    %v9717 = vrot.slane %v9716, 4
    %v9718 = vmax.f32 %v9716, %v9717
    %v9719 = vrot.slane %v9718, 2
    %v9720 = vmax.f32 %v9718, %v9719
    %v9721 = vrot.slane %v9720, 1
    %v9722 = vmax.f32 %v9720, %v9721
    %v9723 = vsel %vm9491, %v9306, -inf
    %v9724 = vrot.slane %v9723, 4
    %v9725 = vmax.f32 %v9723, %v9724
    %v9726 = vrot.slane %v9725, 2
    %v9727 = vmax.f32 %v9725, %v9726
    %v9728 = vrot.slane %v9727, 1
    %v9729 = vmax.f32 %v9727, %v9728
    %v9730 = vsel %vm9491, %v9305, -inf
    %v9731 = vrot.slane %v9730, 4
    %v9732 = vmax.f32 %v9730, %v9731
    %v9733 = vrot.slane %v9732, 2
    %v9734 = vmax.f32 %v9732, %v9733
    %v9735 = vrot.slane %v9734, 1
    %v9736 = vmax.f32 %v9734, %v9735
    %v9737 = vsel %vm9491, %v9307, -inf
    %v9738 = vrot.slane %v9737, 4
    %v9739 = vmax.f32 %v9737, %v9738
    %v9740 = vrot.slane %v9739, 2
    %v9741 = vmax.f32 %v9739, %v9740
    %v9742 = vrot.slane %v9741, 1
    %v9743 = vmax.f32 %v9741, %v9742
    %v9744 = vsel %vm9491, %v9315, -inf
    %v9745 = vrot.slane %v9744, 4
    %v9746 = vmax.f32 %v9744, %v9745
    %v9747 = vrot.slane %v9746, 2
    %v9748 = vmax.f32 %v9746, %v9747
    %v9749 = vrot.slane %v9748, 1
    %v9750 = vmax.f32 %v9748, %v9749
    %v9751 = vsel %vm9491, %v9323, -inf
    %v9752 = vrot.slane %v9751, 4
    %v9753 = vmax.f32 %v9751, %v9752
    %v9754 = vrot.slane %v9753, 2
    %v9755 = vmax.f32 %v9753, %v9754
    %v9756 = vrot.slane %v9755, 1
    %v9757 = vmax.f32 %v9755, %v9756
    %v9758 = vsel %vm9491, %v9322, -inf
    %v9759 = vrot.slane %v9758, 4
    %v9760 = vmax.f32 %v9758, %v9759
    %v9761 = vrot.slane %v9760, 2
    %v9762 = vmax.f32 %v9760, %v9761
    %v9763 = vrot.slane %v9762, 1
    %v9764 = vmax.f32 %v9762, %v9763
    %v9765 = vsel %vm9491, %v9324, -inf
    %v9766 = vrot.slane %v9765, 4
    %v9767 = vmax.f32 %v9765, %v9766
    %v9768 = vrot.slane %v9767, 2
    %v9769 = vmax.f32 %v9767, %v9768
    %v9770 = vrot.slane %v9769, 1
    %v9771 = vmax.f32 %v9769, %v9770
    %v9772 = vsel %vm9491, %v9332, -inf
    %v9773 = vrot.slane %v9772, 4
    %v9774 = vmax.f32 %v9772, %v9773
    %v9775 = vrot.slane %v9774, 2
    %v9776 = vmax.f32 %v9774, %v9775
    %v9777 = vrot.slane %v9776, 1
    %v9778 = vmax.f32 %v9776, %v9777
    %v9779 = vsel %vm9491, %v9340, -inf
    %v9780 = vrot.slane %v9779, 4
    %v9781 = vmax.f32 %v9779, %v9780
    %v9782 = vrot.slane %v9781, 2
    %v9783 = vmax.f32 %v9781, %v9782
    %v9784 = vrot.slane %v9783, 1
    %v9785 = vmax.f32 %v9783, %v9784
    %v9786 = vsel %vm9491, %v9339, -inf
    %v9787 = vrot.slane %v9786, 4
    %v9788 = vmax.f32 %v9786, %v9787
    %v9789 = vrot.slane %v9788, 2
    %v9790 = vmax.f32 %v9788, %v9789
    %v9791 = vrot.slane %v9790, 1
    %v9792 = vmax.f32 %v9790, %v9791
    %v9793 = vsel %vm9491, %v9341, -inf
    %v9794 = vrot.slane %v9793, 4
    %v9795 = vmax.f32 %v9793, %v9794
    %v9796 = vrot.slane %v9795, 2
    %v9797 = vmax.f32 %v9795, %v9796
    %v9798 = vrot.slane %v9797, 1
    %v9799 = vmax.f32 %v9797, %v9798
    %v9800 = vsel %vm9491, %v9349, -inf
    %v9801 = vrot.slane %v9800, 4
    %v9802 = vmax.f32 %v9800, %v9801
    %v9803 = vrot.slane %v9802, 2
    %v9804 = vmax.f32 %v9802, %v9803
    %v9805 = vrot.slane %v9804, 1
    %v9806 = vmax.f32 %v9804, %v9805
    %v9807 = vsel %vm9491, %v9357, -inf
    %v9808 = vrot.slane %v9807, 4
    %v9809 = vmax.f32 %v9807, %v9808
    %v9810 = vrot.slane %v9809, 2
    %v9811 = vmax.f32 %v9809, %v9810
    %v9812 = vrot.slane %v9811, 1
    %v9813 = vmax.f32 %v9811, %v9812
    %v9814 = vsel %vm9491, %v9356, -inf
    %v9815 = vrot.slane %v9814, 4
    %v9816 = vmax.f32 %v9814, %v9815
    %v9817 = vrot.slane %v9816, 2
    %v9818 = vmax.f32 %v9816, %v9817
    %v9819 = vrot.slane %v9818, 1
    %v9820 = vmax.f32 %v9818, %v9819
    %v9821 = vsel %vm9491, %v9358, -inf
    %v9822 = vrot.slane %v9821, 4
    %v9823 = vmax.f32 %v9821, %v9822
    %v9824 = vrot.slane %v9823, 2
    %v9825 = vmax.f32 %v9823, %v9824
    %v9826 = vrot.slane %v9825, 1
    %v9827 = vmax.f32 %v9825, %v9826
    %v9828 = vsel %vm9491, %v9366, -inf
    %v9829 = vrot.slane %v9828, 4
    %v9830 = vmax.f32 %v9828, %v9829
    %v9831 = vrot.slane %v9830, 2
    %v9832 = vmax.f32 %v9830, %v9831
    %v9833 = vrot.slane %v9832, 1
    %v9834 = vmax.f32 %v9832, %v9833
    %v9835 = vsel %vm9491, %v9374, -inf
    %v9836 = vrot.slane %v9835, 4
    %v9837 = vmax.f32 %v9835, %v9836
    %v9838 = vrot.slane %v9837, 2
    %v9839 = vmax.f32 %v9837, %v9838
    %v9840 = vrot.slane %v9839, 1
    %v9841 = vmax.f32 %v9839, %v9840
    %v9842 = vsel %vm9491, %v9373, -inf
    %v9843 = vrot.slane %v9842, 4
    %v9844 = vmax.f32 %v9842, %v9843
    %v9845 = vrot.slane %v9844, 2
    %v9846 = vmax.f32 %v9844, %v9845
    %v9847 = vrot.slane %v9846, 1
    %v9848 = vmax.f32 %v9846, %v9847
    %v9849 = vsel %vm9491, %v9375, -inf
    %v9850 = vrot.slane %v9849, 4
    %v9851 = vmax.f32 %v9849, %v9850
    %v9852 = vrot.slane %v9851, 2
    %v9853 = vmax.f32 %v9851, %v9852
    %v9854 = vrot.slane %v9853, 1
    %v9855 = vmax.f32 %v9853, %v9854
    %v9856 = vsel %vm9491, %v9383, -inf
    %v9857 = vrot.slane %v9856, 4
    %v9858 = vmax.f32 %v9856, %v9857
    %v9859 = vrot.slane %v9858, 2
    %v9860 = vmax.f32 %v9858, %v9859
    %v9861 = vrot.slane %v9860, 1
    %v9862 = vmax.f32 %v9860, %v9861
    %v9863 = vsel %vm9491, %v9391, -inf
    %v9864 = vrot.slane %v9863, 4
    %v9865 = vmax.f32 %v9863, %v9864
    %v9866 = vrot.slane %v9865, 2
    %v9867 = vmax.f32 %v9865, %v9866
    %v9868 = vrot.slane %v9867, 1
    %v9869 = vmax.f32 %v9867, %v9868
    %v9870 = vsel %vm9491, %v9390, -inf
    %v9871 = vrot.slane %v9870, 4
    %v9872 = vmax.f32 %v9870, %v9871
    %v9873 = vrot.slane %v9872, 2
    %v9874 = vmax.f32 %v9872, %v9873
    %v9875 = vrot.slane %v9874, 1
    %v9876 = vmax.f32 %v9874, %v9875
    %v9877 = vsel %vm9491, %v9392, -inf
    %v9878 = vrot.slane %v9877, 4
    %v9879 = vmax.f32 %v9877, %v9878
    %v9880 = vrot.slane %v9879, 2
    %v9881 = vmax.f32 %v9879, %v9880
    %v9882 = vrot.slane %v9881, 1
    %v9883 = vmax.f32 %v9881, %v9882
    %v9884 = vsel %vm9491, %v9400, -inf
    %v9885 = vrot.slane %v9884, 4
    %v9886 = vmax.f32 %v9884, %v9885
    %v9887 = vrot.slane %v9886, 2
    %v9888 = vmax.f32 %v9886, %v9887
    %v9889 = vrot.slane %v9888, 1
    %v9890 = vmax.f32 %v9888, %v9889
    %v9891 = vsel %vm9491, %v9408, -inf
    %v9892 = vrot.slane %v9891, 4
    %v9893 = vmax.f32 %v9891, %v9892
    %v9894 = vrot.slane %v9893, 2
    %v9895 = vmax.f32 %v9893, %v9894
    %v9896 = vrot.slane %v9895, 1
    %v9897 = vmax.f32 %v9895, %v9896
    %v9898 = vsel %vm9491, %v9407, -inf
    %v9899 = vrot.slane %v9898, 4
    %v9900 = vmax.f32 %v9898, %v9899
    %v9901 = vrot.slane %v9900, 2
    %v9902 = vmax.f32 %v9900, %v9901
    %v9903 = vrot.slane %v9902, 1
    %v9904 = vmax.f32 %v9902, %v9903
    %v9905 = vsel %vm9491, %v9409, -inf
    %v9906 = vrot.slane %v9905, 4
    %v9907 = vmax.f32 %v9905, %v9906
    %v9908 = vrot.slane %v9907, 2
    %v9909 = vmax.f32 %v9907, %v9908
    %v9910 = vrot.slane %v9909, 1
    %v9911 = vmax.f32 %v9909, %v9910
    %v9912 = vsel %vm9491, %v9417, -inf
    %v9913 = vrot.slane %v9912, 4
    %v9914 = vmax.f32 %v9912, %v9913
    %v9915 = vrot.slane %v9914, 2
    %v9916 = vmax.f32 %v9914, %v9915
    %v9917 = vrot.slane %v9916, 1
    %v9918 = vmax.f32 %v9916, %v9917
    %v9919 = vsel %vm9491, %v9425, -inf
    %v9920 = vrot.slane %v9919, 4
    %v9921 = vmax.f32 %v9919, %v9920
    %v9922 = vrot.slane %v9921, 2
    %v9923 = vmax.f32 %v9921, %v9922
    %v9924 = vrot.slane %v9923, 1
    %v9925 = vmax.f32 %v9923, %v9924
    %v9926 = vsel %vm9491, %v9424, -inf
    %v9927 = vrot.slane %v9926, 4
    %v9928 = vmax.f32 %v9926, %v9927
    %v9929 = vrot.slane %v9928, 2
    %v9930 = vmax.f32 %v9928, %v9929
    %v9931 = vrot.slane %v9930, 1
    %v9932 = vmax.f32 %v9930, %v9931
    %v9933 = vsel %vm9491, %v9426, -inf
    %v9934 = vrot.slane %v9933, 4
    %v9935 = vmax.f32 %v9933, %v9934
    %v9936 = vrot.slane %v9935, 2
    %v9937 = vmax.f32 %v9935, %v9936
    %v9938 = vrot.slane %v9937, 1
    %v9939 = vmax.f32 %v9937, %v9938
    %vm9940 = vcmask 261120
    %v9941 = vsel %vm9940, %v9498, -inf
    %v9942 = vsel %vm9940, %v9526, -inf
    %v9943 = vmax.f32 %v9941, %v9942
    %v9944 = vsel %vm9940, %v9505, -inf
    %v9945 = vsel %vm9940, %v9533, -inf
    %v9946 = vmax.f32 %v9944, %v9945
    %v9947 = vsel %vm9940, %v9512, -inf
    %v9948 = vsel %vm9940, %v9540, -inf
    %v9949 = vmax.f32 %v9947, %v9948
    %v9950 = vsel %vm9940, %v9519, -inf
    %v9951 = vsel %vm9940, %v9547, -inf
    %v9952 = vmax.f32 %v9950, %v9951
    %v9953 = vsel %vm9940, %v9554, -inf
    %v9954 = vsel %vm9940, %v9582, -inf
    %v9955 = vmax.f32 %v9953, %v9954
    %v9956 = vsel %vm9940, %v9561, -inf
    %v9957 = vsel %vm9940, %v9589, -inf
    %v9958 = vmax.f32 %v9956, %v9957
    %v9959 = vsel %vm9940, %v9568, -inf
    %v9960 = vsel %vm9940, %v9596, -inf
    %v9961 = vmax.f32 %v9959, %v9960
    %v9962 = vsel %vm9940, %v9575, -inf
    %v9963 = vsel %vm9940, %v9603, -inf
    %v9964 = vmax.f32 %v9962, %v9963
    %v9965 = vsel %vm9940, %v9610, -inf
    %v9966 = vsel %vm9940, %v9638, -inf
    %v9967 = vmax.f32 %v9965, %v9966
    %v9968 = vsel %vm9940, %v9617, -inf
    %v9969 = vsel %vm9940, %v9645, -inf
    %v9970 = vmax.f32 %v9968, %v9969
    %v9971 = vsel %vm9940, %v9624, -inf
    %v9972 = vsel %vm9940, %v9652, -inf
    %v9973 = vmax.f32 %v9971, %v9972
    %v9974 = vsel %vm9940, %v9631, -inf
    %v9975 = vsel %vm9940, %v9659, -inf
    %v9976 = vmax.f32 %v9974, %v9975
    %v9977 = vsel %vm9940, %v9666, -inf
    %v9978 = vsel %vm9940, %v9694, -inf
    %v9979 = vmax.f32 %v9977, %v9978
    %v9980 = vsel %vm9940, %v9673, -inf
    %v9981 = vsel %vm9940, %v9701, -inf
    %v9982 = vmax.f32 %v9980, %v9981
    %v9983 = vsel %vm9940, %v9680, -inf
    %v9984 = vsel %vm9940, %v9708, -inf
    %v9985 = vmax.f32 %v9983, %v9984
    %v9986 = vsel %vm9940, %v9687, -inf
    %v9987 = vsel %vm9940, %v9715, -inf
    %v9988 = vmax.f32 %v9986, %v9987
    %v9989 = vsel %vm9940, %v9722, -inf
    %v9990 = vsel %vm9940, %v9750, -inf
    %v9991 = vmax.f32 %v9989, %v9990
    %v9992 = vsel %vm9940, %v9729, -inf
    %v9993 = vsel %vm9940, %v9757, -inf
    %v9994 = vmax.f32 %v9992, %v9993
    %v9995 = vsel %vm9940, %v9736, -inf
    %v9996 = vsel %vm9940, %v9764, -inf
    %v9997 = vmax.f32 %v9995, %v9996
    %v9998 = vsel %vm9940, %v9743, -inf
    %v9999 = vsel %vm9940, %v9771, -inf
    %v10000 = vmax.f32 %v9998, %v9999
    %v10001 = vsel %vm9940, %v9778, -inf
    %v10002 = vsel %vm9940, %v9806, -inf
    %v10003 = vmax.f32 %v10001, %v10002
    %v10004 = vsel %vm9940, %v9785, -inf
    %v10005 = vsel %vm9940, %v9813, -inf
    %v10006 = vmax.f32 %v10004, %v10005
    %v10007 = vsel %vm9940, %v9792, -inf
    %v10008 = vsel %vm9940, %v9820, -inf
    %v10009 = vmax.f32 %v10007, %v10008
    %v10010 = vsel %vm9940, %v9799, -inf
    %v10011 = vsel %vm9940, %v9827, -inf
    %v10012 = vmax.f32 %v10010, %v10011
    %v10013 = vsel %vm9940, %v9834, -inf
    %v10014 = vsel %vm9940, %v9862, -inf
    %v10015 = vmax.f32 %v10013, %v10014
    %v10016 = vsel %vm9940, %v9841, -inf
    %v10017 = vsel %vm9940, %v9869, -inf
    %v10018 = vmax.f32 %v10016, %v10017
    %v10019 = vsel %vm9940, %v9848, -inf
    %v10020 = vsel %vm9940, %v9876, -inf
    %v10021 = vmax.f32 %v10019, %v10020
    %v10022 = vsel %vm9940, %v9855, -inf
    %v10023 = vsel %vm9940, %v9883, -inf
    %v10024 = vmax.f32 %v10022, %v10023
    %v10025 = vsel %vm9940, %v9890, -inf
    %v10026 = vsel %vm9940, %v9918, -inf
    %v10027 = vmax.f32 %v10025, %v10026
    %v10028 = vsel %vm9940, %v9897, -inf
    %v10029 = vsel %vm9940, %v9925, -inf
    %v10030 = vmax.f32 %v10028, %v10029
    %v10031 = vsel %vm9940, %v9904, -inf
    %v10032 = vsel %vm9940, %v9932, -inf
    %v10033 = vmax.f32 %v10031, %v10032
    %v10034 = vsel %vm9940, %v9911, -inf
    %v10035 = vsel %vm9940, %v9939, -inf
    %v10036 = vmax.f32 %v10034, %v10035
    %v10069 = vsel %vm7977, %v9946, %v9943
    %v10070 = vsel %vm7979, %v9949, %v10069
    %v10071 = vsel %vm7981, %v9952, %v10070
    %v10072 = vsel %vm7977, %v9958, %v9955
    %v10073 = vsel %vm7979, %v9961, %v10072
    %v10074 = vsel %vm7981, %v9964, %v10073
    %v10075 = vsel %vm7977, %v9970, %v9967
    %v10076 = vsel %vm7979, %v9973, %v10075
    %v10077 = vsel %vm7981, %v9976, %v10076
    %v10078 = vsel %vm7977, %v9982, %v9979
    %v10079 = vsel %vm7979, %v9985, %v10078
    %v10080 = vsel %vm7981, %v9988, %v10079
    %v10081 = vsel %vm7977, %v9994, %v9991
    %v10082 = vsel %vm7979, %v9997, %v10081
    %v10083 = vsel %vm7981, %v10000, %v10082
    %v10084 = vsel %vm7977, %v10006, %v10003
    %v10085 = vsel %vm7979, %v10009, %v10084
    %v10086 = vsel %vm7981, %v10012, %v10085
    %v10087 = vsel %vm7977, %v10018, %v10015
    %v10088 = vsel %vm7979, %v10021, %v10087
    %v10089 = vsel %vm7981, %v10024, %v10088
    %v10090 = vsel %vm7977, %v10030, %v10027
    %v10091 = vsel %vm7979, %v10033, %v10090
    %v10092 = vsel %vm7981, %v10036, %v10091
    %vm10101 = vcmask 257024
    %10102 = vst.msk [vmem:[#allocation6] sm:$0xf] %vm10101, %v10071
    %10103 = vst.msk [vmem:[#allocation6 + $0x4] sm:$0xf] %vm10101, %v10074
    %10104 = vst.msk [vmem:[#allocation6 + $0x8] sm:$0xf] %vm10101, %v10077
    %10105 = vst.msk [vmem:[#allocation6 + $0xc] sm:$0xf] %vm10101, %v10080
    %10106 = vst.msk [vmem:[#allocation6 + $0x10] sm:$0xf] %vm10101, %v10083
    %10107 = vst.msk [vmem:[#allocation6 + $0x14] sm:$0xf] %vm10101, %v10086
    %10108 = vst.msk [vmem:[#allocation6 + $0x18] sm:$0xf] %vm10101, %v10089
    %10109 = vst.msk [vmem:[#allocation6 + $0x1c] sm:$0xf] %vm10101, %v10092
    %v10110 = vld [vmem:[#allocation6] sm:$0x1]
    %v10111 = vld [vmem:[#allocation6 + $0x10] sm:$0x1]
    %v10115 = vunpack.c.l.s4 1983009808
    %v10116 = vunpack.c.0.s8 %v10115
    %v10117 = vlaneseq
    %v10118 = vshrl.u32 %v10117, 7
    %v10119 = vsub.s32 %v10116, %v10118
    %v10120 = vrot.slane %v10110, %v10119
    %v10122 = vunpack.c.l.s4 1983009808
    %v10123 = vunpack.c.0.s8 %v10122
    %v10124 = vlaneseq
    %v10125 = vshrl.u32 %v10124, 7
    %v10126 = vsub.s32 %v10123, %v10125
    %v10127 = vrot.slane %v10111, %v10126
    %v10128 = vsel %vm7983, %v10120, %v10120
    %v10129 = vsel %vm7987, %v10120, %v10128
    %v10130 = vrot.slane %v10127, 7
    %v10131 = vsel %vm7977, %v10130, %v10129
    %v10132 = vsel %vm7981, %v10130, %v10131
    %v10133 = vsel %vm7985, %v10130, %v10132
    %v10134 = vsel %vm7989, %v10130, %v10133
    %10136 = vst.msk [vmem:[#allocation7] sm:$0x3] %vm9491, %v10134
    %v10137 = vld [vmem:[#allocation6 + $0x1] sm:$0x1]
    %v10138 = vld [vmem:[#allocation6 + $0x11] sm:$0x1]
    %v10142 = vunpack.c.l.s4 1983009808
    %v10143 = vunpack.c.0.s8 %v10142
    %v10144 = vlaneseq
    %v10145 = vshrl.u32 %v10144, 7
    %v10146 = vsub.s32 %v10143, %v10145
    %v10147 = vrot.slane %v10137, %v10146
    %v10149 = vunpack.c.l.s4 1983009808
    %v10150 = vunpack.c.0.s8 %v10149
    %v10151 = vlaneseq
    %v10152 = vshrl.u32 %v10151, 7
    %v10153 = vsub.s32 %v10150, %v10152
    %v10154 = vrot.slane %v10138, %v10153
    %v10155 = vsel %vm7983, %v10147, %v10147
    %v10156 = vsel %vm7987, %v10147, %v10155
    %v10157 = vrot.slane %v10154, 7
    %v10158 = vsel %vm7977, %v10157, %v10156
    %v10159 = vsel %vm7981, %v10157, %v10158
    %v10160 = vsel %vm7985, %v10157, %v10159
    %v10161 = vsel %vm7989, %v10157, %v10160
    %10162 = vrot.lane.b32.xlu0 %v10161, 32
    %v10163 = vpop.permute.xlu0 %10162
    %vm10165 = vcmask 517376
    %10166 = vst.msk [vmem:[#allocation7] sm:$0x3] %vm10165, %v10163
    %v10167 = vld [vmem:[#allocation6 + $0x2] sm:$0x1]
    %v10168 = vld [vmem:[#allocation6 + $0x12] sm:$0x1]
    %v10172 = vunpack.c.l.s4 1983009808
    %v10173 = vunpack.c.0.s8 %v10172
    %v10174 = vlaneseq
    %v10175 = vshrl.u32 %v10174, 7
    %v10176 = vsub.s32 %v10173, %v10175
    %v10177 = vrot.slane %v10167, %v10176
    %v10179 = vunpack.c.l.s4 1983009808
    %v10180 = vunpack.c.0.s8 %v10179
    %v10181 = vlaneseq
    %v10182 = vshrl.u32 %v10181, 7
    %v10183 = vsub.s32 %v10180, %v10182
    %v10184 = vrot.slane %v10168, %v10183
    %v10185 = vsel %vm7983, %v10177, %v10177
    %v10186 = vsel %vm7987, %v10177, %v10185
    %v10187 = vrot.slane %v10184, 7
    %v10188 = vsel %vm7977, %v10187, %v10186
    %v10189 = vsel %vm7981, %v10187, %v10188
    %v10190 = vsel %vm7985, %v10187, %v10189
    %v10191 = vsel %vm7989, %v10187, %v10190
    %10192 = vrot.lane.b32.xlu0 %v10191, 64
    %v10193 = vpop.permute.xlu0 %10192
    %vm10195 = vcmask 779776
    %10196 = vst.msk [vmem:[#allocation7] sm:$0x3] %vm10195, %v10193
    %v10197 = vld [vmem:[#allocation6 + $0x3] sm:$0x1]
    %v10198 = vld [vmem:[#allocation6 + $0x13] sm:$0x1]
    %v10202 = vunpack.c.l.s4 1983009808
    %v10203 = vunpack.c.0.s8 %v10202
    %v10204 = vlaneseq
    %v10205 = vshrl.u32 %v10204, 7
    %v10206 = vsub.s32 %v10203, %v10205
    %v10207 = vrot.slane %v10197, %v10206
    %v10209 = vunpack.c.l.s4 1983009808
    %v10210 = vunpack.c.0.s8 %v10209
    %v10211 = vlaneseq
    %v10212 = vshrl.u32 %v10211, 7
    %v10213 = vsub.s32 %v10210, %v10212
    %v10214 = vrot.slane %v10198, %v10213
    %v10215 = vsel %vm7983, %v10207, %v10207
    %v10216 = vsel %vm7987, %v10207, %v10215
    %v10217 = vrot.slane %v10214, 7
    %v10218 = vsel %vm7977, %v10217, %v10216
    %v10219 = vsel %vm7981, %v10217, %v10218
    %v10220 = vsel %vm7985, %v10217, %v10219
    %v10221 = vsel %vm7989, %v10217, %v10220
    %10222 = vrot.lane.b32.xlu0 %v10221, 96
    %v10223 = vpop.permute.xlu0 %10222
    %vm10225 = vcmask 1042176
    %10226 = vst.msk [vmem:[#allocation7] sm:$0x3] %vm10225, %v10223
    %s10227 = scalar_lea.vmem [#allocation6], 4
    %v10228 = vld [vmem:[%s10227] sm:$0x1]
    %v10229 = vld [vmem:[%s10227 + $0x10] sm:$0x1]
    %v10233 = vunpack.c.l.s4 1983009808
    %v10234 = vunpack.c.0.s8 %v10233
    %v10235 = vlaneseq
    %v10236 = vshrl.u32 %v10235, 7
    %v10237 = vsub.s32 %v10234, %v10236
    %v10238 = vrot.slane %v10228, %v10237
    %v10240 = vunpack.c.l.s4 1983009808
    %v10241 = vunpack.c.0.s8 %v10240
    %v10242 = vlaneseq
    %v10243 = vshrl.u32 %v10242, 7
    %v10244 = vsub.s32 %v10241, %v10243
    %v10245 = vrot.slane %v10229, %v10244
    %v10246 = vsel %vm7983, %v10238, %v10238
    %v10247 = vsel %vm7987, %v10238, %v10246
    %v10248 = vrot.slane %v10245, 7
    %v10249 = vsel %vm7977, %v10248, %v10247
    %v10250 = vsel %vm7981, %v10248, %v10249
    %v10251 = vsel %vm7985, %v10248, %v10250
    %v10252 = vsel %vm7989, %v10248, %v10251
    %10254 = vst.msk [vmem:[#allocation7 + $0x2] sm:$0x3] %vm9491, %v10252
    %v10255 = vld [vmem:[%s10227 + $0x1] sm:$0x1]
    %v10256 = vld [vmem:[%s10227 + $0x11] sm:$0x1]
    %v10260 = vunpack.c.l.s4 1983009808
    %v10261 = vunpack.c.0.s8 %v10260
    %v10262 = vlaneseq
    %v10263 = vshrl.u32 %v10262, 7
    %v10264 = vsub.s32 %v10261, %v10263
    %v10265 = vrot.slane %v10255, %v10264
    %v10267 = vunpack.c.l.s4 1983009808
    %v10268 = vunpack.c.0.s8 %v10267
    %v10269 = vlaneseq
    %v10270 = vshrl.u32 %v10269, 7
    %v10271 = vsub.s32 %v10268, %v10270
    %v10272 = vrot.slane %v10256, %v10271
    %v10273 = vsel %vm7983, %v10265, %v10265
    %v10274 = vsel %vm7987, %v10265, %v10273
    %v10275 = vrot.slane %v10272, 7
    %v10276 = vsel %vm7977, %v10275, %v10274
    %v10277 = vsel %vm7981, %v10275, %v10276
    %v10278 = vsel %vm7985, %v10275, %v10277
    %v10279 = vsel %vm7989, %v10275, %v10278
    %10280 = vrot.lane.b32.xlu0 %v10279, 32
    %v10281 = vpop.permute.xlu0 %10280
    %10283 = vst.msk [vmem:[#allocation7 + $0x2] sm:$0x3] %vm10165, %v10281
    %v10284 = vld [vmem:[%s10227 + $0x2] sm:$0x1]
    %v10285 = vld [vmem:[%s10227 + $0x12] sm:$0x1]
    %v10289 = vunpack.c.l.s4 1983009808
    %v10290 = vunpack.c.0.s8 %v10289
    %v10291 = vlaneseq
    %v10292 = vshrl.u32 %v10291, 7
    %v10293 = vsub.s32 %v10290, %v10292
    %v10294 = vrot.slane %v10284, %v10293
    %v10296 = vunpack.c.l.s4 1983009808
    %v10297 = vunpack.c.0.s8 %v10296
    %v10298 = vlaneseq
    %v10299 = vshrl.u32 %v10298, 7
    %v10300 = vsub.s32 %v10297, %v10299
    %v10301 = vrot.slane %v10285, %v10300
    %v10302 = vsel %vm7983, %v10294, %v10294
    %v10303 = vsel %vm7987, %v10294, %v10302
    %v10304 = vrot.slane %v10301, 7
    %v10305 = vsel %vm7977, %v10304, %v10303
    %v10306 = vsel %vm7981, %v10304, %v10305
    %v10307 = vsel %vm7985, %v10304, %v10306
    %v10308 = vsel %vm7989, %v10304, %v10307
    %10309 = vrot.lane.b32.xlu0 %v10308, 64
    %v10310 = vpop.permute.xlu0 %10309
    %10312 = vst.msk [vmem:[#allocation7 + $0x2] sm:$0x3] %vm10195, %v10310
    %v10313 = vld [vmem:[%s10227 + $0x3] sm:$0x1]
    %v10314 = vld [vmem:[%s10227 + $0x13] sm:$0x1]
    %v10318 = vunpack.c.l.s4 1983009808
    %v10319 = vunpack.c.0.s8 %v10318
    %v10320 = vlaneseq
    %v10321 = vshrl.u32 %v10320, 7
    %v10322 = vsub.s32 %v10319, %v10321
    %v10323 = vrot.slane %v10313, %v10322
    %v10325 = vunpack.c.l.s4 1983009808
    %v10326 = vunpack.c.0.s8 %v10325
    %v10327 = vlaneseq
    %v10328 = vshrl.u32 %v10327, 7
    %v10329 = vsub.s32 %v10326, %v10328
    %v10330 = vrot.slane %v10314, %v10329
    %v10331 = vsel %vm7983, %v10323, %v10323
    %v10332 = vsel %vm7987, %v10323, %v10331
    %v10333 = vrot.slane %v10330, 7
    %v10334 = vsel %vm7977, %v10333, %v10332
    %v10335 = vsel %vm7981, %v10333, %v10334
    %v10336 = vsel %vm7985, %v10333, %v10335
    %v10337 = vsel %vm7989, %v10333, %v10336
    %10338 = vrot.lane.b32.xlu0 %v10337, 96
    %v10339 = vpop.permute.xlu0 %10338
    %10341 = vst.msk [vmem:[#allocation7 + $0x2] sm:$0x3] %vm10225, %v10339
    %s10342 = scalar_lea.vmem [#allocation6], 8
    %v10343 = vld [vmem:[%s10342] sm:$0x1]
    %v10344 = vld [vmem:[%s10342 + $0x10] sm:$0x1]
    %v10348 = vunpack.c.l.s4 1983009808
    %v10349 = vunpack.c.0.s8 %v10348
    %v10350 = vlaneseq
    %v10351 = vshrl.u32 %v10350, 7
    %v10352 = vsub.s32 %v10349, %v10351
    %v10353 = vrot.slane %v10343, %v10352
    %v10355 = vunpack.c.l.s4 1983009808
    %v10356 = vunpack.c.0.s8 %v10355
    %v10357 = vlaneseq
    %v10358 = vshrl.u32 %v10357, 7
    %v10359 = vsub.s32 %v10356, %v10358
    %v10360 = vrot.slane %v10344, %v10359
    %v10361 = vsel %vm7983, %v10353, %v10353
    %v10362 = vsel %vm7987, %v10353, %v10361
    %v10363 = vrot.slane %v10360, 7
    %v10364 = vsel %vm7977, %v10363, %v10362
    %v10365 = vsel %vm7981, %v10363, %v10364
    %v10366 = vsel %vm7985, %v10363, %v10365
    %v10367 = vsel %vm7989, %v10363, %v10366
    %10369 = vst.msk [vmem:[#allocation7 + $0x4] sm:$0x3] %vm9491, %v10367
    %v10370 = vld [vmem:[%s10342 + $0x1] sm:$0x1]
    %v10371 = vld [vmem:[%s10342 + $0x11] sm:$0x1]
    %v10375 = vunpack.c.l.s4 1983009808
    %v10376 = vunpack.c.0.s8 %v10375
    %v10377 = vlaneseq
    %v10378 = vshrl.u32 %v10377, 7
    %v10379 = vsub.s32 %v10376, %v10378
    %v10380 = vrot.slane %v10370, %v10379
    %v10382 = vunpack.c.l.s4 1983009808
    %v10383 = vunpack.c.0.s8 %v10382
    %v10384 = vlaneseq
    %v10385 = vshrl.u32 %v10384, 7
    %v10386 = vsub.s32 %v10383, %v10385
    %v10387 = vrot.slane %v10371, %v10386
    %v10388 = vsel %vm7983, %v10380, %v10380
    %v10389 = vsel %vm7987, %v10380, %v10388
    %v10390 = vrot.slane %v10387, 7
    %v10391 = vsel %vm7977, %v10390, %v10389
    %v10392 = vsel %vm7981, %v10390, %v10391
    %v10393 = vsel %vm7985, %v10390, %v10392
    %v10394 = vsel %vm7989, %v10390, %v10393
    %10395 = vrot.lane.b32.xlu0 %v10394, 32
    %v10396 = vpop.permute.xlu0 %10395
    %10398 = vst.msk [vmem:[#allocation7 + $0x4] sm:$0x3] %vm10165, %v10396
    %v10399 = vld [vmem:[%s10342 + $0x2] sm:$0x1]
    %v10400 = vld [vmem:[%s10342 + $0x12] sm:$0x1]
    %v10404 = vunpack.c.l.s4 1983009808
    %v10405 = vunpack.c.0.s8 %v10404
    %v10406 = vlaneseq
    %v10407 = vshrl.u32 %v10406, 7
    %v10408 = vsub.s32 %v10405, %v10407
    %v10409 = vrot.slane %v10399, %v10408
    %v10411 = vunpack.c.l.s4 1983009808
    %v10412 = vunpack.c.0.s8 %v10411
    %v10413 = vlaneseq
    %v10414 = vshrl.u32 %v10413, 7
    %v10415 = vsub.s32 %v10412, %v10414
    %v10416 = vrot.slane %v10400, %v10415
    %v10417 = vsel %vm7983, %v10409, %v10409
    %v10418 = vsel %vm7987, %v10409, %v10417
    %v10419 = vrot.slane %v10416, 7
    %v10420 = vsel %vm7977, %v10419, %v10418
    %v10421 = vsel %vm7981, %v10419, %v10420
    %v10422 = vsel %vm7985, %v10419, %v10421
    %v10423 = vsel %vm7989, %v10419, %v10422
    %10424 = vrot.lane.b32.xlu0 %v10423, 64
    %v10425 = vpop.permute.xlu0 %10424
    %10427 = vst.msk [vmem:[#allocation7 + $0x4] sm:$0x3] %vm10195, %v10425
    %v10428 = vld [vmem:[%s10342 + $0x3] sm:$0x1]
    %v10429 = vld [vmem:[%s10342 + $0x13] sm:$0x1]
    %v10433 = vunpack.c.l.s4 1983009808
    %v10434 = vunpack.c.0.s8 %v10433
    %v10435 = vlaneseq
    %v10436 = vshrl.u32 %v10435, 7
    %v10437 = vsub.s32 %v10434, %v10436
    %v10438 = vrot.slane %v10428, %v10437
    %v10440 = vunpack.c.l.s4 1983009808
    %v10441 = vunpack.c.0.s8 %v10440
    %v10442 = vlaneseq
    %v10443 = vshrl.u32 %v10442, 7
    %v10444 = vsub.s32 %v10441, %v10443
    %v10445 = vrot.slane %v10429, %v10444
    %v10446 = vsel %vm7983, %v10438, %v10438
    %v10447 = vsel %vm7987, %v10438, %v10446
    %v10448 = vrot.slane %v10445, 7
    %v10449 = vsel %vm7977, %v10448, %v10447
    %v10450 = vsel %vm7981, %v10448, %v10449
    %v10451 = vsel %vm7985, %v10448, %v10450
    %v10452 = vsel %vm7989, %v10448, %v10451
    %10453 = vrot.lane.b32.xlu0 %v10452, 96
    %v10454 = vpop.permute.xlu0 %10453
    %10456 = vst.msk [vmem:[#allocation7 + $0x4] sm:$0x3] %vm10225, %v10454
    %s10457 = scalar_lea.vmem [#allocation6], 12
    %v10458 = vld [vmem:[%s10457] sm:$0x1]
    %v10459 = vld [vmem:[%s10457 + $0x10] sm:$0x1]
    %v10463 = vunpack.c.l.s4 1983009808
    %v10464 = vunpack.c.0.s8 %v10463
    %v10465 = vlaneseq
    %v10466 = vshrl.u32 %v10465, 7
    %v10467 = vsub.s32 %v10464, %v10466
    %v10468 = vrot.slane %v10458, %v10467
    %v10470 = vunpack.c.l.s4 1983009808
    %v10471 = vunpack.c.0.s8 %v10470
    %v10472 = vlaneseq
    %v10473 = vshrl.u32 %v10472, 7
    %v10474 = vsub.s32 %v10471, %v10473
    %v10475 = vrot.slane %v10459, %v10474
    %v10476 = vsel %vm7983, %v10468, %v10468
    %v10477 = vsel %vm7987, %v10468, %v10476
    %v10478 = vrot.slane %v10475, 7
    %v10479 = vsel %vm7977, %v10478, %v10477
    %v10480 = vsel %vm7981, %v10478, %v10479
    %v10481 = vsel %vm7985, %v10478, %v10480
    %v10482 = vsel %vm7989, %v10478, %v10481
    %10484 = vst.msk [vmem:[#allocation7 + $0x6] sm:$0x3] %vm9491, %v10482
    %v10485 = vld [vmem:[%s10457 + $0x1] sm:$0x1]
    %v10486 = vld [vmem:[%s10457 + $0x11] sm:$0x1]
    %v10490 = vunpack.c.l.s4 1983009808
    %v10491 = vunpack.c.0.s8 %v10490
    %v10492 = vlaneseq
    %v10493 = vshrl.u32 %v10492, 7
    %v10494 = vsub.s32 %v10491, %v10493
    %v10495 = vrot.slane %v10485, %v10494
    %v10497 = vunpack.c.l.s4 1983009808
    %v10498 = vunpack.c.0.s8 %v10497
    %v10499 = vlaneseq
    %v10500 = vshrl.u32 %v10499, 7
    %v10501 = vsub.s32 %v10498, %v10500
    %v10502 = vrot.slane %v10486, %v10501
    %v10503 = vsel %vm7983, %v10495, %v10495
    %v10504 = vsel %vm7987, %v10495, %v10503
    %v10505 = vrot.slane %v10502, 7
    %v10506 = vsel %vm7977, %v10505, %v10504
    %v10507 = vsel %vm7981, %v10505, %v10506
    %v10508 = vsel %vm7985, %v10505, %v10507
    %v10509 = vsel %vm7989, %v10505, %v10508
    %10510 = vrot.lane.b32.xlu0 %v10509, 32
    %v10511 = vpop.permute.xlu0 %10510
    %10513 = vst.msk [vmem:[#allocation7 + $0x6] sm:$0x3] %vm10165, %v10511
    %v10514 = vld [vmem:[%s10457 + $0x2] sm:$0x1]
    %v10515 = vld [vmem:[%s10457 + $0x12] sm:$0x1]
    %v10519 = vunpack.c.l.s4 1983009808
    %v10520 = vunpack.c.0.s8 %v10519
    %v10521 = vlaneseq
    %v10522 = vshrl.u32 %v10521, 7
    %v10523 = vsub.s32 %v10520, %v10522
    %v10524 = vrot.slane %v10514, %v10523
    %v10526 = vunpack.c.l.s4 1983009808
    %v10527 = vunpack.c.0.s8 %v10526
    %v10528 = vlaneseq
    %v10529 = vshrl.u32 %v10528, 7
    %v10530 = vsub.s32 %v10527, %v10529
    %v10531 = vrot.slane %v10515, %v10530
    %v10532 = vsel %vm7983, %v10524, %v10524
    %v10533 = vsel %vm7987, %v10524, %v10532
    %v10534 = vrot.slane %v10531, 7
    %v10535 = vsel %vm7977, %v10534, %v10533
    %v10536 = vsel %vm7981, %v10534, %v10535
    %v10537 = vsel %vm7985, %v10534, %v10536
    %v10538 = vsel %vm7989, %v10534, %v10537
    %10539 = vrot.lane.b32.xlu0 %v10538, 64
    %v10540 = vpop.permute.xlu0 %10539
    %10542 = vst.msk [vmem:[#allocation7 + $0x6] sm:$0x3] %vm10195, %v10540
    %v10543 = vld [vmem:[%s10457 + $0x3] sm:$0x1]
    %v10544 = vld [vmem:[%s10457 + $0x13] sm:$0x1]
    %v10548 = vunpack.c.l.s4 1983009808
    %v10549 = vunpack.c.0.s8 %v10548
    %v10550 = vlaneseq
    %v10551 = vshrl.u32 %v10550, 7
    %v10552 = vsub.s32 %v10549, %v10551
    %v10553 = vrot.slane %v10543, %v10552
    %v10555 = vunpack.c.l.s4 1983009808
    %v10556 = vunpack.c.0.s8 %v10555
    %v10557 = vlaneseq
    %v10558 = vshrl.u32 %v10557, 7
    %v10559 = vsub.s32 %v10556, %v10558
    %v10560 = vrot.slane %v10544, %v10559
    %v10561 = vsel %vm7983, %v10553, %v10553
    %v10562 = vsel %vm7987, %v10553, %v10561
    %v10563 = vrot.slane %v10560, 7
    %v10564 = vsel %vm7977, %v10563, %v10562
    %v10565 = vsel %vm7981, %v10563, %v10564
    %v10566 = vsel %vm7985, %v10563, %v10565
    %v10567 = vsel %vm7989, %v10563, %v10566
    %10568 = vrot.lane.b32.xlu0 %v10567, 96
    %v10569 = vpop.permute.xlu0 %10568
    %10571 = vst.msk [vmem:[#allocation7 + $0x6] sm:$0x3] %vm10225, %v10569
    %v10572 = vld [vmem:[#allocation7] sm:$0xff]
    %v10573 = vld [vmem:[%s5] sm:$0xff]
    %v10574 = vld [vmem:[%s5 + $0x8] sm:$0xff]
    %v10575 = vld [vmem:[%s5 + $0x10] sm:$0xff]
    %v10576 = vld [vmem:[%s5 + $0x18] sm:$0xff]
    %v10577 = vld [vmem:[%s5 + $0x20] sm:$0xff]
    %v10578 = vld [vmem:[%s5 + $0x28] sm:$0xff]
    %v10579 = vld [vmem:[%s5 + $0x30] sm:$0xff]
    %v10580 = vld [vmem:[%s5 + $0x38] sm:$0xff]
    %v10581 = vld [vmem:[%s5 + $0x40] sm:$0xff]
    %v10582 = vld [vmem:[%s5 + $0x48] sm:$0xff]
    %v10583 = vld [vmem:[%s5 + $0x50] sm:$0xff]
    %v10584 = vld [vmem:[%s5 + $0x58] sm:$0xff]
    %v10585 = vld [vmem:[%s5 + $0x60] sm:$0xff]
    %v10586 = vld [vmem:[%s5 + $0x68] sm:$0xff]
    %v10587 = vld [vmem:[%s5 + $0x70] sm:$0xff]
    %v10588 = vld [vmem:[%s5 + $0x78] sm:$0xff]
    %v10589 = vld [vmem:[%s5 + $0x80] sm:$0xff]
    %v10590 = vld [vmem:[%s5 + $0x88] sm:$0xff]
    %v10591 = vld [vmem:[%s5 + $0x90] sm:$0xff]
    %v10592 = vld [vmem:[%s5 + $0x98] sm:$0xff]
    %v10593 = vld [vmem:[%s5 + $0xa0] sm:$0xff]
    %v10594 = vld [vmem:[%s5 + $0xa8] sm:$0xff]
    %v10595 = vld [vmem:[%s5 + $0xb0] sm:$0xff]
    %v10596 = vld [vmem:[%s5 + $0xb8] sm:$0xff]
    %v10597 = vld [vmem:[%s5 + $0xc0] sm:$0xff]
    %v10598 = vld [vmem:[%s5 + $0xc8] sm:$0xff]
    %v10599 = vld [vmem:[%s5 + $0xd0] sm:$0xff]
    %v10600 = vld [vmem:[%s5 + $0xd8] sm:$0xff]
    %v10601 = vld [vmem:[%s5 + $0xe0] sm:$0xff]
    %v10602 = vld [vmem:[%s5 + $0xe8] sm:$0xff]
    %v10603 = vld [vmem:[%s5 + $0xf0] sm:$0xff]
    %v10604 = vld [vmem:[%s5 + $0xf8] sm:$0xff]
    %v10605 = vld [vmem:[%s5 + $0x100] sm:$0xff]
    %v10606 = vld [vmem:[%s5 + $0x108] sm:$0xff]
    %v10607 = vld [vmem:[%s5 + $0x110] sm:$0xff]
    %v10608 = vld [vmem:[%s5 + $0x118] sm:$0xff]
    %v10609 = vld [vmem:[%s5 + $0x120] sm:$0xff]
    %v10610 = vld [vmem:[%s5 + $0x128] sm:$0xff]
    %v10611 = vld [vmem:[%s5 + $0x130] sm:$0xff]
    %v10612 = vld [vmem:[%s5 + $0x138] sm:$0xff]
    %v10613 = vld [vmem:[%s5 + $0x140] sm:$0xff]
    %v10614 = vld [vmem:[%s5 + $0x148] sm:$0xff]
    %v10615 = vld [vmem:[%s5 + $0x150] sm:$0xff]
    %v10616 = vld [vmem:[%s5 + $0x158] sm:$0xff]
    %v10617 = vld [vmem:[%s5 + $0x160] sm:$0xff]
    %v10618 = vld [vmem:[%s5 + $0x168] sm:$0xff]
    %v10619 = vld [vmem:[%s5 + $0x170] sm:$0xff]
    %v10620 = vld [vmem:[%s5 + $0x178] sm:$0xff]
    %v10621 = vld [vmem:[%s5 + $0x180] sm:$0xff]
    %v10622 = vld [vmem:[%s5 + $0x188] sm:$0xff]
    %v10623 = vld [vmem:[%s5 + $0x190] sm:$0xff]
    %v10624 = vld [vmem:[%s5 + $0x198] sm:$0xff]
    %v10625 = vld [vmem:[%s5 + $0x1a0] sm:$0xff]
    %v10626 = vld [vmem:[%s5 + $0x1a8] sm:$0xff]
    %v10627 = vld [vmem:[%s5 + $0x1b0] sm:$0xff]
    %v10628 = vld [vmem:[%s5 + $0x1b8] sm:$0xff]
    %v10629 = vld [vmem:[%s5 + $0x1c0] sm:$0xff]
    %v10630 = vld [vmem:[%s5 + $0x1c8] sm:$0xff]
    %v10631 = vld [vmem:[%s5 + $0x1d0] sm:$0xff]
    %v10632 = vld [vmem:[%s5 + $0x1d8] sm:$0xff]
    %v10633 = vld [vmem:[%s5 + $0x1e0] sm:$0xff]
    %v10634 = vld [vmem:[%s5 + $0x1e8] sm:$0xff]
    %v10635 = vld [vmem:[%s5 + $0x1f0] sm:$0xff]
    %v10636 = vld [vmem:[%s5 + $0x1f8] sm:$0xff]
    %v10637 = vld [vmem:[%s5 + $0x200] sm:$0xff]
    %v10638 = vld [vmem:[%s5 + $0x208] sm:$0xff]
    %v10639 = vld [vmem:[%s5 + $0x210] sm:$0xff]
    %v10640 = vld [vmem:[%s5 + $0x218] sm:$0xff]
    %v10641 = vld [vmem:[%s5 + $0x220] sm:$0xff]
    %v10642 = vld [vmem:[%s5 + $0x228] sm:$0xff]
    %v10643 = vld [vmem:[%s5 + $0x230] sm:$0xff]
    %v10644 = vld [vmem:[%s5 + $0x238] sm:$0xff]
    %v10645 = vld [vmem:[%s5 + $0x240] sm:$0xff]
    %v10646 = vld [vmem:[%s5 + $0x248] sm:$0xff]
    %v10647 = vld [vmem:[%s5 + $0x250] sm:$0xff]
    %v10648 = vld [vmem:[%s5 + $0x258] sm:$0xff]
    %v10649 = vld [vmem:[%s5 + $0x260] sm:$0xff]
    %v10650 = vld [vmem:[%s5 + $0x268] sm:$0xff]
    %v10651 = vld [vmem:[%s5 + $0x270] sm:$0xff]
    %v10652 = vld [vmem:[%s5 + $0x278] sm:$0xff]
    %v10653 = vld [vmem:[%s5 + $0x280] sm:$0xff]
    %v10654 = vld [vmem:[%s5 + $0x288] sm:$0xff]
    %v10655 = vld [vmem:[%s5 + $0x290] sm:$0xff]
    %v10656 = vld [vmem:[%s5 + $0x298] sm:$0xff]
    %v10657 = vld [vmem:[%s5 + $0x2a0] sm:$0xff]
    %v10658 = vld [vmem:[%s5 + $0x2a8] sm:$0xff]
    %v10659 = vld [vmem:[%s5 + $0x2b0] sm:$0xff]
    %v10660 = vld [vmem:[%s5 + $0x2b8] sm:$0xff]
    %v10661 = vld [vmem:[%s5 + $0x2c0] sm:$0xff]
    %v10662 = vld [vmem:[%s5 + $0x2c8] sm:$0xff]
    %v10663 = vld [vmem:[%s5 + $0x2d0] sm:$0xff]
    %v10664 = vld [vmem:[%s5 + $0x2d8] sm:$0xff]
    %v10665 = vld [vmem:[%s5 + $0x2e0] sm:$0xff]
    %v10666 = vld [vmem:[%s5 + $0x2e8] sm:$0xff]
    %v10667 = vld [vmem:[%s5 + $0x2f0] sm:$0xff]
    %v10668 = vld [vmem:[%s5 + $0x2f8] sm:$0xff]
    %v10669 = vld [vmem:[%s5 + $0x300] sm:$0xff]
    %v10670 = vld [vmem:[%s5 + $0x308] sm:$0xff]
    %v10671 = vld [vmem:[%s5 + $0x310] sm:$0xff]
    %v10672 = vld [vmem:[%s5 + $0x318] sm:$0xff]
    %v10673 = vld [vmem:[%s5 + $0x320] sm:$0xff]
    %v10674 = vld [vmem:[%s5 + $0x328] sm:$0xff]
    %v10675 = vld [vmem:[%s5 + $0x330] sm:$0xff]
    %v10676 = vld [vmem:[%s5 + $0x338] sm:$0xff]
    %v10677 = vld [vmem:[%s5 + $0x340] sm:$0xff]
    %v10678 = vld [vmem:[%s5 + $0x348] sm:$0xff]
    %v10679 = vld [vmem:[%s5 + $0x350] sm:$0xff]
    %v10680 = vld [vmem:[%s5 + $0x358] sm:$0xff]
    %v10681 = vld [vmem:[%s5 + $0x360] sm:$0xff]
    %v10682 = vld [vmem:[%s5 + $0x368] sm:$0xff]
    %v10683 = vld [vmem:[%s5 + $0x370] sm:$0xff]
    %v10684 = vld [vmem:[%s5 + $0x378] sm:$0xff]
    %v10685 = vld [vmem:[%s5 + $0x380] sm:$0xff]
    %v10686 = vld [vmem:[%s5 + $0x388] sm:$0xff]
    %v10687 = vld [vmem:[%s5 + $0x390] sm:$0xff]
    %v10688 = vld [vmem:[%s5 + $0x398] sm:$0xff]
    %v10689 = vld [vmem:[%s5 + $0x3a0] sm:$0xff]
    %v10690 = vld [vmem:[%s5 + $0x3a8] sm:$0xff]
    %v10691 = vld [vmem:[%s5 + $0x3b0] sm:$0xff]
    %v10692 = vld [vmem:[%s5 + $0x3b8] sm:$0xff]
    %v10693 = vld [vmem:[%s5 + $0x3c0] sm:$0xff]
    %v10694 = vld [vmem:[%s5 + $0x3c8] sm:$0xff]
    %v10695 = vld [vmem:[%s5 + $0x3d0] sm:$0xff]
    %v10696 = vld [vmem:[%s5 + $0x3d8] sm:$0xff]
    %v10697 = vld [vmem:[%s5 + $0x3e0] sm:$0xff]
    %v10698 = vld [vmem:[%s5 + $0x3e8] sm:$0xff]
    %v10699 = vld [vmem:[%s5 + $0x3f0] sm:$0xff]
    %v10700 = vld [vmem:[%s5 + $0x3f8] sm:$0xff]
    %v10701 = vld [vmem:[%s6] sm:$0x3]
    %v10703 = vlaneseq
    %v10704 = vshrl.u32 %v10703, 7
    %v10705 = vsub.s32 0, %v10704
    %v10706 = vrot.slane %v10701, %v10705
    %v10707 = vlaneseq
    %v10708 = vshrl.u32 %v10707, 7
    %v10709 = vsub.s32 1, %v10708
    %v10710 = vrot.slane %v10701, %v10709
    %v10714 = vcombine.high %v10572, %v10572
    %v10716 = vunpack.c.l.s4 1983009808
    %v10717 = vunpack.c.0.s8 %v10716
    %v10718 = vlaneseq
    %v10719 = vshrl.u32 %v10718, 7
    %v10720 = vsub.s32 %v10717, %v10719
    %v10721 = vrot.slane %v10572, %v10720
    %v10723 = vunpack.c.l.s4 1983009808
    %v10724 = vunpack.c.0.s8 %v10723
    %v10725 = vlaneseq
    %v10726 = vshrl.u32 %v10725, 7
    %v10727 = vsub.s32 %v10724, %v10726
    %v10728 = vrot.slane %v10714, %v10727
    %v10729 = vcombine.high %v10721, %v10721
    %v10730 = vcombine.high %v10728, %v10728
    %10735 = vmatprep.subr.mxu0 %v10574
    %10736 = vmatpush1.msra.mxu0 %v10573
    %10737 = vmatprep.subr.mxu0 %v10576
    %10738 = vmatpush1.msra.mxu0 %v10575
    %10739 = vmatprep.subr.mxu0 %v10578
    %10740 = vmatpush1.msra.mxu0 %v10577
    %10741 = vmatprep.subr.mxu0 %v10580
    %10742 = vmatpush1.msra.mxu0 %v10579
    %10743 = vmatprep.subr.mxu0 %v10582
    %10744 = vmatpush1.msra.mxu0 %v10581
    %10745 = vmatprep.subr.mxu0 %v10584
    %10746 = vmatpush1.msra.mxu0 %v10583
    %10747 = vmatprep.subr.mxu0 %v10586
    %10748 = vmatpush1.msra.mxu0 %v10585
    %10749 = vmatprep.subr.mxu0 %v10588
    %10750 = vmatpush1.msra.mxu0 %v10587
    %10751 = vmatprep.subr.mxu0 %v10590
    %10752 = vmatpush1.msra.mxu0 %v10589
    %10753 = vmatprep.subr.mxu0 %v10592
    %10754 = vmatpush1.msra.mxu0 %v10591
    %10755 = vmatprep.subr.mxu0 %v10594
    %10756 = vmatpush1.msra.mxu0 %v10593
    %10757 = vmatprep.subr.mxu0 %v10596
    %10758 = vmatpush1.msra.mxu0 %v10595
    %10759 = vmatprep.subr.mxu0 %v10598
    %10760 = vmatpush1.msra.mxu0 %v10597
    %10761 = vmatprep.subr.mxu0 %v10600
    %10762 = vmatpush1.msra.mxu0 %v10599
    %10763 = vmatprep.subr.mxu0 %v10602
    %10764 = vmatpush1.msra.mxu0 %v10601
    %10765 = vmatprep.subr.mxu0 %v10604
    %10766 = vmatpush1.msra.mxu0 %v10603
    %10767 = vmatprep.subr.mxu0 %v10606
    %10768 = vmatpush1.msra.mxu0 %v10605
    %10769 = vmatprep.subr.mxu0 %v10608
    %10770 = vmatpush1.msra.mxu0 %v10607
    %10771 = vmatprep.subr.mxu0 %v10610
    %10772 = vmatpush1.msra.mxu0 %v10609
    %10773 = vmatprep.subr.mxu0 %v10612
    %10774 = vmatpush1.msra.mxu0 %v10611
    %10775 = vmatprep.subr.mxu0 %v10614
    %10776 = vmatpush1.msra.mxu0 %v10613
    %10777 = vmatprep.subr.mxu0 %v10616
    %10778 = vmatpush1.msra.mxu0 %v10615
    %10779 = vmatprep.subr.mxu0 %v10618
    %10780 = vmatpush1.msra.mxu0 %v10617
    %10781 = vmatprep.subr.mxu0 %v10620
    %10782 = vmatpush1.msra.mxu0 %v10619
    %10783 = vmatprep.subr.mxu0 %v10622
    %10784 = vmatpush1.msra.mxu0 %v10621
    %10785 = vmatprep.subr.mxu0 %v10624
    %10786 = vmatpush1.msra.mxu0 %v10623
    %10787 = vmatprep.subr.mxu0 %v10626
    %10788 = vmatpush1.msra.mxu0 %v10625
    %10789 = vmatprep.subr.mxu0 %v10628
    %10790 = vmatpush1.msra.mxu0 %v10627
    %10791 = vmatprep.subr.mxu0 %v10630
    %10792 = vmatpush1.msra.mxu0 %v10629
    %10793 = vmatprep.subr.mxu0 %v10632
    %10794 = vmatpush1.msra.mxu0 %v10631
    %10795 = vmatprep.subr.mxu0 %v10634
    %10796 = vmatpush1.msra.mxu0 %v10633
    %10797 = vmatprep.subr.mxu0 %v10636
    %10798 = vmatpush1.msra.mxu0 %v10635
    %10799 = vmatprep.mubr.f32.mxu0 %v10729
    %10800 = vmatmul.mubr.f32.gmra.mrb[0].mxu0 %v10721
    %v10801 = vpop.f32.mrb[0].mxu0
    %v10802 = vadd.f32 %v10706, %v10801
    %v10803 = vpop.f32.mrb[0].mxu0
    %v10804 = vadd.f32 %v10710, %v10803
    %10805 = vdwg.mxu0
    %10806 = vmatprep.subr.mxu0 %v10638
    %10807 = vmatpush1.msra.mxu0 %v10637
    %10808 = vmatprep.subr.mxu0 %v10640
    %10809 = vmatpush1.msra.mxu0 %v10639
    %10810 = vmatprep.subr.mxu0 %v10642
    %10811 = vmatpush1.msra.mxu0 %v10641
    %10812 = vmatprep.subr.mxu0 %v10644
    %10813 = vmatpush1.msra.mxu0 %v10643
    %10814 = vmatprep.subr.mxu0 %v10646
    %10815 = vmatpush1.msra.mxu0 %v10645
    %10816 = vmatprep.subr.mxu0 %v10648
    %10817 = vmatpush1.msra.mxu0 %v10647
    %10818 = vmatprep.subr.mxu0 %v10650
    %10819 = vmatpush1.msra.mxu0 %v10649
    %10820 = vmatprep.subr.mxu0 %v10652
    %10821 = vmatpush1.msra.mxu0 %v10651
    %10822 = vmatprep.subr.mxu0 %v10654
    %10823 = vmatpush1.msra.mxu0 %v10653
    %10824 = vmatprep.subr.mxu0 %v10656
    %10825 = vmatpush1.msra.mxu0 %v10655
    %10826 = vmatprep.subr.mxu0 %v10658
    %10827 = vmatpush1.msra.mxu0 %v10657
    %10828 = vmatprep.subr.mxu0 %v10660
    %10829 = vmatpush1.msra.mxu0 %v10659
    %10830 = vmatprep.subr.mxu0 %v10662
    %10831 = vmatpush1.msra.mxu0 %v10661
    %10832 = vmatprep.subr.mxu0 %v10664
    %10833 = vmatpush1.msra.mxu0 %v10663
    %10834 = vmatprep.subr.mxu0 %v10666
    %10835 = vmatpush1.msra.mxu0 %v10665
    %10836 = vmatprep.subr.mxu0 %v10668
    %10837 = vmatpush1.msra.mxu0 %v10667
    %10838 = vmatprep.subr.mxu0 %v10670
    %10839 = vmatpush1.msra.mxu0 %v10669
    %10840 = vmatprep.subr.mxu0 %v10672
    %10841 = vmatpush1.msra.mxu0 %v10671
    %10842 = vmatprep.subr.mxu0 %v10674
    %10843 = vmatpush1.msra.mxu0 %v10673
    %10844 = vmatprep.subr.mxu0 %v10676
    %10845 = vmatpush1.msra.mxu0 %v10675
    %10846 = vmatprep.subr.mxu0 %v10678
    %10847 = vmatpush1.msra.mxu0 %v10677
    %10848 = vmatprep.subr.mxu0 %v10680
    %10849 = vmatpush1.msra.mxu0 %v10679
    %10850 = vmatprep.subr.mxu0 %v10682
    %10851 = vmatpush1.msra.mxu0 %v10681
    %10852 = vmatprep.subr.mxu0 %v10684
    %10853 = vmatpush1.msra.mxu0 %v10683
    %10854 = vmatprep.subr.mxu0 %v10686
    %10855 = vmatpush1.msra.mxu0 %v10685
    %10856 = vmatprep.subr.mxu0 %v10688
    %10857 = vmatpush1.msra.mxu0 %v10687
    %10858 = vmatprep.subr.mxu0 %v10690
    %10859 = vmatpush1.msra.mxu0 %v10689
    %10860 = vmatprep.subr.mxu0 %v10692
    %10861 = vmatpush1.msra.mxu0 %v10691
    %10862 = vmatprep.subr.mxu0 %v10694
    %10863 = vmatpush1.msra.mxu0 %v10693
    %10864 = vmatprep.subr.mxu0 %v10696
    %10865 = vmatpush1.msra.mxu0 %v10695
    %10866 = vmatprep.subr.mxu0 %v10698
    %10867 = vmatpush1.msra.mxu0 %v10697
    %10868 = vmatprep.subr.mxu0 %v10700
    %10869 = vmatpush1.msra.mxu0 %v10699
    %10870 = vmatprep.mubr.f32.mxu0 %v10730
    %10871 = vmatmul.mubr.f32.gmra.mrb[0].mxu0 %v10728
    %v10872 = vpop.f32.mrb[0].mxu0
    %v10873 = vadd.f32 %v10802, %v10872
    %v10874 = vpop.f32.mrb[0].mxu0
    %v10875 = vadd.f32 %v10804, %v10874
    %10876 = vdwg.mxu0
    %v10877 = vmax.f32 %v10873, 0.0
    %v10878 = vmax.f32 %v10875, 0.0
    %v10879 = vld [vmem:[#allocation8] sm:$0xff]
    %v10880 = vld [vmem:[#allocation8 + $0x8] sm:$0xff]
    %v10881 = vld [vmem:[#allocation8 + $0x10] sm:$0xff]
    %v10882 = vld [vmem:[#allocation8 + $0x18] sm:$0xff]
    %v10883 = vld [vmem:[#allocation8 + $0x20] sm:$0xff]
    %v10884 = vld [vmem:[#allocation8 + $0x28] sm:$0xff]
    %v10885 = vld [vmem:[#allocation8 + $0x30] sm:$0xff]
    %v10886 = vld [vmem:[#allocation8 + $0x38] sm:$0xff]
    %v10887 = vld [vmem:[#allocation8 + $0x40] sm:$0xff]
    %v10888 = vld [vmem:[#allocation8 + $0x48] sm:$0xff]
    %v10889 = vld [vmem:[#allocation8 + $0x50] sm:$0xff]
    %v10890 = vld [vmem:[#allocation8 + $0x58] sm:$0xff]
    %v10891 = vld [vmem:[#allocation8 + $0x60] sm:$0xff]
    %v10892 = vld [vmem:[#allocation8 + $0x68] sm:$0xff]
    %v10893 = vld [vmem:[#allocation8 + $0x70] sm:$0xff]
    %v10894 = vld [vmem:[#allocation8 + $0x78] sm:$0xff]
    %v10895 = vld [vmem:[#allocation8 + $0x80] sm:$0xff]
    %v10896 = vld [vmem:[#allocation8 + $0x88] sm:$0xff]
    %v10897 = vld [vmem:[#allocation8 + $0x90] sm:$0xff]
    %v10898 = vld [vmem:[#allocation8 + $0x98] sm:$0xff]
    %v10899 = vld [vmem:[#allocation8 + $0xa0] sm:$0xff]
    %v10900 = vld [vmem:[#allocation8 + $0xa8] sm:$0xff]
    %v10901 = vld [vmem:[#allocation8 + $0xb0] sm:$0xff]
    %v10902 = vld [vmem:[#allocation8 + $0xb8] sm:$0xff]
    %v10903 = vld [vmem:[#allocation8 + $0xc0] sm:$0xff]
    %v10904 = vld [vmem:[#allocation8 + $0xc8] sm:$0xff]
    %v10905 = vld [vmem:[#allocation8 + $0xd0] sm:$0xff]
    %v10906 = vld [vmem:[#allocation8 + $0xd8] sm:$0xff]
    %v10907 = vld [vmem:[#allocation8 + $0xe0] sm:$0xff]
    %v10908 = vld [vmem:[#allocation8 + $0xe8] sm:$0xff]
    %v10909 = vld [vmem:[#allocation8 + $0xf0] sm:$0xff]
    %v10910 = vld [vmem:[#allocation8 + $0xf8] sm:$0xff]
    %v10911 = vld [vmem:[%s8] sm:$0x1]
    %v10913 = vlaneseq
    %v10914 = vshrl.u32 %v10913, 7
    %v10915 = vsub.s32 0, %v10914
    %v10916 = vrot.slane %v10911, %v10915
    %10918 = vmatprep.subr.mxu0 0.0
    %10919 = vmatpush1.msra.mxu0 %v10879
    %10920 = vmatprep.subr.mxu0 0.0
    %10921 = vmatpush1.msra.mxu0 %v10880
    %10922 = vmatprep.subr.mxu0 0.0
    %10923 = vmatpush1.msra.mxu0 %v10881
    %10924 = vmatprep.subr.mxu0 0.0
    %10925 = vmatpush1.msra.mxu0 %v10882
    %10926 = vmatprep.subr.mxu0 0.0
    %10927 = vmatpush1.msra.mxu0 %v10883
    %10928 = vmatprep.subr.mxu0 0.0
    %10929 = vmatpush1.msra.mxu0 %v10884
    %10930 = vmatprep.subr.mxu0 0.0
    %10931 = vmatpush1.msra.mxu0 %v10885
    %10932 = vmatprep.subr.mxu0 0.0
    %10933 = vmatpush1.msra.mxu0 %v10886
    %10934 = vmatprep.subr.mxu0 0.0
    %10935 = vmatpush1.msra.mxu0 %v10887
    %10936 = vmatprep.subr.mxu0 0.0
    %10937 = vmatpush1.msra.mxu0 %v10888
    %10938 = vmatprep.subr.mxu0 0.0
    %10939 = vmatpush1.msra.mxu0 %v10889
    %10940 = vmatprep.subr.mxu0 0.0
    %10941 = vmatpush1.msra.mxu0 %v10890
    %10942 = vmatprep.subr.mxu0 0.0
    %10943 = vmatpush1.msra.mxu0 %v10891
    %10944 = vmatprep.subr.mxu0 0.0
    %10945 = vmatpush1.msra.mxu0 %v10892
    %10946 = vmatprep.subr.mxu0 0.0
    %10947 = vmatpush1.msra.mxu0 %v10893
    %10948 = vmatprep.subr.mxu0 0.0
    %10949 = vmatpush1.msra.mxu0 %v10894
    %10950 = vmatprep.subr.mxu0 0.0
    %10951 = vmatpush1.msra.mxu0 %v10895
    %10952 = vmatprep.subr.mxu0 0.0
    %10953 = vmatpush1.msra.mxu0 %v10896
    %10954 = vmatprep.subr.mxu0 0.0
    %10955 = vmatpush1.msra.mxu0 %v10897
    %10956 = vmatprep.subr.mxu0 0.0
    %10957 = vmatpush1.msra.mxu0 %v10898
    %10958 = vmatprep.subr.mxu0 0.0
    %10959 = vmatpush1.msra.mxu0 %v10899
    %10960 = vmatprep.subr.mxu0 0.0
    %10961 = vmatpush1.msra.mxu0 %v10900
    %10962 = vmatprep.subr.mxu0 0.0
    %10963 = vmatpush1.msra.mxu0 %v10901
    %10964 = vmatprep.subr.mxu0 0.0
    %10965 = vmatpush1.msra.mxu0 %v10902
    %10966 = vmatprep.subr.mxu0 0.0
    %10967 = vmatpush1.msra.mxu0 %v10903
    %10968 = vmatprep.subr.mxu0 0.0
    %10969 = vmatpush1.msra.mxu0 %v10904
    %10970 = vmatprep.subr.mxu0 0.0
    %10971 = vmatpush1.msra.mxu0 %v10905
    %10972 = vmatprep.subr.mxu0 0.0
    %10973 = vmatpush1.msra.mxu0 %v10906
    %10974 = vmatprep.subr.mxu0 0.0
    %10975 = vmatpush1.msra.mxu0 %v10907
    %10976 = vmatprep.subr.mxu0 0.0
    %10977 = vmatpush1.msra.mxu0 %v10908
    %10978 = vmatprep.subr.mxu0 0.0
    %10979 = vmatpush1.msra.mxu0 %v10909
    %10980 = vmatprep.subr.mxu0 0.0
    %10981 = vmatpush1.msra.mxu0 %v10910
    %10982 = vmatprep.mubr.f32.mxu0 %v10878
    %10983 = vmatmul.mubr.f32.gmra.mrb[0].mxu0 %v10877
    %v10984 = vpop.f32.mrb[0].mxu0
    %v10985 = vadd.f32 %v10916, %v10984
    %v10986 = vpop.f32.mrb[0].mxu0
    %10987 = vdwg.mxu0
    %v10988 = vmax.f32 %v10985, 0.0
    %v10989 = vld [vmem:[%s9] sm:$0xff]
    %v10990 = vld [vmem:[%s9 + $0x8] sm:$0xff]
    %v10991 = vld [vmem:[%s9 + $0x10] sm:$0xff]
    %v10992 = vld [vmem:[%s9 + $0x18] sm:$0xff]
    %v10993 = vld [vmem:[%s9 + $0x20] sm:$0xff]
    %v10994 = vld [vmem:[%s9 + $0x28] sm:$0xff]
    %v10995 = vld [vmem:[%s9 + $0x30] sm:$0xff]
    %v10996 = vld [vmem:[%s9 + $0x38] sm:$0xff]
    %v10997 = vld [vmem:[%s9 + $0x40] sm:$0xff]
    %v10998 = vld [vmem:[%s9 + $0x48] sm:$0xff]
    %v10999 = vld [vmem:[%s9 + $0x50] sm:$0xff]
    %v11000 = vld [vmem:[%s9 + $0x58] sm:$0xff]
    %v11001 = vld [vmem:[%s9 + $0x60] sm:$0xff]
    %v11002 = vld [vmem:[%s9 + $0x68] sm:$0xff]
    %v11003 = vld [vmem:[%s9 + $0x70] sm:$0xff]
    %v11004 = vld [vmem:[%s9 + $0x78] sm:$0xff]
    %v11005 = vld [vmem:[%s10] sm:$0x1]
    %v11007 = vlaneseq
    %v11008 = vshrl.u32 %v11007, 7
    %v11009 = vsub.s32 0, %v11008
    %v11010 = vrot.slane %v11005, %v11009
    %11012 = vmatprep.subr.mxu0 0.0
    %11013 = vmatpush1.msra.mxu0 %v10989
    %11014 = vmatprep.subr.mxu0 0.0
    %11015 = vmatpush1.msra.mxu0 %v10990
    %11016 = vmatprep.subr.mxu0 0.0
    %11017 = vmatpush1.msra.mxu0 %v10991
    %11018 = vmatprep.subr.mxu0 0.0
    %11019 = vmatpush1.msra.mxu0 %v10992
    %11020 = vmatprep.subr.mxu0 0.0
    %11021 = vmatpush1.msra.mxu0 %v10993
    %11022 = vmatprep.subr.mxu0 0.0
    %11023 = vmatpush1.msra.mxu0 %v10994
    %11024 = vmatprep.subr.mxu0 0.0
    %11025 = vmatpush1.msra.mxu0 %v10995
    %11026 = vmatprep.subr.mxu0 0.0
    %11027 = vmatpush1.msra.mxu0 %v10996
    %11028 = vmatprep.subr.mxu0 0.0
    %11029 = vmatpush1.msra.mxu0 %v10997
    %11030 = vmatprep.subr.mxu0 0.0
    %11031 = vmatpush1.msra.mxu0 %v10998
    %11032 = vmatprep.subr.mxu0 0.0
    %11033 = vmatpush1.msra.mxu0 %v10999
    %11034 = vmatprep.subr.mxu0 0.0
    %11035 = vmatpush1.msra.mxu0 %v11000
    %11036 = vmatprep.subr.mxu0 0.0
    %11037 = vmatpush1.msra.mxu0 %v11001
    %11038 = vmatprep.subr.mxu0 0.0
    %11039 = vmatpush1.msra.mxu0 %v11002
    %11040 = vmatprep.subr.mxu0 0.0
    %11041 = vmatpush1.msra.mxu0 %v11003
    %11042 = vmatprep.subr.mxu0 0.0
    %11043 = vmatpush1.msra.mxu0 %v11004
    %11044 = vmatprep.subr.mxu0 0.0
    %11045 = vmatpush1.msra.mxu0 0.0
    %11046 = vmatprep.subr.mxu0 0.0
    %11047 = vmatpush1.msra.mxu0 0.0
    %11048 = vmatprep.subr.mxu0 0.0
    %11049 = vmatpush1.msra.mxu0 0.0
    %11050 = vmatprep.subr.mxu0 0.0
    %11051 = vmatpush1.msra.mxu0 0.0
    %11052 = vmatprep.subr.mxu0 0.0
    %11053 = vmatpush1.msra.mxu0 0.0
    %11054 = vmatprep.subr.mxu0 0.0
    %11055 = vmatpush1.msra.mxu0 0.0
    %11056 = vmatprep.subr.mxu0 0.0
    %11057 = vmatpush1.msra.mxu0 0.0
    %11058 = vmatprep.subr.mxu0 0.0
    %11059 = vmatpush1.msra.mxu0 0.0
    %11060 = vmatprep.subr.mxu0 0.0
    %11061 = vmatpush1.msra.mxu0 0.0
    %11062 = vmatprep.subr.mxu0 0.0
    %11063 = vmatpush1.msra.mxu0 0.0
    %11064 = vmatprep.subr.mxu0 0.0
    %11065 = vmatpush1.msra.mxu0 0.0
    %11066 = vmatprep.subr.mxu0 0.0
    %11067 = vmatpush1.msra.mxu0 0.0
    %11068 = vmatprep.subr.mxu0 0.0
    %11069 = vmatpush1.msra.mxu0 0.0
    %11070 = vmatprep.subr.mxu0 0.0
    %11071 = vmatpush1.msra.mxu0 0.0
    %11072 = vmatprep.subr.mxu0 0.0
    %11073 = vmatpush1.msra.mxu0 0.0
    %11074 = vmatprep.subr.mxu0 0.0
    %11075 = vmatpush1.msra.mxu0 0.0
    %11076 = vmatprep.mubr.f32.mxu0 0.0
    %11077 = vmatmul.mubr.f32.gmra.mrb[0].mxu0 %v10988
    %v11078 = vpop.f32.mrb[0].mxu0
    %v11079 = vadd.f32 %v11010, %v11078
    %v11080 = vpop.f32.mrb[0].mxu0
    %11081 = vdwg.mxu0
    %vm11082 = vcmask 74752
    %v11083 = vsel %vm11082, %v11079, -inf
    %11084 = vmax.xlane.f32.xlu0 %v11083
    %v11085 = vpop.xlane.xlu0 %11084
    %v11086 = vsub.f32 %v11079, %v11085
    %v11087 = vmul.f32 %v11086, 1.442695
    %v11088 = vpow.pop %v11087
    %v11089 = vsel %vm11082, %v11088, 0.0
    %11090 = vadd.xlane.f32.xlu0 %v11089
    %v11091 = vpop.xlane.xlu0 %11090
    %v11092 = vrcp.pop %v11091
    %v11093 = vmul.f32 %v11088, %v11092
    %11094 = vst.msk [vmem:[#allocation11] sm:$0x3] %vm11082, %v11093
    // Predicated region
    $region50: #{forward.1} parent=1 // pred_check
      _
    $region51: #{forward.1} parent=1 // pred_check_branch
      %11096 = sbr.rel (0) target = $region53
    $region52: #{forward.1} parent=1 // pred_region
      %s11098 = ssub.s32 32, 32
      %11099 = vsyncadd [#allocation10], %s11098
      %s11101 = sshll.u32 [#allocation11], 4
      %s11102 = int_to_ptr.vmem [resolvable:$true] %s11101
      %11104 = dma.vmem_to_hbm [thread:$0]  %s11102, 32, %s11, [#allocation10]
    $region53: #{forward.1} parent=1 // pred_fallthru
      _
    // Predicated region
    $region54: #{forward.1} parent=1 // pred_check
      _
    $region55: #{forward.1} parent=1 // pred_check_branch
      %11106 = sbr.rel (0) target = $region57
    $region56: #{forward.1} parent=1 // pred_region
      %11107 = dma.done [#allocation10], 32
    $region57: #{forward.1} parent=1 // pred_fallthru
      _
    %11108 = vsyncpa [#allocation9], 1
    %11109 = vsyncpa [#allocation10], 1

</llo_original>
